<compile_context>
chip_gen: v7x
topology: tpu7x:2x2x1
jax: 0.10.0
libtpu: 0.0.40
codegen_flags: <defaults>
</compile_context>

<pallas_src>
import jax
import jax.numpy as jnp
from jax.experimental import pallas as pl
from jax.experimental.pallas import tpu as pltpu

EPS = 1e-5
LANE = 128


def residual_block_kernel(x_ref, w1_ref, g1_ref, b1_ref, w2_ref, g2_ref, b2_ref,
                          o_ref, pad_ref, patch_ref):
    """Whole residual block, fully resident in VMEM.

    x_ref    : (N, H, W, Cp)      input, NHWC, channels zero-padded to Cp (f32)
    w1_ref   : (9*Cp, Cp)         conv1 weights in im2col layout (bf16)
    g1/b1    : (1, Cp)            bn1 gamma / beta (zero in padded channels, f32)
    w2_ref   : (9*Cp, Cp)         conv2 weights in im2col layout (bf16)
    g2/b2    : (1, Cp)            bn2 gamma / beta (f32)
    o_ref    : (N, H, W, Cp)      output (f32)
    pad_ref  : (N, H+2, W+2, Cp)  f32 scratch: zero-haloed conv input (reused)
    patch_ref: (N*H*W, 9*Cp)      bf16 scratch: im2col patch matrix (reused)
    """
    N, H, W, Cp = x_ref.shape
    M = N * H * W
    inv_m = 1.0 / M

    # ---- zero ONLY the 1-px halo of the padded scratch (not the interior) ----
    pad_ref[:, 0:1, :, :] = jnp.zeros((N, 1, W + 2, Cp), jnp.float32)
    pad_ref[:, H + 1:H + 2, :, :] = jnp.zeros((N, 1, W + 2, Cp), jnp.float32)
    pad_ref[:, :, 0:1, :] = jnp.zeros((N, H + 2, 1, Cp), jnp.float32)
    pad_ref[:, :, W + 1:W + 2, :] = jnp.zeros((N, H + 2, 1, Cp), jnp.float32)
    # interior <- input (single HBM DMA of x; no pre-padded copy from HBM)
    pad_ref[:, 1:H + 1, 1:W + 1, :] = x_ref[...]

    def conv3x3(w_ref):
        # im2col: 9 taps written as lane-aligned 128-wide bf16 column slabs,
        # then one big (M, 9*Cp) x (9*Cp, Cp) bf16 matmul with f32 accumulation.
        for dh in range(3):
            for dw in range(3):
                t = dh * 3 + dw
                patch_ref[:, t * Cp:(t + 1) * Cp] = (
                    pad_ref[:, dh:dh + H, dw:dw + W, :]
                    .reshape(M, Cp).astype(jnp.bfloat16))
        return jnp.dot(patch_ref[...], w_ref[...],
                       preferred_element_type=jnp.float32)

    def bn_relu(acc, g_ref, b_ref):
        # single-pass batch stats; gamma/beta folded into one scale/shift
        mean = jnp.sum(acc, axis=0, keepdims=True) * inv_m
        meansq = jnp.sum(acc * acc, axis=0, keepdims=True) * inv_m
        var = jnp.maximum(meansq - mean * mean, 0.0)
        scale = g_ref[...] * jax.lax.rsqrt(var + EPS)
        shift = b_ref[...] - mean * scale
        return jnp.maximum(acc * scale + shift, 0.0)

    # ---- conv1 -> bn1 -> relu ----
    h1 = bn_relu(conv3x3(w1_ref), g1_ref, b1_ref)

    # reuse the padded scratch: overwrite interior with h1 (halo stays zero)
    pad_ref[:, 1:H + 1, 1:W + 1, :] = h1.reshape(N, H, W, Cp)

    # ---- conv2 -> bn2 -> relu ----
    h2 = bn_relu(conv3x3(w2_ref), g2_ref, b2_ref)

    # ---- residual add + final relu (skip connection stays f32) ----
    out = jnp.maximum(x_ref[...].reshape(M, Cp) + h2, 0.0)
    o_ref[...] = out.reshape(N, H, W, Cp)


def _compiler_params():
    # VMEM headroom hint (only matters once shapes grow; harmless at test size).
    cls = getattr(pltpu, "CompilerParams", None) or getattr(pltpu, "TPUCompilerParams", None)
    return cls(vmem_limit_bytes=32 * 1024 * 1024) if cls is not None else None


def residual_block(x_nchw, w1, g1, b1, w2, g2, b2):
    """same_shape=True residual block.  x_nchw: (N, C, H, W) float32.
    Conv weights are HWIO = (3, 3, in_ch, out_ch); BatchNorm uses training-mode
    batch statistics (PyTorch nn.BatchNorm2d default forward), eps=1e-5.
    """
    # TODO(synk): same_shape=False branch (stride-2 convs + 1x1 conv3 shortcut) not implemented.
    N, C, H, W = x_nchw.shape
    Cout = w1.shape[-1]
    assert C == w1.shape[2] and Cout == C, "same_shape=True requires Cin == Cout"

    Cp = ((C + LANE - 1) // LANE) * LANE          # lane-dense channel padding
    M = N * H * W

    x = jnp.transpose(x_nchw, (0, 2, 3, 1)).astype(jnp.float32)        # NHWC
    x = jnp.pad(x, ((0, 0), (0, 0), (0, 0), (0, Cp - C)))

    def prep_w(w):  # (3,3,C,C) -> (9*Cp, Cp) bf16, im2col contraction layout
        wp = jnp.pad(w.astype(jnp.float32),
                     ((0, 0), (0, 0), (0, Cp - C), (0, Cp - Cout)))
        return wp.reshape(9 * Cp, Cp).astype(jnp.bfloat16)

    def prep_v(v):  # (C,) -> (1, Cp) f32; padded channels get 0 (stay inert)
        return jnp.pad(v.astype(jnp.float32), (0, Cp - C)).reshape(1, Cp)

    out_nhwc = pl.pallas_call(
        residual_block_kernel,
        out_shape=jax.ShapeDtypeStruct((N, H, W, Cp), jnp.float32),
        scratch_shapes=[
            pltpu.VMEM((N, H + 2, W + 2, Cp), jnp.float32),   # zero-haloed activations
            pltpu.VMEM((M, 9 * Cp), jnp.bfloat16),            # im2col patch matrix
        ],
        compiler_params=_compiler_params(),
    )(x, prep_w(w1), prep_v(g1), prep_v(b1), prep_w(w2), prep_v(g2), prep_v(b2))

    return jnp.transpose(out_nhwc[:, :, :, :C], (0, 3, 1, 2))           # back to NCHW


# ---------------- pure-JAX f32 reference (for verification) ----------------
def _reference_nchw(x_nchw, w1, g1, b1, w2, g2, b2):
    x = jnp.transpose(x_nchw, (0, 2, 3, 1)).astype(jnp.float32)

    def conv(y, w):
        return jax.lax.conv_general_dilated(
            y, w, window_strides=(1, 1), padding=((1, 1), (1, 1)),
            dimension_numbers=("NHWC", "HWIO", "NHWC"),
            precision=jax.lax.Precision.HIGHEST)

    def bn(y, g, b):
        m = jnp.mean(y, axis=(0, 1, 2), keepdims=True)
        v = jnp.mean((y - m) ** 2, axis=(0, 1, 2), keepdims=True)
        return (y - m) * jax.lax.rsqrt(v + EPS) * g + b

    h = jnp.maximum(bn(conv(x, w1), g1, b1), 0.0)
    h = jnp.maximum(bn(conv(h, w2), g2, b2), 0.0)
    out = jnp.maximum(x + h, 0.0)
    return jnp.transpose(out, (0, 3, 1, 2))


if __name__ == "__main__":
    # small shapes: batch=2, channels=4, spatial=16x16 (same_shape=True)
    N, C, H, W = 2, 4, 16, 16
    key = jax.random.PRNGKey(0)
    kx, kw1, kw2 = jax.random.split(key, 3)

    x = jax.random.normal(kx, (N, C, H, W), dtype=jnp.float32)

    # deterministic params: conv weights ~ small normal; BN affine at PyTorch
    # defaults (gamma=1, beta=0)
    w1 = 0.1 * jax.random.normal(kw1, (3, 3, C, C), dtype=jnp.float32)   # HWIO
    w2 = 0.1 * jax.random.normal(kw2, (3, 3, C, C), dtype=jnp.float32)   # HWIO
    g1 = jnp.ones((C,), jnp.float32)
    b1 = jnp.zeros((C,), jnp.float32)
    g2 = jnp.ones((C,), jnp.float32)
    b2 = jnp.zeros((C,), jnp.float32)

    out = jax.block_until_ready(residual_block(x, w1, g1, b1, w2, g2, b2))
    ref = jax.block_until_ready(_reference_nchw(x, w1, g1, b1, w2, g2, b2))

    assert out.shape == (N, C, H, W)
    # tolerance accounts for bf16 MXU operands through two convs + two BN
    # renormalizations (reference is full-f32 HIGHEST-precision conv).
    assert jnp.allclose(out, ref, atol=2e-2, rtol=2e-2), (
        "mismatch vs reference, max abs err = %f"
        % float(jnp.max(jnp.abs(out - ref))))

    print("KERNEL_OK")
</pallas_src>

<mosaic_0001>
module attributes {stable_mosaic.version = 11 : i64} {
  func.func @residual_block_kernel(%arg0: memref<2x16x16x128xf32, #tpu.memory_space<vmem>>, %arg1: memref<1152x128xbf16, #tpu.memory_space<vmem>>, %arg2: memref<1x128xf32, #tpu.memory_space<vmem>>, %arg3: memref<1x128xf32, #tpu.memory_space<vmem>>, %arg4: memref<1152x128xbf16, #tpu.memory_space<vmem>>, %arg5: memref<1x128xf32, #tpu.memory_space<vmem>>, %arg6: memref<1x128xf32, #tpu.memory_space<vmem>>, %arg7: memref<2x16x16x128xf32, #tpu.memory_space<vmem>>, %arg8: memref<2x18x18x128xf32, #tpu.memory_space<vmem>>, %arg9: memref<512x1152xbf16, #tpu.memory_space<vmem>>) attributes {dimension_semantics = [], scalar_prefetch = 0 : i64, scratch_operands = 2 : i64, tpu.core_type = #tpu.core_type<tc>} {
    %cst = arith.constant 0.000000e+00 : f32
    %0 = vector.broadcast %cst : f32 to vector<2x1x18x128xf32>
    %c0 = arith.constant 0 : index
    %c0_0 = arith.constant 0 : index
    %c0_1 = arith.constant 0 : index
    %c0_2 = arith.constant 0 : index
    %1 = vector.load %arg8[%c0, %c0_0, %c0_1, %c0_2] : memref<2x18x18x128xf32, #tpu.memory_space<vmem>>, vector<2x1x18x128xf32>
    tpu.vector_store %arg8[%c0, %c0_0, %c0_1, %c0_2], %0 {strides = array<i32>} : memref<2x18x18x128xf32, #tpu.memory_space<vmem>>, vector<2x1x18x128xf32>,
    %cst_3 = arith.constant 0.000000e+00 : f32
    %2 = vector.broadcast %cst_3 : f32 to vector<2x1x18x128xf32>
    %c0_4 = arith.constant 0 : index
    %c17 = arith.constant 17 : index
    %c0_5 = arith.constant 0 : index
    %c0_6 = arith.constant 0 : index
    %3 = vector.load %arg8[%c0_4, %c17, %c0_5, %c0_6] : memref<2x18x18x128xf32, #tpu.memory_space<vmem>>, vector<2x1x18x128xf32>
    tpu.vector_store %arg8[%c0_4, %c17, %c0_5, %c0_6], %2 {strides = array<i32>} : memref<2x18x18x128xf32, #tpu.memory_space<vmem>>, vector<2x1x18x128xf32>,
    %cst_7 = arith.constant 0.000000e+00 : f32
    %4 = vector.broadcast %cst_7 : f32 to vector<2x18x1x128xf32>
    %c0_8 = arith.constant 0 : index
    %c0_9 = arith.constant 0 : index
    %c0_10 = arith.constant 0 : index
    %c0_11 = arith.constant 0 : index
    %5 = vector.load %arg8[%c0_8, %c0_9, %c0_10, %c0_11] : memref<2x18x18x128xf32, #tpu.memory_space<vmem>>, vector<2x18x1x128xf32>
    tpu.vector_store %arg8[%c0_8, %c0_9, %c0_10, %c0_11], %4 {strides = array<i32>} : memref<2x18x18x128xf32, #tpu.memory_space<vmem>>, vector<2x18x1x128xf32>,
    %cst_12 = arith.constant 0.000000e+00 : f32
    %6 = vector.broadcast %cst_12 : f32 to vector<2x18x1x128xf32>
    %c0_13 = arith.constant 0 : index
    %c0_14 = arith.constant 0 : index
    %c17_15 = arith.constant 17 : index
    %c0_16 = arith.constant 0 : index
    %7 = vector.load %arg8[%c0_13, %c0_14, %c17_15, %c0_16] : memref<2x18x18x128xf32, #tpu.memory_space<vmem>>, vector<2x18x1x128xf32>
    tpu.vector_store %arg8[%c0_13, %c0_14, %c17_15, %c0_16], %6 {strides = array<i32>} : memref<2x18x18x128xf32, #tpu.memory_space<vmem>>, vector<2x18x1x128xf32>,
    %c0_17 = arith.constant 0 : index
    %c0_18 = arith.constant 0 : index
    %c0_19 = arith.constant 0 : index
    %c0_20 = arith.constant 0 : index
    %8 = vector.load %arg0[%c0_17, %c0_18, %c0_19, %c0_20] : memref<2x16x16x128xf32, #tpu.memory_space<vmem>>, vector<2x16x16x128xf32>
    %c0_21 = arith.constant 0 : index
    %c1 = arith.constant 1 : index
    %c1_22 = arith.constant 1 : index
    %c0_23 = arith.constant 0 : index
    %9 = vector.load %arg8[%c0_21, %c1, %c1_22, %c0_23] : memref<2x18x18x128xf32, #tpu.memory_space<vmem>>, vector<2x16x16x128xf32>
    tpu.vector_store %arg8[%c0_21, %c1, %c1_22, %c0_23], %8 {strides = array<i32>} : memref<2x18x18x128xf32, #tpu.memory_space<vmem>>, vector<2x16x16x128xf32>,
    %c0_24 = arith.constant 0 : index
    %c0_25 = arith.constant 0 : index
    %c0_26 = arith.constant 0 : index
    %c0_27 = arith.constant 0 : index
    %10 = vector.load %arg8[%c0_24, %c0_25, %c0_26, %c0_27] : memref<2x18x18x128xf32, #tpu.memory_space<vmem>>, vector<2x16x16x128xf32>
    %11 = vector.shape_cast %10 : vector<2x16x16x128xf32> to vector<512x128xf32>
    %12 = arith.truncf %11 : vector<512x128xf32> to vector<512x128xbf16>
    %c0_28 = arith.constant 0 : index
    %c0_29 = arith.constant 0 : index
    %13 = vector.load %arg9[%c0_28, %c0_29] : memref<512x1152xbf16, #tpu.memory_space<vmem>>, vector<512x128xbf16>
    tpu.vector_store %arg9[%c0_28, %c0_29], %12 {strides = array<i32>} : memref<512x1152xbf16, #tpu.memory_space<vmem>>, vector<512x128xbf16>,
    %c0_30 = arith.constant 0 : index
    %c0_31 = arith.constant 0 : index
    %c1_32 = arith.constant 1 : index
    %c0_33 = arith.constant 0 : index
    %14 = vector.load %arg8[%c0_30, %c0_31, %c1_32, %c0_33] : memref<2x18x18x128xf32, #tpu.memory_space<vmem>>, vector<2x16x16x128xf32>
    %15 = vector.shape_cast %14 : vector<2x16x16x128xf32> to vector<512x128xf32>
    %16 = arith.truncf %15 : vector<512x128xf32> to vector<512x128xbf16>
    %c0_34 = arith.constant 0 : index
    %c128 = arith.constant 128 : index
    %17 = vector.load %arg9[%c0_34, %c128] : memref<512x1152xbf16, #tpu.memory_space<vmem>>, vector<512x128xbf16>
    tpu.vector_store %arg9[%c0_34, %c128], %16 {strides = array<i32>} : memref<512x1152xbf16, #tpu.memory_space<vmem>>, vector<512x128xbf16>,
    %c0_35 = arith.constant 0 : index
    %c0_36 = arith.constant 0 : index
    %c2 = arith.constant 2 : index
    %c0_37 = arith.constant 0 : index
    %18 = vector.load %arg8[%c0_35, %c0_36, %c2, %c0_37] : memref<2x18x18x128xf32, #tpu.memory_space<vmem>>, vector<2x16x16x128xf32>
    %19 = vector.shape_cast %18 : vector<2x16x16x128xf32> to vector<512x128xf32>
    %20 = arith.truncf %19 : vector<512x128xf32> to vector<512x128xbf16>
    %c0_38 = arith.constant 0 : index
    %c256 = arith.constant 256 : index
    %21 = vector.load %arg9[%c0_38, %c256] : memref<512x1152xbf16, #tpu.memory_space<vmem>>, vector<512x128xbf16>
    tpu.vector_store %arg9[%c0_38, %c256], %20 {strides = array<i32>} : memref<512x1152xbf16, #tpu.memory_space<vmem>>, vector<512x128xbf16>,
    %c0_39 = arith.constant 0 : index
    %c1_40 = arith.constant 1 : index
    %c0_41 = arith.constant 0 : index
    %c0_42 = arith.constant 0 : index
    %22 = vector.load %arg8[%c0_39, %c1_40, %c0_41, %c0_42] : memref<2x18x18x128xf32, #tpu.memory_space<vmem>>, vector<2x16x16x128xf32>
    %23 = vector.shape_cast %22 : vector<2x16x16x128xf32> to vector<512x128xf32>
    %24 = arith.truncf %23 : vector<512x128xf32> to vector<512x128xbf16>
    %c0_43 = arith.constant 0 : index
    %c384 = arith.constant 384 : index
    %25 = vector.load %arg9[%c0_43, %c384] : memref<512x1152xbf16, #tpu.memory_space<vmem>>, vector<512x128xbf16>
    tpu.vector_store %arg9[%c0_43, %c384], %24 {strides = array<i32>} : memref<512x1152xbf16, #tpu.memory_space<vmem>>, vector<512x128xbf16>,
    %c0_44 = arith.constant 0 : index
    %c1_45 = arith.constant 1 : index
    %c1_46 = arith.constant 1 : index
    %c0_47 = arith.constant 0 : index
    %26 = vector.load %arg8[%c0_44, %c1_45, %c1_46, %c0_47] : memref<2x18x18x128xf32, #tpu.memory_space<vmem>>, vector<2x16x16x128xf32>
    %27 = vector.shape_cast %26 : vector<2x16x16x128xf32> to vector<512x128xf32>
    %28 = arith.truncf %27 : vector<512x128xf32> to vector<512x128xbf16>
    %c0_48 = arith.constant 0 : index
    %c512 = arith.constant 512 : index
    %29 = vector.load %arg9[%c0_48, %c512] : memref<512x1152xbf16, #tpu.memory_space<vmem>>, vector<512x128xbf16>
    tpu.vector_store %arg9[%c0_48, %c512], %28 {strides = array<i32>} : memref<512x1152xbf16, #tpu.memory_space<vmem>>, vector<512x128xbf16>,
    %c0_49 = arith.constant 0 : index
    %c1_50 = arith.constant 1 : index
    %c2_51 = arith.constant 2 : index
    %c0_52 = arith.constant 0 : index
    %30 = vector.load %arg8[%c0_49, %c1_50, %c2_51, %c0_52] : memref<2x18x18x128xf32, #tpu.memory_space<vmem>>, vector<2x16x16x128xf32>
    %31 = vector.shape_cast %30 : vector<2x16x16x128xf32> to vector<512x128xf32>
    %32 = arith.truncf %31 : vector<512x128xf32> to vector<512x128xbf16>
    %c0_53 = arith.constant 0 : index
    %c640 = arith.constant 640 : index
    %33 = vector.load %arg9[%c0_53, %c640] : memref<512x1152xbf16, #tpu.memory_space<vmem>>, vector<512x128xbf16>
    tpu.vector_store %arg9[%c0_53, %c640], %32 {strides = array<i32>} : memref<512x1152xbf16, #tpu.memory_space<vmem>>, vector<512x128xbf16>,
    %c0_54 = arith.constant 0 : index
    %c2_55 = arith.constant 2 : index
    %c0_56 = arith.constant 0 : index
    %c0_57 = arith.constant 0 : index
    %34 = vector.load %arg8[%c0_54, %c2_55, %c0_56, %c0_57] : memref<2x18x18x128xf32, #tpu.memory_space<vmem>>, vector<2x16x16x128xf32>
    %35 = vector.shape_cast %34 : vector<2x16x16x128xf32> to vector<512x128xf32>
    %36 = arith.truncf %35 : vector<512x128xf32> to vector<512x128xbf16>
    %c0_58 = arith.constant 0 : index
    %c768 = arith.constant 768 : index
    %37 = vector.load %arg9[%c0_58, %c768] : memref<512x1152xbf16, #tpu.memory_space<vmem>>, vector<512x128xbf16>
    tpu.vector_store %arg9[%c0_58, %c768], %36 {strides = array<i32>} : memref<512x1152xbf16, #tpu.memory_space<vmem>>, vector<512x128xbf16>,
    %c0_59 = arith.constant 0 : index
    %c2_60 = arith.constant 2 : index
    %c1_61 = arith.constant 1 : index
    %c0_62 = arith.constant 0 : index
    %38 = vector.load %arg8[%c0_59, %c2_60, %c1_61, %c0_62] : memref<2x18x18x128xf32, #tpu.memory_space<vmem>>, vector<2x16x16x128xf32>
    %39 = vector.shape_cast %38 : vector<2x16x16x128xf32> to vector<512x128xf32>
    %40 = arith.truncf %39 : vector<512x128xf32> to vector<512x128xbf16>
    %c0_63 = arith.constant 0 : index
    %c896 = arith.constant 896 : index
    %41 = vector.load %arg9[%c0_63, %c896] : memref<512x1152xbf16, #tpu.memory_space<vmem>>, vector<512x128xbf16>
    tpu.vector_store %arg9[%c0_63, %c896], %40 {strides = array<i32>} : memref<512x1152xbf16, #tpu.memory_space<vmem>>, vector<512x128xbf16>,
    %c0_64 = arith.constant 0 : index
    %c2_65 = arith.constant 2 : index
    %c2_66 = arith.constant 2 : index
    %c0_67 = arith.constant 0 : index
    %42 = vector.load %arg8[%c0_64, %c2_65, %c2_66, %c0_67] : memref<2x18x18x128xf32, #tpu.memory_space<vmem>>, vector<2x16x16x128xf32>
    %43 = vector.shape_cast %42 : vector<2x16x16x128xf32> to vector<512x128xf32>
    %44 = arith.truncf %43 : vector<512x128xf32> to vector<512x128xbf16>
    %c0_68 = arith.constant 0 : index
    %c1024 = arith.constant 1024 : index
    %45 = vector.load %arg9[%c0_68, %c1024] : memref<512x1152xbf16, #tpu.memory_space<vmem>>, vector<512x128xbf16>
    tpu.vector_store %arg9[%c0_68, %c1024], %44 {strides = array<i32>} : memref<512x1152xbf16, #tpu.memory_space<vmem>>, vector<512x128xbf16>,
    %c0_69 = arith.constant 0 : index
    %c0_70 = arith.constant 0 : index
    %46 = vector.load %arg9[%c0_69, %c0_70] : memref<512x1152xbf16, #tpu.memory_space<vmem>>, vector<512x1152xbf16>
    %c0_71 = arith.constant 0 : index
    %c0_72 = arith.constant 0 : index
    %47 = vector.load %arg1[%c0_71, %c0_72] : memref<1152x128xbf16, #tpu.memory_space<vmem>>, vector<1152x128xbf16>
    %cst_73 = arith.constant dense<0.000000e+00> : vector<512x128xf32>
    %48 = tpu.matmul %46, %47, %cst_73 {dimension_numbers = #tpu.dot_dimension_numbers<[1], [0], [0], [1], [0, 0, 1, 1], [], []>} : vector<512x1152xbf16>, vector<1152x128xbf16>, vector<512x128xf32> -> vector<512x128xf32>
    %cst_74 = arith.constant dense<0.000000e+00> : vector<128xf32>
    %49 = vector.multi_reduction <add>, %48, %cst_74 [0] : vector<512x128xf32> to vector<128xf32>
    %50 = vector.shape_cast %49 : vector<128xf32> to vector<1x128xf32>
    %cst_75 = arith.constant 0.001953125 : f32
    %51 = vector.broadcast %cst_75 : f32 to vector<1x128xf32>
    %52 = arith.mulf %50, %51 : vector<1x128xf32>
    %53 = arith.mulf %48, %48 : vector<512x128xf32>
    %cst_76 = arith.constant dense<0.000000e+00> : vector<128xf32>
    %54 = vector.multi_reduction <add>, %53, %cst_76 [0] : vector<512x128xf32> to vector<128xf32>
    %55 = vector.shape_cast %54 : vector<128xf32> to vector<1x128xf32>
    %cst_77 = arith.constant 0.001953125 : f32
    %56 = vector.broadcast %cst_77 : f32 to vector<1x128xf32>
    %57 = arith.mulf %55, %56 : vector<1x128xf32>
    %58 = arith.mulf %52, %52 : vector<1x128xf32>
    %59 = arith.subf %57, %58 : vector<1x128xf32>
    %cst_78 = arith.constant 0.000000e+00 : f32
    %60 = vector.broadcast %cst_78 : f32 to vector<1x128xf32>
    %61 = arith.maximumf %59, %60 : vector<1x128xf32>
    %c0_79 = arith.constant 0 : index
    %c0_80 = arith.constant 0 : index
    %62 = vector.load %arg2[%c0_79, %c0_80] : memref<1x128xf32, #tpu.memory_space<vmem>>, vector<1x128xf32>
    %cst_81 = arith.constant 9.99999974E-6 : f32
    %63 = vector.broadcast %cst_81 : f32 to vector<1x128xf32>
    %64 = arith.addf %61, %63 : vector<1x128xf32>
    %65 = math.rsqrt %64 : vector<1x128xf32>
    %66 = arith.mulf %62, %65 : vector<1x128xf32>
    %c0_82 = arith.constant 0 : index
    %c0_83 = arith.constant 0 : index
    %67 = vector.load %arg3[%c0_82, %c0_83] : memref<1x128xf32, #tpu.memory_space<vmem>>, vector<1x128xf32>
    %68 = arith.mulf %52, %66 : vector<1x128xf32>
    %69 = arith.subf %67, %68 : vector<1x128xf32>
    %70 = vector.broadcast %66 : vector<1x128xf32> to vector<512x128xf32>
    %71 = arith.mulf %48, %70 : vector<512x128xf32>
    %72 = vector.broadcast %69 : vector<1x128xf32> to vector<512x128xf32>
    %73 = arith.addf %71, %72 : vector<512x128xf32>
    %cst_84 = arith.constant 0.000000e+00 : f32
    %74 = vector.broadcast %cst_84 : f32 to vector<512x128xf32>
    %75 = arith.maximumf %73, %74 : vector<512x128xf32>
    %76 = vector.shape_cast %75 : vector<512x128xf32> to vector<2x16x16x128xf32>
    %c0_85 = arith.constant 0 : index
    %c1_86 = arith.constant 1 : index
    %c1_87 = arith.constant 1 : index
    %c0_88 = arith.constant 0 : index
    %77 = vector.load %arg8[%c0_85, %c1_86, %c1_87, %c0_88] : memref<2x18x18x128xf32, #tpu.memory_space<vmem>>, vector<2x16x16x128xf32>
    tpu.vector_store %arg8[%c0_85, %c1_86, %c1_87, %c0_88], %76 {strides = array<i32>} : memref<2x18x18x128xf32, #tpu.memory_space<vmem>>, vector<2x16x16x128xf32>,
    %c0_89 = arith.constant 0 : index
    %c0_90 = arith.constant 0 : index
    %c0_91 = arith.constant 0 : index
    %c0_92 = arith.constant 0 : index
    %78 = vector.load %arg8[%c0_89, %c0_90, %c0_91, %c0_92] : memref<2x18x18x128xf32, #tpu.memory_space<vmem>>, vector<2x16x16x128xf32>
    %79 = vector.shape_cast %78 : vector<2x16x16x128xf32> to vector<512x128xf32>
    %80 = arith.truncf %79 : vector<512x128xf32> to vector<512x128xbf16>
    %c0_93 = arith.constant 0 : index
    %c0_94 = arith.constant 0 : index
    %81 = vector.load %arg9[%c0_93, %c0_94] : memref<512x1152xbf16, #tpu.memory_space<vmem>>, vector<512x128xbf16>
    tpu.vector_store %arg9[%c0_93, %c0_94], %80 {strides = array<i32>} : memref<512x1152xbf16, #tpu.memory_space<vmem>>, vector<512x128xbf16>,
    %c0_95 = arith.constant 0 : index
    %c0_96 = arith.constant 0 : index
    %c1_97 = arith.constant 1 : index
    %c0_98 = arith.constant 0 : index
    %82 = vector.load %arg8[%c0_95, %c0_96, %c1_97, %c0_98] : memref<2x18x18x128xf32, #tpu.memory_space<vmem>>, vector<2x16x16x128xf32>
    %83 = vector.shape_cast %82 : vector<2x16x16x128xf32> to vector<512x128xf32>
    %84 = arith.truncf %83 : vector<512x128xf32> to vector<512x128xbf16>
    %c0_99 = arith.constant 0 : index
    %c128_100 = arith.constant 128 : index
    %85 = vector.load %arg9[%c0_99, %c128_100] : memref<512x1152xbf16, #tpu.memory_space<vmem>>, vector<512x128xbf16>
    tpu.vector_store %arg9[%c0_99, %c128_100], %84 {strides = array<i32>} : memref<512x1152xbf16, #tpu.memory_space<vmem>>, vector<512x128xbf16>,
    %c0_101 = arith.constant 0 : index
    %c0_102 = arith.constant 0 : index
    %c2_103 = arith.constant 2 : index
    %c0_104 = arith.constant 0 : index
    %86 = vector.load %arg8[%c0_101, %c0_102, %c2_103, %c0_104] : memref<2x18x18x128xf32, #tpu.memory_space<vmem>>, vector<2x16x16x128xf32>
    %87 = vector.shape_cast %86 : vector<2x16x16x128xf32> to vector<512x128xf32>
    %88 = arith.truncf %87 : vector<512x128xf32> to vector<512x128xbf16>
    %c0_105 = arith.constant 0 : index
    %c256_106 = arith.constant 256 : index
    %89 = vector.load %arg9[%c0_105, %c256_106] : memref<512x1152xbf16, #tpu.memory_space<vmem>>, vector<512x128xbf16>
    tpu.vector_store %arg9[%c0_105, %c256_106], %88 {strides = array<i32>} : memref<512x1152xbf16, #tpu.memory_space<vmem>>, vector<512x128xbf16>,
    %c0_107 = arith.constant 0 : index
    %c1_108 = arith.constant 1 : index
    %c0_109 = arith.constant 0 : index
    %c0_110 = arith.constant 0 : index
    %90 = vector.load %arg8[%c0_107, %c1_108, %c0_109, %c0_110] : memref<2x18x18x128xf32, #tpu.memory_space<vmem>>, vector<2x16x16x128xf32>
    %91 = vector.shape_cast %90 : vector<2x16x16x128xf32> to vector<512x128xf32>
    %92 = arith.truncf %91 : vector<512x128xf32> to vector<512x128xbf16>
    %c0_111 = arith.constant 0 : index
    %c384_112 = arith.constant 384 : index
    %93 = vector.load %arg9[%c0_111, %c384_112] : memref<512x1152xbf16, #tpu.memory_space<vmem>>, vector<512x128xbf16>
    tpu.vector_store %arg9[%c0_111, %c384_112], %92 {strides = array<i32>} : memref<512x1152xbf16, #tpu.memory_space<vmem>>, vector<512x128xbf16>,
    %c0_113 = arith.constant 0 : index
    %c1_114 = arith.constant 1 : index
    %c1_115 = arith.constant 1 : index
    %c0_116 = arith.constant 0 : index
    %94 = vector.load %arg8[%c0_113, %c1_114, %c1_115, %c0_116] : memref<2x18x18x128xf32, #tpu.memory_space<vmem>>, vector<2x16x16x128xf32>
    %95 = vector.shape_cast %94 : vector<2x16x16x128xf32> to vector<512x128xf32>
    %96 = arith.truncf %95 : vector<512x128xf32> to vector<512x128xbf16>
    %c0_117 = arith.constant 0 : index
    %c512_118 = arith.constant 512 : index
    %97 = vector.load %arg9[%c0_117, %c512_118] : memref<512x1152xbf16, #tpu.memory_space<vmem>>, vector<512x128xbf16>
    tpu.vector_store %arg9[%c0_117, %c512_118], %96 {strides = array<i32>} : memref<512x1152xbf16, #tpu.memory_space<vmem>>, vector<512x128xbf16>,
    %c0_119 = arith.constant 0 : index
    %c1_120 = arith.constant 1 : index
    %c2_121 = arith.constant 2 : index
    %c0_122 = arith.constant 0 : index
    %98 = vector.load %arg8[%c0_119, %c1_120, %c2_121, %c0_122] : memref<2x18x18x128xf32, #tpu.memory_space<vmem>>, vector<2x16x16x128xf32>
    %99 = vector.shape_cast %98 : vector<2x16x16x128xf32> to vector<512x128xf32>
    %100 = arith.truncf %99 : vector<512x128xf32> to vector<512x128xbf16>
    %c0_123 = arith.constant 0 : index
    %c640_124 = arith.constant 640 : index
    %101 = vector.load %arg9[%c0_123, %c640_124] : memref<512x1152xbf16, #tpu.memory_space<vmem>>, vector<512x128xbf16>
    tpu.vector_store %arg9[%c0_123, %c640_124], %100 {strides = array<i32>} : memref<512x1152xbf16, #tpu.memory_space<vmem>>, vector<512x128xbf16>,
    %c0_125 = arith.constant 0 : index
    %c2_126 = arith.constant 2 : index
    %c0_127 = arith.constant 0 : index
    %c0_128 = arith.constant 0 : index
    %102 = vector.load %arg8[%c0_125, %c2_126, %c0_127, %c0_128] : memref<2x18x18x128xf32, #tpu.memory_space<vmem>>, vector<2x16x16x128xf32>
    %103 = vector.shape_cast %102 : vector<2x16x16x128xf32> to vector<512x128xf32>
    %104 = arith.truncf %103 : vector<512x128xf32> to vector<512x128xbf16>
    %c0_129 = arith.constant 0 : index
    %c768_130 = arith.constant 768 : index
    %105 = vector.load %arg9[%c0_129, %c768_130] : memref<512x1152xbf16, #tpu.memory_space<vmem>>, vector<512x128xbf16>
    tpu.vector_store %arg9[%c0_129, %c768_130], %104 {strides = array<i32>} : memref<512x1152xbf16, #tpu.memory_space<vmem>>, vector<512x128xbf16>,
    %c0_131 = arith.constant 0 : index
    %c2_132 = arith.constant 2 : index
    %c1_133 = arith.constant 1 : index
    %c0_134 = arith.constant 0 : index
    %106 = vector.load %arg8[%c0_131, %c2_132, %c1_133, %c0_134] : memref<2x18x18x128xf32, #tpu.memory_space<vmem>>, vector<2x16x16x128xf32>
    %107 = vector.shape_cast %106 : vector<2x16x16x128xf32> to vector<512x128xf32>
    %108 = arith.truncf %107 : vector<512x128xf32> to vector<512x128xbf16>
    %c0_135 = arith.constant 0 : index
    %c896_136 = arith.constant 896 : index
    %109 = vector.load %arg9[%c0_135, %c896_136] : memref<512x1152xbf16, #tpu.memory_space<vmem>>, vector<512x128xbf16>
    tpu.vector_store %arg9[%c0_135, %c896_136], %108 {strides = array<i32>} : memref<512x1152xbf16, #tpu.memory_space<vmem>>, vector<512x128xbf16>,
    %c0_137 = arith.constant 0 : index
    %c2_138 = arith.constant 2 : index
    %c2_139 = arith.constant 2 : index
    %c0_140 = arith.constant 0 : index
    %110 = vector.load %arg8[%c0_137, %c2_138, %c2_139, %c0_140] : memref<2x18x18x128xf32, #tpu.memory_space<vmem>>, vector<2x16x16x128xf32>
    %111 = vector.shape_cast %110 : vector<2x16x16x128xf32> to vector<512x128xf32>
    %112 = arith.truncf %111 : vector<512x128xf32> to vector<512x128xbf16>
    %c0_141 = arith.constant 0 : index
    %c1024_142 = arith.constant 1024 : index
    %113 = vector.load %arg9[%c0_141, %c1024_142] : memref<512x1152xbf16, #tpu.memory_space<vmem>>, vector<512x128xbf16>
    tpu.vector_store %arg9[%c0_141, %c1024_142], %112 {strides = array<i32>} : memref<512x1152xbf16, #tpu.memory_space<vmem>>, vector<512x128xbf16>,
    %c0_143 = arith.constant 0 : index
    %c0_144 = arith.constant 0 : index
    %114 = vector.load %arg9[%c0_143, %c0_144] : memref<512x1152xbf16, #tpu.memory_space<vmem>>, vector<512x1152xbf16>
    %c0_145 = arith.constant 0 : index
    %c0_146 = arith.constant 0 : index
    %115 = vector.load %arg4[%c0_145, %c0_146] : memref<1152x128xbf16, #tpu.memory_space<vmem>>, vector<1152x128xbf16>
    %cst_147 = arith.constant dense<0.000000e+00> : vector<512x128xf32>
    %116 = tpu.matmul %114, %115, %cst_147 {dimension_numbers = #tpu.dot_dimension_numbers<[1], [0], [0], [1], [0, 0, 1, 1], [], []>} : vector<512x1152xbf16>, vector<1152x128xbf16>, vector<512x128xf32> -> vector<512x128xf32>
    %cst_148 = arith.constant dense<0.000000e+00> : vector<128xf32>
    %117 = vector.multi_reduction <add>, %116, %cst_148 [0] : vector<512x128xf32> to vector<128xf32>
    %118 = vector.shape_cast %117 : vector<128xf32> to vector<1x128xf32>
    %cst_149 = arith.constant 0.001953125 : f32
    %119 = vector.broadcast %cst_149 : f32 to vector<1x128xf32>
    %120 = arith.mulf %118, %119 : vector<1x128xf32>
    %121 = arith.mulf %116, %116 : vector<512x128xf32>
    %cst_150 = arith.constant dense<0.000000e+00> : vector<128xf32>
    %122 = vector.multi_reduction <add>, %121, %cst_150 [0] : vector<512x128xf32> to vector<128xf32>
    %123 = vector.shape_cast %122 : vector<128xf32> to vector<1x128xf32>
    %cst_151 = arith.constant 0.001953125 : f32
    %124 = vector.broadcast %cst_151 : f32 to vector<1x128xf32>
    %125 = arith.mulf %123, %124 : vector<1x128xf32>
    %126 = arith.mulf %120, %120 : vector<1x128xf32>
    %127 = arith.subf %125, %126 : vector<1x128xf32>
    %cst_152 = arith.constant 0.000000e+00 : f32
    %128 = vector.broadcast %cst_152 : f32 to vector<1x128xf32>
    %129 = arith.maximumf %127, %128 : vector<1x128xf32>
    %c0_153 = arith.constant 0 : index
    %c0_154 = arith.constant 0 : index
    %130 = vector.load %arg5[%c0_153, %c0_154] : memref<1x128xf32, #tpu.memory_space<vmem>>, vector<1x128xf32>
    %cst_155 = arith.constant 9.99999974E-6 : f32
    %131 = vector.broadcast %cst_155 : f32 to vector<1x128xf32>
    %132 = arith.addf %129, %131 : vector<1x128xf32>
    %133 = math.rsqrt %132 : vector<1x128xf32>
    %134 = arith.mulf %130, %133 : vector<1x128xf32>
    %c0_156 = arith.constant 0 : index
    %c0_157 = arith.constant 0 : index
    %135 = vector.load %arg6[%c0_156, %c0_157] : memref<1x128xf32, #tpu.memory_space<vmem>>, vector<1x128xf32>
    %136 = arith.mulf %120, %134 : vector<1x128xf32>
    %137 = arith.subf %135, %136 : vector<1x128xf32>
    %138 = vector.broadcast %134 : vector<1x128xf32> to vector<512x128xf32>
    %139 = arith.mulf %116, %138 : vector<512x128xf32>
    %140 = vector.broadcast %137 : vector<1x128xf32> to vector<512x128xf32>
    %141 = arith.addf %139, %140 : vector<512x128xf32>
    %cst_158 = arith.constant 0.000000e+00 : f32
    %142 = vector.broadcast %cst_158 : f32 to vector<512x128xf32>
    %143 = arith.maximumf %141, %142 : vector<512x128xf32>
    %c0_159 = arith.constant 0 : index
    %c0_160 = arith.constant 0 : index
    %c0_161 = arith.constant 0 : index
    %c0_162 = arith.constant 0 : index
    %144 = vector.load %arg0[%c0_159, %c0_160, %c0_161, %c0_162] : memref<2x16x16x128xf32, #tpu.memory_space<vmem>>, vector<2x16x16x128xf32>
    %145 = vector.shape_cast %144 : vector<2x16x16x128xf32> to vector<512x128xf32>
    %146 = arith.addf %145, %143 : vector<512x128xf32>
    %cst_163 = arith.constant 0.000000e+00 : f32
    %147 = vector.broadcast %cst_163 : f32 to vector<512x128xf32>
    %148 = arith.maximumf %146, %147 : vector<512x128xf32>
    %149 = vector.shape_cast %148 : vector<512x128xf32> to vector<2x16x16x128xf32>
    %c0_164 = arith.constant 0 : index
    %c0_165 = arith.constant 0 : index
    %c0_166 = arith.constant 0 : index
    %c0_167 = arith.constant 0 : index
    %150 = vector.load %arg7[%c0_164, %c0_165, %c0_166, %c0_167] : memref<2x16x16x128xf32, #tpu.memory_space<vmem>>, vector<2x16x16x128xf32>
    tpu.vector_store %arg7[%c0_164, %c0_165, %c0_166, %c0_167], %149 {strides = array<i32>} : memref<2x16x16x128xf32, #tpu.memory_space<vmem>>, vector<2x16x16x128xf32>,
    return
  }
}

</mosaic_0001>

<llo_original>
// kernel: tpu_custom_call.1
$region0: #{tpu_custom_call.1}
  #allocation0 [shape = 'u32[]', space=smem, size = 0x4, offset = 0x4, fixed_abs, tag = 'smem constant byte address 0x4 - core index']
  #allocation1 [shape = 'u32[144,128]{1,0:T(1,128)}', space=vmem, size = 0x12000, scoped, tag = 'internal scratch']
  #allocation2 [shape = 'f32[2,18,18,128]{3,2,1,0:T(8,128)}', space=vmem, size = 0x6c000, scoped, tag = 'scratch operand']
  #allocation3 [shape = 'bf16[512,1152]{1,0:T(16,128)(2,1)}', space=vmem, size = 0x120000, scoped, tag = 'scratch operand']
  %s0 = inlined_call_operand.hbm [shape: f32[2,16,16,128], index: 0, kind: input, shape index: {}]
  %s1 = inlined_call_operand.hbm [shape: bf16[1152,128], index: 1, kind: input, shape index: {}]
  %s2 = inlined_call_operand.vmem [shape: f32[1,128], index: 2, kind: input, shape index: {}]
  %s3 = inlined_call_operand.vmem [shape: f32[1,128], index: 3, kind: input, shape index: {}]
  %s4 = inlined_call_operand.hbm [shape: bf16[1152,128], index: 4, kind: input, shape index: {}]
  %s5 = inlined_call_operand.vmem [shape: f32[1,128], index: 5, kind: input, shape index: {}]
  %s6 = inlined_call_operand.vmem [shape: f32[1,128], index: 6, kind: input, shape index: {}]
  %s7 = inlined_call_operand.hbm [shape: f32[2,16,16,128], index: 7, kind: output, shape index: {}]
  %s8 = sld [smem:[#allocation0]]
  $region50: #{tpu_custom_call.1} parent=0
    _
  %s10 = ssub.s32 1, %s8
  %s11 = scalar_select 0, %s10, %s8
  $region1: #{tpu_custom_call.1} parent=0
    #allocation4 [shape = 'u8[262144]{0}', space=vmem, size = 0x40000, scoped, tag = 'input window, operand 0, single buffered']
    #allocation5 [shape = 's32[1]{0}', space=sflag, size = 0x4, scoped, tag = 'scoped memory for tpu_custom_call.1']
    #allocation6 [shape = 's32[1]{0}', space=sflag, size = 0x4, scoped, tag = 'scoped memory for tpu_custom_call.1']
    #allocation7 [shape = 'u8[294912]{0}', space=vmem, size = 0x48000, scoped, tag = 'input window, operand 1, single buffered']
    #allocation8 [shape = 's32[1]{0}', space=sflag, size = 0x4, scoped, tag = 'scoped memory for tpu_custom_call.1']
    #allocation9 [shape = 'u8[294912]{0}', space=vmem, size = 0x48000, scoped, tag = 'input window, operand 4, single buffered']
    #allocation10 [shape = 'u8[262144]{0}', space=vmem, size = 0x40000, scoped, tag = 'output window, operand 0, single buffered']
    %12 = vsyncpa [#allocation5], 0
    %13 = vsyncpa [#allocation8], 0
    %14 = vsyncpa [#allocation6], 0
    // Predicated region
    $region2: #{tpu_custom_call.1} parent=1 // pred_check
      _
    $region3: #{tpu_custom_call.1} parent=1 // pred_check_branch
      %16 = sbr.rel (0) target = $region5
    $region4: #{tpu_custom_call.1} parent=1 // pred_region
      %s18 = ssub.s32 8192, 8192
      %19 = vsyncadd [#allocation5], %s18
      %s20 = sshll.u32 [#allocation4], 4
      %s21 = int_to_ptr.vmem [resolvable:$true] %s20
      %26 = dma.hbm_to_vmem [thread:$0]  %s0, 8192, %s21, [#allocation5], 128, 128, 8
    $region5: #{tpu_custom_call.1} parent=1 // pred_fallthru
      _
    // Predicated region
    $region6: #{tpu_custom_call.1} parent=1 // pred_check
      _
    $region7: #{tpu_custom_call.1} parent=1 // pred_check_branch
      %28 = sbr.rel (0) target = $region9
    $region8: #{tpu_custom_call.1} parent=1 // pred_region
      %s30 = ssub.s32 9216, 9216
      %31 = vsyncadd [#allocation8], %s30
      %s32 = sshll.u32 [#allocation7], 4
      %s33 = int_to_ptr.vmem [resolvable:$true] %s32
      %38 = dma.hbm_to_vmem [thread:$0]  %s1, 9216, %s33, [#allocation8], 64, 64, 4
    $region9: #{tpu_custom_call.1} parent=1 // pred_fallthru
      _
    // Predicated region
    $region10: #{tpu_custom_call.1} parent=1 // pred_check
      _
    $region11: #{tpu_custom_call.1} parent=1 // pred_check_branch
      %40 = sbr.rel (0) target = $region13
    $region12: #{tpu_custom_call.1} parent=1 // pred_region
      _
    $region13: #{tpu_custom_call.1} parent=1 // pred_fallthru
      _
    // Predicated region
    $region14: #{tpu_custom_call.1} parent=1 // pred_check
      _
    $region15: #{tpu_custom_call.1} parent=1 // pred_check_branch
      %42 = sbr.rel (0) target = $region17
    $region16: #{tpu_custom_call.1} parent=1 // pred_region
      _
    $region17: #{tpu_custom_call.1} parent=1 // pred_fallthru
      _
    // Predicated region
    $region18: #{tpu_custom_call.1} parent=1 // pred_check
      _
    $region19: #{tpu_custom_call.1} parent=1 // pred_check_branch
      %44 = sbr.rel (0) target = $region21
    $region20: #{tpu_custom_call.1} parent=1 // pred_region
      %s46 = ssub.s32 9216, 9216
      %47 = vsyncadd [#allocation8], %s46
      %s48 = sshll.u32 [#allocation9], 4
      %s49 = int_to_ptr.vmem [resolvable:$true] %s48
      %54 = dma.hbm_to_vmem [thread:$0]  %s4, 9216, %s49, [#allocation8], 64, 64, 4
    $region21: #{tpu_custom_call.1} parent=1 // pred_fallthru
      _
    // Predicated region
    $region22: #{tpu_custom_call.1} parent=1 // pred_check
      _
    $region23: #{tpu_custom_call.1} parent=1 // pred_check_branch
      %56 = sbr.rel (0) target = $region25
    $region24: #{tpu_custom_call.1} parent=1 // pred_region
      _
    $region25: #{tpu_custom_call.1} parent=1 // pred_fallthru
      _
    // Predicated region
    $region26: #{tpu_custom_call.1} parent=1 // pred_check
      _
    $region27: #{tpu_custom_call.1} parent=1 // pred_check_branch
      %58 = sbr.rel (0) target = $region29
    $region28: #{tpu_custom_call.1} parent=1 // pred_region
      _
    $region29: #{tpu_custom_call.1} parent=1 // pred_fallthru
      _
    // Predicated region
    $region30: #{tpu_custom_call.1} parent=1 // pred_check
      _
    $region31: #{tpu_custom_call.1} parent=1 // pred_check_branch
      %60 = sbr.rel (0) target = $region33
    $region32: #{tpu_custom_call.1} parent=1 // pred_region
      %61 = dma.done [#allocation5], 8192
    $region33: #{tpu_custom_call.1} parent=1 // pred_fallthru
      _
    // Predicated region
    $region34: #{tpu_custom_call.1} parent=1 // pred_check
      _
    $region35: #{tpu_custom_call.1} parent=1 // pred_check_branch
      %63 = sbr.rel (0) target = $region37
    $region36: #{tpu_custom_call.1} parent=1 // pred_region
      %64 = dma.done [#allocation8], 9216
    $region37: #{tpu_custom_call.1} parent=1 // pred_fallthru
      _
    // Predicated region
    $region38: #{tpu_custom_call.1} parent=1 // pred_check
      _
    $region39: #{tpu_custom_call.1} parent=1 // pred_check_branch
      %66 = sbr.rel (0) target = $region41
    $region40: #{tpu_custom_call.1} parent=1 // pred_region
      %67 = dma.done [#allocation8], 9216
    $region41: #{tpu_custom_call.1} parent=1 // pred_fallthru
      _
    %69 = vst [vmem:[#allocation2] sm:$0xff] 0.0
    %70 = vst [vmem:[#allocation2 + $0x8] sm:$0xff] 0.0
    %71 = vst [vmem:[#allocation2 + $0x10] sm:$0x3] 0.0
    %72 = vst [vmem:[#allocation2 + $0x1b0] sm:$0xff] 0.0
    %73 = vst [vmem:[#allocation2 + $0x1b8] sm:$0xff] 0.0
    %74 = vst [vmem:[#allocation2 + $0x1c0] sm:$0x3] 0.0
    %s75 = scalar_lea.vmem [#allocation2], 408
    %76 = vst [vmem:[%s75] sm:$0xff] 0.0
    %77 = vst [vmem:[%s75 + $0x8] sm:$0xff] 0.0
    %78 = vst [vmem:[%s75 + $0x10] sm:$0x3] 0.0
    %79 = vst [vmem:[%s75 + $0x1b0] sm:$0xff] 0.0
    %80 = vst [vmem:[%s75 + $0x1b8] sm:$0xff] 0.0
    %81 = vst [vmem:[%s75 + $0x1c0] sm:$0x3] 0.0
    %82 = vst [vmem:[#allocation2] sm:$0x1] 0.0
    %83 = vst [vmem:[#allocation2 + $0x18] sm:$0x1] 0.0
    %84 = vst [vmem:[#allocation2 + $0x30] sm:$0x1] 0.0
    %85 = vst [vmem:[#allocation2 + $0x48] sm:$0x1] 0.0
    %86 = vst [vmem:[#allocation2 + $0x60] sm:$0x1] 0.0
    %87 = vst [vmem:[#allocation2 + $0x78] sm:$0x1] 0.0
    %88 = vst [vmem:[#allocation2 + $0x90] sm:$0x1] 0.0
    %89 = vst [vmem:[#allocation2 + $0xa8] sm:$0x1] 0.0
    %90 = vst [vmem:[#allocation2 + $0xc0] sm:$0x1] 0.0
    %91 = vst [vmem:[#allocation2 + $0xd8] sm:$0x1] 0.0
    %92 = vst [vmem:[#allocation2 + $0xf0] sm:$0x1] 0.0
    %93 = vst [vmem:[#allocation2 + $0x108] sm:$0x1] 0.0
    %94 = vst [vmem:[#allocation2 + $0x120] sm:$0x1] 0.0
    %95 = vst [vmem:[#allocation2 + $0x138] sm:$0x1] 0.0
    %96 = vst [vmem:[#allocation2 + $0x150] sm:$0x1] 0.0
    %97 = vst [vmem:[#allocation2 + $0x168] sm:$0x1] 0.0
    %98 = vst [vmem:[#allocation2 + $0x180] sm:$0x1] 0.0
    %99 = vst [vmem:[#allocation2 + $0x198] sm:$0x1] 0.0
    %100 = vst [vmem:[#allocation2 + $0x1b0] sm:$0x1] 0.0
    %101 = vst [vmem:[#allocation2 + $0x1c8] sm:$0x1] 0.0
    %102 = vst [vmem:[#allocation2 + $0x1e0] sm:$0x1] 0.0
    %103 = vst [vmem:[#allocation2 + $0x1f8] sm:$0x1] 0.0
    %104 = vst [vmem:[#allocation2 + $0x210] sm:$0x1] 0.0
    %105 = vst [vmem:[#allocation2 + $0x228] sm:$0x1] 0.0
    %106 = vst [vmem:[#allocation2 + $0x240] sm:$0x1] 0.0
    %107 = vst [vmem:[#allocation2 + $0x258] sm:$0x1] 0.0
    %108 = vst [vmem:[#allocation2 + $0x270] sm:$0x1] 0.0
    %109 = vst [vmem:[#allocation2 + $0x288] sm:$0x1] 0.0
    %110 = vst [vmem:[#allocation2 + $0x2a0] sm:$0x1] 0.0
    %111 = vst [vmem:[#allocation2 + $0x2b8] sm:$0x1] 0.0
    %112 = vst [vmem:[#allocation2 + $0x2d0] sm:$0x1] 0.0
    %113 = vst [vmem:[#allocation2 + $0x2e8] sm:$0x1] 0.0
    %114 = vst [vmem:[#allocation2 + $0x300] sm:$0x1] 0.0
    %115 = vst [vmem:[#allocation2 + $0x318] sm:$0x1] 0.0
    %116 = vst [vmem:[#allocation2 + $0x330] sm:$0x1] 0.0
    %117 = vst [vmem:[#allocation2 + $0x348] sm:$0x1] 0.0
    %118 = vst [vmem:[#allocation2 + $0x11] sm:$0x1] 0.0
    %119 = vst [vmem:[#allocation2 + $0x29] sm:$0x1] 0.0
    %120 = vst [vmem:[#allocation2 + $0x41] sm:$0x1] 0.0
    %121 = vst [vmem:[#allocation2 + $0x59] sm:$0x1] 0.0
    %122 = vst [vmem:[#allocation2 + $0x71] sm:$0x1] 0.0
    %123 = vst [vmem:[#allocation2 + $0x89] sm:$0x1] 0.0
    %124 = vst [vmem:[#allocation2 + $0xa1] sm:$0x1] 0.0
    %125 = vst [vmem:[#allocation2 + $0xb9] sm:$0x1] 0.0
    %126 = vst [vmem:[#allocation2 + $0xd1] sm:$0x1] 0.0
    %127 = vst [vmem:[#allocation2 + $0xe9] sm:$0x1] 0.0
    %128 = vst [vmem:[#allocation2 + $0x101] sm:$0x1] 0.0
    %129 = vst [vmem:[#allocation2 + $0x119] sm:$0x1] 0.0
    %130 = vst [vmem:[#allocation2 + $0x131] sm:$0x1] 0.0
    %131 = vst [vmem:[#allocation2 + $0x149] sm:$0x1] 0.0
    %132 = vst [vmem:[#allocation2 + $0x161] sm:$0x1] 0.0
    %133 = vst [vmem:[#allocation2 + $0x179] sm:$0x1] 0.0
    %134 = vst [vmem:[#allocation2 + $0x191] sm:$0x1] 0.0
    %135 = vst [vmem:[#allocation2 + $0x1a9] sm:$0x1] 0.0
    %136 = vst [vmem:[#allocation2 + $0x1c1] sm:$0x1] 0.0
    %137 = vst [vmem:[#allocation2 + $0x1d9] sm:$0x1] 0.0
    %138 = vst [vmem:[#allocation2 + $0x1f1] sm:$0x1] 0.0
    %139 = vst [vmem:[#allocation2 + $0x209] sm:$0x1] 0.0
    %140 = vst [vmem:[#allocation2 + $0x221] sm:$0x1] 0.0
    %141 = vst [vmem:[#allocation2 + $0x239] sm:$0x1] 0.0
    %142 = vst [vmem:[#allocation2 + $0x251] sm:$0x1] 0.0
    %143 = vst [vmem:[#allocation2 + $0x269] sm:$0x1] 0.0
    %144 = vst [vmem:[#allocation2 + $0x281] sm:$0x1] 0.0
    %145 = vst [vmem:[#allocation2 + $0x299] sm:$0x1] 0.0
    %146 = vst [vmem:[#allocation2 + $0x2b1] sm:$0x1] 0.0
    %147 = vst [vmem:[#allocation2 + $0x2c9] sm:$0x1] 0.0
    %148 = vst [vmem:[#allocation2 + $0x2e1] sm:$0x1] 0.0
    %149 = vst [vmem:[#allocation2 + $0x2f9] sm:$0x1] 0.0
    %150 = vst [vmem:[#allocation2 + $0x311] sm:$0x1] 0.0
    %151 = vst [vmem:[#allocation2 + $0x329] sm:$0x1] 0.0
    %152 = vst [vmem:[#allocation2 + $0x341] sm:$0x1] 0.0
    %153 = vst [vmem:[#allocation2 + $0x359] sm:$0x1] 0.0
    %v154 = vld [vmem:[#allocation4] sm:$0xff]
    %v155 = vld [vmem:[#allocation4 + $0x8] sm:$0xff]
    %v156 = vld [vmem:[#allocation4 + $0x10] sm:$0xff]
    %v157 = vld [vmem:[#allocation4 + $0x18] sm:$0xff]
    %v158 = vld [vmem:[#allocation4 + $0x20] sm:$0xff]
    %v159 = vld [vmem:[#allocation4 + $0x28] sm:$0xff]
    %v160 = vld [vmem:[#allocation4 + $0x30] sm:$0xff]
    %v161 = vld [vmem:[#allocation4 + $0x38] sm:$0xff]
    %v162 = vld [vmem:[#allocation4 + $0x40] sm:$0xff]
    %v163 = vld [vmem:[#allocation4 + $0x48] sm:$0xff]
    %v164 = vld [vmem:[#allocation4 + $0x50] sm:$0xff]
    %v165 = vld [vmem:[#allocation4 + $0x58] sm:$0xff]
    %v166 = vld [vmem:[#allocation4 + $0x60] sm:$0xff]
    %v167 = vld [vmem:[#allocation4 + $0x68] sm:$0xff]
    %v168 = vld [vmem:[#allocation4 + $0x70] sm:$0xff]
    %v169 = vld [vmem:[#allocation4 + $0x78] sm:$0xff]
    %v170 = vld [vmem:[#allocation4 + $0x80] sm:$0xff]
    %v171 = vld [vmem:[#allocation4 + $0x88] sm:$0xff]
    %v172 = vld [vmem:[#allocation4 + $0x90] sm:$0xff]
    %v173 = vld [vmem:[#allocation4 + $0x98] sm:$0xff]
    %v174 = vld [vmem:[#allocation4 + $0xa0] sm:$0xff]
    %v175 = vld [vmem:[#allocation4 + $0xa8] sm:$0xff]
    %v176 = vld [vmem:[#allocation4 + $0xb0] sm:$0xff]
    %v177 = vld [vmem:[#allocation4 + $0xb8] sm:$0xff]
    %v178 = vld [vmem:[#allocation4 + $0xc0] sm:$0xff]
    %v179 = vld [vmem:[#allocation4 + $0xc8] sm:$0xff]
    %v180 = vld [vmem:[#allocation4 + $0xd0] sm:$0xff]
    %v181 = vld [vmem:[#allocation4 + $0xd8] sm:$0xff]
    %v182 = vld [vmem:[#allocation4 + $0xe0] sm:$0xff]
    %v183 = vld [vmem:[#allocation4 + $0xe8] sm:$0xff]
    %v184 = vld [vmem:[#allocation4 + $0xf0] sm:$0xff]
    %v185 = vld [vmem:[#allocation4 + $0xf8] sm:$0xff]
    %v186 = vld [vmem:[#allocation4 + $0x100] sm:$0xff]
    %v187 = vld [vmem:[#allocation4 + $0x108] sm:$0xff]
    %v188 = vld [vmem:[#allocation4 + $0x110] sm:$0xff]
    %v189 = vld [vmem:[#allocation4 + $0x118] sm:$0xff]
    %v190 = vld [vmem:[#allocation4 + $0x120] sm:$0xff]
    %v191 = vld [vmem:[#allocation4 + $0x128] sm:$0xff]
    %v192 = vld [vmem:[#allocation4 + $0x130] sm:$0xff]
    %v193 = vld [vmem:[#allocation4 + $0x138] sm:$0xff]
    %v194 = vld [vmem:[#allocation4 + $0x140] sm:$0xff]
    %v195 = vld [vmem:[#allocation4 + $0x148] sm:$0xff]
    %v196 = vld [vmem:[#allocation4 + $0x150] sm:$0xff]
    %v197 = vld [vmem:[#allocation4 + $0x158] sm:$0xff]
    %v198 = vld [vmem:[#allocation4 + $0x160] sm:$0xff]
    %v199 = vld [vmem:[#allocation4 + $0x168] sm:$0xff]
    %v200 = vld [vmem:[#allocation4 + $0x170] sm:$0xff]
    %v201 = vld [vmem:[#allocation4 + $0x178] sm:$0xff]
    %v202 = vld [vmem:[#allocation4 + $0x180] sm:$0xff]
    %v203 = vld [vmem:[#allocation4 + $0x188] sm:$0xff]
    %v204 = vld [vmem:[#allocation4 + $0x190] sm:$0xff]
    %v205 = vld [vmem:[#allocation4 + $0x198] sm:$0xff]
    %v206 = vld [vmem:[#allocation4 + $0x1a0] sm:$0xff]
    %v207 = vld [vmem:[#allocation4 + $0x1a8] sm:$0xff]
    %v208 = vld [vmem:[#allocation4 + $0x1b0] sm:$0xff]
    %v209 = vld [vmem:[#allocation4 + $0x1b8] sm:$0xff]
    %v210 = vld [vmem:[#allocation4 + $0x1c0] sm:$0xff]
    %v211 = vld [vmem:[#allocation4 + $0x1c8] sm:$0xff]
    %v212 = vld [vmem:[#allocation4 + $0x1d0] sm:$0xff]
    %v213 = vld [vmem:[#allocation4 + $0x1d8] sm:$0xff]
    %v214 = vld [vmem:[#allocation4 + $0x1e0] sm:$0xff]
    %v215 = vld [vmem:[#allocation4 + $0x1e8] sm:$0xff]
    %v216 = vld [vmem:[#allocation4 + $0x1f0] sm:$0xff]
    %v217 = vld [vmem:[#allocation4 + $0x1f8] sm:$0xff]
    %s218 = scalar_lea.vmem [#allocation2], 24
    %219 = vst [vmem:[%s218 + $0x1] sm:$0xff] %v154
    %220 = vst [vmem:[%s218 + $0x9] sm:$0xff] %v155
    %221 = vst [vmem:[%s218 + $0x19] sm:$0xff] %v156
    %222 = vst [vmem:[%s218 + $0x21] sm:$0xff] %v157
    %223 = vst [vmem:[%s218 + $0x31] sm:$0xff] %v158
    %224 = vst [vmem:[%s218 + $0x39] sm:$0xff] %v159
    %225 = vst [vmem:[%s218 + $0x49] sm:$0xff] %v160
    %226 = vst [vmem:[%s218 + $0x51] sm:$0xff] %v161
    %227 = vst [vmem:[%s218 + $0x61] sm:$0xff] %v162
    %228 = vst [vmem:[%s218 + $0x69] sm:$0xff] %v163
    %229 = vst [vmem:[%s218 + $0x79] sm:$0xff] %v164
    %230 = vst [vmem:[%s218 + $0x81] sm:$0xff] %v165
    %231 = vst [vmem:[%s218 + $0x91] sm:$0xff] %v166
    %232 = vst [vmem:[%s218 + $0x99] sm:$0xff] %v167
    %233 = vst [vmem:[%s218 + $0xa9] sm:$0xff] %v168
    %234 = vst [vmem:[%s218 + $0xb1] sm:$0xff] %v169
    %235 = vst [vmem:[%s218 + $0xc1] sm:$0xff] %v170
    %236 = vst [vmem:[%s218 + $0xc9] sm:$0xff] %v171
    %237 = vst [vmem:[%s218 + $0xd9] sm:$0xff] %v172
    %238 = vst [vmem:[%s218 + $0xe1] sm:$0xff] %v173
    %239 = vst [vmem:[%s218 + $0xf1] sm:$0xff] %v174
    %240 = vst [vmem:[%s218 + $0xf9] sm:$0xff] %v175
    %241 = vst [vmem:[%s218 + $0x109] sm:$0xff] %v176
    %242 = vst [vmem:[%s218 + $0x111] sm:$0xff] %v177
    %243 = vst [vmem:[%s218 + $0x121] sm:$0xff] %v178
    %244 = vst [vmem:[%s218 + $0x129] sm:$0xff] %v179
    %245 = vst [vmem:[%s218 + $0x139] sm:$0xff] %v180
    %246 = vst [vmem:[%s218 + $0x141] sm:$0xff] %v181
    %247 = vst [vmem:[%s218 + $0x151] sm:$0xff] %v182
    %248 = vst [vmem:[%s218 + $0x159] sm:$0xff] %v183
    %249 = vst [vmem:[%s218 + $0x169] sm:$0xff] %v184
    %250 = vst [vmem:[%s218 + $0x171] sm:$0xff] %v185
    %251 = vst [vmem:[%s218 + $0x1b1] sm:$0xff] %v186
    %252 = vst [vmem:[%s218 + $0x1b9] sm:$0xff] %v187
    %253 = vst [vmem:[%s218 + $0x1c9] sm:$0xff] %v188
    %254 = vst [vmem:[%s218 + $0x1d1] sm:$0xff] %v189
    %255 = vst [vmem:[%s218 + $0x1e1] sm:$0xff] %v190
    %256 = vst [vmem:[%s218 + $0x1e9] sm:$0xff] %v191
    %257 = vst [vmem:[%s218 + $0x1f9] sm:$0xff] %v192
    %258 = vst [vmem:[%s218 + $0x201] sm:$0xff] %v193
    %259 = vst [vmem:[%s218 + $0x211] sm:$0xff] %v194
    %260 = vst [vmem:[%s218 + $0x219] sm:$0xff] %v195
    %261 = vst [vmem:[%s218 + $0x229] sm:$0xff] %v196
    %262 = vst [vmem:[%s218 + $0x231] sm:$0xff] %v197
    %263 = vst [vmem:[%s218 + $0x241] sm:$0xff] %v198
    %264 = vst [vmem:[%s218 + $0x249] sm:$0xff] %v199
    %265 = vst [vmem:[%s218 + $0x259] sm:$0xff] %v200
    %266 = vst [vmem:[%s218 + $0x261] sm:$0xff] %v201
    %267 = vst [vmem:[%s218 + $0x271] sm:$0xff] %v202
    %268 = vst [vmem:[%s218 + $0x279] sm:$0xff] %v203
    %269 = vst [vmem:[%s218 + $0x289] sm:$0xff] %v204
    %270 = vst [vmem:[%s218 + $0x291] sm:$0xff] %v205
    %271 = vst [vmem:[%s218 + $0x2a1] sm:$0xff] %v206
    %272 = vst [vmem:[%s218 + $0x2a9] sm:$0xff] %v207
    %273 = vst [vmem:[%s218 + $0x2b9] sm:$0xff] %v208
    %274 = vst [vmem:[%s218 + $0x2c1] sm:$0xff] %v209
    %275 = vst [vmem:[%s218 + $0x2d1] sm:$0xff] %v210
    %276 = vst [vmem:[%s218 + $0x2d9] sm:$0xff] %v211
    %277 = vst [vmem:[%s218 + $0x2e9] sm:$0xff] %v212
    %278 = vst [vmem:[%s218 + $0x2f1] sm:$0xff] %v213
    %279 = vst [vmem:[%s218 + $0x301] sm:$0xff] %v214
    %280 = vst [vmem:[%s218 + $0x309] sm:$0xff] %v215
    %281 = vst [vmem:[%s218 + $0x319] sm:$0xff] %v216
    %282 = vst [vmem:[%s218 + $0x321] sm:$0xff] %v217
    %v283 = vld [vmem:[#allocation2] sm:$0xff]
    %v284 = vld [vmem:[#allocation2 + $0x8] sm:$0xff]
    %v285 = vld [vmem:[#allocation2 + $0x18] sm:$0xff]
    %v286 = vld [vmem:[#allocation2 + $0x20] sm:$0xff]
    %v287 = vld [vmem:[#allocation2 + $0x30] sm:$0xff]
    %v288 = vld [vmem:[#allocation2 + $0x38] sm:$0xff]
    %v289 = vld [vmem:[#allocation2 + $0x48] sm:$0xff]
    %v290 = vld [vmem:[#allocation2 + $0x50] sm:$0xff]
    %v291 = vld [vmem:[#allocation2 + $0x60] sm:$0xff]
    %v292 = vld [vmem:[#allocation2 + $0x68] sm:$0xff]
    %v293 = vld [vmem:[#allocation2 + $0x78] sm:$0xff]
    %v294 = vld [vmem:[#allocation2 + $0x80] sm:$0xff]
    %v295 = vld [vmem:[#allocation2 + $0x90] sm:$0xff]
    %v296 = vld [vmem:[#allocation2 + $0x98] sm:$0xff]
    %v297 = vld [vmem:[#allocation2 + $0xa8] sm:$0xff]
    %v298 = vld [vmem:[#allocation2 + $0xb0] sm:$0xff]
    %v299 = vld [vmem:[#allocation2 + $0xc0] sm:$0xff]
    %v300 = vld [vmem:[#allocation2 + $0xc8] sm:$0xff]
    %v301 = vld [vmem:[#allocation2 + $0xd8] sm:$0xff]
    %v302 = vld [vmem:[#allocation2 + $0xe0] sm:$0xff]
    %v303 = vld [vmem:[#allocation2 + $0xf0] sm:$0xff]
    %v304 = vld [vmem:[#allocation2 + $0xf8] sm:$0xff]
    %v305 = vld [vmem:[#allocation2 + $0x108] sm:$0xff]
    %v306 = vld [vmem:[#allocation2 + $0x110] sm:$0xff]
    %v307 = vld [vmem:[#allocation2 + $0x120] sm:$0xff]
    %v308 = vld [vmem:[#allocation2 + $0x128] sm:$0xff]
    %v309 = vld [vmem:[#allocation2 + $0x138] sm:$0xff]
    %v310 = vld [vmem:[#allocation2 + $0x140] sm:$0xff]
    %v311 = vld [vmem:[#allocation2 + $0x150] sm:$0xff]
    %v312 = vld [vmem:[#allocation2 + $0x158] sm:$0xff]
    %v313 = vld [vmem:[#allocation2 + $0x168] sm:$0xff]
    %v314 = vld [vmem:[#allocation2 + $0x170] sm:$0xff]
    %v315 = vld [vmem:[#allocation2 + $0x1b0] sm:$0xff]
    %v316 = vld [vmem:[#allocation2 + $0x1b8] sm:$0xff]
    %v317 = vld [vmem:[#allocation2 + $0x1c8] sm:$0xff]
    %v318 = vld [vmem:[#allocation2 + $0x1d0] sm:$0xff]
    %v319 = vld [vmem:[#allocation2 + $0x1e0] sm:$0xff]
    %v320 = vld [vmem:[#allocation2 + $0x1e8] sm:$0xff]
    %v321 = vld [vmem:[#allocation2 + $0x1f8] sm:$0xff]
    %v322 = vld [vmem:[#allocation2 + $0x200] sm:$0xff]
    %v323 = vld [vmem:[#allocation2 + $0x210] sm:$0xff]
    %v324 = vld [vmem:[#allocation2 + $0x218] sm:$0xff]
    %v325 = vld [vmem:[#allocation2 + $0x228] sm:$0xff]
    %v326 = vld [vmem:[#allocation2 + $0x230] sm:$0xff]
    %v327 = vld [vmem:[#allocation2 + $0x240] sm:$0xff]
    %v328 = vld [vmem:[#allocation2 + $0x248] sm:$0xff]
    %v329 = vld [vmem:[#allocation2 + $0x258] sm:$0xff]
    %v330 = vld [vmem:[#allocation2 + $0x260] sm:$0xff]
    %v331 = vld [vmem:[#allocation2 + $0x270] sm:$0xff]
    %v332 = vld [vmem:[#allocation2 + $0x278] sm:$0xff]
    %v333 = vld [vmem:[#allocation2 + $0x288] sm:$0xff]
    %v334 = vld [vmem:[#allocation2 + $0x290] sm:$0xff]
    %v335 = vld [vmem:[#allocation2 + $0x2a0] sm:$0xff]
    %v336 = vld [vmem:[#allocation2 + $0x2a8] sm:$0xff]
    %v337 = vld [vmem:[#allocation2 + $0x2b8] sm:$0xff]
    %v338 = vld [vmem:[#allocation2 + $0x2c0] sm:$0xff]
    %v339 = vld [vmem:[#allocation2 + $0x2d0] sm:$0xff]
    %v340 = vld [vmem:[#allocation2 + $0x2d8] sm:$0xff]
    %v341 = vld [vmem:[#allocation2 + $0x2e8] sm:$0xff]
    %v342 = vld [vmem:[#allocation2 + $0x2f0] sm:$0xff]
    %v343 = vld [vmem:[#allocation2 + $0x300] sm:$0xff]
    %v344 = vld [vmem:[#allocation2 + $0x308] sm:$0xff]
    %v345 = vld [vmem:[#allocation2 + $0x318] sm:$0xff]
    %v346 = vld [vmem:[#allocation2 + $0x320] sm:$0xff]
    %v347 = vpack.c.bf16 %v284, %v283
    %v348 = vpack.c.bf16 %v286, %v285
    %v349 = vpack.c.bf16 %v288, %v287
    %v350 = vpack.c.bf16 %v290, %v289
    %v351 = vpack.c.bf16 %v292, %v291
    %v352 = vpack.c.bf16 %v294, %v293
    %v353 = vpack.c.bf16 %v296, %v295
    %v354 = vpack.c.bf16 %v298, %v297
    %v355 = vpack.c.bf16 %v300, %v299
    %v356 = vpack.c.bf16 %v302, %v301
    %v357 = vpack.c.bf16 %v304, %v303
    %v358 = vpack.c.bf16 %v306, %v305
    %v359 = vpack.c.bf16 %v308, %v307
    %v360 = vpack.c.bf16 %v310, %v309
    %v361 = vpack.c.bf16 %v312, %v311
    %v362 = vpack.c.bf16 %v314, %v313
    %v363 = vpack.c.bf16 %v316, %v315
    %v364 = vpack.c.bf16 %v318, %v317
    %v365 = vpack.c.bf16 %v320, %v319
    %v366 = vpack.c.bf16 %v322, %v321
    %v367 = vpack.c.bf16 %v324, %v323
    %v368 = vpack.c.bf16 %v326, %v325
    %v369 = vpack.c.bf16 %v328, %v327
    %v370 = vpack.c.bf16 %v330, %v329
    %v371 = vpack.c.bf16 %v332, %v331
    %v372 = vpack.c.bf16 %v334, %v333
    %v373 = vpack.c.bf16 %v336, %v335
    %v374 = vpack.c.bf16 %v338, %v337
    %v375 = vpack.c.bf16 %v340, %v339
    %v376 = vpack.c.bf16 %v342, %v341
    %v377 = vpack.c.bf16 %v344, %v343
    %v378 = vpack.c.bf16 %v346, %v345
    %379 = vst [vmem:[#allocation3] sm:$0xff] %v347
    %380 = vst [vmem:[#allocation3 + $0x48] sm:$0xff] %v348
    %381 = vst [vmem:[#allocation3 + $0x90] sm:$0xff] %v349
    %382 = vst [vmem:[#allocation3 + $0xd8] sm:$0xff] %v350
    %383 = vst [vmem:[#allocation3 + $0x120] sm:$0xff] %v351
    %384 = vst [vmem:[#allocation3 + $0x168] sm:$0xff] %v352
    %385 = vst [vmem:[#allocation3 + $0x1b0] sm:$0xff] %v353
    %386 = vst [vmem:[#allocation3 + $0x1f8] sm:$0xff] %v354
    %387 = vst [vmem:[#allocation3 + $0x240] sm:$0xff] %v355
    %388 = vst [vmem:[#allocation3 + $0x288] sm:$0xff] %v356
    %389 = vst [vmem:[#allocation3 + $0x2d0] sm:$0xff] %v357
    %390 = vst [vmem:[#allocation3 + $0x318] sm:$0xff] %v358
    %391 = vst [vmem:[#allocation3 + $0x360] sm:$0xff] %v359
    %392 = vst [vmem:[#allocation3 + $0x3a8] sm:$0xff] %v360
    %393 = vst [vmem:[#allocation3 + $0x3f0] sm:$0xff] %v361
    %394 = vst [vmem:[#allocation3 + $0x438] sm:$0xff] %v362
    %395 = vst [vmem:[#allocation3 + $0x480] sm:$0xff] %v363
    %396 = vst [vmem:[#allocation3 + $0x4c8] sm:$0xff] %v364
    %397 = vst [vmem:[#allocation3 + $0x510] sm:$0xff] %v365
    %398 = vst [vmem:[#allocation3 + $0x558] sm:$0xff] %v366
    %399 = vst [vmem:[#allocation3 + $0x5a0] sm:$0xff] %v367
    %400 = vst [vmem:[#allocation3 + $0x5e8] sm:$0xff] %v368
    %401 = vst [vmem:[#allocation3 + $0x630] sm:$0xff] %v369
    %402 = vst [vmem:[#allocation3 + $0x678] sm:$0xff] %v370
    %403 = vst [vmem:[#allocation3 + $0x6c0] sm:$0xff] %v371
    %404 = vst [vmem:[#allocation3 + $0x708] sm:$0xff] %v372
    %405 = vst [vmem:[#allocation3 + $0x750] sm:$0xff] %v373
    %406 = vst [vmem:[#allocation3 + $0x798] sm:$0xff] %v374
    %407 = vst [vmem:[#allocation3 + $0x7e0] sm:$0xff] %v375
    %408 = vst [vmem:[#allocation3 + $0x828] sm:$0xff] %v376
    %409 = vst [vmem:[#allocation3 + $0x870] sm:$0xff] %v377
    %410 = vst [vmem:[#allocation3 + $0x8b8] sm:$0xff] %v378
    %v411 = vld [vmem:[#allocation2 + $0x1] sm:$0xff]
    %v412 = vld [vmem:[#allocation2 + $0x9] sm:$0xff]
    %v413 = vld [vmem:[#allocation2 + $0x19] sm:$0xff]
    %v414 = vld [vmem:[#allocation2 + $0x21] sm:$0xff]
    %v415 = vld [vmem:[#allocation2 + $0x31] sm:$0xff]
    %v416 = vld [vmem:[#allocation2 + $0x39] sm:$0xff]
    %v417 = vld [vmem:[#allocation2 + $0x49] sm:$0xff]
    %v418 = vld [vmem:[#allocation2 + $0x51] sm:$0xff]
    %v419 = vld [vmem:[#allocation2 + $0x61] sm:$0xff]
    %v420 = vld [vmem:[#allocation2 + $0x69] sm:$0xff]
    %v421 = vld [vmem:[#allocation2 + $0x79] sm:$0xff]
    %v422 = vld [vmem:[#allocation2 + $0x81] sm:$0xff]
    %v423 = vld [vmem:[#allocation2 + $0x91] sm:$0xff]
    %v424 = vld [vmem:[#allocation2 + $0x99] sm:$0xff]
    %v425 = vld [vmem:[#allocation2 + $0xa9] sm:$0xff]
    %v426 = vld [vmem:[#allocation2 + $0xb1] sm:$0xff]
    %v427 = vld [vmem:[#allocation2 + $0xc1] sm:$0xff]
    %v428 = vld [vmem:[#allocation2 + $0xc9] sm:$0xff]
    %v429 = vld [vmem:[#allocation2 + $0xd9] sm:$0xff]
    %v430 = vld [vmem:[#allocation2 + $0xe1] sm:$0xff]
    %v431 = vld [vmem:[#allocation2 + $0xf1] sm:$0xff]
    %v432 = vld [vmem:[#allocation2 + $0xf9] sm:$0xff]
    %v433 = vld [vmem:[#allocation2 + $0x109] sm:$0xff]
    %v434 = vld [vmem:[#allocation2 + $0x111] sm:$0xff]
    %v435 = vld [vmem:[#allocation2 + $0x121] sm:$0xff]
    %v436 = vld [vmem:[#allocation2 + $0x129] sm:$0xff]
    %v437 = vld [vmem:[#allocation2 + $0x139] sm:$0xff]
    %v438 = vld [vmem:[#allocation2 + $0x141] sm:$0xff]
    %v439 = vld [vmem:[#allocation2 + $0x151] sm:$0xff]
    %v440 = vld [vmem:[#allocation2 + $0x159] sm:$0xff]
    %v441 = vld [vmem:[#allocation2 + $0x169] sm:$0xff]
    %v442 = vld [vmem:[#allocation2 + $0x171] sm:$0xff]
    %v443 = vld [vmem:[#allocation2 + $0x1b1] sm:$0xff]
    %v444 = vld [vmem:[#allocation2 + $0x1b9] sm:$0xff]
    %v445 = vld [vmem:[#allocation2 + $0x1c9] sm:$0xff]
    %v446 = vld [vmem:[#allocation2 + $0x1d1] sm:$0xff]
    %v447 = vld [vmem:[#allocation2 + $0x1e1] sm:$0xff]
    %v448 = vld [vmem:[#allocation2 + $0x1e9] sm:$0xff]
    %v449 = vld [vmem:[#allocation2 + $0x1f9] sm:$0xff]
    %v450 = vld [vmem:[#allocation2 + $0x201] sm:$0xff]
    %v451 = vld [vmem:[#allocation2 + $0x211] sm:$0xff]
    %v452 = vld [vmem:[#allocation2 + $0x219] sm:$0xff]
    %v453 = vld [vmem:[#allocation2 + $0x229] sm:$0xff]
    %v454 = vld [vmem:[#allocation2 + $0x231] sm:$0xff]
    %v455 = vld [vmem:[#allocation2 + $0x241] sm:$0xff]
    %v456 = vld [vmem:[#allocation2 + $0x249] sm:$0xff]
    %v457 = vld [vmem:[#allocation2 + $0x259] sm:$0xff]
    %v458 = vld [vmem:[#allocation2 + $0x261] sm:$0xff]
    %v459 = vld [vmem:[#allocation2 + $0x271] sm:$0xff]
    %v460 = vld [vmem:[#allocation2 + $0x279] sm:$0xff]
    %v461 = vld [vmem:[#allocation2 + $0x289] sm:$0xff]
    %v462 = vld [vmem:[#allocation2 + $0x291] sm:$0xff]
    %v463 = vld [vmem:[#allocation2 + $0x2a1] sm:$0xff]
    %v464 = vld [vmem:[#allocation2 + $0x2a9] sm:$0xff]
    %v465 = vld [vmem:[#allocation2 + $0x2b9] sm:$0xff]
    %v466 = vld [vmem:[#allocation2 + $0x2c1] sm:$0xff]
    %v467 = vld [vmem:[#allocation2 + $0x2d1] sm:$0xff]
    %v468 = vld [vmem:[#allocation2 + $0x2d9] sm:$0xff]
    %v469 = vld [vmem:[#allocation2 + $0x2e9] sm:$0xff]
    %v470 = vld [vmem:[#allocation2 + $0x2f1] sm:$0xff]
    %v471 = vld [vmem:[#allocation2 + $0x301] sm:$0xff]
    %v472 = vld [vmem:[#allocation2 + $0x309] sm:$0xff]
    %v473 = vld [vmem:[#allocation2 + $0x319] sm:$0xff]
    %v474 = vld [vmem:[#allocation2 + $0x321] sm:$0xff]
    %v475 = vpack.c.bf16 %v412, %v411
    %v476 = vpack.c.bf16 %v414, %v413
    %v477 = vpack.c.bf16 %v416, %v415
    %v478 = vpack.c.bf16 %v418, %v417
    %v479 = vpack.c.bf16 %v420, %v419
    %v480 = vpack.c.bf16 %v422, %v421
    %v481 = vpack.c.bf16 %v424, %v423
    %v482 = vpack.c.bf16 %v426, %v425
    %v483 = vpack.c.bf16 %v428, %v427
    %v484 = vpack.c.bf16 %v430, %v429
    %v485 = vpack.c.bf16 %v432, %v431
    %v486 = vpack.c.bf16 %v434, %v433
    %v487 = vpack.c.bf16 %v436, %v435
    %v488 = vpack.c.bf16 %v438, %v437
    %v489 = vpack.c.bf16 %v440, %v439
    %v490 = vpack.c.bf16 %v442, %v441
    %v491 = vpack.c.bf16 %v444, %v443
    %v492 = vpack.c.bf16 %v446, %v445
    %v493 = vpack.c.bf16 %v448, %v447
    %v494 = vpack.c.bf16 %v450, %v449
    %v495 = vpack.c.bf16 %v452, %v451
    %v496 = vpack.c.bf16 %v454, %v453
    %v497 = vpack.c.bf16 %v456, %v455
    %v498 = vpack.c.bf16 %v458, %v457
    %v499 = vpack.c.bf16 %v460, %v459
    %v500 = vpack.c.bf16 %v462, %v461
    %v501 = vpack.c.bf16 %v464, %v463
    %v502 = vpack.c.bf16 %v466, %v465
    %v503 = vpack.c.bf16 %v468, %v467
    %v504 = vpack.c.bf16 %v470, %v469
    %v505 = vpack.c.bf16 %v472, %v471
    %v506 = vpack.c.bf16 %v474, %v473
    %507 = vst [vmem:[#allocation3 + $0x8] sm:$0xff] %v475
    %508 = vst [vmem:[#allocation3 + $0x50] sm:$0xff] %v476
    %509 = vst [vmem:[#allocation3 + $0x98] sm:$0xff] %v477
    %510 = vst [vmem:[#allocation3 + $0xe0] sm:$0xff] %v478
    %511 = vst [vmem:[#allocation3 + $0x128] sm:$0xff] %v479
    %512 = vst [vmem:[#allocation3 + $0x170] sm:$0xff] %v480
    %513 = vst [vmem:[#allocation3 + $0x1b8] sm:$0xff] %v481
    %514 = vst [vmem:[#allocation3 + $0x200] sm:$0xff] %v482
    %515 = vst [vmem:[#allocation3 + $0x248] sm:$0xff] %v483
    %516 = vst [vmem:[#allocation3 + $0x290] sm:$0xff] %v484
    %517 = vst [vmem:[#allocation3 + $0x2d8] sm:$0xff] %v485
    %518 = vst [vmem:[#allocation3 + $0x320] sm:$0xff] %v486
    %519 = vst [vmem:[#allocation3 + $0x368] sm:$0xff] %v487
    %520 = vst [vmem:[#allocation3 + $0x3b0] sm:$0xff] %v488
    %521 = vst [vmem:[#allocation3 + $0x3f8] sm:$0xff] %v489
    %522 = vst [vmem:[#allocation3 + $0x440] sm:$0xff] %v490
    %523 = vst [vmem:[#allocation3 + $0x488] sm:$0xff] %v491
    %524 = vst [vmem:[#allocation3 + $0x4d0] sm:$0xff] %v492
    %525 = vst [vmem:[#allocation3 + $0x518] sm:$0xff] %v493
    %526 = vst [vmem:[#allocation3 + $0x560] sm:$0xff] %v494
    %527 = vst [vmem:[#allocation3 + $0x5a8] sm:$0xff] %v495
    %528 = vst [vmem:[#allocation3 + $0x5f0] sm:$0xff] %v496
    %529 = vst [vmem:[#allocation3 + $0x638] sm:$0xff] %v497
    %530 = vst [vmem:[#allocation3 + $0x680] sm:$0xff] %v498
    %531 = vst [vmem:[#allocation3 + $0x6c8] sm:$0xff] %v499
    %532 = vst [vmem:[#allocation3 + $0x710] sm:$0xff] %v500
    %533 = vst [vmem:[#allocation3 + $0x758] sm:$0xff] %v501
    %534 = vst [vmem:[#allocation3 + $0x7a0] sm:$0xff] %v502
    %535 = vst [vmem:[#allocation3 + $0x7e8] sm:$0xff] %v503
    %536 = vst [vmem:[#allocation3 + $0x830] sm:$0xff] %v504
    %537 = vst [vmem:[#allocation3 + $0x878] sm:$0xff] %v505
    %538 = vst [vmem:[#allocation3 + $0x8c0] sm:$0xff] %v506
    %v539 = vld [vmem:[#allocation2 + $0x2] sm:$0xff]
    %v540 = vld [vmem:[#allocation2 + $0xa] sm:$0xff]
    %v541 = vld [vmem:[#allocation2 + $0x1a] sm:$0xff]
    %v542 = vld [vmem:[#allocation2 + $0x22] sm:$0xff]
    %v543 = vld [vmem:[#allocation2 + $0x32] sm:$0xff]
    %v544 = vld [vmem:[#allocation2 + $0x3a] sm:$0xff]
    %v545 = vld [vmem:[#allocation2 + $0x4a] sm:$0xff]
    %v546 = vld [vmem:[#allocation2 + $0x52] sm:$0xff]
    %v547 = vld [vmem:[#allocation2 + $0x62] sm:$0xff]
    %v548 = vld [vmem:[#allocation2 + $0x6a] sm:$0xff]
    %v549 = vld [vmem:[#allocation2 + $0x7a] sm:$0xff]
    %v550 = vld [vmem:[#allocation2 + $0x82] sm:$0xff]
    %v551 = vld [vmem:[#allocation2 + $0x92] sm:$0xff]
    %v552 = vld [vmem:[#allocation2 + $0x9a] sm:$0xff]
    %v553 = vld [vmem:[#allocation2 + $0xaa] sm:$0xff]
    %v554 = vld [vmem:[#allocation2 + $0xb2] sm:$0xff]
    %v555 = vld [vmem:[#allocation2 + $0xc2] sm:$0xff]
    %v556 = vld [vmem:[#allocation2 + $0xca] sm:$0xff]
    %v557 = vld [vmem:[#allocation2 + $0xda] sm:$0xff]
    %v558 = vld [vmem:[#allocation2 + $0xe2] sm:$0xff]
    %v559 = vld [vmem:[#allocation2 + $0xf2] sm:$0xff]
    %v560 = vld [vmem:[#allocation2 + $0xfa] sm:$0xff]
    %v561 = vld [vmem:[#allocation2 + $0x10a] sm:$0xff]
    %v562 = vld [vmem:[#allocation2 + $0x112] sm:$0xff]
    %v563 = vld [vmem:[#allocation2 + $0x122] sm:$0xff]
    %v564 = vld [vmem:[#allocation2 + $0x12a] sm:$0xff]
    %v565 = vld [vmem:[#allocation2 + $0x13a] sm:$0xff]
    %v566 = vld [vmem:[#allocation2 + $0x142] sm:$0xff]
    %v567 = vld [vmem:[#allocation2 + $0x152] sm:$0xff]
    %v568 = vld [vmem:[#allocation2 + $0x15a] sm:$0xff]
    %v569 = vld [vmem:[#allocation2 + $0x16a] sm:$0xff]
    %v570 = vld [vmem:[#allocation2 + $0x172] sm:$0xff]
    %v571 = vld [vmem:[#allocation2 + $0x1b2] sm:$0xff]
    %v572 = vld [vmem:[#allocation2 + $0x1ba] sm:$0xff]
    %v573 = vld [vmem:[#allocation2 + $0x1ca] sm:$0xff]
    %v574 = vld [vmem:[#allocation2 + $0x1d2] sm:$0xff]
    %v575 = vld [vmem:[#allocation2 + $0x1e2] sm:$0xff]
    %v576 = vld [vmem:[#allocation2 + $0x1ea] sm:$0xff]
    %v577 = vld [vmem:[#allocation2 + $0x1fa] sm:$0xff]
    %v578 = vld [vmem:[#allocation2 + $0x202] sm:$0xff]
    %v579 = vld [vmem:[#allocation2 + $0x212] sm:$0xff]
    %v580 = vld [vmem:[#allocation2 + $0x21a] sm:$0xff]
    %v581 = vld [vmem:[#allocation2 + $0x22a] sm:$0xff]
    %v582 = vld [vmem:[#allocation2 + $0x232] sm:$0xff]
    %v583 = vld [vmem:[#allocation2 + $0x242] sm:$0xff]
    %v584 = vld [vmem:[#allocation2 + $0x24a] sm:$0xff]
    %v585 = vld [vmem:[#allocation2 + $0x25a] sm:$0xff]
    %v586 = vld [vmem:[#allocation2 + $0x262] sm:$0xff]
    %v587 = vld [vmem:[#allocation2 + $0x272] sm:$0xff]
    %v588 = vld [vmem:[#allocation2 + $0x27a] sm:$0xff]
    %v589 = vld [vmem:[#allocation2 + $0x28a] sm:$0xff]
    %v590 = vld [vmem:[#allocation2 + $0x292] sm:$0xff]
    %v591 = vld [vmem:[#allocation2 + $0x2a2] sm:$0xff]
    %v592 = vld [vmem:[#allocation2 + $0x2aa] sm:$0xff]
    %v593 = vld [vmem:[#allocation2 + $0x2ba] sm:$0xff]
    %v594 = vld [vmem:[#allocation2 + $0x2c2] sm:$0xff]
    %v595 = vld [vmem:[#allocation2 + $0x2d2] sm:$0xff]
    %v596 = vld [vmem:[#allocation2 + $0x2da] sm:$0xff]
    %v597 = vld [vmem:[#allocation2 + $0x2ea] sm:$0xff]
    %v598 = vld [vmem:[#allocation2 + $0x2f2] sm:$0xff]
    %v599 = vld [vmem:[#allocation2 + $0x302] sm:$0xff]
    %v600 = vld [vmem:[#allocation2 + $0x30a] sm:$0xff]
    %v601 = vld [vmem:[#allocation2 + $0x31a] sm:$0xff]
    %v602 = vld [vmem:[#allocation2 + $0x322] sm:$0xff]
    %v603 = vpack.c.bf16 %v540, %v539
    %v604 = vpack.c.bf16 %v542, %v541
    %v605 = vpack.c.bf16 %v544, %v543
    %v606 = vpack.c.bf16 %v546, %v545
    %v607 = vpack.c.bf16 %v548, %v547
    %v608 = vpack.c.bf16 %v550, %v549
    %v609 = vpack.c.bf16 %v552, %v551
    %v610 = vpack.c.bf16 %v554, %v553
    %v611 = vpack.c.bf16 %v556, %v555
    %v612 = vpack.c.bf16 %v558, %v557
    %v613 = vpack.c.bf16 %v560, %v559
    %v614 = vpack.c.bf16 %v562, %v561
    %v615 = vpack.c.bf16 %v564, %v563
    %v616 = vpack.c.bf16 %v566, %v565
    %v617 = vpack.c.bf16 %v568, %v567
    %v618 = vpack.c.bf16 %v570, %v569
    %v619 = vpack.c.bf16 %v572, %v571
    %v620 = vpack.c.bf16 %v574, %v573
    %v621 = vpack.c.bf16 %v576, %v575
    %v622 = vpack.c.bf16 %v578, %v577
    %v623 = vpack.c.bf16 %v580, %v579
    %v624 = vpack.c.bf16 %v582, %v581
    %v625 = vpack.c.bf16 %v584, %v583
    %v626 = vpack.c.bf16 %v586, %v585
    %v627 = vpack.c.bf16 %v588, %v587
    %v628 = vpack.c.bf16 %v590, %v589
    %v629 = vpack.c.bf16 %v592, %v591
    %v630 = vpack.c.bf16 %v594, %v593
    %v631 = vpack.c.bf16 %v596, %v595
    %v632 = vpack.c.bf16 %v598, %v597
    %v633 = vpack.c.bf16 %v600, %v599
    %v634 = vpack.c.bf16 %v602, %v601
    %635 = vst [vmem:[#allocation3 + $0x10] sm:$0xff] %v603
    %636 = vst [vmem:[#allocation3 + $0x58] sm:$0xff] %v604
    %637 = vst [vmem:[#allocation3 + $0xa0] sm:$0xff] %v605
    %638 = vst [vmem:[#allocation3 + $0xe8] sm:$0xff] %v606
    %639 = vst [vmem:[#allocation3 + $0x130] sm:$0xff] %v607
    %640 = vst [vmem:[#allocation3 + $0x178] sm:$0xff] %v608
    %641 = vst [vmem:[#allocation3 + $0x1c0] sm:$0xff] %v609
    %642 = vst [vmem:[#allocation3 + $0x208] sm:$0xff] %v610
    %643 = vst [vmem:[#allocation3 + $0x250] sm:$0xff] %v611
    %644 = vst [vmem:[#allocation3 + $0x298] sm:$0xff] %v612
    %645 = vst [vmem:[#allocation3 + $0x2e0] sm:$0xff] %v613
    %646 = vst [vmem:[#allocation3 + $0x328] sm:$0xff] %v614
    %647 = vst [vmem:[#allocation3 + $0x370] sm:$0xff] %v615
    %648 = vst [vmem:[#allocation3 + $0x3b8] sm:$0xff] %v616
    %649 = vst [vmem:[#allocation3 + $0x400] sm:$0xff] %v617
    %650 = vst [vmem:[#allocation3 + $0x448] sm:$0xff] %v618
    %651 = vst [vmem:[#allocation3 + $0x490] sm:$0xff] %v619
    %652 = vst [vmem:[#allocation3 + $0x4d8] sm:$0xff] %v620
    %653 = vst [vmem:[#allocation3 + $0x520] sm:$0xff] %v621
    %654 = vst [vmem:[#allocation3 + $0x568] sm:$0xff] %v622
    %655 = vst [vmem:[#allocation3 + $0x5b0] sm:$0xff] %v623
    %656 = vst [vmem:[#allocation3 + $0x5f8] sm:$0xff] %v624
    %657 = vst [vmem:[#allocation3 + $0x640] sm:$0xff] %v625
    %658 = vst [vmem:[#allocation3 + $0x688] sm:$0xff] %v626
    %659 = vst [vmem:[#allocation3 + $0x6d0] sm:$0xff] %v627
    %660 = vst [vmem:[#allocation3 + $0x718] sm:$0xff] %v628
    %661 = vst [vmem:[#allocation3 + $0x760] sm:$0xff] %v629
    %662 = vst [vmem:[#allocation3 + $0x7a8] sm:$0xff] %v630
    %663 = vst [vmem:[#allocation3 + $0x7f0] sm:$0xff] %v631
    %664 = vst [vmem:[#allocation3 + $0x838] sm:$0xff] %v632
    %665 = vst [vmem:[#allocation3 + $0x880] sm:$0xff] %v633
    %666 = vst [vmem:[#allocation3 + $0x8c8] sm:$0xff] %v634
    %v667 = vld [vmem:[%s218] sm:$0xff]
    %v668 = vld [vmem:[%s218 + $0x8] sm:$0xff]
    %v669 = vld [vmem:[%s218 + $0x18] sm:$0xff]
    %v670 = vld [vmem:[%s218 + $0x20] sm:$0xff]
    %v671 = vld [vmem:[%s218 + $0x30] sm:$0xff]
    %v672 = vld [vmem:[%s218 + $0x38] sm:$0xff]
    %v673 = vld [vmem:[%s218 + $0x48] sm:$0xff]
    %v674 = vld [vmem:[%s218 + $0x50] sm:$0xff]
    %v675 = vld [vmem:[%s218 + $0x60] sm:$0xff]
    %v676 = vld [vmem:[%s218 + $0x68] sm:$0xff]
    %v677 = vld [vmem:[%s218 + $0x78] sm:$0xff]
    %v678 = vld [vmem:[%s218 + $0x80] sm:$0xff]
    %v679 = vld [vmem:[%s218 + $0x90] sm:$0xff]
    %v680 = vld [vmem:[%s218 + $0x98] sm:$0xff]
    %v681 = vld [vmem:[%s218 + $0xa8] sm:$0xff]
    %v682 = vld [vmem:[%s218 + $0xb0] sm:$0xff]
    %v683 = vld [vmem:[%s218 + $0xc0] sm:$0xff]
    %v684 = vld [vmem:[%s218 + $0xc8] sm:$0xff]
    %v685 = vld [vmem:[%s218 + $0xd8] sm:$0xff]
    %v686 = vld [vmem:[%s218 + $0xe0] sm:$0xff]
    %v687 = vld [vmem:[%s218 + $0xf0] sm:$0xff]
    %v688 = vld [vmem:[%s218 + $0xf8] sm:$0xff]
    %v689 = vld [vmem:[%s218 + $0x108] sm:$0xff]
    %v690 = vld [vmem:[%s218 + $0x110] sm:$0xff]
    %v691 = vld [vmem:[%s218 + $0x120] sm:$0xff]
    %v692 = vld [vmem:[%s218 + $0x128] sm:$0xff]
    %v693 = vld [vmem:[%s218 + $0x138] sm:$0xff]
    %v694 = vld [vmem:[%s218 + $0x140] sm:$0xff]
    %v695 = vld [vmem:[%s218 + $0x150] sm:$0xff]
    %v696 = vld [vmem:[%s218 + $0x158] sm:$0xff]
    %v697 = vld [vmem:[%s218 + $0x168] sm:$0xff]
    %v698 = vld [vmem:[%s218 + $0x170] sm:$0xff]
    %v699 = vld [vmem:[%s218 + $0x1b0] sm:$0xff]
    %v700 = vld [vmem:[%s218 + $0x1b8] sm:$0xff]
    %v701 = vld [vmem:[%s218 + $0x1c8] sm:$0xff]
    %v702 = vld [vmem:[%s218 + $0x1d0] sm:$0xff]
    %v703 = vld [vmem:[%s218 + $0x1e0] sm:$0xff]
    %v704 = vld [vmem:[%s218 + $0x1e8] sm:$0xff]
    %v705 = vld [vmem:[%s218 + $0x1f8] sm:$0xff]
    %v706 = vld [vmem:[%s218 + $0x200] sm:$0xff]
    %v707 = vld [vmem:[%s218 + $0x210] sm:$0xff]
    %v708 = vld [vmem:[%s218 + $0x218] sm:$0xff]
    %v709 = vld [vmem:[%s218 + $0x228] sm:$0xff]
    %v710 = vld [vmem:[%s218 + $0x230] sm:$0xff]
    %v711 = vld [vmem:[%s218 + $0x240] sm:$0xff]
    %v712 = vld [vmem:[%s218 + $0x248] sm:$0xff]
    %v713 = vld [vmem:[%s218 + $0x258] sm:$0xff]
    %v714 = vld [vmem:[%s218 + $0x260] sm:$0xff]
    %v715 = vld [vmem:[%s218 + $0x270] sm:$0xff]
    %v716 = vld [vmem:[%s218 + $0x278] sm:$0xff]
    %v717 = vld [vmem:[%s218 + $0x288] sm:$0xff]
    %v718 = vld [vmem:[%s218 + $0x290] sm:$0xff]
    %v719 = vld [vmem:[%s218 + $0x2a0] sm:$0xff]
    %v720 = vld [vmem:[%s218 + $0x2a8] sm:$0xff]
    %v721 = vld [vmem:[%s218 + $0x2b8] sm:$0xff]
    %v722 = vld [vmem:[%s218 + $0x2c0] sm:$0xff]
    %v723 = vld [vmem:[%s218 + $0x2d0] sm:$0xff]
    %v724 = vld [vmem:[%s218 + $0x2d8] sm:$0xff]
    %v725 = vld [vmem:[%s218 + $0x2e8] sm:$0xff]
    %v726 = vld [vmem:[%s218 + $0x2f0] sm:$0xff]
    %v727 = vld [vmem:[%s218 + $0x300] sm:$0xff]
    %v728 = vld [vmem:[%s218 + $0x308] sm:$0xff]
    %v729 = vld [vmem:[%s218 + $0x318] sm:$0xff]
    %v730 = vld [vmem:[%s218 + $0x320] sm:$0xff]
    %v731 = vpack.c.bf16 %v668, %v667
    %v732 = vpack.c.bf16 %v670, %v669
    %v733 = vpack.c.bf16 %v672, %v671
    %v734 = vpack.c.bf16 %v674, %v673
    %v735 = vpack.c.bf16 %v676, %v675
    %v736 = vpack.c.bf16 %v678, %v677
    %v737 = vpack.c.bf16 %v680, %v679
    %v738 = vpack.c.bf16 %v682, %v681
    %v739 = vpack.c.bf16 %v684, %v683
    %v740 = vpack.c.bf16 %v686, %v685
    %v741 = vpack.c.bf16 %v688, %v687
    %v742 = vpack.c.bf16 %v690, %v689
    %v743 = vpack.c.bf16 %v692, %v691
    %v744 = vpack.c.bf16 %v694, %v693
    %v745 = vpack.c.bf16 %v696, %v695
    %v746 = vpack.c.bf16 %v698, %v697
    %v747 = vpack.c.bf16 %v700, %v699
    %v748 = vpack.c.bf16 %v702, %v701
    %v749 = vpack.c.bf16 %v704, %v703
    %v750 = vpack.c.bf16 %v706, %v705
    %v751 = vpack.c.bf16 %v708, %v707
    %v752 = vpack.c.bf16 %v710, %v709
    %v753 = vpack.c.bf16 %v712, %v711
    %v754 = vpack.c.bf16 %v714, %v713
    %v755 = vpack.c.bf16 %v716, %v715
    %v756 = vpack.c.bf16 %v718, %v717
    %v757 = vpack.c.bf16 %v720, %v719
    %v758 = vpack.c.bf16 %v722, %v721
    %v759 = vpack.c.bf16 %v724, %v723
    %v760 = vpack.c.bf16 %v726, %v725
    %v761 = vpack.c.bf16 %v728, %v727
    %v762 = vpack.c.bf16 %v730, %v729
    %763 = vst [vmem:[#allocation3 + $0x18] sm:$0xff] %v731
    %764 = vst [vmem:[#allocation3 + $0x60] sm:$0xff] %v732
    %765 = vst [vmem:[#allocation3 + $0xa8] sm:$0xff] %v733
    %766 = vst [vmem:[#allocation3 + $0xf0] sm:$0xff] %v734
    %767 = vst [vmem:[#allocation3 + $0x138] sm:$0xff] %v735
    %768 = vst [vmem:[#allocation3 + $0x180] sm:$0xff] %v736
    %769 = vst [vmem:[#allocation3 + $0x1c8] sm:$0xff] %v737
    %770 = vst [vmem:[#allocation3 + $0x210] sm:$0xff] %v738
    %771 = vst [vmem:[#allocation3 + $0x258] sm:$0xff] %v739
    %772 = vst [vmem:[#allocation3 + $0x2a0] sm:$0xff] %v740
    %773 = vst [vmem:[#allocation3 + $0x2e8] sm:$0xff] %v741
    %774 = vst [vmem:[#allocation3 + $0x330] sm:$0xff] %v742
    %775 = vst [vmem:[#allocation3 + $0x378] sm:$0xff] %v743
    %776 = vst [vmem:[#allocation3 + $0x3c0] sm:$0xff] %v744
    %777 = vst [vmem:[#allocation3 + $0x408] sm:$0xff] %v745
    %778 = vst [vmem:[#allocation3 + $0x450] sm:$0xff] %v746
    %779 = vst [vmem:[#allocation3 + $0x498] sm:$0xff] %v747
    %780 = vst [vmem:[#allocation3 + $0x4e0] sm:$0xff] %v748
    %781 = vst [vmem:[#allocation3 + $0x528] sm:$0xff] %v749
    %782 = vst [vmem:[#allocation3 + $0x570] sm:$0xff] %v750
    %783 = vst [vmem:[#allocation3 + $0x5b8] sm:$0xff] %v751
    %784 = vst [vmem:[#allocation3 + $0x600] sm:$0xff] %v752
    %785 = vst [vmem:[#allocation3 + $0x648] sm:$0xff] %v753
    %786 = vst [vmem:[#allocation3 + $0x690] sm:$0xff] %v754
    %787 = vst [vmem:[#allocation3 + $0x6d8] sm:$0xff] %v755
    %788 = vst [vmem:[#allocation3 + $0x720] sm:$0xff] %v756
    %789 = vst [vmem:[#allocation3 + $0x768] sm:$0xff] %v757
    %790 = vst [vmem:[#allocation3 + $0x7b0] sm:$0xff] %v758
    %791 = vst [vmem:[#allocation3 + $0x7f8] sm:$0xff] %v759
    %792 = vst [vmem:[#allocation3 + $0x840] sm:$0xff] %v760
    %793 = vst [vmem:[#allocation3 + $0x888] sm:$0xff] %v761
    %794 = vst [vmem:[#allocation3 + $0x8d0] sm:$0xff] %v762
    %v795 = vld [vmem:[%s218 + $0x1] sm:$0xff]
    %v796 = vld [vmem:[%s218 + $0x9] sm:$0xff]
    %v797 = vld [vmem:[%s218 + $0x19] sm:$0xff]
    %v798 = vld [vmem:[%s218 + $0x21] sm:$0xff]
    %v799 = vld [vmem:[%s218 + $0x31] sm:$0xff]
    %v800 = vld [vmem:[%s218 + $0x39] sm:$0xff]
    %v801 = vld [vmem:[%s218 + $0x49] sm:$0xff]
    %v802 = vld [vmem:[%s218 + $0x51] sm:$0xff]
    %v803 = vld [vmem:[%s218 + $0x61] sm:$0xff]
    %v804 = vld [vmem:[%s218 + $0x69] sm:$0xff]
    %v805 = vld [vmem:[%s218 + $0x79] sm:$0xff]
    %v806 = vld [vmem:[%s218 + $0x81] sm:$0xff]
    %v807 = vld [vmem:[%s218 + $0x91] sm:$0xff]
    %v808 = vld [vmem:[%s218 + $0x99] sm:$0xff]
    %v809 = vld [vmem:[%s218 + $0xa9] sm:$0xff]
    %v810 = vld [vmem:[%s218 + $0xb1] sm:$0xff]
    %v811 = vld [vmem:[%s218 + $0xc1] sm:$0xff]
    %v812 = vld [vmem:[%s218 + $0xc9] sm:$0xff]
    %v813 = vld [vmem:[%s218 + $0xd9] sm:$0xff]
    %v814 = vld [vmem:[%s218 + $0xe1] sm:$0xff]
    %v815 = vld [vmem:[%s218 + $0xf1] sm:$0xff]
    %v816 = vld [vmem:[%s218 + $0xf9] sm:$0xff]
    %v817 = vld [vmem:[%s218 + $0x109] sm:$0xff]
    %v818 = vld [vmem:[%s218 + $0x111] sm:$0xff]
    %v819 = vld [vmem:[%s218 + $0x121] sm:$0xff]
    %v820 = vld [vmem:[%s218 + $0x129] sm:$0xff]
    %v821 = vld [vmem:[%s218 + $0x139] sm:$0xff]
    %v822 = vld [vmem:[%s218 + $0x141] sm:$0xff]
    %v823 = vld [vmem:[%s218 + $0x151] sm:$0xff]
    %v824 = vld [vmem:[%s218 + $0x159] sm:$0xff]
    %v825 = vld [vmem:[%s218 + $0x169] sm:$0xff]
    %v826 = vld [vmem:[%s218 + $0x171] sm:$0xff]
    %v827 = vld [vmem:[%s218 + $0x1b1] sm:$0xff]
    %v828 = vld [vmem:[%s218 + $0x1b9] sm:$0xff]
    %v829 = vld [vmem:[%s218 + $0x1c9] sm:$0xff]
    %v830 = vld [vmem:[%s218 + $0x1d1] sm:$0xff]
    %v831 = vld [vmem:[%s218 + $0x1e1] sm:$0xff]
    %v832 = vld [vmem:[%s218 + $0x1e9] sm:$0xff]
    %v833 = vld [vmem:[%s218 + $0x1f9] sm:$0xff]
    %v834 = vld [vmem:[%s218 + $0x201] sm:$0xff]
    %v835 = vld [vmem:[%s218 + $0x211] sm:$0xff]
    %v836 = vld [vmem:[%s218 + $0x219] sm:$0xff]
    %v837 = vld [vmem:[%s218 + $0x229] sm:$0xff]
    %v838 = vld [vmem:[%s218 + $0x231] sm:$0xff]
    %v839 = vld [vmem:[%s218 + $0x241] sm:$0xff]
    %v840 = vld [vmem:[%s218 + $0x249] sm:$0xff]
    %v841 = vld [vmem:[%s218 + $0x259] sm:$0xff]
    %v842 = vld [vmem:[%s218 + $0x261] sm:$0xff]
    %v843 = vld [vmem:[%s218 + $0x271] sm:$0xff]
    %v844 = vld [vmem:[%s218 + $0x279] sm:$0xff]
    %v845 = vld [vmem:[%s218 + $0x289] sm:$0xff]
    %v846 = vld [vmem:[%s218 + $0x291] sm:$0xff]
    %v847 = vld [vmem:[%s218 + $0x2a1] sm:$0xff]
    %v848 = vld [vmem:[%s218 + $0x2a9] sm:$0xff]
    %v849 = vld [vmem:[%s218 + $0x2b9] sm:$0xff]
    %v850 = vld [vmem:[%s218 + $0x2c1] sm:$0xff]
    %v851 = vld [vmem:[%s218 + $0x2d1] sm:$0xff]
    %v852 = vld [vmem:[%s218 + $0x2d9] sm:$0xff]
    %v853 = vld [vmem:[%s218 + $0x2e9] sm:$0xff]
    %v854 = vld [vmem:[%s218 + $0x2f1] sm:$0xff]
    %v855 = vld [vmem:[%s218 + $0x301] sm:$0xff]
    %v856 = vld [vmem:[%s218 + $0x309] sm:$0xff]
    %v857 = vld [vmem:[%s218 + $0x319] sm:$0xff]
    %v858 = vld [vmem:[%s218 + $0x321] sm:$0xff]
    %v859 = vpack.c.bf16 %v796, %v795
    %v860 = vpack.c.bf16 %v798, %v797
    %v861 = vpack.c.bf16 %v800, %v799
    %v862 = vpack.c.bf16 %v802, %v801
    %v863 = vpack.c.bf16 %v804, %v803
    %v864 = vpack.c.bf16 %v806, %v805
    %v865 = vpack.c.bf16 %v808, %v807
    %v866 = vpack.c.bf16 %v810, %v809
    %v867 = vpack.c.bf16 %v812, %v811
    %v868 = vpack.c.bf16 %v814, %v813
    %v869 = vpack.c.bf16 %v816, %v815
    %v870 = vpack.c.bf16 %v818, %v817
    %v871 = vpack.c.bf16 %v820, %v819
    %v872 = vpack.c.bf16 %v822, %v821
    %v873 = vpack.c.bf16 %v824, %v823
    %v874 = vpack.c.bf16 %v826, %v825
    %v875 = vpack.c.bf16 %v828, %v827
    %v876 = vpack.c.bf16 %v830, %v829
    %v877 = vpack.c.bf16 %v832, %v831
    %v878 = vpack.c.bf16 %v834, %v833
    %v879 = vpack.c.bf16 %v836, %v835
    %v880 = vpack.c.bf16 %v838, %v837
    %v881 = vpack.c.bf16 %v840, %v839
    %v882 = vpack.c.bf16 %v842, %v841
    %v883 = vpack.c.bf16 %v844, %v843
    %v884 = vpack.c.bf16 %v846, %v845
    %v885 = vpack.c.bf16 %v848, %v847
    %v886 = vpack.c.bf16 %v850, %v849
    %v887 = vpack.c.bf16 %v852, %v851
    %v888 = vpack.c.bf16 %v854, %v853
    %v889 = vpack.c.bf16 %v856, %v855
    %v890 = vpack.c.bf16 %v858, %v857
    %891 = vst [vmem:[#allocation3 + $0x20] sm:$0xff] %v859
    %892 = vst [vmem:[#allocation3 + $0x68] sm:$0xff] %v860
    %893 = vst [vmem:[#allocation3 + $0xb0] sm:$0xff] %v861
    %894 = vst [vmem:[#allocation3 + $0xf8] sm:$0xff] %v862
    %895 = vst [vmem:[#allocation3 + $0x140] sm:$0xff] %v863
    %896 = vst [vmem:[#allocation3 + $0x188] sm:$0xff] %v864
    %897 = vst [vmem:[#allocation3 + $0x1d0] sm:$0xff] %v865
    %898 = vst [vmem:[#allocation3 + $0x218] sm:$0xff] %v866
    %899 = vst [vmem:[#allocation3 + $0x260] sm:$0xff] %v867
    %900 = vst [vmem:[#allocation3 + $0x2a8] sm:$0xff] %v868
    %901 = vst [vmem:[#allocation3 + $0x2f0] sm:$0xff] %v869
    %902 = vst [vmem:[#allocation3 + $0x338] sm:$0xff] %v870
    %903 = vst [vmem:[#allocation3 + $0x380] sm:$0xff] %v871
    %904 = vst [vmem:[#allocation3 + $0x3c8] sm:$0xff] %v872
    %905 = vst [vmem:[#allocation3 + $0x410] sm:$0xff] %v873
    %906 = vst [vmem:[#allocation3 + $0x458] sm:$0xff] %v874
    %907 = vst [vmem:[#allocation3 + $0x4a0] sm:$0xff] %v875
    %908 = vst [vmem:[#allocation3 + $0x4e8] sm:$0xff] %v876
    %909 = vst [vmem:[#allocation3 + $0x530] sm:$0xff] %v877
    %910 = vst [vmem:[#allocation3 + $0x578] sm:$0xff] %v878
    %911 = vst [vmem:[#allocation3 + $0x5c0] sm:$0xff] %v879
    %912 = vst [vmem:[#allocation3 + $0x608] sm:$0xff] %v880
    %913 = vst [vmem:[#allocation3 + $0x650] sm:$0xff] %v881
    %914 = vst [vmem:[#allocation3 + $0x698] sm:$0xff] %v882
    %915 = vst [vmem:[#allocation3 + $0x6e0] sm:$0xff] %v883
    %916 = vst [vmem:[#allocation3 + $0x728] sm:$0xff] %v884
    %917 = vst [vmem:[#allocation3 + $0x770] sm:$0xff] %v885
    %918 = vst [vmem:[#allocation3 + $0x7b8] sm:$0xff] %v886
    %919 = vst [vmem:[#allocation3 + $0x800] sm:$0xff] %v887
    %920 = vst [vmem:[#allocation3 + $0x848] sm:$0xff] %v888
    %921 = vst [vmem:[#allocation3 + $0x890] sm:$0xff] %v889
    %922 = vst [vmem:[#allocation3 + $0x8d8] sm:$0xff] %v890
    %v923 = vld [vmem:[%s218 + $0x2] sm:$0xff]
    %v924 = vld [vmem:[%s218 + $0xa] sm:$0xff]
    %v925 = vld [vmem:[%s218 + $0x1a] sm:$0xff]
    %v926 = vld [vmem:[%s218 + $0x22] sm:$0xff]
    %v927 = vld [vmem:[%s218 + $0x32] sm:$0xff]
    %v928 = vld [vmem:[%s218 + $0x3a] sm:$0xff]
    %v929 = vld [vmem:[%s218 + $0x4a] sm:$0xff]
    %v930 = vld [vmem:[%s218 + $0x52] sm:$0xff]
    %v931 = vld [vmem:[%s218 + $0x62] sm:$0xff]
    %v932 = vld [vmem:[%s218 + $0x6a] sm:$0xff]
    %v933 = vld [vmem:[%s218 + $0x7a] sm:$0xff]
    %v934 = vld [vmem:[%s218 + $0x82] sm:$0xff]
    %v935 = vld [vmem:[%s218 + $0x92] sm:$0xff]
    %v936 = vld [vmem:[%s218 + $0x9a] sm:$0xff]
    %v937 = vld [vmem:[%s218 + $0xaa] sm:$0xff]
    %v938 = vld [vmem:[%s218 + $0xb2] sm:$0xff]
    %v939 = vld [vmem:[%s218 + $0xc2] sm:$0xff]
    %v940 = vld [vmem:[%s218 + $0xca] sm:$0xff]
    %v941 = vld [vmem:[%s218 + $0xda] sm:$0xff]
    %v942 = vld [vmem:[%s218 + $0xe2] sm:$0xff]
    %v943 = vld [vmem:[%s218 + $0xf2] sm:$0xff]
    %v944 = vld [vmem:[%s218 + $0xfa] sm:$0xff]
    %v945 = vld [vmem:[%s218 + $0x10a] sm:$0xff]
    %v946 = vld [vmem:[%s218 + $0x112] sm:$0xff]
    %v947 = vld [vmem:[%s218 + $0x122] sm:$0xff]
    %v948 = vld [vmem:[%s218 + $0x12a] sm:$0xff]
    %v949 = vld [vmem:[%s218 + $0x13a] sm:$0xff]
    %v950 = vld [vmem:[%s218 + $0x142] sm:$0xff]
    %v951 = vld [vmem:[%s218 + $0x152] sm:$0xff]
    %v952 = vld [vmem:[%s218 + $0x15a] sm:$0xff]
    %v953 = vld [vmem:[%s218 + $0x16a] sm:$0xff]
    %v954 = vld [vmem:[%s218 + $0x172] sm:$0xff]
    %v955 = vld [vmem:[%s218 + $0x1b2] sm:$0xff]
    %v956 = vld [vmem:[%s218 + $0x1ba] sm:$0xff]
    %v957 = vld [vmem:[%s218 + $0x1ca] sm:$0xff]
    %v958 = vld [vmem:[%s218 + $0x1d2] sm:$0xff]
    %v959 = vld [vmem:[%s218 + $0x1e2] sm:$0xff]
    %v960 = vld [vmem:[%s218 + $0x1ea] sm:$0xff]
    %v961 = vld [vmem:[%s218 + $0x1fa] sm:$0xff]
    %v962 = vld [vmem:[%s218 + $0x202] sm:$0xff]
    %v963 = vld [vmem:[%s218 + $0x212] sm:$0xff]
    %v964 = vld [vmem:[%s218 + $0x21a] sm:$0xff]
    %v965 = vld [vmem:[%s218 + $0x22a] sm:$0xff]
    %v966 = vld [vmem:[%s218 + $0x232] sm:$0xff]
    %v967 = vld [vmem:[%s218 + $0x242] sm:$0xff]
    %v968 = vld [vmem:[%s218 + $0x24a] sm:$0xff]
    %v969 = vld [vmem:[%s218 + $0x25a] sm:$0xff]
    %v970 = vld [vmem:[%s218 + $0x262] sm:$0xff]
    %v971 = vld [vmem:[%s218 + $0x272] sm:$0xff]
    %v972 = vld [vmem:[%s218 + $0x27a] sm:$0xff]
    %v973 = vld [vmem:[%s218 + $0x28a] sm:$0xff]
    %v974 = vld [vmem:[%s218 + $0x292] sm:$0xff]
    %v975 = vld [vmem:[%s218 + $0x2a2] sm:$0xff]
    %v976 = vld [vmem:[%s218 + $0x2aa] sm:$0xff]
    %v977 = vld [vmem:[%s218 + $0x2ba] sm:$0xff]
    %v978 = vld [vmem:[%s218 + $0x2c2] sm:$0xff]
    %v979 = vld [vmem:[%s218 + $0x2d2] sm:$0xff]
    %v980 = vld [vmem:[%s218 + $0x2da] sm:$0xff]
    %v981 = vld [vmem:[%s218 + $0x2ea] sm:$0xff]
    %v982 = vld [vmem:[%s218 + $0x2f2] sm:$0xff]
    %v983 = vld [vmem:[%s218 + $0x302] sm:$0xff]
    %v984 = vld [vmem:[%s218 + $0x30a] sm:$0xff]
    %v985 = vld [vmem:[%s218 + $0x31a] sm:$0xff]
    %v986 = vld [vmem:[%s218 + $0x322] sm:$0xff]
    %v987 = vpack.c.bf16 %v924, %v923
    %v988 = vpack.c.bf16 %v926, %v925
    %v989 = vpack.c.bf16 %v928, %v927
    %v990 = vpack.c.bf16 %v930, %v929
    %v991 = vpack.c.bf16 %v932, %v931
    %v992 = vpack.c.bf16 %v934, %v933
    %v993 = vpack.c.bf16 %v936, %v935
    %v994 = vpack.c.bf16 %v938, %v937
    %v995 = vpack.c.bf16 %v940, %v939
    %v996 = vpack.c.bf16 %v942, %v941
    %v997 = vpack.c.bf16 %v944, %v943
    %v998 = vpack.c.bf16 %v946, %v945
    %v999 = vpack.c.bf16 %v948, %v947
    %v1000 = vpack.c.bf16 %v950, %v949
    %v1001 = vpack.c.bf16 %v952, %v951
    %v1002 = vpack.c.bf16 %v954, %v953
    %v1003 = vpack.c.bf16 %v956, %v955
    %v1004 = vpack.c.bf16 %v958, %v957
    %v1005 = vpack.c.bf16 %v960, %v959
    %v1006 = vpack.c.bf16 %v962, %v961
    %v1007 = vpack.c.bf16 %v964, %v963
    %v1008 = vpack.c.bf16 %v966, %v965
    %v1009 = vpack.c.bf16 %v968, %v967
    %v1010 = vpack.c.bf16 %v970, %v969
    %v1011 = vpack.c.bf16 %v972, %v971
    %v1012 = vpack.c.bf16 %v974, %v973
    %v1013 = vpack.c.bf16 %v976, %v975
    %v1014 = vpack.c.bf16 %v978, %v977
    %v1015 = vpack.c.bf16 %v980, %v979
    %v1016 = vpack.c.bf16 %v982, %v981
    %v1017 = vpack.c.bf16 %v984, %v983
    %v1018 = vpack.c.bf16 %v986, %v985
    %1019 = vst [vmem:[#allocation3 + $0x28] sm:$0xff] %v987
    %1020 = vst [vmem:[#allocation3 + $0x70] sm:$0xff] %v988
    %1021 = vst [vmem:[#allocation3 + $0xb8] sm:$0xff] %v989
    %1022 = vst [vmem:[#allocation3 + $0x100] sm:$0xff] %v990
    %1023 = vst [vmem:[#allocation3 + $0x148] sm:$0xff] %v991
    %1024 = vst [vmem:[#allocation3 + $0x190] sm:$0xff] %v992
    %1025 = vst [vmem:[#allocation3 + $0x1d8] sm:$0xff] %v993
    %1026 = vst [vmem:[#allocation3 + $0x220] sm:$0xff] %v994
    %1027 = vst [vmem:[#allocation3 + $0x268] sm:$0xff] %v995
    %1028 = vst [vmem:[#allocation3 + $0x2b0] sm:$0xff] %v996
    %1029 = vst [vmem:[#allocation3 + $0x2f8] sm:$0xff] %v997
    %1030 = vst [vmem:[#allocation3 + $0x340] sm:$0xff] %v998
    %1031 = vst [vmem:[#allocation3 + $0x388] sm:$0xff] %v999
    %1032 = vst [vmem:[#allocation3 + $0x3d0] sm:$0xff] %v1000
    %1033 = vst [vmem:[#allocation3 + $0x418] sm:$0xff] %v1001
    %1034 = vst [vmem:[#allocation3 + $0x460] sm:$0xff] %v1002
    %1035 = vst [vmem:[#allocation3 + $0x4a8] sm:$0xff] %v1003
    %1036 = vst [vmem:[#allocation3 + $0x4f0] sm:$0xff] %v1004
    %1037 = vst [vmem:[#allocation3 + $0x538] sm:$0xff] %v1005
    %1038 = vst [vmem:[#allocation3 + $0x580] sm:$0xff] %v1006
    %1039 = vst [vmem:[#allocation3 + $0x5c8] sm:$0xff] %v1007
    %1040 = vst [vmem:[#allocation3 + $0x610] sm:$0xff] %v1008
    %1041 = vst [vmem:[#allocation3 + $0x658] sm:$0xff] %v1009
    %1042 = vst [vmem:[#allocation3 + $0x6a0] sm:$0xff] %v1010
    %1043 = vst [vmem:[#allocation3 + $0x6e8] sm:$0xff] %v1011
    %1044 = vst [vmem:[#allocation3 + $0x730] sm:$0xff] %v1012
    %1045 = vst [vmem:[#allocation3 + $0x778] sm:$0xff] %v1013
    %1046 = vst [vmem:[#allocation3 + $0x7c0] sm:$0xff] %v1014
    %1047 = vst [vmem:[#allocation3 + $0x808] sm:$0xff] %v1015
    %1048 = vst [vmem:[#allocation3 + $0x850] sm:$0xff] %v1016
    %1049 = vst [vmem:[#allocation3 + $0x898] sm:$0xff] %v1017
    %1050 = vst [vmem:[#allocation3 + $0x8e0] sm:$0xff] %v1018
    %s1051 = scalar_lea.vmem [#allocation2], 48
    %v1052 = vld [vmem:[%s1051] sm:$0xff]
    %v1053 = vld [vmem:[%s1051 + $0x8] sm:$0xff]
    %v1054 = vld [vmem:[%s1051 + $0x18] sm:$0xff]
    %v1055 = vld [vmem:[%s1051 + $0x20] sm:$0xff]
    %v1056 = vld [vmem:[%s1051 + $0x30] sm:$0xff]
    %v1057 = vld [vmem:[%s1051 + $0x38] sm:$0xff]
    %v1058 = vld [vmem:[%s1051 + $0x48] sm:$0xff]
    %v1059 = vld [vmem:[%s1051 + $0x50] sm:$0xff]
    %v1060 = vld [vmem:[%s1051 + $0x60] sm:$0xff]
    %v1061 = vld [vmem:[%s1051 + $0x68] sm:$0xff]
    %v1062 = vld [vmem:[%s1051 + $0x78] sm:$0xff]
    %v1063 = vld [vmem:[%s1051 + $0x80] sm:$0xff]
    %v1064 = vld [vmem:[%s1051 + $0x90] sm:$0xff]
    %v1065 = vld [vmem:[%s1051 + $0x98] sm:$0xff]
    %v1066 = vld [vmem:[%s1051 + $0xa8] sm:$0xff]
    %v1067 = vld [vmem:[%s1051 + $0xb0] sm:$0xff]
    %v1068 = vld [vmem:[%s1051 + $0xc0] sm:$0xff]
    %v1069 = vld [vmem:[%s1051 + $0xc8] sm:$0xff]
    %v1070 = vld [vmem:[%s1051 + $0xd8] sm:$0xff]
    %v1071 = vld [vmem:[%s1051 + $0xe0] sm:$0xff]
    %v1072 = vld [vmem:[%s1051 + $0xf0] sm:$0xff]
    %v1073 = vld [vmem:[%s1051 + $0xf8] sm:$0xff]
    %v1074 = vld [vmem:[%s1051 + $0x108] sm:$0xff]
    %v1075 = vld [vmem:[%s1051 + $0x110] sm:$0xff]
    %v1076 = vld [vmem:[%s1051 + $0x120] sm:$0xff]
    %v1077 = vld [vmem:[%s1051 + $0x128] sm:$0xff]
    %v1078 = vld [vmem:[%s1051 + $0x138] sm:$0xff]
    %v1079 = vld [vmem:[%s1051 + $0x140] sm:$0xff]
    %v1080 = vld [vmem:[%s1051 + $0x150] sm:$0xff]
    %v1081 = vld [vmem:[%s1051 + $0x158] sm:$0xff]
    %v1082 = vld [vmem:[%s1051 + $0x168] sm:$0xff]
    %v1083 = vld [vmem:[%s1051 + $0x170] sm:$0xff]
    %v1084 = vld [vmem:[%s1051 + $0x1b0] sm:$0xff]
    %v1085 = vld [vmem:[%s1051 + $0x1b8] sm:$0xff]
    %v1086 = vld [vmem:[%s1051 + $0x1c8] sm:$0xff]
    %v1087 = vld [vmem:[%s1051 + $0x1d0] sm:$0xff]
    %v1088 = vld [vmem:[%s1051 + $0x1e0] sm:$0xff]
    %v1089 = vld [vmem:[%s1051 + $0x1e8] sm:$0xff]
    %v1090 = vld [vmem:[%s1051 + $0x1f8] sm:$0xff]
    %v1091 = vld [vmem:[%s1051 + $0x200] sm:$0xff]
    %v1092 = vld [vmem:[%s1051 + $0x210] sm:$0xff]
    %v1093 = vld [vmem:[%s1051 + $0x218] sm:$0xff]
    %v1094 = vld [vmem:[%s1051 + $0x228] sm:$0xff]
    %v1095 = vld [vmem:[%s1051 + $0x230] sm:$0xff]
    %v1096 = vld [vmem:[%s1051 + $0x240] sm:$0xff]
    %v1097 = vld [vmem:[%s1051 + $0x248] sm:$0xff]
    %v1098 = vld [vmem:[%s1051 + $0x258] sm:$0xff]
    %v1099 = vld [vmem:[%s1051 + $0x260] sm:$0xff]
    %v1100 = vld [vmem:[%s1051 + $0x270] sm:$0xff]
    %v1101 = vld [vmem:[%s1051 + $0x278] sm:$0xff]
    %v1102 = vld [vmem:[%s1051 + $0x288] sm:$0xff]
    %v1103 = vld [vmem:[%s1051 + $0x290] sm:$0xff]
    %v1104 = vld [vmem:[%s1051 + $0x2a0] sm:$0xff]
    %v1105 = vld [vmem:[%s1051 + $0x2a8] sm:$0xff]
    %v1106 = vld [vmem:[%s1051 + $0x2b8] sm:$0xff]
    %v1107 = vld [vmem:[%s1051 + $0x2c0] sm:$0xff]
    %v1108 = vld [vmem:[%s1051 + $0x2d0] sm:$0xff]
    %v1109 = vld [vmem:[%s1051 + $0x2d8] sm:$0xff]
    %v1110 = vld [vmem:[%s1051 + $0x2e8] sm:$0xff]
    %v1111 = vld [vmem:[%s1051 + $0x2f0] sm:$0xff]
    %v1112 = vld [vmem:[%s1051 + $0x300] sm:$0xff]
    %v1113 = vld [vmem:[%s1051 + $0x308] sm:$0xff]
    %v1114 = vld [vmem:[%s1051 + $0x318] sm:$0xff]
    %v1115 = vld [vmem:[%s1051 + $0x320] sm:$0xff]
    %v1116 = vpack.c.bf16 %v1053, %v1052
    %v1117 = vpack.c.bf16 %v1055, %v1054
    %v1118 = vpack.c.bf16 %v1057, %v1056
    %v1119 = vpack.c.bf16 %v1059, %v1058
    %v1120 = vpack.c.bf16 %v1061, %v1060
    %v1121 = vpack.c.bf16 %v1063, %v1062
    %v1122 = vpack.c.bf16 %v1065, %v1064
    %v1123 = vpack.c.bf16 %v1067, %v1066
    %v1124 = vpack.c.bf16 %v1069, %v1068
    %v1125 = vpack.c.bf16 %v1071, %v1070
    %v1126 = vpack.c.bf16 %v1073, %v1072
    %v1127 = vpack.c.bf16 %v1075, %v1074
    %v1128 = vpack.c.bf16 %v1077, %v1076
    %v1129 = vpack.c.bf16 %v1079, %v1078
    %v1130 = vpack.c.bf16 %v1081, %v1080
    %v1131 = vpack.c.bf16 %v1083, %v1082
    %v1132 = vpack.c.bf16 %v1085, %v1084
    %v1133 = vpack.c.bf16 %v1087, %v1086
    %v1134 = vpack.c.bf16 %v1089, %v1088
    %v1135 = vpack.c.bf16 %v1091, %v1090
    %v1136 = vpack.c.bf16 %v1093, %v1092
    %v1137 = vpack.c.bf16 %v1095, %v1094
    %v1138 = vpack.c.bf16 %v1097, %v1096
    %v1139 = vpack.c.bf16 %v1099, %v1098
    %v1140 = vpack.c.bf16 %v1101, %v1100
    %v1141 = vpack.c.bf16 %v1103, %v1102
    %v1142 = vpack.c.bf16 %v1105, %v1104
    %v1143 = vpack.c.bf16 %v1107, %v1106
    %v1144 = vpack.c.bf16 %v1109, %v1108
    %v1145 = vpack.c.bf16 %v1111, %v1110
    %v1146 = vpack.c.bf16 %v1113, %v1112
    %v1147 = vpack.c.bf16 %v1115, %v1114
    %1148 = vst [vmem:[#allocation3 + $0x30] sm:$0xff] %v1116
    %1149 = vst [vmem:[#allocation3 + $0x78] sm:$0xff] %v1117
    %1150 = vst [vmem:[#allocation3 + $0xc0] sm:$0xff] %v1118
    %1151 = vst [vmem:[#allocation3 + $0x108] sm:$0xff] %v1119
    %1152 = vst [vmem:[#allocation3 + $0x150] sm:$0xff] %v1120
    %1153 = vst [vmem:[#allocation3 + $0x198] sm:$0xff] %v1121
    %1154 = vst [vmem:[#allocation3 + $0x1e0] sm:$0xff] %v1122
    %1155 = vst [vmem:[#allocation3 + $0x228] sm:$0xff] %v1123
    %1156 = vst [vmem:[#allocation3 + $0x270] sm:$0xff] %v1124
    %1157 = vst [vmem:[#allocation3 + $0x2b8] sm:$0xff] %v1125
    %1158 = vst [vmem:[#allocation3 + $0x300] sm:$0xff] %v1126
    %1159 = vst [vmem:[#allocation3 + $0x348] sm:$0xff] %v1127
    %1160 = vst [vmem:[#allocation3 + $0x390] sm:$0xff] %v1128
    %1161 = vst [vmem:[#allocation3 + $0x3d8] sm:$0xff] %v1129
    %1162 = vst [vmem:[#allocation3 + $0x420] sm:$0xff] %v1130
    %1163 = vst [vmem:[#allocation3 + $0x468] sm:$0xff] %v1131
    %1164 = vst [vmem:[#allocation3 + $0x4b0] sm:$0xff] %v1132
    %1165 = vst [vmem:[#allocation3 + $0x4f8] sm:$0xff] %v1133
    %1166 = vst [vmem:[#allocation3 + $0x540] sm:$0xff] %v1134
    %1167 = vst [vmem:[#allocation3 + $0x588] sm:$0xff] %v1135
    %1168 = vst [vmem:[#allocation3 + $0x5d0] sm:$0xff] %v1136
    %1169 = vst [vmem:[#allocation3 + $0x618] sm:$0xff] %v1137
    %1170 = vst [vmem:[#allocation3 + $0x660] sm:$0xff] %v1138
    %1171 = vst [vmem:[#allocation3 + $0x6a8] sm:$0xff] %v1139
    %1172 = vst [vmem:[#allocation3 + $0x6f0] sm:$0xff] %v1140
    %1173 = vst [vmem:[#allocation3 + $0x738] sm:$0xff] %v1141
    %1174 = vst [vmem:[#allocation3 + $0x780] sm:$0xff] %v1142
    %1175 = vst [vmem:[#allocation3 + $0x7c8] sm:$0xff] %v1143
    %1176 = vst [vmem:[#allocation3 + $0x810] sm:$0xff] %v1144
    %1177 = vst [vmem:[#allocation3 + $0x858] sm:$0xff] %v1145
    %1178 = vst [vmem:[#allocation3 + $0x8a0] sm:$0xff] %v1146
    %1179 = vst [vmem:[#allocation3 + $0x8e8] sm:$0xff] %v1147
    %v1180 = vld [vmem:[%s1051 + $0x1] sm:$0xff]
    %v1181 = vld [vmem:[%s1051 + $0x9] sm:$0xff]
    %v1182 = vld [vmem:[%s1051 + $0x19] sm:$0xff]
    %v1183 = vld [vmem:[%s1051 + $0x21] sm:$0xff]
    %v1184 = vld [vmem:[%s1051 + $0x31] sm:$0xff]
    %v1185 = vld [vmem:[%s1051 + $0x39] sm:$0xff]
    %v1186 = vld [vmem:[%s1051 + $0x49] sm:$0xff]
    %v1187 = vld [vmem:[%s1051 + $0x51] sm:$0xff]
    %v1188 = vld [vmem:[%s1051 + $0x61] sm:$0xff]
    %v1189 = vld [vmem:[%s1051 + $0x69] sm:$0xff]
    %v1190 = vld [vmem:[%s1051 + $0x79] sm:$0xff]
    %v1191 = vld [vmem:[%s1051 + $0x81] sm:$0xff]
    %v1192 = vld [vmem:[%s1051 + $0x91] sm:$0xff]
    %v1193 = vld [vmem:[%s1051 + $0x99] sm:$0xff]
    %v1194 = vld [vmem:[%s1051 + $0xa9] sm:$0xff]
    %v1195 = vld [vmem:[%s1051 + $0xb1] sm:$0xff]
    %v1196 = vld [vmem:[%s1051 + $0xc1] sm:$0xff]
    %v1197 = vld [vmem:[%s1051 + $0xc9] sm:$0xff]
    %v1198 = vld [vmem:[%s1051 + $0xd9] sm:$0xff]
    %v1199 = vld [vmem:[%s1051 + $0xe1] sm:$0xff]
    %v1200 = vld [vmem:[%s1051 + $0xf1] sm:$0xff]
    %v1201 = vld [vmem:[%s1051 + $0xf9] sm:$0xff]
    %v1202 = vld [vmem:[%s1051 + $0x109] sm:$0xff]
    %v1203 = vld [vmem:[%s1051 + $0x111] sm:$0xff]
    %v1204 = vld [vmem:[%s1051 + $0x121] sm:$0xff]
    %v1205 = vld [vmem:[%s1051 + $0x129] sm:$0xff]
    %v1206 = vld [vmem:[%s1051 + $0x139] sm:$0xff]
    %v1207 = vld [vmem:[%s1051 + $0x141] sm:$0xff]
    %v1208 = vld [vmem:[%s1051 + $0x151] sm:$0xff]
    %v1209 = vld [vmem:[%s1051 + $0x159] sm:$0xff]
    %v1210 = vld [vmem:[%s1051 + $0x169] sm:$0xff]
    %v1211 = vld [vmem:[%s1051 + $0x171] sm:$0xff]
    %v1212 = vld [vmem:[%s1051 + $0x1b1] sm:$0xff]
    %v1213 = vld [vmem:[%s1051 + $0x1b9] sm:$0xff]
    %v1214 = vld [vmem:[%s1051 + $0x1c9] sm:$0xff]
    %v1215 = vld [vmem:[%s1051 + $0x1d1] sm:$0xff]
    %v1216 = vld [vmem:[%s1051 + $0x1e1] sm:$0xff]
    %v1217 = vld [vmem:[%s1051 + $0x1e9] sm:$0xff]
    %v1218 = vld [vmem:[%s1051 + $0x1f9] sm:$0xff]
    %v1219 = vld [vmem:[%s1051 + $0x201] sm:$0xff]
    %v1220 = vld [vmem:[%s1051 + $0x211] sm:$0xff]
    %v1221 = vld [vmem:[%s1051 + $0x219] sm:$0xff]
    %v1222 = vld [vmem:[%s1051 + $0x229] sm:$0xff]
    %v1223 = vld [vmem:[%s1051 + $0x231] sm:$0xff]
    %v1224 = vld [vmem:[%s1051 + $0x241] sm:$0xff]
    %v1225 = vld [vmem:[%s1051 + $0x249] sm:$0xff]
    %v1226 = vld [vmem:[%s1051 + $0x259] sm:$0xff]
    %v1227 = vld [vmem:[%s1051 + $0x261] sm:$0xff]
    %v1228 = vld [vmem:[%s1051 + $0x271] sm:$0xff]
    %v1229 = vld [vmem:[%s1051 + $0x279] sm:$0xff]
    %v1230 = vld [vmem:[%s1051 + $0x289] sm:$0xff]
    %v1231 = vld [vmem:[%s1051 + $0x291] sm:$0xff]
    %v1232 = vld [vmem:[%s1051 + $0x2a1] sm:$0xff]
    %v1233 = vld [vmem:[%s1051 + $0x2a9] sm:$0xff]
    %v1234 = vld [vmem:[%s1051 + $0x2b9] sm:$0xff]
    %v1235 = vld [vmem:[%s1051 + $0x2c1] sm:$0xff]
    %v1236 = vld [vmem:[%s1051 + $0x2d1] sm:$0xff]
    %v1237 = vld [vmem:[%s1051 + $0x2d9] sm:$0xff]
    %v1238 = vld [vmem:[%s1051 + $0x2e9] sm:$0xff]
    %v1239 = vld [vmem:[%s1051 + $0x2f1] sm:$0xff]
    %v1240 = vld [vmem:[%s1051 + $0x301] sm:$0xff]
    %v1241 = vld [vmem:[%s1051 + $0x309] sm:$0xff]
    %v1242 = vld [vmem:[%s1051 + $0x319] sm:$0xff]
    %v1243 = vld [vmem:[%s1051 + $0x321] sm:$0xff]
    %v1244 = vpack.c.bf16 %v1181, %v1180
    %v1245 = vpack.c.bf16 %v1183, %v1182
    %v1246 = vpack.c.bf16 %v1185, %v1184
    %v1247 = vpack.c.bf16 %v1187, %v1186
    %v1248 = vpack.c.bf16 %v1189, %v1188
    %v1249 = vpack.c.bf16 %v1191, %v1190
    %v1250 = vpack.c.bf16 %v1193, %v1192
    %v1251 = vpack.c.bf16 %v1195, %v1194
    %v1252 = vpack.c.bf16 %v1197, %v1196
    %v1253 = vpack.c.bf16 %v1199, %v1198
    %v1254 = vpack.c.bf16 %v1201, %v1200
    %v1255 = vpack.c.bf16 %v1203, %v1202
    %v1256 = vpack.c.bf16 %v1205, %v1204
    %v1257 = vpack.c.bf16 %v1207, %v1206
    %v1258 = vpack.c.bf16 %v1209, %v1208
    %v1259 = vpack.c.bf16 %v1211, %v1210
    %v1260 = vpack.c.bf16 %v1213, %v1212
    %v1261 = vpack.c.bf16 %v1215, %v1214
    %v1262 = vpack.c.bf16 %v1217, %v1216
    %v1263 = vpack.c.bf16 %v1219, %v1218
    %v1264 = vpack.c.bf16 %v1221, %v1220
    %v1265 = vpack.c.bf16 %v1223, %v1222
    %v1266 = vpack.c.bf16 %v1225, %v1224
    %v1267 = vpack.c.bf16 %v1227, %v1226
    %v1268 = vpack.c.bf16 %v1229, %v1228
    %v1269 = vpack.c.bf16 %v1231, %v1230
    %v1270 = vpack.c.bf16 %v1233, %v1232
    %v1271 = vpack.c.bf16 %v1235, %v1234
    %v1272 = vpack.c.bf16 %v1237, %v1236
    %v1273 = vpack.c.bf16 %v1239, %v1238
    %v1274 = vpack.c.bf16 %v1241, %v1240
    %v1275 = vpack.c.bf16 %v1243, %v1242
    %1276 = vst [vmem:[#allocation3 + $0x38] sm:$0xff] %v1244
    %1277 = vst [vmem:[#allocation3 + $0x80] sm:$0xff] %v1245
    %1278 = vst [vmem:[#allocation3 + $0xc8] sm:$0xff] %v1246
    %1279 = vst [vmem:[#allocation3 + $0x110] sm:$0xff] %v1247
    %1280 = vst [vmem:[#allocation3 + $0x158] sm:$0xff] %v1248
    %1281 = vst [vmem:[#allocation3 + $0x1a0] sm:$0xff] %v1249
    %1282 = vst [vmem:[#allocation3 + $0x1e8] sm:$0xff] %v1250
    %1283 = vst [vmem:[#allocation3 + $0x230] sm:$0xff] %v1251
    %1284 = vst [vmem:[#allocation3 + $0x278] sm:$0xff] %v1252
    %1285 = vst [vmem:[#allocation3 + $0x2c0] sm:$0xff] %v1253
    %1286 = vst [vmem:[#allocation3 + $0x308] sm:$0xff] %v1254
    %1287 = vst [vmem:[#allocation3 + $0x350] sm:$0xff] %v1255
    %1288 = vst [vmem:[#allocation3 + $0x398] sm:$0xff] %v1256
    %1289 = vst [vmem:[#allocation3 + $0x3e0] sm:$0xff] %v1257
    %1290 = vst [vmem:[#allocation3 + $0x428] sm:$0xff] %v1258
    %1291 = vst [vmem:[#allocation3 + $0x470] sm:$0xff] %v1259
    %1292 = vst [vmem:[#allocation3 + $0x4b8] sm:$0xff] %v1260
    %1293 = vst [vmem:[#allocation3 + $0x500] sm:$0xff] %v1261
    %1294 = vst [vmem:[#allocation3 + $0x548] sm:$0xff] %v1262
    %1295 = vst [vmem:[#allocation3 + $0x590] sm:$0xff] %v1263
    %1296 = vst [vmem:[#allocation3 + $0x5d8] sm:$0xff] %v1264
    %1297 = vst [vmem:[#allocation3 + $0x620] sm:$0xff] %v1265
    %1298 = vst [vmem:[#allocation3 + $0x668] sm:$0xff] %v1266
    %1299 = vst [vmem:[#allocation3 + $0x6b0] sm:$0xff] %v1267
    %1300 = vst [vmem:[#allocation3 + $0x6f8] sm:$0xff] %v1268
    %1301 = vst [vmem:[#allocation3 + $0x740] sm:$0xff] %v1269
    %1302 = vst [vmem:[#allocation3 + $0x788] sm:$0xff] %v1270
    %1303 = vst [vmem:[#allocation3 + $0x7d0] sm:$0xff] %v1271
    %1304 = vst [vmem:[#allocation3 + $0x818] sm:$0xff] %v1272
    %1305 = vst [vmem:[#allocation3 + $0x860] sm:$0xff] %v1273
    %1306 = vst [vmem:[#allocation3 + $0x8a8] sm:$0xff] %v1274
    %1307 = vst [vmem:[#allocation3 + $0x8f0] sm:$0xff] %v1275
    %v1308 = vld [vmem:[%s1051 + $0x2] sm:$0xff]
    %v1309 = vld [vmem:[%s1051 + $0xa] sm:$0xff]
    %v1310 = vld [vmem:[%s1051 + $0x1a] sm:$0xff]
    %v1311 = vld [vmem:[%s1051 + $0x22] sm:$0xff]
    %v1312 = vld [vmem:[%s1051 + $0x32] sm:$0xff]
    %v1313 = vld [vmem:[%s1051 + $0x3a] sm:$0xff]
    %v1314 = vld [vmem:[%s1051 + $0x4a] sm:$0xff]
    %v1315 = vld [vmem:[%s1051 + $0x52] sm:$0xff]
    %v1316 = vld [vmem:[%s1051 + $0x62] sm:$0xff]
    %v1317 = vld [vmem:[%s1051 + $0x6a] sm:$0xff]
    %v1318 = vld [vmem:[%s1051 + $0x7a] sm:$0xff]
    %v1319 = vld [vmem:[%s1051 + $0x82] sm:$0xff]
    %v1320 = vld [vmem:[%s1051 + $0x92] sm:$0xff]
    %v1321 = vld [vmem:[%s1051 + $0x9a] sm:$0xff]
    %v1322 = vld [vmem:[%s1051 + $0xaa] sm:$0xff]
    %v1323 = vld [vmem:[%s1051 + $0xb2] sm:$0xff]
    %v1324 = vld [vmem:[%s1051 + $0xc2] sm:$0xff]
    %v1325 = vld [vmem:[%s1051 + $0xca] sm:$0xff]
    %v1326 = vld [vmem:[%s1051 + $0xda] sm:$0xff]
    %v1327 = vld [vmem:[%s1051 + $0xe2] sm:$0xff]
    %v1328 = vld [vmem:[%s1051 + $0xf2] sm:$0xff]
    %v1329 = vld [vmem:[%s1051 + $0xfa] sm:$0xff]
    %v1330 = vld [vmem:[%s1051 + $0x10a] sm:$0xff]
    %v1331 = vld [vmem:[%s1051 + $0x112] sm:$0xff]
    %v1332 = vld [vmem:[%s1051 + $0x122] sm:$0xff]
    %v1333 = vld [vmem:[%s1051 + $0x12a] sm:$0xff]
    %v1334 = vld [vmem:[%s1051 + $0x13a] sm:$0xff]
    %v1335 = vld [vmem:[%s1051 + $0x142] sm:$0xff]
    %v1336 = vld [vmem:[%s1051 + $0x152] sm:$0xff]
    %v1337 = vld [vmem:[%s1051 + $0x15a] sm:$0xff]
    %v1338 = vld [vmem:[%s1051 + $0x16a] sm:$0xff]
    %v1339 = vld [vmem:[%s1051 + $0x172] sm:$0xff]
    %v1340 = vld [vmem:[%s1051 + $0x1b2] sm:$0xff]
    %v1341 = vld [vmem:[%s1051 + $0x1ba] sm:$0xff]
    %v1342 = vld [vmem:[%s1051 + $0x1ca] sm:$0xff]
    %v1343 = vld [vmem:[%s1051 + $0x1d2] sm:$0xff]
    %v1344 = vld [vmem:[%s1051 + $0x1e2] sm:$0xff]
    %v1345 = vld [vmem:[%s1051 + $0x1ea] sm:$0xff]
    %v1346 = vld [vmem:[%s1051 + $0x1fa] sm:$0xff]
    %v1347 = vld [vmem:[%s1051 + $0x202] sm:$0xff]
    %v1348 = vld [vmem:[%s1051 + $0x212] sm:$0xff]
    %v1349 = vld [vmem:[%s1051 + $0x21a] sm:$0xff]
    %v1350 = vld [vmem:[%s1051 + $0x22a] sm:$0xff]
    %v1351 = vld [vmem:[%s1051 + $0x232] sm:$0xff]
    %v1352 = vld [vmem:[%s1051 + $0x242] sm:$0xff]
    %v1353 = vld [vmem:[%s1051 + $0x24a] sm:$0xff]
    %v1354 = vld [vmem:[%s1051 + $0x25a] sm:$0xff]
    %v1355 = vld [vmem:[%s1051 + $0x262] sm:$0xff]
    %v1356 = vld [vmem:[%s1051 + $0x272] sm:$0xff]
    %v1357 = vld [vmem:[%s1051 + $0x27a] sm:$0xff]
    %v1358 = vld [vmem:[%s1051 + $0x28a] sm:$0xff]
    %v1359 = vld [vmem:[%s1051 + $0x292] sm:$0xff]
    %v1360 = vld [vmem:[%s1051 + $0x2a2] sm:$0xff]
    %v1361 = vld [vmem:[%s1051 + $0x2aa] sm:$0xff]
    %v1362 = vld [vmem:[%s1051 + $0x2ba] sm:$0xff]
    %v1363 = vld [vmem:[%s1051 + $0x2c2] sm:$0xff]
    %v1364 = vld [vmem:[%s1051 + $0x2d2] sm:$0xff]
    %v1365 = vld [vmem:[%s1051 + $0x2da] sm:$0xff]
    %v1366 = vld [vmem:[%s1051 + $0x2ea] sm:$0xff]
    %v1367 = vld [vmem:[%s1051 + $0x2f2] sm:$0xff]
    %v1368 = vld [vmem:[%s1051 + $0x302] sm:$0xff]
    %v1369 = vld [vmem:[%s1051 + $0x30a] sm:$0xff]
    %v1370 = vld [vmem:[%s1051 + $0x31a] sm:$0xff]
    %v1371 = vld [vmem:[%s1051 + $0x322] sm:$0xff]
    %v1372 = vpack.c.bf16 %v1309, %v1308
    %v1373 = vpack.c.bf16 %v1311, %v1310
    %v1374 = vpack.c.bf16 %v1313, %v1312
    %v1375 = vpack.c.bf16 %v1315, %v1314
    %v1376 = vpack.c.bf16 %v1317, %v1316
    %v1377 = vpack.c.bf16 %v1319, %v1318
    %v1378 = vpack.c.bf16 %v1321, %v1320
    %v1379 = vpack.c.bf16 %v1323, %v1322
    %v1380 = vpack.c.bf16 %v1325, %v1324
    %v1381 = vpack.c.bf16 %v1327, %v1326
    %v1382 = vpack.c.bf16 %v1329, %v1328
    %v1383 = vpack.c.bf16 %v1331, %v1330
    %v1384 = vpack.c.bf16 %v1333, %v1332
    %v1385 = vpack.c.bf16 %v1335, %v1334
    %v1386 = vpack.c.bf16 %v1337, %v1336
    %v1387 = vpack.c.bf16 %v1339, %v1338
    %v1388 = vpack.c.bf16 %v1341, %v1340
    %v1389 = vpack.c.bf16 %v1343, %v1342
    %v1390 = vpack.c.bf16 %v1345, %v1344
    %v1391 = vpack.c.bf16 %v1347, %v1346
    %v1392 = vpack.c.bf16 %v1349, %v1348
    %v1393 = vpack.c.bf16 %v1351, %v1350
    %v1394 = vpack.c.bf16 %v1353, %v1352
    %v1395 = vpack.c.bf16 %v1355, %v1354
    %v1396 = vpack.c.bf16 %v1357, %v1356
    %v1397 = vpack.c.bf16 %v1359, %v1358
    %v1398 = vpack.c.bf16 %v1361, %v1360
    %v1399 = vpack.c.bf16 %v1363, %v1362
    %v1400 = vpack.c.bf16 %v1365, %v1364
    %v1401 = vpack.c.bf16 %v1367, %v1366
    %v1402 = vpack.c.bf16 %v1369, %v1368
    %v1403 = vpack.c.bf16 %v1371, %v1370
    %1404 = vst [vmem:[#allocation3 + $0x40] sm:$0xff] %v1372
    %1405 = vst [vmem:[#allocation3 + $0x88] sm:$0xff] %v1373
    %1406 = vst [vmem:[#allocation3 + $0xd0] sm:$0xff] %v1374
    %1407 = vst [vmem:[#allocation3 + $0x118] sm:$0xff] %v1375
    %1408 = vst [vmem:[#allocation3 + $0x160] sm:$0xff] %v1376
    %1409 = vst [vmem:[#allocation3 + $0x1a8] sm:$0xff] %v1377
    %1410 = vst [vmem:[#allocation3 + $0x1f0] sm:$0xff] %v1378
    %1411 = vst [vmem:[#allocation3 + $0x238] sm:$0xff] %v1379
    %1412 = vst [vmem:[#allocation3 + $0x280] sm:$0xff] %v1380
    %1413 = vst [vmem:[#allocation3 + $0x2c8] sm:$0xff] %v1381
    %1414 = vst [vmem:[#allocation3 + $0x310] sm:$0xff] %v1382
    %1415 = vst [vmem:[#allocation3 + $0x358] sm:$0xff] %v1383
    %1416 = vst [vmem:[#allocation3 + $0x3a0] sm:$0xff] %v1384
    %1417 = vst [vmem:[#allocation3 + $0x3e8] sm:$0xff] %v1385
    %1418 = vst [vmem:[#allocation3 + $0x430] sm:$0xff] %v1386
    %1419 = vst [vmem:[#allocation3 + $0x478] sm:$0xff] %v1387
    %1420 = vst [vmem:[#allocation3 + $0x4c0] sm:$0xff] %v1388
    %1421 = vst [vmem:[#allocation3 + $0x508] sm:$0xff] %v1389
    %1422 = vst [vmem:[#allocation3 + $0x550] sm:$0xff] %v1390
    %1423 = vst [vmem:[#allocation3 + $0x598] sm:$0xff] %v1391
    %1424 = vst [vmem:[#allocation3 + $0x5e0] sm:$0xff] %v1392
    %1425 = vst [vmem:[#allocation3 + $0x628] sm:$0xff] %v1393
    %1426 = vst [vmem:[#allocation3 + $0x670] sm:$0xff] %v1394
    %1427 = vst [vmem:[#allocation3 + $0x6b8] sm:$0xff] %v1395
    %1428 = vst [vmem:[#allocation3 + $0x700] sm:$0xff] %v1396
    %1429 = vst [vmem:[#allocation3 + $0x748] sm:$0xff] %v1397
    %1430 = vst [vmem:[#allocation3 + $0x790] sm:$0xff] %v1398
    %1431 = vst [vmem:[#allocation3 + $0x7d8] sm:$0xff] %v1399
    %1432 = vst [vmem:[#allocation3 + $0x820] sm:$0xff] %v1400
    %1433 = vst [vmem:[#allocation3 + $0x868] sm:$0xff] %v1401
    %1434 = vst [vmem:[#allocation3 + $0x8b0] sm:$0xff] %v1402
    %1435 = vst [vmem:[#allocation3 + $0x8f8] sm:$0xff] %v1403
    %v1436 = vld [vmem:[#allocation3] sm:$0xff]
    %v1437 = vld [vmem:[#allocation3 + $0x8] sm:$0xff]
    %v1438 = vld [vmem:[#allocation3 + $0x10] sm:$0xff]
    %v1439 = vld [vmem:[#allocation3 + $0x18] sm:$0xff]
    %v1440 = vld [vmem:[#allocation3 + $0x20] sm:$0xff]
    %v1441 = vld [vmem:[#allocation3 + $0x28] sm:$0xff]
    %v1442 = vld [vmem:[#allocation3 + $0x30] sm:$0xff]
    %v1443 = vld [vmem:[#allocation3 + $0x38] sm:$0xff]
    %v1444 = vld [vmem:[#allocation3 + $0x40] sm:$0xff]
    %v1445 = vld [vmem:[#allocation3 + $0x48] sm:$0xff]
    %v1446 = vld [vmem:[#allocation3 + $0x50] sm:$0xff]
    %v1447 = vld [vmem:[#allocation3 + $0x58] sm:$0xff]
    %v1448 = vld [vmem:[#allocation3 + $0x60] sm:$0xff]
    %v1449 = vld [vmem:[#allocation3 + $0x68] sm:$0xff]
    %v1450 = vld [vmem:[#allocation3 + $0x70] sm:$0xff]
    %v1451 = vld [vmem:[#allocation3 + $0x78] sm:$0xff]
    %v1452 = vld [vmem:[#allocation3 + $0x80] sm:$0xff]
    %v1453 = vld [vmem:[#allocation3 + $0x88] sm:$0xff]
    %v1454 = vld [vmem:[#allocation3 + $0x90] sm:$0xff]
    %v1455 = vld [vmem:[#allocation3 + $0x98] sm:$0xff]
    %v1456 = vld [vmem:[#allocation3 + $0xa0] sm:$0xff]
    %v1457 = vld [vmem:[#allocation3 + $0xa8] sm:$0xff]
    %v1458 = vld [vmem:[#allocation3 + $0xb0] sm:$0xff]
    %v1459 = vld [vmem:[#allocation3 + $0xb8] sm:$0xff]
    %v1460 = vld [vmem:[#allocation3 + $0xc0] sm:$0xff]
    %v1461 = vld [vmem:[#allocation3 + $0xc8] sm:$0xff]
    %v1462 = vld [vmem:[#allocation3 + $0xd0] sm:$0xff]
    %v1463 = vld [vmem:[#allocation3 + $0xd8] sm:$0xff]
    %v1464 = vld [vmem:[#allocation3 + $0xe0] sm:$0xff]
    %v1465 = vld [vmem:[#allocation3 + $0xe8] sm:$0xff]
    %v1466 = vld [vmem:[#allocation3 + $0xf0] sm:$0xff]
    %v1467 = vld [vmem:[#allocation3 + $0xf8] sm:$0xff]
    %v1468 = vld [vmem:[#allocation3 + $0x100] sm:$0xff]
    %v1469 = vld [vmem:[#allocation3 + $0x108] sm:$0xff]
    %v1470 = vld [vmem:[#allocation3 + $0x110] sm:$0xff]
    %v1471 = vld [vmem:[#allocation3 + $0x118] sm:$0xff]
    %v1472 = vld [vmem:[#allocation3 + $0x120] sm:$0xff]
    %v1473 = vld [vmem:[#allocation3 + $0x128] sm:$0xff]
    %v1474 = vld [vmem:[#allocation3 + $0x130] sm:$0xff]
    %v1475 = vld [vmem:[#allocation3 + $0x138] sm:$0xff]
    %v1476 = vld [vmem:[#allocation3 + $0x140] sm:$0xff]
    %v1477 = vld [vmem:[#allocation3 + $0x148] sm:$0xff]
    %v1478 = vld [vmem:[#allocation3 + $0x150] sm:$0xff]
    %v1479 = vld [vmem:[#allocation3 + $0x158] sm:$0xff]
    %v1480 = vld [vmem:[#allocation3 + $0x160] sm:$0xff]
    %v1481 = vld [vmem:[#allocation3 + $0x168] sm:$0xff]
    %v1482 = vld [vmem:[#allocation3 + $0x170] sm:$0xff]
    %v1483 = vld [vmem:[#allocation3 + $0x178] sm:$0xff]
    %v1484 = vld [vmem:[#allocation3 + $0x180] sm:$0xff]
    %v1485 = vld [vmem:[#allocation3 + $0x188] sm:$0xff]
    %v1486 = vld [vmem:[#allocation3 + $0x190] sm:$0xff]
    %v1487 = vld [vmem:[#allocation3 + $0x198] sm:$0xff]
    %v1488 = vld [vmem:[#allocation3 + $0x1a0] sm:$0xff]
    %v1489 = vld [vmem:[#allocation3 + $0x1a8] sm:$0xff]
    %v1490 = vld [vmem:[#allocation3 + $0x1b0] sm:$0xff]
    %v1491 = vld [vmem:[#allocation3 + $0x1b8] sm:$0xff]
    %v1492 = vld [vmem:[#allocation3 + $0x1c0] sm:$0xff]
    %v1493 = vld [vmem:[#allocation3 + $0x1c8] sm:$0xff]
    %v1494 = vld [vmem:[#allocation3 + $0x1d0] sm:$0xff]
    %v1495 = vld [vmem:[#allocation3 + $0x1d8] sm:$0xff]
    %v1496 = vld [vmem:[#allocation3 + $0x1e0] sm:$0xff]
    %v1497 = vld [vmem:[#allocation3 + $0x1e8] sm:$0xff]
    %v1498 = vld [vmem:[#allocation3 + $0x1f0] sm:$0xff]
    %v1499 = vld [vmem:[#allocation3 + $0x1f8] sm:$0xff]
    %v1500 = vld [vmem:[#allocation3 + $0x200] sm:$0xff]
    %v1501 = vld [vmem:[#allocation3 + $0x208] sm:$0xff]
    %v1502 = vld [vmem:[#allocation3 + $0x210] sm:$0xff]
    %v1503 = vld [vmem:[#allocation3 + $0x218] sm:$0xff]
    %v1504 = vld [vmem:[#allocation3 + $0x220] sm:$0xff]
    %v1505 = vld [vmem:[#allocation3 + $0x228] sm:$0xff]
    %v1506 = vld [vmem:[#allocation3 + $0x230] sm:$0xff]
    %v1507 = vld [vmem:[#allocation3 + $0x238] sm:$0xff]
    %v1508 = vld [vmem:[#allocation3 + $0x240] sm:$0xff]
    %v1509 = vld [vmem:[#allocation3 + $0x248] sm:$0xff]
    %v1510 = vld [vmem:[#allocation3 + $0x250] sm:$0xff]
    %v1511 = vld [vmem:[#allocation3 + $0x258] sm:$0xff]
    %v1512 = vld [vmem:[#allocation3 + $0x260] sm:$0xff]
    %v1513 = vld [vmem:[#allocation3 + $0x268] sm:$0xff]
    %v1514 = vld [vmem:[#allocation3 + $0x270] sm:$0xff]
    %v1515 = vld [vmem:[#allocation3 + $0x278] sm:$0xff]
    %v1516 = vld [vmem:[#allocation3 + $0x280] sm:$0xff]
    %v1517 = vld [vmem:[#allocation3 + $0x288] sm:$0xff]
    %v1518 = vld [vmem:[#allocation3 + $0x290] sm:$0xff]
    %v1519 = vld [vmem:[#allocation3 + $0x298] sm:$0xff]
    %v1520 = vld [vmem:[#allocation3 + $0x2a0] sm:$0xff]
    %v1521 = vld [vmem:[#allocation3 + $0x2a8] sm:$0xff]
    %v1522 = vld [vmem:[#allocation3 + $0x2b0] sm:$0xff]
    %v1523 = vld [vmem:[#allocation3 + $0x2b8] sm:$0xff]
    %v1524 = vld [vmem:[#allocation3 + $0x2c0] sm:$0xff]
    %v1525 = vld [vmem:[#allocation3 + $0x2c8] sm:$0xff]
    %v1526 = vld [vmem:[#allocation3 + $0x2d0] sm:$0xff]
    %v1527 = vld [vmem:[#allocation3 + $0x2d8] sm:$0xff]
    %v1528 = vld [vmem:[#allocation3 + $0x2e0] sm:$0xff]
    %v1529 = vld [vmem:[#allocation3 + $0x2e8] sm:$0xff]
    %v1530 = vld [vmem:[#allocation3 + $0x2f0] sm:$0xff]
    %v1531 = vld [vmem:[#allocation3 + $0x2f8] sm:$0xff]
    %v1532 = vld [vmem:[#allocation3 + $0x300] sm:$0xff]
    %v1533 = vld [vmem:[#allocation3 + $0x308] sm:$0xff]
    %v1534 = vld [vmem:[#allocation3 + $0x310] sm:$0xff]
    %v1535 = vld [vmem:[#allocation3 + $0x318] sm:$0xff]
    %v1536 = vld [vmem:[#allocation3 + $0x320] sm:$0xff]
    %v1537 = vld [vmem:[#allocation3 + $0x328] sm:$0xff]
    %v1538 = vld [vmem:[#allocation3 + $0x330] sm:$0xff]
    %v1539 = vld [vmem:[#allocation3 + $0x338] sm:$0xff]
    %v1540 = vld [vmem:[#allocation3 + $0x340] sm:$0xff]
    %v1541 = vld [vmem:[#allocation3 + $0x348] sm:$0xff]
    %v1542 = vld [vmem:[#allocation3 + $0x350] sm:$0xff]
    %v1543 = vld [vmem:[#allocation3 + $0x358] sm:$0xff]
    %v1544 = vld [vmem:[#allocation3 + $0x360] sm:$0xff]
    %v1545 = vld [vmem:[#allocation3 + $0x368] sm:$0xff]
    %v1546 = vld [vmem:[#allocation3 + $0x370] sm:$0xff]
    %v1547 = vld [vmem:[#allocation3 + $0x378] sm:$0xff]
    %v1548 = vld [vmem:[#allocation3 + $0x380] sm:$0xff]
    %v1549 = vld [vmem:[#allocation3 + $0x388] sm:$0xff]
    %v1550 = vld [vmem:[#allocation3 + $0x390] sm:$0xff]
    %v1551 = vld [vmem:[#allocation3 + $0x398] sm:$0xff]
    %v1552 = vld [vmem:[#allocation3 + $0x3a0] sm:$0xff]
    %v1553 = vld [vmem:[#allocation3 + $0x3a8] sm:$0xff]
    %v1554 = vld [vmem:[#allocation3 + $0x3b0] sm:$0xff]
    %v1555 = vld [vmem:[#allocation3 + $0x3b8] sm:$0xff]
    %v1556 = vld [vmem:[#allocation3 + $0x3c0] sm:$0xff]
    %v1557 = vld [vmem:[#allocation3 + $0x3c8] sm:$0xff]
    %v1558 = vld [vmem:[#allocation3 + $0x3d0] sm:$0xff]
    %v1559 = vld [vmem:[#allocation3 + $0x3d8] sm:$0xff]
    %v1560 = vld [vmem:[#allocation3 + $0x3e0] sm:$0xff]
    %v1561 = vld [vmem:[#allocation3 + $0x3e8] sm:$0xff]
    %v1562 = vld [vmem:[#allocation3 + $0x3f0] sm:$0xff]
    %v1563 = vld [vmem:[#allocation3 + $0x3f8] sm:$0xff]
    %v1564 = vld [vmem:[#allocation3 + $0x400] sm:$0xff]
    %v1565 = vld [vmem:[#allocation3 + $0x408] sm:$0xff]
    %v1566 = vld [vmem:[#allocation3 + $0x410] sm:$0xff]
    %v1567 = vld [vmem:[#allocation3 + $0x418] sm:$0xff]
    %v1568 = vld [vmem:[#allocation3 + $0x420] sm:$0xff]
    %v1569 = vld [vmem:[#allocation3 + $0x428] sm:$0xff]
    %v1570 = vld [vmem:[#allocation3 + $0x430] sm:$0xff]
    %v1571 = vld [vmem:[#allocation3 + $0x438] sm:$0xff]
    %v1572 = vld [vmem:[#allocation3 + $0x440] sm:$0xff]
    %v1573 = vld [vmem:[#allocation3 + $0x448] sm:$0xff]
    %v1574 = vld [vmem:[#allocation3 + $0x450] sm:$0xff]
    %v1575 = vld [vmem:[#allocation3 + $0x458] sm:$0xff]
    %v1576 = vld [vmem:[#allocation3 + $0x460] sm:$0xff]
    %v1577 = vld [vmem:[#allocation3 + $0x468] sm:$0xff]
    %v1578 = vld [vmem:[#allocation3 + $0x470] sm:$0xff]
    %v1579 = vld [vmem:[#allocation3 + $0x478] sm:$0xff]
    %v1580 = vld [vmem:[#allocation3 + $0x480] sm:$0xff]
    %v1581 = vld [vmem:[#allocation3 + $0x488] sm:$0xff]
    %v1582 = vld [vmem:[#allocation3 + $0x490] sm:$0xff]
    %v1583 = vld [vmem:[#allocation3 + $0x498] sm:$0xff]
    %v1584 = vld [vmem:[#allocation3 + $0x4a0] sm:$0xff]
    %v1585 = vld [vmem:[#allocation3 + $0x4a8] sm:$0xff]
    %v1586 = vld [vmem:[#allocation3 + $0x4b0] sm:$0xff]
    %v1587 = vld [vmem:[#allocation3 + $0x4b8] sm:$0xff]
    %v1588 = vld [vmem:[#allocation3 + $0x4c0] sm:$0xff]
    %v1589 = vld [vmem:[#allocation3 + $0x4c8] sm:$0xff]
    %v1590 = vld [vmem:[#allocation3 + $0x4d0] sm:$0xff]
    %v1591 = vld [vmem:[#allocation3 + $0x4d8] sm:$0xff]
    %v1592 = vld [vmem:[#allocation3 + $0x4e0] sm:$0xff]
    %v1593 = vld [vmem:[#allocation3 + $0x4e8] sm:$0xff]
    %v1594 = vld [vmem:[#allocation3 + $0x4f0] sm:$0xff]
    %v1595 = vld [vmem:[#allocation3 + $0x4f8] sm:$0xff]
    %v1596 = vld [vmem:[#allocation3 + $0x500] sm:$0xff]
    %v1597 = vld [vmem:[#allocation3 + $0x508] sm:$0xff]
    %v1598 = vld [vmem:[#allocation3 + $0x510] sm:$0xff]
    %v1599 = vld [vmem:[#allocation3 + $0x518] sm:$0xff]
    %v1600 = vld [vmem:[#allocation3 + $0x520] sm:$0xff]
    %v1601 = vld [vmem:[#allocation3 + $0x528] sm:$0xff]
    %v1602 = vld [vmem:[#allocation3 + $0x530] sm:$0xff]
    %v1603 = vld [vmem:[#allocation3 + $0x538] sm:$0xff]
    %v1604 = vld [vmem:[#allocation3 + $0x540] sm:$0xff]
    %v1605 = vld [vmem:[#allocation3 + $0x548] sm:$0xff]
    %v1606 = vld [vmem:[#allocation3 + $0x550] sm:$0xff]
    %v1607 = vld [vmem:[#allocation3 + $0x558] sm:$0xff]
    %v1608 = vld [vmem:[#allocation3 + $0x560] sm:$0xff]
    %v1609 = vld [vmem:[#allocation3 + $0x568] sm:$0xff]
    %v1610 = vld [vmem:[#allocation3 + $0x570] sm:$0xff]
    %v1611 = vld [vmem:[#allocation3 + $0x578] sm:$0xff]
    %v1612 = vld [vmem:[#allocation3 + $0x580] sm:$0xff]
    %v1613 = vld [vmem:[#allocation3 + $0x588] sm:$0xff]
    %v1614 = vld [vmem:[#allocation3 + $0x590] sm:$0xff]
    %v1615 = vld [vmem:[#allocation3 + $0x598] sm:$0xff]
    %v1616 = vld [vmem:[#allocation3 + $0x5a0] sm:$0xff]
    %v1617 = vld [vmem:[#allocation3 + $0x5a8] sm:$0xff]
    %v1618 = vld [vmem:[#allocation3 + $0x5b0] sm:$0xff]
    %v1619 = vld [vmem:[#allocation3 + $0x5b8] sm:$0xff]
    %v1620 = vld [vmem:[#allocation3 + $0x5c0] sm:$0xff]
    %v1621 = vld [vmem:[#allocation3 + $0x5c8] sm:$0xff]
    %v1622 = vld [vmem:[#allocation3 + $0x5d0] sm:$0xff]
    %v1623 = vld [vmem:[#allocation3 + $0x5d8] sm:$0xff]
    %v1624 = vld [vmem:[#allocation3 + $0x5e0] sm:$0xff]
    %v1625 = vld [vmem:[#allocation3 + $0x5e8] sm:$0xff]
    %v1626 = vld [vmem:[#allocation3 + $0x5f0] sm:$0xff]
    %v1627 = vld [vmem:[#allocation3 + $0x5f8] sm:$0xff]
    %v1628 = vld [vmem:[#allocation3 + $0x600] sm:$0xff]
    %v1629 = vld [vmem:[#allocation3 + $0x608] sm:$0xff]
    %v1630 = vld [vmem:[#allocation3 + $0x610] sm:$0xff]
    %v1631 = vld [vmem:[#allocation3 + $0x618] sm:$0xff]
    %v1632 = vld [vmem:[#allocation3 + $0x620] sm:$0xff]
    %v1633 = vld [vmem:[#allocation3 + $0x628] sm:$0xff]
    %v1634 = vld [vmem:[#allocation3 + $0x630] sm:$0xff]
    %v1635 = vld [vmem:[#allocation3 + $0x638] sm:$0xff]
    %v1636 = vld [vmem:[#allocation3 + $0x640] sm:$0xff]
    %v1637 = vld [vmem:[#allocation3 + $0x648] sm:$0xff]
    %v1638 = vld [vmem:[#allocation3 + $0x650] sm:$0xff]
    %v1639 = vld [vmem:[#allocation3 + $0x658] sm:$0xff]
    %v1640 = vld [vmem:[#allocation3 + $0x660] sm:$0xff]
    %v1641 = vld [vmem:[#allocation3 + $0x668] sm:$0xff]
    %v1642 = vld [vmem:[#allocation3 + $0x670] sm:$0xff]
    %v1643 = vld [vmem:[#allocation3 + $0x678] sm:$0xff]
    %v1644 = vld [vmem:[#allocation3 + $0x680] sm:$0xff]
    %v1645 = vld [vmem:[#allocation3 + $0x688] sm:$0xff]
    %v1646 = vld [vmem:[#allocation3 + $0x690] sm:$0xff]
    %v1647 = vld [vmem:[#allocation3 + $0x698] sm:$0xff]
    %v1648 = vld [vmem:[#allocation3 + $0x6a0] sm:$0xff]
    %v1649 = vld [vmem:[#allocation3 + $0x6a8] sm:$0xff]
    %v1650 = vld [vmem:[#allocation3 + $0x6b0] sm:$0xff]
    %v1651 = vld [vmem:[#allocation3 + $0x6b8] sm:$0xff]
    %v1652 = vld [vmem:[#allocation3 + $0x6c0] sm:$0xff]
    %v1653 = vld [vmem:[#allocation3 + $0x6c8] sm:$0xff]
    %v1654 = vld [vmem:[#allocation3 + $0x6d0] sm:$0xff]
    %v1655 = vld [vmem:[#allocation3 + $0x6d8] sm:$0xff]
    %v1656 = vld [vmem:[#allocation3 + $0x6e0] sm:$0xff]
    %v1657 = vld [vmem:[#allocation3 + $0x6e8] sm:$0xff]
    %v1658 = vld [vmem:[#allocation3 + $0x6f0] sm:$0xff]
    %v1659 = vld [vmem:[#allocation3 + $0x6f8] sm:$0xff]
    %v1660 = vld [vmem:[#allocation3 + $0x700] sm:$0xff]
    %v1661 = vld [vmem:[#allocation3 + $0x708] sm:$0xff]
    %v1662 = vld [vmem:[#allocation3 + $0x710] sm:$0xff]
    %v1663 = vld [vmem:[#allocation3 + $0x718] sm:$0xff]
    %v1664 = vld [vmem:[#allocation3 + $0x720] sm:$0xff]
    %v1665 = vld [vmem:[#allocation3 + $0x728] sm:$0xff]
    %v1666 = vld [vmem:[#allocation3 + $0x730] sm:$0xff]
    %v1667 = vld [vmem:[#allocation3 + $0x738] sm:$0xff]
    %v1668 = vld [vmem:[#allocation3 + $0x740] sm:$0xff]
    %v1669 = vld [vmem:[#allocation3 + $0x748] sm:$0xff]
    %v1670 = vld [vmem:[#allocation3 + $0x750] sm:$0xff]
    %v1671 = vld [vmem:[#allocation3 + $0x758] sm:$0xff]
    %v1672 = vld [vmem:[#allocation3 + $0x760] sm:$0xff]
    %v1673 = vld [vmem:[#allocation3 + $0x768] sm:$0xff]
    %v1674 = vld [vmem:[#allocation3 + $0x770] sm:$0xff]
    %v1675 = vld [vmem:[#allocation3 + $0x778] sm:$0xff]
    %v1676 = vld [vmem:[#allocation3 + $0x780] sm:$0xff]
    %v1677 = vld [vmem:[#allocation3 + $0x788] sm:$0xff]
    %v1678 = vld [vmem:[#allocation3 + $0x790] sm:$0xff]
    %v1679 = vld [vmem:[#allocation3 + $0x798] sm:$0xff]
    %v1680 = vld [vmem:[#allocation3 + $0x7a0] sm:$0xff]
    %v1681 = vld [vmem:[#allocation3 + $0x7a8] sm:$0xff]
    %v1682 = vld [vmem:[#allocation3 + $0x7b0] sm:$0xff]
    %v1683 = vld [vmem:[#allocation3 + $0x7b8] sm:$0xff]
    %v1684 = vld [vmem:[#allocation3 + $0x7c0] sm:$0xff]
    %v1685 = vld [vmem:[#allocation3 + $0x7c8] sm:$0xff]
    %v1686 = vld [vmem:[#allocation3 + $0x7d0] sm:$0xff]
    %v1687 = vld [vmem:[#allocation3 + $0x7d8] sm:$0xff]
    %v1688 = vld [vmem:[#allocation3 + $0x7e0] sm:$0xff]
    %v1689 = vld [vmem:[#allocation3 + $0x7e8] sm:$0xff]
    %v1690 = vld [vmem:[#allocation3 + $0x7f0] sm:$0xff]
    %v1691 = vld [vmem:[#allocation3 + $0x7f8] sm:$0xff]
    %v1692 = vld [vmem:[#allocation3 + $0x800] sm:$0xff]
    %v1693 = vld [vmem:[#allocation3 + $0x808] sm:$0xff]
    %v1694 = vld [vmem:[#allocation3 + $0x810] sm:$0xff]
    %v1695 = vld [vmem:[#allocation3 + $0x818] sm:$0xff]
    %v1696 = vld [vmem:[#allocation3 + $0x820] sm:$0xff]
    %v1697 = vld [vmem:[#allocation3 + $0x828] sm:$0xff]
    %v1698 = vld [vmem:[#allocation3 + $0x830] sm:$0xff]
    %v1699 = vld [vmem:[#allocation3 + $0x838] sm:$0xff]
    %v1700 = vld [vmem:[#allocation3 + $0x840] sm:$0xff]
    %v1701 = vld [vmem:[#allocation3 + $0x848] sm:$0xff]
    %v1702 = vld [vmem:[#allocation3 + $0x850] sm:$0xff]
    %v1703 = vld [vmem:[#allocation3 + $0x858] sm:$0xff]
    %v1704 = vld [vmem:[#allocation3 + $0x860] sm:$0xff]
    %v1705 = vld [vmem:[#allocation3 + $0x868] sm:$0xff]
    %v1706 = vld [vmem:[#allocation3 + $0x870] sm:$0xff]
    %v1707 = vld [vmem:[#allocation3 + $0x878] sm:$0xff]
    %v1708 = vld [vmem:[#allocation3 + $0x880] sm:$0xff]
    %v1709 = vld [vmem:[#allocation3 + $0x888] sm:$0xff]
    %v1710 = vld [vmem:[#allocation3 + $0x890] sm:$0xff]
    %v1711 = vld [vmem:[#allocation3 + $0x898] sm:$0xff]
    %v1712 = vld [vmem:[#allocation3 + $0x8a0] sm:$0xff]
    %v1713 = vld [vmem:[#allocation3 + $0x8a8] sm:$0xff]
    %v1714 = vld [vmem:[#allocation3 + $0x8b0] sm:$0xff]
    %v1715 = vld [vmem:[#allocation3 + $0x8b8] sm:$0xff]
    %v1716 = vld [vmem:[#allocation3 + $0x8c0] sm:$0xff]
    %v1717 = vld [vmem:[#allocation3 + $0x8c8] sm:$0xff]
    %v1718 = vld [vmem:[#allocation3 + $0x8d0] sm:$0xff]
    %v1719 = vld [vmem:[#allocation3 + $0x8d8] sm:$0xff]
    %v1720 = vld [vmem:[#allocation3 + $0x8e0] sm:$0xff]
    %v1721 = vld [vmem:[#allocation3 + $0x8e8] sm:$0xff]
    %v1722 = vld [vmem:[#allocation3 + $0x8f0] sm:$0xff]
    %v1723 = vld [vmem:[#allocation3 + $0x8f8] sm:$0xff]
    %v1724 = vld [vmem:[#allocation7] sm:$0xf]
    %v1725 = vld [vmem:[#allocation7 + $0x4] sm:$0xf]
    %v1726 = vld [vmem:[#allocation7 + $0x8] sm:$0xf]
    %v1727 = vld [vmem:[#allocation7 + $0xc] sm:$0xf]
    %v1728 = vld [vmem:[#allocation7 + $0x10] sm:$0xf]
    %v1729 = vld [vmem:[#allocation7 + $0x14] sm:$0xf]
    %v1730 = vld [vmem:[#allocation7 + $0x18] sm:$0xf]
    %v1731 = vld [vmem:[#allocation7 + $0x1c] sm:$0xf]
    %v1732 = vld [vmem:[#allocation7 + $0x20] sm:$0xf]
    %v1733 = vld [vmem:[#allocation7 + $0x24] sm:$0xf]
    %v1734 = vld [vmem:[#allocation7 + $0x28] sm:$0xf]
    %v1735 = vld [vmem:[#allocation7 + $0x2c] sm:$0xf]
    %v1736 = vld [vmem:[#allocation7 + $0x30] sm:$0xf]
    %v1737 = vld [vmem:[#allocation7 + $0x34] sm:$0xf]
    %v1738 = vld [vmem:[#allocation7 + $0x38] sm:$0xf]
    %v1739 = vld [vmem:[#allocation7 + $0x3c] sm:$0xf]
    %v1740 = vld [vmem:[#allocation7 + $0x40] sm:$0xf]
    %v1741 = vld [vmem:[#allocation7 + $0x44] sm:$0xf]
    %v1742 = vld [vmem:[#allocation7 + $0x48] sm:$0xf]
    %v1743 = vld [vmem:[#allocation7 + $0x4c] sm:$0xf]
    %v1744 = vld [vmem:[#allocation7 + $0x50] sm:$0xf]
    %v1745 = vld [vmem:[#allocation7 + $0x54] sm:$0xf]
    %v1746 = vld [vmem:[#allocation7 + $0x58] sm:$0xf]
    %v1747 = vld [vmem:[#allocation7 + $0x5c] sm:$0xf]
    %v1748 = vld [vmem:[#allocation7 + $0x60] sm:$0xf]
    %v1749 = vld [vmem:[#allocation7 + $0x64] sm:$0xf]
    %v1750 = vld [vmem:[#allocation7 + $0x68] sm:$0xf]
    %v1751 = vld [vmem:[#allocation7 + $0x6c] sm:$0xf]
    %v1752 = vld [vmem:[#allocation7 + $0x70] sm:$0xf]
    %v1753 = vld [vmem:[#allocation7 + $0x74] sm:$0xf]
    %v1754 = vld [vmem:[#allocation7 + $0x78] sm:$0xf]
    %v1755 = vld [vmem:[#allocation7 + $0x7c] sm:$0xf]
    %v1756 = vld [vmem:[#allocation7 + $0x80] sm:$0xf]
    %v1757 = vld [vmem:[#allocation7 + $0x84] sm:$0xf]
    %v1758 = vld [vmem:[#allocation7 + $0x88] sm:$0xf]
    %v1759 = vld [vmem:[#allocation7 + $0x8c] sm:$0xf]
    %v1760 = vld [vmem:[#allocation7 + $0x90] sm:$0xf]
    %v1761 = vld [vmem:[#allocation7 + $0x94] sm:$0xf]
    %v1762 = vld [vmem:[#allocation7 + $0x98] sm:$0xf]
    %v1763 = vld [vmem:[#allocation7 + $0x9c] sm:$0xf]
    %v1764 = vld [vmem:[#allocation7 + $0xa0] sm:$0xf]
    %v1765 = vld [vmem:[#allocation7 + $0xa4] sm:$0xf]
    %v1766 = vld [vmem:[#allocation7 + $0xa8] sm:$0xf]
    %v1767 = vld [vmem:[#allocation7 + $0xac] sm:$0xf]
    %v1768 = vld [vmem:[#allocation7 + $0xb0] sm:$0xf]
    %v1769 = vld [vmem:[#allocation7 + $0xb4] sm:$0xf]
    %v1770 = vld [vmem:[#allocation7 + $0xb8] sm:$0xf]
    %v1771 = vld [vmem:[#allocation7 + $0xbc] sm:$0xf]
    %v1772 = vld [vmem:[#allocation7 + $0xc0] sm:$0xf]
    %v1773 = vld [vmem:[#allocation7 + $0xc4] sm:$0xf]
    %v1774 = vld [vmem:[#allocation7 + $0xc8] sm:$0xf]
    %v1775 = vld [vmem:[#allocation7 + $0xcc] sm:$0xf]
    %v1776 = vld [vmem:[#allocation7 + $0xd0] sm:$0xf]
    %v1777 = vld [vmem:[#allocation7 + $0xd4] sm:$0xf]
    %v1778 = vld [vmem:[#allocation7 + $0xd8] sm:$0xf]
    %v1779 = vld [vmem:[#allocation7 + $0xdc] sm:$0xf]
    %v1780 = vld [vmem:[#allocation7 + $0xe0] sm:$0xf]
    %v1781 = vld [vmem:[#allocation7 + $0xe4] sm:$0xf]
    %v1782 = vld [vmem:[#allocation7 + $0xe8] sm:$0xf]
    %v1783 = vld [vmem:[#allocation7 + $0xec] sm:$0xf]
    %v1784 = vld [vmem:[#allocation7 + $0xf0] sm:$0xf]
    %v1785 = vld [vmem:[#allocation7 + $0xf4] sm:$0xf]
    %v1786 = vld [vmem:[#allocation7 + $0xf8] sm:$0xf]
    %v1787 = vld [vmem:[#allocation7 + $0xfc] sm:$0xf]
    %v1788 = vld [vmem:[#allocation7 + $0x100] sm:$0xf]
    %v1789 = vld [vmem:[#allocation7 + $0x104] sm:$0xf]
    %v1790 = vld [vmem:[#allocation7 + $0x108] sm:$0xf]
    %v1791 = vld [vmem:[#allocation7 + $0x10c] sm:$0xf]
    %v1792 = vld [vmem:[#allocation7 + $0x110] sm:$0xf]
    %v1793 = vld [vmem:[#allocation7 + $0x114] sm:$0xf]
    %v1794 = vld [vmem:[#allocation7 + $0x118] sm:$0xf]
    %v1795 = vld [vmem:[#allocation7 + $0x11c] sm:$0xf]
    %v1796 = vld [vmem:[#allocation7 + $0x120] sm:$0xf]
    %v1797 = vld [vmem:[#allocation7 + $0x124] sm:$0xf]
    %v1798 = vld [vmem:[#allocation7 + $0x128] sm:$0xf]
    %v1799 = vld [vmem:[#allocation7 + $0x12c] sm:$0xf]
    %v1800 = vld [vmem:[#allocation7 + $0x130] sm:$0xf]
    %v1801 = vld [vmem:[#allocation7 + $0x134] sm:$0xf]
    %v1802 = vld [vmem:[#allocation7 + $0x138] sm:$0xf]
    %v1803 = vld [vmem:[#allocation7 + $0x13c] sm:$0xf]
    %v1804 = vld [vmem:[#allocation7 + $0x140] sm:$0xf]
    %v1805 = vld [vmem:[#allocation7 + $0x144] sm:$0xf]
    %v1806 = vld [vmem:[#allocation7 + $0x148] sm:$0xf]
    %v1807 = vld [vmem:[#allocation7 + $0x14c] sm:$0xf]
    %v1808 = vld [vmem:[#allocation7 + $0x150] sm:$0xf]
    %v1809 = vld [vmem:[#allocation7 + $0x154] sm:$0xf]
    %v1810 = vld [vmem:[#allocation7 + $0x158] sm:$0xf]
    %v1811 = vld [vmem:[#allocation7 + $0x15c] sm:$0xf]
    %v1812 = vld [vmem:[#allocation7 + $0x160] sm:$0xf]
    %v1813 = vld [vmem:[#allocation7 + $0x164] sm:$0xf]
    %v1814 = vld [vmem:[#allocation7 + $0x168] sm:$0xf]
    %v1815 = vld [vmem:[#allocation7 + $0x16c] sm:$0xf]
    %v1816 = vld [vmem:[#allocation7 + $0x170] sm:$0xf]
    %v1817 = vld [vmem:[#allocation7 + $0x174] sm:$0xf]
    %v1818 = vld [vmem:[#allocation7 + $0x178] sm:$0xf]
    %v1819 = vld [vmem:[#allocation7 + $0x17c] sm:$0xf]
    %v1820 = vld [vmem:[#allocation7 + $0x180] sm:$0xf]
    %v1821 = vld [vmem:[#allocation7 + $0x184] sm:$0xf]
    %v1822 = vld [vmem:[#allocation7 + $0x188] sm:$0xf]
    %v1823 = vld [vmem:[#allocation7 + $0x18c] sm:$0xf]
    %v1824 = vld [vmem:[#allocation7 + $0x190] sm:$0xf]
    %v1825 = vld [vmem:[#allocation7 + $0x194] sm:$0xf]
    %v1826 = vld [vmem:[#allocation7 + $0x198] sm:$0xf]
    %v1827 = vld [vmem:[#allocation7 + $0x19c] sm:$0xf]
    %v1828 = vld [vmem:[#allocation7 + $0x1a0] sm:$0xf]
    %v1829 = vld [vmem:[#allocation7 + $0x1a4] sm:$0xf]
    %v1830 = vld [vmem:[#allocation7 + $0x1a8] sm:$0xf]
    %v1831 = vld [vmem:[#allocation7 + $0x1ac] sm:$0xf]
    %v1832 = vld [vmem:[#allocation7 + $0x1b0] sm:$0xf]
    %v1833 = vld [vmem:[#allocation7 + $0x1b4] sm:$0xf]
    %v1834 = vld [vmem:[#allocation7 + $0x1b8] sm:$0xf]
    %v1835 = vld [vmem:[#allocation7 + $0x1bc] sm:$0xf]
    %v1836 = vld [vmem:[#allocation7 + $0x1c0] sm:$0xf]
    %v1837 = vld [vmem:[#allocation7 + $0x1c4] sm:$0xf]
    %v1838 = vld [vmem:[#allocation7 + $0x1c8] sm:$0xf]
    %v1839 = vld [vmem:[#allocation7 + $0x1cc] sm:$0xf]
    %v1840 = vld [vmem:[#allocation7 + $0x1d0] sm:$0xf]
    %v1841 = vld [vmem:[#allocation7 + $0x1d4] sm:$0xf]
    %v1842 = vld [vmem:[#allocation7 + $0x1d8] sm:$0xf]
    %v1843 = vld [vmem:[#allocation7 + $0x1dc] sm:$0xf]
    %v1844 = vld [vmem:[#allocation7 + $0x1e0] sm:$0xf]
    %v1845 = vld [vmem:[#allocation7 + $0x1e4] sm:$0xf]
    %v1846 = vld [vmem:[#allocation7 + $0x1e8] sm:$0xf]
    %v1847 = vld [vmem:[#allocation7 + $0x1ec] sm:$0xf]
    %v1848 = vld [vmem:[#allocation7 + $0x1f0] sm:$0xf]
    %v1849 = vld [vmem:[#allocation7 + $0x1f4] sm:$0xf]
    %v1850 = vld [vmem:[#allocation7 + $0x1f8] sm:$0xf]
    %v1851 = vld [vmem:[#allocation7 + $0x1fc] sm:$0xf]
    %v1852 = vld [vmem:[#allocation7 + $0x200] sm:$0xf]
    %v1853 = vld [vmem:[#allocation7 + $0x204] sm:$0xf]
    %v1854 = vld [vmem:[#allocation7 + $0x208] sm:$0xf]
    %v1855 = vld [vmem:[#allocation7 + $0x20c] sm:$0xf]
    %v1856 = vld [vmem:[#allocation7 + $0x210] sm:$0xf]
    %v1857 = vld [vmem:[#allocation7 + $0x214] sm:$0xf]
    %v1858 = vld [vmem:[#allocation7 + $0x218] sm:$0xf]
    %v1859 = vld [vmem:[#allocation7 + $0x21c] sm:$0xf]
    %v1860 = vld [vmem:[#allocation7 + $0x220] sm:$0xf]
    %v1861 = vld [vmem:[#allocation7 + $0x224] sm:$0xf]
    %v1862 = vld [vmem:[#allocation7 + $0x228] sm:$0xf]
    %v1863 = vld [vmem:[#allocation7 + $0x22c] sm:$0xf]
    %v1864 = vld [vmem:[#allocation7 + $0x230] sm:$0xf]
    %v1865 = vld [vmem:[#allocation7 + $0x234] sm:$0xf]
    %v1866 = vld [vmem:[#allocation7 + $0x238] sm:$0xf]
    %v1867 = vld [vmem:[#allocation7 + $0x23c] sm:$0xf]
    %v2012 = vunpack.c.l.b16 %v1724
    %v2013 = vunpack.c.l.b16 %v1725
    %v2014 = vunpack.c.l.b16 %v1726
    %v2015 = vunpack.c.l.b16 %v1727
    %v2016 = vunpack.c.l.b16 %v1728
    %v2017 = vunpack.c.l.b16 %v1729
    %v2018 = vunpack.c.l.b16 %v1730
    %v2019 = vunpack.c.l.b16 %v1731
    %v2020 = vunpack.c.l.b16 %v1732
    %v2021 = vunpack.c.l.b16 %v1733
    %v2022 = vunpack.c.l.b16 %v1734
    %v2023 = vunpack.c.l.b16 %v1735
    %v2024 = vunpack.c.l.b16 %v1736
    %v2025 = vunpack.c.l.b16 %v1737
    %v2026 = vunpack.c.l.b16 %v1738
    %v2027 = vunpack.c.l.b16 %v1739
    %v2028 = vunpack.c.l.b16 %v1740
    %v2029 = vunpack.c.l.b16 %v1741
    %v2030 = vunpack.c.l.b16 %v1742
    %v2031 = vunpack.c.l.b16 %v1743
    %v2032 = vunpack.c.l.b16 %v1744
    %v2033 = vunpack.c.l.b16 %v1745
    %v2034 = vunpack.c.l.b16 %v1746
    %v2035 = vunpack.c.l.b16 %v1747
    %v2036 = vunpack.c.l.b16 %v1748
    %v2037 = vunpack.c.l.b16 %v1749
    %v2038 = vunpack.c.l.b16 %v1750
    %v2039 = vunpack.c.l.b16 %v1751
    %v2040 = vunpack.c.l.b16 %v1752
    %v2041 = vunpack.c.l.b16 %v1753
    %v2042 = vunpack.c.l.b16 %v1754
    %v2043 = vunpack.c.l.b16 %v1755
    %v2044 = vunpack.c.l.b16 %v1756
    %v2045 = vunpack.c.l.b16 %v1757
    %v2046 = vunpack.c.l.b16 %v1758
    %v2047 = vunpack.c.l.b16 %v1759
    %v2048 = vunpack.c.l.b16 %v1760
    %v2049 = vunpack.c.l.b16 %v1761
    %v2050 = vunpack.c.l.b16 %v1762
    %v2051 = vunpack.c.l.b16 %v1763
    %v2052 = vunpack.c.l.b16 %v1764
    %v2053 = vunpack.c.l.b16 %v1765
    %v2054 = vunpack.c.l.b16 %v1766
    %v2055 = vunpack.c.l.b16 %v1767
    %v2056 = vunpack.c.l.b16 %v1768
    %v2057 = vunpack.c.l.b16 %v1769
    %v2058 = vunpack.c.l.b16 %v1770
    %v2059 = vunpack.c.l.b16 %v1771
    %v2060 = vunpack.c.l.b16 %v1772
    %v2061 = vunpack.c.l.b16 %v1773
    %v2062 = vunpack.c.l.b16 %v1774
    %v2063 = vunpack.c.l.b16 %v1775
    %v2064 = vunpack.c.l.b16 %v1776
    %v2065 = vunpack.c.l.b16 %v1777
    %v2066 = vunpack.c.l.b16 %v1778
    %v2067 = vunpack.c.l.b16 %v1779
    %v2068 = vunpack.c.l.b16 %v1780
    %v2069 = vunpack.c.l.b16 %v1781
    %v2070 = vunpack.c.l.b16 %v1782
    %v2071 = vunpack.c.l.b16 %v1783
    %v2072 = vunpack.c.l.b16 %v1784
    %v2073 = vunpack.c.l.b16 %v1785
    %v2074 = vunpack.c.l.b16 %v1786
    %v2075 = vunpack.c.l.b16 %v1787
    %v2076 = vunpack.c.l.b16 %v1788
    %v2077 = vunpack.c.l.b16 %v1789
    %v2078 = vunpack.c.l.b16 %v1790
    %v2079 = vunpack.c.l.b16 %v1791
    %v2080 = vunpack.c.l.b16 %v1792
    %v2081 = vunpack.c.l.b16 %v1793
    %v2082 = vunpack.c.l.b16 %v1794
    %v2083 = vunpack.c.l.b16 %v1795
    %v2084 = vunpack.c.l.b16 %v1796
    %v2085 = vunpack.c.l.b16 %v1797
    %v2086 = vunpack.c.l.b16 %v1798
    %v2087 = vunpack.c.l.b16 %v1799
    %v2088 = vunpack.c.l.b16 %v1800
    %v2089 = vunpack.c.l.b16 %v1801
    %v2090 = vunpack.c.l.b16 %v1802
    %v2091 = vunpack.c.l.b16 %v1803
    %v2092 = vunpack.c.l.b16 %v1804
    %v2093 = vunpack.c.l.b16 %v1805
    %v2094 = vunpack.c.l.b16 %v1806
    %v2095 = vunpack.c.l.b16 %v1807
    %v2096 = vunpack.c.l.b16 %v1808
    %v2097 = vunpack.c.l.b16 %v1809
    %v2098 = vunpack.c.l.b16 %v1810
    %v2099 = vunpack.c.l.b16 %v1811
    %v2100 = vunpack.c.l.b16 %v1812
    %v2101 = vunpack.c.l.b16 %v1813
    %v2102 = vunpack.c.l.b16 %v1814
    %v2103 = vunpack.c.l.b16 %v1815
    %v2104 = vunpack.c.l.b16 %v1816
    %v2105 = vunpack.c.l.b16 %v1817
    %v2106 = vunpack.c.l.b16 %v1818
    %v2107 = vunpack.c.l.b16 %v1819
    %v2108 = vunpack.c.l.b16 %v1820
    %v2109 = vunpack.c.l.b16 %v1821
    %v2110 = vunpack.c.l.b16 %v1822
    %v2111 = vunpack.c.l.b16 %v1823
    %v2112 = vunpack.c.l.b16 %v1824
    %v2113 = vunpack.c.l.b16 %v1825
    %v2114 = vunpack.c.l.b16 %v1826
    %v2115 = vunpack.c.l.b16 %v1827
    %v2116 = vunpack.c.l.b16 %v1828
    %v2117 = vunpack.c.l.b16 %v1829
    %v2118 = vunpack.c.l.b16 %v1830
    %v2119 = vunpack.c.l.b16 %v1831
    %v2120 = vunpack.c.l.b16 %v1832
    %v2121 = vunpack.c.l.b16 %v1833
    %v2122 = vunpack.c.l.b16 %v1834
    %v2123 = vunpack.c.l.b16 %v1835
    %v2124 = vunpack.c.l.b16 %v1836
    %v2125 = vunpack.c.l.b16 %v1837
    %v2126 = vunpack.c.l.b16 %v1838
    %v2127 = vunpack.c.l.b16 %v1839
    %v2128 = vunpack.c.l.b16 %v1840
    %v2129 = vunpack.c.l.b16 %v1841
    %v2130 = vunpack.c.l.b16 %v1842
    %v2131 = vunpack.c.l.b16 %v1843
    %v2132 = vunpack.c.l.b16 %v1844
    %v2133 = vunpack.c.l.b16 %v1845
    %v2134 = vunpack.c.l.b16 %v1846
    %v2135 = vunpack.c.l.b16 %v1847
    %v2136 = vunpack.c.l.b16 %v1848
    %v2137 = vunpack.c.l.b16 %v1849
    %v2138 = vunpack.c.l.b16 %v1850
    %v2139 = vunpack.c.l.b16 %v1851
    %v2140 = vunpack.c.l.b16 %v1852
    %v2141 = vunpack.c.l.b16 %v1853
    %v2142 = vunpack.c.l.b16 %v1854
    %v2143 = vunpack.c.l.b16 %v1855
    %v2144 = vunpack.c.l.b16 %v1856
    %v2145 = vunpack.c.l.b16 %v1857
    %v2146 = vunpack.c.l.b16 %v1858
    %v2147 = vunpack.c.l.b16 %v1859
    %v2148 = vunpack.c.l.b16 %v1860
    %v2149 = vunpack.c.l.b16 %v1861
    %v2150 = vunpack.c.l.b16 %v1862
    %v2151 = vunpack.c.l.b16 %v1863
    %v2152 = vunpack.c.l.b16 %v1864
    %v2153 = vunpack.c.l.b16 %v1865
    %v2154 = vunpack.c.l.b16 %v1866
    %v2155 = vunpack.c.l.b16 %v1867
    %v2156 = vpack.c.b16 %v2013, %v2012
    %v2157 = vpack.c.b16 %v2015, %v2014
    %v2158 = vpack.c.b16 %v2017, %v2016
    %v2159 = vpack.c.b16 %v2019, %v2018
    %v2160 = vpack.c.b16 %v2021, %v2020
    %v2161 = vpack.c.b16 %v2023, %v2022
    %v2162 = vpack.c.b16 %v2025, %v2024
    %v2163 = vpack.c.b16 %v2027, %v2026
    %v2164 = vpack.c.b16 %v2029, %v2028
    %v2165 = vpack.c.b16 %v2031, %v2030
    %v2166 = vpack.c.b16 %v2033, %v2032
    %v2167 = vpack.c.b16 %v2035, %v2034
    %v2168 = vpack.c.b16 %v2037, %v2036
    %v2169 = vpack.c.b16 %v2039, %v2038
    %v2170 = vpack.c.b16 %v2041, %v2040
    %v2171 = vpack.c.b16 %v2043, %v2042
    %v2172 = vpack.c.b16 %v2045, %v2044
    %v2173 = vpack.c.b16 %v2047, %v2046
    %v2174 = vpack.c.b16 %v2049, %v2048
    %v2175 = vpack.c.b16 %v2051, %v2050
    %v2176 = vpack.c.b16 %v2053, %v2052
    %v2177 = vpack.c.b16 %v2055, %v2054
    %v2178 = vpack.c.b16 %v2057, %v2056
    %v2179 = vpack.c.b16 %v2059, %v2058
    %v2180 = vpack.c.b16 %v2061, %v2060
    %v2181 = vpack.c.b16 %v2063, %v2062
    %v2182 = vpack.c.b16 %v2065, %v2064
    %v2183 = vpack.c.b16 %v2067, %v2066
    %v2184 = vpack.c.b16 %v2069, %v2068
    %v2185 = vpack.c.b16 %v2071, %v2070
    %v2186 = vpack.c.b16 %v2073, %v2072
    %v2187 = vpack.c.b16 %v2075, %v2074
    %v2188 = vpack.c.b16 %v2077, %v2076
    %v2189 = vpack.c.b16 %v2079, %v2078
    %v2190 = vpack.c.b16 %v2081, %v2080
    %v2191 = vpack.c.b16 %v2083, %v2082
    %v2192 = vpack.c.b16 %v2085, %v2084
    %v2193 = vpack.c.b16 %v2087, %v2086
    %v2194 = vpack.c.b16 %v2089, %v2088
    %v2195 = vpack.c.b16 %v2091, %v2090
    %v2196 = vpack.c.b16 %v2093, %v2092
    %v2197 = vpack.c.b16 %v2095, %v2094
    %v2198 = vpack.c.b16 %v2097, %v2096
    %v2199 = vpack.c.b16 %v2099, %v2098
    %v2200 = vpack.c.b16 %v2101, %v2100
    %v2201 = vpack.c.b16 %v2103, %v2102
    %v2202 = vpack.c.b16 %v2105, %v2104
    %v2203 = vpack.c.b16 %v2107, %v2106
    %v2204 = vpack.c.b16 %v2109, %v2108
    %v2205 = vpack.c.b16 %v2111, %v2110
    %v2206 = vpack.c.b16 %v2113, %v2112
    %v2207 = vpack.c.b16 %v2115, %v2114
    %v2208 = vpack.c.b16 %v2117, %v2116
    %v2209 = vpack.c.b16 %v2119, %v2118
    %v2210 = vpack.c.b16 %v2121, %v2120
    %v2211 = vpack.c.b16 %v2123, %v2122
    %v2212 = vpack.c.b16 %v2125, %v2124
    %v2213 = vpack.c.b16 %v2127, %v2126
    %v2214 = vpack.c.b16 %v2129, %v2128
    %v2215 = vpack.c.b16 %v2131, %v2130
    %v2216 = vpack.c.b16 %v2133, %v2132
    %v2217 = vpack.c.b16 %v2135, %v2134
    %v2218 = vpack.c.b16 %v2137, %v2136
    %v2219 = vpack.c.b16 %v2139, %v2138
    %v2220 = vpack.c.b16 %v2141, %v2140
    %v2221 = vpack.c.b16 %v2143, %v2142
    %v2222 = vpack.c.b16 %v2145, %v2144
    %v2223 = vpack.c.b16 %v2147, %v2146
    %v2224 = vpack.c.b16 %v2149, %v2148
    %v2225 = vpack.c.b16 %v2151, %v2150
    %v2226 = vpack.c.b16 %v2153, %v2152
    %v2227 = vpack.c.b16 %v2155, %v2154
    %2300 = vmatprep.subr.bf16.mxu0 0
    %2301 = vmatpush1.bf16.msra.mxu0 %v2156
    %2302 = vmatprep.subr.bf16.mxu0 0
    %2303 = vmatpush1.bf16.msra.mxu0 %v2157
    %2304 = vmatprep.subr.bf16.mxu0 0
    %2305 = vmatpush1.bf16.msra.mxu0 %v2158
    %2306 = vmatprep.subr.bf16.mxu0 0
    %2307 = vmatpush1.bf16.msra.mxu0 %v2159
    %2308 = vmatprep.subr.bf16.mxu0 0
    %2309 = vmatpush1.bf16.msra.mxu0 %v2160
    %2310 = vmatprep.subr.bf16.mxu0 0
    %2311 = vmatpush1.bf16.msra.mxu0 %v2161
    %2312 = vmatprep.subr.bf16.mxu0 0
    %2313 = vmatpush1.bf16.msra.mxu0 %v2162
    %2314 = vmatprep.subr.bf16.mxu0 0
    %2315 = vmatpush1.bf16.msra.mxu0 %v2163
    %2316 = vmatprep.subr.bf16.mxu0 0
    %2317 = vmatpush1.bf16.msra.mxu0 %v2164
    %2318 = vmatprep.subr.bf16.mxu0 0
    %2319 = vmatpush1.bf16.msra.mxu0 %v2165
    %2320 = vmatprep.subr.bf16.mxu0 0
    %2321 = vmatpush1.bf16.msra.mxu0 %v2166
    %2322 = vmatprep.subr.bf16.mxu0 0
    %2323 = vmatpush1.bf16.msra.mxu0 %v2167
    %2324 = vmatprep.subr.bf16.mxu0 0
    %2325 = vmatpush1.bf16.msra.mxu0 %v2168
    %2326 = vmatprep.subr.bf16.mxu0 0
    %2327 = vmatpush1.bf16.msra.mxu0 %v2169
    %2328 = vmatprep.subr.bf16.mxu0 0
    %2329 = vmatpush1.bf16.msra.mxu0 %v2170
    %2330 = vmatprep.subr.bf16.mxu0 0
    %2331 = vmatpush1.bf16.msra.mxu0 %v2171
    %2332 = vmatprep.mubr.bf16.mxu0 %v1437
    %2333 = vmatmul.mubr.bf16.gmra.mrb[0].mxu0 %v1436
    %v2334 = vpop.f32.mrb[0].mxu0
    %v2335 = vadd.f32 0.0, %v2334
    %v2336 = vpop.f32.mrb[0].mxu0
    %v2337 = vpop.f32.mrb[0].mxu0
    %v2338 = vadd.f32 0.0, %v2337
    %v2339 = vpop.f32.mrb[0].mxu0
    %2340 = vmatprep.mubr.bf16.mxu0 %v1446
    %2341 = vmatmul.mubr.bf16.gmra.mrb[0].mxu0 %v1445
    %v2342 = vpop.f32.mrb[0].mxu0
    %v2343 = vadd.f32 0.0, %v2342
    %v2344 = vpop.f32.mrb[0].mxu0
    %v2345 = vpop.f32.mrb[0].mxu0
    %v2346 = vadd.f32 0.0, %v2345
    %v2347 = vpop.f32.mrb[0].mxu0
    %2348 = vmatprep.mubr.bf16.mxu0 %v1455
    %2349 = vmatmul.mubr.bf16.gmra.mrb[0].mxu0 %v1454
    %v2350 = vpop.f32.mrb[0].mxu0
    %v2351 = vadd.f32 0.0, %v2350
    %v2352 = vpop.f32.mrb[0].mxu0
    %v2353 = vpop.f32.mrb[0].mxu0
    %v2354 = vadd.f32 0.0, %v2353
    %v2355 = vpop.f32.mrb[0].mxu0
    %2356 = vmatprep.mubr.bf16.mxu0 %v1464
    %2357 = vmatmul.mubr.bf16.gmra.mrb[0].mxu0 %v1463
    %v2358 = vpop.f32.mrb[0].mxu0
    %v2359 = vadd.f32 0.0, %v2358
    %v2360 = vpop.f32.mrb[0].mxu0
    %v2361 = vpop.f32.mrb[0].mxu0
    %v2362 = vadd.f32 0.0, %v2361
    %v2363 = vpop.f32.mrb[0].mxu0
    %2364 = vmatprep.mubr.bf16.mxu0 %v1473
    %2365 = vmatmul.mubr.bf16.gmra.mrb[0].mxu0 %v1472
    %v2366 = vpop.f32.mrb[0].mxu0
    %v2367 = vadd.f32 0.0, %v2366
    %v2368 = vpop.f32.mrb[0].mxu0
    %v2369 = vpop.f32.mrb[0].mxu0
    %v2370 = vadd.f32 0.0, %v2369
    %v2371 = vpop.f32.mrb[0].mxu0
    %2372 = vmatprep.mubr.bf16.mxu0 %v1482
    %2373 = vmatmul.mubr.bf16.gmra.mrb[0].mxu0 %v1481
    %v2374 = vpop.f32.mrb[0].mxu0
    %v2375 = vadd.f32 0.0, %v2374
    %v2376 = vpop.f32.mrb[0].mxu0
    %v2377 = vpop.f32.mrb[0].mxu0
    %v2378 = vadd.f32 0.0, %v2377
    %v2379 = vpop.f32.mrb[0].mxu0
    %2380 = vmatprep.mubr.bf16.mxu0 %v1491
    %2381 = vmatmul.mubr.bf16.gmra.mrb[0].mxu0 %v1490
    %v2382 = vpop.f32.mrb[0].mxu0
    %v2383 = vadd.f32 0.0, %v2382
    %v2384 = vpop.f32.mrb[0].mxu0
    %v2385 = vpop.f32.mrb[0].mxu0
    %v2386 = vadd.f32 0.0, %v2385
    %v2387 = vpop.f32.mrb[0].mxu0
    %2388 = vmatprep.mubr.bf16.mxu0 %v1500
    %2389 = vmatmul.mubr.bf16.gmra.mrb[0].mxu0 %v1499
    %v2390 = vpop.f32.mrb[0].mxu0
    %v2391 = vadd.f32 0.0, %v2390
    %v2392 = vpop.f32.mrb[0].mxu0
    %v2393 = vpop.f32.mrb[0].mxu0
    %v2394 = vadd.f32 0.0, %v2393
    %v2395 = vpop.f32.mrb[0].mxu0
    %2396 = vmatprep.mubr.bf16.mxu0 %v1509
    %2397 = vmatmul.mubr.bf16.gmra.mrb[0].mxu0 %v1508
    %v2398 = vpop.f32.mrb[0].mxu0
    %v2399 = vadd.f32 0.0, %v2398
    %v2400 = vpop.f32.mrb[0].mxu0
    %v2401 = vpop.f32.mrb[0].mxu0
    %v2402 = vadd.f32 0.0, %v2401
    %v2403 = vpop.f32.mrb[0].mxu0
    %2404 = vmatprep.mubr.bf16.mxu0 %v1518
    %2405 = vmatmul.mubr.bf16.gmra.mrb[0].mxu0 %v1517
    %v2406 = vpop.f32.mrb[0].mxu0
    %v2407 = vadd.f32 0.0, %v2406
    %v2408 = vpop.f32.mrb[0].mxu0
    %v2409 = vpop.f32.mrb[0].mxu0
    %v2410 = vadd.f32 0.0, %v2409
    %v2411 = vpop.f32.mrb[0].mxu0
    %2412 = vmatprep.mubr.bf16.mxu0 %v1527
    %2413 = vmatmul.mubr.bf16.gmra.mrb[0].mxu0 %v1526
    %v2414 = vpop.f32.mrb[0].mxu0
    %v2415 = vadd.f32 0.0, %v2414
    %v2416 = vpop.f32.mrb[0].mxu0
    %v2417 = vpop.f32.mrb[0].mxu0
    %v2418 = vadd.f32 0.0, %v2417
    %v2419 = vpop.f32.mrb[0].mxu0
    %2420 = vmatprep.mubr.bf16.mxu0 %v1536
    %2421 = vmatmul.mubr.bf16.gmra.mrb[0].mxu0 %v1535
    %v2422 = vpop.f32.mrb[0].mxu0
    %v2423 = vadd.f32 0.0, %v2422
    %v2424 = vpop.f32.mrb[0].mxu0
    %v2425 = vpop.f32.mrb[0].mxu0
    %v2426 = vadd.f32 0.0, %v2425
    %v2427 = vpop.f32.mrb[0].mxu0
    %2428 = vmatprep.mubr.bf16.mxu0 %v1545
    %2429 = vmatmul.mubr.bf16.gmra.mrb[0].mxu0 %v1544
    %v2430 = vpop.f32.mrb[0].mxu0
    %v2431 = vadd.f32 0.0, %v2430
    %v2432 = vpop.f32.mrb[0].mxu0
    %v2433 = vpop.f32.mrb[0].mxu0
    %v2434 = vadd.f32 0.0, %v2433
    %v2435 = vpop.f32.mrb[0].mxu0
    %2436 = vmatprep.mubr.bf16.mxu0 %v1554
    %2437 = vmatmul.mubr.bf16.gmra.mrb[0].mxu0 %v1553
    %v2438 = vpop.f32.mrb[0].mxu0
    %v2439 = vadd.f32 0.0, %v2438
    %v2440 = vpop.f32.mrb[0].mxu0
    %v2441 = vpop.f32.mrb[0].mxu0
    %v2442 = vadd.f32 0.0, %v2441
    %v2443 = vpop.f32.mrb[0].mxu0
    %2444 = vmatprep.mubr.bf16.mxu0 %v1563
    %2445 = vmatmul.mubr.bf16.gmra.mrb[0].mxu0 %v1562
    %v2446 = vpop.f32.mrb[0].mxu0
    %v2447 = vadd.f32 0.0, %v2446
    %v2448 = vpop.f32.mrb[0].mxu0
    %v2449 = vpop.f32.mrb[0].mxu0
    %v2450 = vadd.f32 0.0, %v2449
    %v2451 = vpop.f32.mrb[0].mxu0
    %2452 = vmatprep.mubr.bf16.mxu0 %v1572
    %2453 = vmatmul.mubr.bf16.gmra.mrb[0].mxu0 %v1571
    %v2454 = vpop.f32.mrb[0].mxu0
    %v2455 = vadd.f32 0.0, %v2454
    %v2456 = vpop.f32.mrb[0].mxu0
    %v2457 = vpop.f32.mrb[0].mxu0
    %v2458 = vadd.f32 0.0, %v2457
    %v2459 = vpop.f32.mrb[0].mxu0
    %2460 = vmatprep.mubr.bf16.mxu0 %v1581
    %2461 = vmatmul.mubr.bf16.gmra.mrb[0].mxu0 %v1580
    %v2462 = vpop.f32.mrb[0].mxu0
    %v2463 = vadd.f32 0.0, %v2462
    %v2464 = vpop.f32.mrb[0].mxu0
    %v2465 = vpop.f32.mrb[0].mxu0
    %v2466 = vadd.f32 0.0, %v2465
    %v2467 = vpop.f32.mrb[0].mxu0
    %2468 = vmatprep.mubr.bf16.mxu0 %v1590
    %2469 = vmatmul.mubr.bf16.gmra.mrb[0].mxu0 %v1589
    %v2470 = vpop.f32.mrb[0].mxu0
    %v2471 = vadd.f32 0.0, %v2470
    %v2472 = vpop.f32.mrb[0].mxu0
    %v2473 = vpop.f32.mrb[0].mxu0
    %v2474 = vadd.f32 0.0, %v2473
    %v2475 = vpop.f32.mrb[0].mxu0
    %2476 = vmatprep.mubr.bf16.mxu0 %v1599
    %2477 = vmatmul.mubr.bf16.gmra.mrb[0].mxu0 %v1598
    %v2478 = vpop.f32.mrb[0].mxu0
    %v2479 = vadd.f32 0.0, %v2478
    %v2480 = vpop.f32.mrb[0].mxu0
    %v2481 = vpop.f32.mrb[0].mxu0
    %v2482 = vadd.f32 0.0, %v2481
    %v2483 = vpop.f32.mrb[0].mxu0
    %2484 = vmatprep.mubr.bf16.mxu0 %v1608
    %2485 = vmatmul.mubr.bf16.gmra.mrb[0].mxu0 %v1607
    %v2486 = vpop.f32.mrb[0].mxu0
    %v2487 = vadd.f32 0.0, %v2486
    %v2488 = vpop.f32.mrb[0].mxu0
    %v2489 = vpop.f32.mrb[0].mxu0
    %v2490 = vadd.f32 0.0, %v2489
    %v2491 = vpop.f32.mrb[0].mxu0
    %2492 = vmatprep.mubr.bf16.mxu0 %v1617
    %2493 = vmatmul.mubr.bf16.gmra.mrb[0].mxu0 %v1616
    %v2494 = vpop.f32.mrb[0].mxu0
    %v2495 = vadd.f32 0.0, %v2494
    %v2496 = vpop.f32.mrb[0].mxu0
    %v2497 = vpop.f32.mrb[0].mxu0
    %v2498 = vadd.f32 0.0, %v2497
    %v2499 = vpop.f32.mrb[0].mxu0
    %2500 = vmatprep.mubr.bf16.mxu0 %v1626
    %2501 = vmatmul.mubr.bf16.gmra.mrb[0].mxu0 %v1625
    %v2502 = vpop.f32.mrb[0].mxu0
    %v2503 = vadd.f32 0.0, %v2502
    %v2504 = vpop.f32.mrb[0].mxu0
    %v2505 = vpop.f32.mrb[0].mxu0
    %v2506 = vadd.f32 0.0, %v2505
    %v2507 = vpop.f32.mrb[0].mxu0
    %2508 = vmatprep.mubr.bf16.mxu0 %v1635
    %2509 = vmatmul.mubr.bf16.gmra.mrb[0].mxu0 %v1634
    %v2510 = vpop.f32.mrb[0].mxu0
    %v2511 = vadd.f32 0.0, %v2510
    %v2512 = vpop.f32.mrb[0].mxu0
    %v2513 = vpop.f32.mrb[0].mxu0
    %v2514 = vadd.f32 0.0, %v2513
    %v2515 = vpop.f32.mrb[0].mxu0
    %2516 = vmatprep.mubr.bf16.mxu0 %v1644
    %2517 = vmatmul.mubr.bf16.gmra.mrb[0].mxu0 %v1643
    %v2518 = vpop.f32.mrb[0].mxu0
    %v2519 = vadd.f32 0.0, %v2518
    %v2520 = vpop.f32.mrb[0].mxu0
    %v2521 = vpop.f32.mrb[0].mxu0
    %v2522 = vadd.f32 0.0, %v2521
    %v2523 = vpop.f32.mrb[0].mxu0
    %2524 = vmatprep.mubr.bf16.mxu0 %v1653
    %2525 = vmatmul.mubr.bf16.gmra.mrb[0].mxu0 %v1652
    %v2526 = vpop.f32.mrb[0].mxu0
    %v2527 = vadd.f32 0.0, %v2526
    %v2528 = vpop.f32.mrb[0].mxu0
    %v2529 = vpop.f32.mrb[0].mxu0
    %v2530 = vadd.f32 0.0, %v2529
    %v2531 = vpop.f32.mrb[0].mxu0
    %2532 = vmatprep.mubr.bf16.mxu0 %v1662
    %2533 = vmatmul.mubr.bf16.gmra.mrb[0].mxu0 %v1661
    %v2534 = vpop.f32.mrb[0].mxu0
    %v2535 = vadd.f32 0.0, %v2534
    %v2536 = vpop.f32.mrb[0].mxu0
    %v2537 = vpop.f32.mrb[0].mxu0
    %v2538 = vadd.f32 0.0, %v2537
    %v2539 = vpop.f32.mrb[0].mxu0
    %2540 = vmatprep.mubr.bf16.mxu0 %v1671
    %2541 = vmatmul.mubr.bf16.gmra.mrb[0].mxu0 %v1670
    %v2542 = vpop.f32.mrb[0].mxu0
    %v2543 = vadd.f32 0.0, %v2542
    %v2544 = vpop.f32.mrb[0].mxu0
    %v2545 = vpop.f32.mrb[0].mxu0
    %v2546 = vadd.f32 0.0, %v2545
    %v2547 = vpop.f32.mrb[0].mxu0
    %2548 = vmatprep.mubr.bf16.mxu0 %v1680
    %2549 = vmatmul.mubr.bf16.gmra.mrb[0].mxu0 %v1679
    %v2550 = vpop.f32.mrb[0].mxu0
    %v2551 = vadd.f32 0.0, %v2550
    %v2552 = vpop.f32.mrb[0].mxu0
    %v2553 = vpop.f32.mrb[0].mxu0
    %v2554 = vadd.f32 0.0, %v2553
    %v2555 = vpop.f32.mrb[0].mxu0
    %2556 = vmatprep.mubr.bf16.mxu0 %v1689
    %2557 = vmatmul.mubr.bf16.gmra.mrb[0].mxu0 %v1688
    %v2558 = vpop.f32.mrb[0].mxu0
    %v2559 = vadd.f32 0.0, %v2558
    %v2560 = vpop.f32.mrb[0].mxu0
    %v2561 = vpop.f32.mrb[0].mxu0
    %v2562 = vadd.f32 0.0, %v2561
    %v2563 = vpop.f32.mrb[0].mxu0
    %2564 = vmatprep.mubr.bf16.mxu0 %v1698
    %2565 = vmatmul.mubr.bf16.gmra.mrb[0].mxu0 %v1697
    %v2566 = vpop.f32.mrb[0].mxu0
    %v2567 = vadd.f32 0.0, %v2566
    %v2568 = vpop.f32.mrb[0].mxu0
    %v2569 = vpop.f32.mrb[0].mxu0
    %v2570 = vadd.f32 0.0, %v2569
    %v2571 = vpop.f32.mrb[0].mxu0
    %2572 = vmatprep.mubr.bf16.mxu0 %v1707
    %2573 = vmatmul.mubr.bf16.gmra.mrb[0].mxu0 %v1706
    %v2574 = vpop.f32.mrb[0].mxu0
    %v2575 = vadd.f32 0.0, %v2574
    %v2576 = vpop.f32.mrb[0].mxu0
    %v2577 = vpop.f32.mrb[0].mxu0
    %v2578 = vadd.f32 0.0, %v2577
    %v2579 = vpop.f32.mrb[0].mxu0
    %2580 = vmatprep.mubr.bf16.mxu0 %v1716
    %2581 = vmatmul.mubr.bf16.gmra.mrb[0].mxu0 %v1715
    %v2582 = vpop.f32.mrb[0].mxu0
    %v2583 = vadd.f32 0.0, %v2582
    %v2584 = vpop.f32.mrb[0].mxu0
    %v2585 = vpop.f32.mrb[0].mxu0
    %v2586 = vadd.f32 0.0, %v2585
    %v2587 = vpop.f32.mrb[0].mxu0
    %2588 = vdwg.mxu0
    %2589 = vmatprep.subr.bf16.mxu0 0
    %2590 = vmatpush1.bf16.msra.mxu0 %v2172
    %2591 = vmatprep.subr.bf16.mxu0 0
    %2592 = vmatpush1.bf16.msra.mxu0 %v2173
    %2593 = vmatprep.subr.bf16.mxu0 0
    %2594 = vmatpush1.bf16.msra.mxu0 %v2174
    %2595 = vmatprep.subr.bf16.mxu0 0
    %2596 = vmatpush1.bf16.msra.mxu0 %v2175
    %2597 = vmatprep.subr.bf16.mxu0 0
    %2598 = vmatpush1.bf16.msra.mxu0 %v2176
    %2599 = vmatprep.subr.bf16.mxu0 0
    %2600 = vmatpush1.bf16.msra.mxu0 %v2177
    %2601 = vmatprep.subr.bf16.mxu0 0
    %2602 = vmatpush1.bf16.msra.mxu0 %v2178
    %2603 = vmatprep.subr.bf16.mxu0 0
    %2604 = vmatpush1.bf16.msra.mxu0 %v2179
    %2605 = vmatprep.subr.bf16.mxu0 0
    %2606 = vmatpush1.bf16.msra.mxu0 %v2180
    %2607 = vmatprep.subr.bf16.mxu0 0
    %2608 = vmatpush1.bf16.msra.mxu0 %v2181
    %2609 = vmatprep.subr.bf16.mxu0 0
    %2610 = vmatpush1.bf16.msra.mxu0 %v2182
    %2611 = vmatprep.subr.bf16.mxu0 0
    %2612 = vmatpush1.bf16.msra.mxu0 %v2183
    %2613 = vmatprep.subr.bf16.mxu0 0
    %2614 = vmatpush1.bf16.msra.mxu0 %v2184
    %2615 = vmatprep.subr.bf16.mxu0 0
    %2616 = vmatpush1.bf16.msra.mxu0 %v2185
    %2617 = vmatprep.subr.bf16.mxu0 0
    %2618 = vmatpush1.bf16.msra.mxu0 %v2186
    %2619 = vmatprep.subr.bf16.mxu0 0
    %2620 = vmatpush1.bf16.msra.mxu0 %v2187
    %2621 = vmatprep.mubr.bf16.mxu0 %v1439
    %2622 = vmatmul.mubr.bf16.gmra.mrb[0].mxu0 %v1438
    %v2623 = vpop.f32.mrb[0].mxu0
    %v2624 = vadd.f32 %v2335, %v2623
    %v2625 = vpop.f32.mrb[0].mxu0
    %v2626 = vpop.f32.mrb[0].mxu0
    %v2627 = vadd.f32 %v2338, %v2626
    %v2628 = vpop.f32.mrb[0].mxu0
    %2629 = vmatprep.mubr.bf16.mxu0 %v1448
    %2630 = vmatmul.mubr.bf16.gmra.mrb[0].mxu0 %v1447
    %v2631 = vpop.f32.mrb[0].mxu0
    %v2632 = vadd.f32 %v2343, %v2631
    %v2633 = vpop.f32.mrb[0].mxu0
    %v2634 = vpop.f32.mrb[0].mxu0
    %v2635 = vadd.f32 %v2346, %v2634
    %v2636 = vpop.f32.mrb[0].mxu0
    %2637 = vmatprep.mubr.bf16.mxu0 %v1457
    %2638 = vmatmul.mubr.bf16.gmra.mrb[0].mxu0 %v1456
    %v2639 = vpop.f32.mrb[0].mxu0
    %v2640 = vadd.f32 %v2351, %v2639
    %v2641 = vpop.f32.mrb[0].mxu0
    %v2642 = vpop.f32.mrb[0].mxu0
    %v2643 = vadd.f32 %v2354, %v2642
    %v2644 = vpop.f32.mrb[0].mxu0
    %2645 = vmatprep.mubr.bf16.mxu0 %v1466
    %2646 = vmatmul.mubr.bf16.gmra.mrb[0].mxu0 %v1465
    %v2647 = vpop.f32.mrb[0].mxu0
    %v2648 = vadd.f32 %v2359, %v2647
    %v2649 = vpop.f32.mrb[0].mxu0
    %v2650 = vpop.f32.mrb[0].mxu0
    %v2651 = vadd.f32 %v2362, %v2650
    %v2652 = vpop.f32.mrb[0].mxu0
    %2653 = vmatprep.mubr.bf16.mxu0 %v1475
    %2654 = vmatmul.mubr.bf16.gmra.mrb[0].mxu0 %v1474
    %v2655 = vpop.f32.mrb[0].mxu0
    %v2656 = vadd.f32 %v2367, %v2655
    %v2657 = vpop.f32.mrb[0].mxu0
    %v2658 = vpop.f32.mrb[0].mxu0
    %v2659 = vadd.f32 %v2370, %v2658
    %v2660 = vpop.f32.mrb[0].mxu0
    %2661 = vmatprep.mubr.bf16.mxu0 %v1484
    %2662 = vmatmul.mubr.bf16.gmra.mrb[0].mxu0 %v1483
    %v2663 = vpop.f32.mrb[0].mxu0
    %v2664 = vadd.f32 %v2375, %v2663
    %v2665 = vpop.f32.mrb[0].mxu0
    %v2666 = vpop.f32.mrb[0].mxu0
    %v2667 = vadd.f32 %v2378, %v2666
    %v2668 = vpop.f32.mrb[0].mxu0
    %2669 = vmatprep.mubr.bf16.mxu0 %v1493
    %2670 = vmatmul.mubr.bf16.gmra.mrb[0].mxu0 %v1492
    %v2671 = vpop.f32.mrb[0].mxu0
    %v2672 = vadd.f32 %v2383, %v2671
    %v2673 = vpop.f32.mrb[0].mxu0
    %v2674 = vpop.f32.mrb[0].mxu0
    %v2675 = vadd.f32 %v2386, %v2674
    %v2676 = vpop.f32.mrb[0].mxu0
    %2677 = vmatprep.mubr.bf16.mxu0 %v1502
    %2678 = vmatmul.mubr.bf16.gmra.mrb[0].mxu0 %v1501
    %v2679 = vpop.f32.mrb[0].mxu0
    %v2680 = vadd.f32 %v2391, %v2679
    %v2681 = vpop.f32.mrb[0].mxu0
    %v2682 = vpop.f32.mrb[0].mxu0
    %v2683 = vadd.f32 %v2394, %v2682
    %v2684 = vpop.f32.mrb[0].mxu0
    %2685 = vmatprep.mubr.bf16.mxu0 %v1511
    %2686 = vmatmul.mubr.bf16.gmra.mrb[0].mxu0 %v1510
    %v2687 = vpop.f32.mrb[0].mxu0
    %v2688 = vadd.f32 %v2399, %v2687
    %v2689 = vpop.f32.mrb[0].mxu0
    %v2690 = vpop.f32.mrb[0].mxu0
    %v2691 = vadd.f32 %v2402, %v2690
    %v2692 = vpop.f32.mrb[0].mxu0
    %2693 = vmatprep.mubr.bf16.mxu0 %v1520
    %2694 = vmatmul.mubr.bf16.gmra.mrb[0].mxu0 %v1519
    %v2695 = vpop.f32.mrb[0].mxu0
    %v2696 = vadd.f32 %v2407, %v2695
    %v2697 = vpop.f32.mrb[0].mxu0
    %v2698 = vpop.f32.mrb[0].mxu0
    %v2699 = vadd.f32 %v2410, %v2698
    %v2700 = vpop.f32.mrb[0].mxu0
    %2701 = vmatprep.mubr.bf16.mxu0 %v1529
    %2702 = vmatmul.mubr.bf16.gmra.mrb[0].mxu0 %v1528
    %v2703 = vpop.f32.mrb[0].mxu0
    %v2704 = vadd.f32 %v2415, %v2703
    %v2705 = vpop.f32.mrb[0].mxu0
    %v2706 = vpop.f32.mrb[0].mxu0
    %v2707 = vadd.f32 %v2418, %v2706
    %v2708 = vpop.f32.mrb[0].mxu0
    %2709 = vmatprep.mubr.bf16.mxu0 %v1538
    %2710 = vmatmul.mubr.bf16.gmra.mrb[0].mxu0 %v1537
    %v2711 = vpop.f32.mrb[0].mxu0
    %v2712 = vadd.f32 %v2423, %v2711
    %v2713 = vpop.f32.mrb[0].mxu0
    %v2714 = vpop.f32.mrb[0].mxu0
    %v2715 = vadd.f32 %v2426, %v2714
    %v2716 = vpop.f32.mrb[0].mxu0
    %2717 = vmatprep.mubr.bf16.mxu0 %v1547
    %2718 = vmatmul.mubr.bf16.gmra.mrb[0].mxu0 %v1546
    %v2719 = vpop.f32.mrb[0].mxu0
    %v2720 = vadd.f32 %v2431, %v2719
    %v2721 = vpop.f32.mrb[0].mxu0
    %v2722 = vpop.f32.mrb[0].mxu0
    %v2723 = vadd.f32 %v2434, %v2722
    %v2724 = vpop.f32.mrb[0].mxu0
    %2725 = vmatprep.mubr.bf16.mxu0 %v1556
    %2726 = vmatmul.mubr.bf16.gmra.mrb[0].mxu0 %v1555
    %v2727 = vpop.f32.mrb[0].mxu0
    %v2728 = vadd.f32 %v2439, %v2727
    %v2729 = vpop.f32.mrb[0].mxu0
    %v2730 = vpop.f32.mrb[0].mxu0
    %v2731 = vadd.f32 %v2442, %v2730
    %v2732 = vpop.f32.mrb[0].mxu0
    %2733 = vmatprep.mubr.bf16.mxu0 %v1565
    %2734 = vmatmul.mubr.bf16.gmra.mrb[0].mxu0 %v1564
    %v2735 = vpop.f32.mrb[0].mxu0
    %v2736 = vadd.f32 %v2447, %v2735
    %v2737 = vpop.f32.mrb[0].mxu0
    %v2738 = vpop.f32.mrb[0].mxu0
    %v2739 = vadd.f32 %v2450, %v2738
    %v2740 = vpop.f32.mrb[0].mxu0
    %2741 = vmatprep.mubr.bf16.mxu0 %v1574
    %2742 = vmatmul.mubr.bf16.gmra.mrb[0].mxu0 %v1573
    %v2743 = vpop.f32.mrb[0].mxu0
    %v2744 = vadd.f32 %v2455, %v2743
    %v2745 = vpop.f32.mrb[0].mxu0
    %v2746 = vpop.f32.mrb[0].mxu0
    %v2747 = vadd.f32 %v2458, %v2746
    %v2748 = vpop.f32.mrb[0].mxu0
    %2749 = vmatprep.mubr.bf16.mxu0 %v1583
    %2750 = vmatmul.mubr.bf16.gmra.mrb[0].mxu0 %v1582
    %v2751 = vpop.f32.mrb[0].mxu0
    %v2752 = vadd.f32 %v2463, %v2751
    %v2753 = vpop.f32.mrb[0].mxu0
    %v2754 = vpop.f32.mrb[0].mxu0
    %v2755 = vadd.f32 %v2466, %v2754
    %v2756 = vpop.f32.mrb[0].mxu0
    %2757 = vmatprep.mubr.bf16.mxu0 %v1592
    %2758 = vmatmul.mubr.bf16.gmra.mrb[0].mxu0 %v1591
    %v2759 = vpop.f32.mrb[0].mxu0
    %v2760 = vadd.f32 %v2471, %v2759
    %v2761 = vpop.f32.mrb[0].mxu0
    %v2762 = vpop.f32.mrb[0].mxu0
    %v2763 = vadd.f32 %v2474, %v2762
    %v2764 = vpop.f32.mrb[0].mxu0
    %2765 = vmatprep.mubr.bf16.mxu0 %v1601
    %2766 = vmatmul.mubr.bf16.gmra.mrb[0].mxu0 %v1600
    %v2767 = vpop.f32.mrb[0].mxu0
    %v2768 = vadd.f32 %v2479, %v2767
    %v2769 = vpop.f32.mrb[0].mxu0
    %v2770 = vpop.f32.mrb[0].mxu0
    %v2771 = vadd.f32 %v2482, %v2770
    %v2772 = vpop.f32.mrb[0].mxu0
    %2773 = vmatprep.mubr.bf16.mxu0 %v1610
    %2774 = vmatmul.mubr.bf16.gmra.mrb[0].mxu0 %v1609
    %v2775 = vpop.f32.mrb[0].mxu0
    %v2776 = vadd.f32 %v2487, %v2775
    %v2777 = vpop.f32.mrb[0].mxu0
    %v2778 = vpop.f32.mrb[0].mxu0
    %v2779 = vadd.f32 %v2490, %v2778
    %v2780 = vpop.f32.mrb[0].mxu0
    %2781 = vmatprep.mubr.bf16.mxu0 %v1619
    %2782 = vmatmul.mubr.bf16.gmra.mrb[0].mxu0 %v1618
    %v2783 = vpop.f32.mrb[0].mxu0
    %v2784 = vadd.f32 %v2495, %v2783
    %v2785 = vpop.f32.mrb[0].mxu0
    %v2786 = vpop.f32.mrb[0].mxu0
    %v2787 = vadd.f32 %v2498, %v2786
    %v2788 = vpop.f32.mrb[0].mxu0
    %2789 = vmatprep.mubr.bf16.mxu0 %v1628
    %2790 = vmatmul.mubr.bf16.gmra.mrb[0].mxu0 %v1627
    %v2791 = vpop.f32.mrb[0].mxu0
    %v2792 = vadd.f32 %v2503, %v2791
    %v2793 = vpop.f32.mrb[0].mxu0
    %v2794 = vpop.f32.mrb[0].mxu0
    %v2795 = vadd.f32 %v2506, %v2794
    %v2796 = vpop.f32.mrb[0].mxu0
    %2797 = vmatprep.mubr.bf16.mxu0 %v1637
    %2798 = vmatmul.mubr.bf16.gmra.mrb[0].mxu0 %v1636
    %v2799 = vpop.f32.mrb[0].mxu0
    %v2800 = vadd.f32 %v2511, %v2799
    %v2801 = vpop.f32.mrb[0].mxu0
    %v2802 = vpop.f32.mrb[0].mxu0
    %v2803 = vadd.f32 %v2514, %v2802
    %v2804 = vpop.f32.mrb[0].mxu0
    %2805 = vmatprep.mubr.bf16.mxu0 %v1646
    %2806 = vmatmul.mubr.bf16.gmra.mrb[0].mxu0 %v1645
    %v2807 = vpop.f32.mrb[0].mxu0
    %v2808 = vadd.f32 %v2519, %v2807
    %v2809 = vpop.f32.mrb[0].mxu0
    %v2810 = vpop.f32.mrb[0].mxu0
    %v2811 = vadd.f32 %v2522, %v2810
    %v2812 = vpop.f32.mrb[0].mxu0
    %2813 = vmatprep.mubr.bf16.mxu0 %v1655
    %2814 = vmatmul.mubr.bf16.gmra.mrb[0].mxu0 %v1654
    %v2815 = vpop.f32.mrb[0].mxu0
    %v2816 = vadd.f32 %v2527, %v2815
    %v2817 = vpop.f32.mrb[0].mxu0
    %v2818 = vpop.f32.mrb[0].mxu0
    %v2819 = vadd.f32 %v2530, %v2818
    %v2820 = vpop.f32.mrb[0].mxu0
    %2821 = vmatprep.mubr.bf16.mxu0 %v1664
    %2822 = vmatmul.mubr.bf16.gmra.mrb[0].mxu0 %v1663
    %v2823 = vpop.f32.mrb[0].mxu0
    %v2824 = vadd.f32 %v2535, %v2823
    %v2825 = vpop.f32.mrb[0].mxu0
    %v2826 = vpop.f32.mrb[0].mxu0
    %v2827 = vadd.f32 %v2538, %v2826
    %v2828 = vpop.f32.mrb[0].mxu0
    %2829 = vmatprep.mubr.bf16.mxu0 %v1673
    %2830 = vmatmul.mubr.bf16.gmra.mrb[0].mxu0 %v1672
    %v2831 = vpop.f32.mrb[0].mxu0
    %v2832 = vadd.f32 %v2543, %v2831
    %v2833 = vpop.f32.mrb[0].mxu0
    %v2834 = vpop.f32.mrb[0].mxu0
    %v2835 = vadd.f32 %v2546, %v2834
    %v2836 = vpop.f32.mrb[0].mxu0
    %2837 = vmatprep.mubr.bf16.mxu0 %v1682
    %2838 = vmatmul.mubr.bf16.gmra.mrb[0].mxu0 %v1681
    %v2839 = vpop.f32.mrb[0].mxu0
    %v2840 = vadd.f32 %v2551, %v2839
    %v2841 = vpop.f32.mrb[0].mxu0
    %v2842 = vpop.f32.mrb[0].mxu0
    %v2843 = vadd.f32 %v2554, %v2842
    %v2844 = vpop.f32.mrb[0].mxu0
    %2845 = vmatprep.mubr.bf16.mxu0 %v1691
    %2846 = vmatmul.mubr.bf16.gmra.mrb[0].mxu0 %v1690
    %v2847 = vpop.f32.mrb[0].mxu0
    %v2848 = vadd.f32 %v2559, %v2847
    %v2849 = vpop.f32.mrb[0].mxu0
    %v2850 = vpop.f32.mrb[0].mxu0
    %v2851 = vadd.f32 %v2562, %v2850
    %v2852 = vpop.f32.mrb[0].mxu0
    %2853 = vmatprep.mubr.bf16.mxu0 %v1700
    %2854 = vmatmul.mubr.bf16.gmra.mrb[0].mxu0 %v1699
    %v2855 = vpop.f32.mrb[0].mxu0
    %v2856 = vadd.f32 %v2567, %v2855
    %v2857 = vpop.f32.mrb[0].mxu0
    %v2858 = vpop.f32.mrb[0].mxu0
    %v2859 = vadd.f32 %v2570, %v2858
    %v2860 = vpop.f32.mrb[0].mxu0
    %2861 = vmatprep.mubr.bf16.mxu0 %v1709
    %2862 = vmatmul.mubr.bf16.gmra.mrb[0].mxu0 %v1708
    %v2863 = vpop.f32.mrb[0].mxu0
    %v2864 = vadd.f32 %v2575, %v2863
    %v2865 = vpop.f32.mrb[0].mxu0
    %v2866 = vpop.f32.mrb[0].mxu0
    %v2867 = vadd.f32 %v2578, %v2866
    %v2868 = vpop.f32.mrb[0].mxu0
    %2869 = vmatprep.mubr.bf16.mxu0 %v1718
    %2870 = vmatmul.mubr.bf16.gmra.mrb[0].mxu0 %v1717
    %v2871 = vpop.f32.mrb[0].mxu0
    %v2872 = vadd.f32 %v2583, %v2871
    %v2873 = vpop.f32.mrb[0].mxu0
    %v2874 = vpop.f32.mrb[0].mxu0
    %v2875 = vadd.f32 %v2586, %v2874
    %v2876 = vpop.f32.mrb[0].mxu0
    %2877 = vdwg.mxu0
    %2878 = vmatprep.subr.bf16.mxu0 0
    %2879 = vmatpush1.bf16.msra.mxu0 %v2188
    %2880 = vmatprep.subr.bf16.mxu0 0
    %2881 = vmatpush1.bf16.msra.mxu0 %v2189
    %2882 = vmatprep.subr.bf16.mxu0 0
    %2883 = vmatpush1.bf16.msra.mxu0 %v2190
    %2884 = vmatprep.subr.bf16.mxu0 0
    %2885 = vmatpush1.bf16.msra.mxu0 %v2191
    %2886 = vmatprep.subr.bf16.mxu0 0
    %2887 = vmatpush1.bf16.msra.mxu0 %v2192
    %2888 = vmatprep.subr.bf16.mxu0 0
    %2889 = vmatpush1.bf16.msra.mxu0 %v2193
    %2890 = vmatprep.subr.bf16.mxu0 0
    %2891 = vmatpush1.bf16.msra.mxu0 %v2194
    %2892 = vmatprep.subr.bf16.mxu0 0
    %2893 = vmatpush1.bf16.msra.mxu0 %v2195
    %2894 = vmatprep.subr.bf16.mxu0 0
    %2895 = vmatpush1.bf16.msra.mxu0 %v2196
    %2896 = vmatprep.subr.bf16.mxu0 0
    %2897 = vmatpush1.bf16.msra.mxu0 %v2197
    %2898 = vmatprep.subr.bf16.mxu0 0
    %2899 = vmatpush1.bf16.msra.mxu0 %v2198
    %2900 = vmatprep.subr.bf16.mxu0 0
    %2901 = vmatpush1.bf16.msra.mxu0 %v2199
    %2902 = vmatprep.subr.bf16.mxu0 0
    %2903 = vmatpush1.bf16.msra.mxu0 %v2200
    %2904 = vmatprep.subr.bf16.mxu0 0
    %2905 = vmatpush1.bf16.msra.mxu0 %v2201
    %2906 = vmatprep.subr.bf16.mxu0 0
    %2907 = vmatpush1.bf16.msra.mxu0 %v2202
    %2908 = vmatprep.subr.bf16.mxu0 0
    %2909 = vmatpush1.bf16.msra.mxu0 %v2203
    %2910 = vmatprep.mubr.bf16.mxu0 %v1441
    %2911 = vmatmul.mubr.bf16.gmra.mrb[0].mxu0 %v1440
    %v2912 = vpop.f32.mrb[0].mxu0
    %v2913 = vadd.f32 %v2624, %v2912
    %v2914 = vpop.f32.mrb[0].mxu0
    %v2915 = vpop.f32.mrb[0].mxu0
    %v2916 = vadd.f32 %v2627, %v2915
    %v2917 = vpop.f32.mrb[0].mxu0
    %2918 = vmatprep.mubr.bf16.mxu0 %v1450
    %2919 = vmatmul.mubr.bf16.gmra.mrb[0].mxu0 %v1449
    %v2920 = vpop.f32.mrb[0].mxu0
    %v2921 = vadd.f32 %v2632, %v2920
    %v2922 = vpop.f32.mrb[0].mxu0
    %v2923 = vpop.f32.mrb[0].mxu0
    %v2924 = vadd.f32 %v2635, %v2923
    %v2925 = vpop.f32.mrb[0].mxu0
    %2926 = vmatprep.mubr.bf16.mxu0 %v1459
    %2927 = vmatmul.mubr.bf16.gmra.mrb[0].mxu0 %v1458
    %v2928 = vpop.f32.mrb[0].mxu0
    %v2929 = vadd.f32 %v2640, %v2928
    %v2930 = vpop.f32.mrb[0].mxu0
    %v2931 = vpop.f32.mrb[0].mxu0
    %v2932 = vadd.f32 %v2643, %v2931
    %v2933 = vpop.f32.mrb[0].mxu0
    %2934 = vmatprep.mubr.bf16.mxu0 %v1468
    %2935 = vmatmul.mubr.bf16.gmra.mrb[0].mxu0 %v1467
    %v2936 = vpop.f32.mrb[0].mxu0
    %v2937 = vadd.f32 %v2648, %v2936
    %v2938 = vpop.f32.mrb[0].mxu0
    %v2939 = vpop.f32.mrb[0].mxu0
    %v2940 = vadd.f32 %v2651, %v2939
    %v2941 = vpop.f32.mrb[0].mxu0
    %2942 = vmatprep.mubr.bf16.mxu0 %v1477
    %2943 = vmatmul.mubr.bf16.gmra.mrb[0].mxu0 %v1476
    %v2944 = vpop.f32.mrb[0].mxu0
    %v2945 = vadd.f32 %v2656, %v2944
    %v2946 = vpop.f32.mrb[0].mxu0
    %v2947 = vpop.f32.mrb[0].mxu0
    %v2948 = vadd.f32 %v2659, %v2947
    %v2949 = vpop.f32.mrb[0].mxu0
    %2950 = vmatprep.mubr.bf16.mxu0 %v1486
    %2951 = vmatmul.mubr.bf16.gmra.mrb[0].mxu0 %v1485
    %v2952 = vpop.f32.mrb[0].mxu0
    %v2953 = vadd.f32 %v2664, %v2952
    %v2954 = vpop.f32.mrb[0].mxu0
    %v2955 = vpop.f32.mrb[0].mxu0
    %v2956 = vadd.f32 %v2667, %v2955
    %v2957 = vpop.f32.mrb[0].mxu0
    %2958 = vmatprep.mubr.bf16.mxu0 %v1495
    %2959 = vmatmul.mubr.bf16.gmra.mrb[0].mxu0 %v1494
    %v2960 = vpop.f32.mrb[0].mxu0
    %v2961 = vadd.f32 %v2672, %v2960
    %v2962 = vpop.f32.mrb[0].mxu0
    %v2963 = vpop.f32.mrb[0].mxu0
    %v2964 = vadd.f32 %v2675, %v2963
    %v2965 = vpop.f32.mrb[0].mxu0
    %2966 = vmatprep.mubr.bf16.mxu0 %v1504
    %2967 = vmatmul.mubr.bf16.gmra.mrb[0].mxu0 %v1503
    %v2968 = vpop.f32.mrb[0].mxu0
    %v2969 = vadd.f32 %v2680, %v2968
    %v2970 = vpop.f32.mrb[0].mxu0
    %v2971 = vpop.f32.mrb[0].mxu0
    %v2972 = vadd.f32 %v2683, %v2971
    %v2973 = vpop.f32.mrb[0].mxu0
    %2974 = vmatprep.mubr.bf16.mxu0 %v1513
    %2975 = vmatmul.mubr.bf16.gmra.mrb[0].mxu0 %v1512
    %v2976 = vpop.f32.mrb[0].mxu0
    %v2977 = vadd.f32 %v2688, %v2976
    %v2978 = vpop.f32.mrb[0].mxu0
    %v2979 = vpop.f32.mrb[0].mxu0
    %v2980 = vadd.f32 %v2691, %v2979
    %v2981 = vpop.f32.mrb[0].mxu0
    %2982 = vmatprep.mubr.bf16.mxu0 %v1522
    %2983 = vmatmul.mubr.bf16.gmra.mrb[0].mxu0 %v1521
    %v2984 = vpop.f32.mrb[0].mxu0
    %v2985 = vadd.f32 %v2696, %v2984
    %v2986 = vpop.f32.mrb[0].mxu0
    %v2987 = vpop.f32.mrb[0].mxu0
    %v2988 = vadd.f32 %v2699, %v2987
    %v2989 = vpop.f32.mrb[0].mxu0
    %2990 = vmatprep.mubr.bf16.mxu0 %v1531
    %2991 = vmatmul.mubr.bf16.gmra.mrb[0].mxu0 %v1530
    %v2992 = vpop.f32.mrb[0].mxu0
    %v2993 = vadd.f32 %v2704, %v2992
    %v2994 = vpop.f32.mrb[0].mxu0
    %v2995 = vpop.f32.mrb[0].mxu0
    %v2996 = vadd.f32 %v2707, %v2995
    %v2997 = vpop.f32.mrb[0].mxu0
    %2998 = vmatprep.mubr.bf16.mxu0 %v1540
    %2999 = vmatmul.mubr.bf16.gmra.mrb[0].mxu0 %v1539
    %v3000 = vpop.f32.mrb[0].mxu0
    %v3001 = vadd.f32 %v2712, %v3000
    %v3002 = vpop.f32.mrb[0].mxu0
    %v3003 = vpop.f32.mrb[0].mxu0
    %v3004 = vadd.f32 %v2715, %v3003
    %v3005 = vpop.f32.mrb[0].mxu0
    %3006 = vmatprep.mubr.bf16.mxu0 %v1549
    %3007 = vmatmul.mubr.bf16.gmra.mrb[0].mxu0 %v1548
    %v3008 = vpop.f32.mrb[0].mxu0
    %v3009 = vadd.f32 %v2720, %v3008
    %v3010 = vpop.f32.mrb[0].mxu0
    %v3011 = vpop.f32.mrb[0].mxu0
    %v3012 = vadd.f32 %v2723, %v3011
    %v3013 = vpop.f32.mrb[0].mxu0
    %3014 = vmatprep.mubr.bf16.mxu0 %v1558
    %3015 = vmatmul.mubr.bf16.gmra.mrb[0].mxu0 %v1557
    %v3016 = vpop.f32.mrb[0].mxu0
    %v3017 = vadd.f32 %v2728, %v3016
    %v3018 = vpop.f32.mrb[0].mxu0
    %v3019 = vpop.f32.mrb[0].mxu0
    %v3020 = vadd.f32 %v2731, %v3019
    %v3021 = vpop.f32.mrb[0].mxu0
    %3022 = vmatprep.mubr.bf16.mxu0 %v1567
    %3023 = vmatmul.mubr.bf16.gmra.mrb[0].mxu0 %v1566
    %v3024 = vpop.f32.mrb[0].mxu0
    %v3025 = vadd.f32 %v2736, %v3024
    %v3026 = vpop.f32.mrb[0].mxu0
    %v3027 = vpop.f32.mrb[0].mxu0
    %v3028 = vadd.f32 %v2739, %v3027
    %v3029 = vpop.f32.mrb[0].mxu0
    %3030 = vmatprep.mubr.bf16.mxu0 %v1576
    %3031 = vmatmul.mubr.bf16.gmra.mrb[0].mxu0 %v1575
    %v3032 = vpop.f32.mrb[0].mxu0
    %v3033 = vadd.f32 %v2744, %v3032
    %v3034 = vpop.f32.mrb[0].mxu0
    %v3035 = vpop.f32.mrb[0].mxu0
    %v3036 = vadd.f32 %v2747, %v3035
    %v3037 = vpop.f32.mrb[0].mxu0
    %3038 = vmatprep.mubr.bf16.mxu0 %v1585
    %3039 = vmatmul.mubr.bf16.gmra.mrb[0].mxu0 %v1584
    %v3040 = vpop.f32.mrb[0].mxu0
    %v3041 = vadd.f32 %v2752, %v3040
    %v3042 = vpop.f32.mrb[0].mxu0
    %v3043 = vpop.f32.mrb[0].mxu0
    %v3044 = vadd.f32 %v2755, %v3043
    %v3045 = vpop.f32.mrb[0].mxu0
    %3046 = vmatprep.mubr.bf16.mxu0 %v1594
    %3047 = vmatmul.mubr.bf16.gmra.mrb[0].mxu0 %v1593
    %v3048 = vpop.f32.mrb[0].mxu0
    %v3049 = vadd.f32 %v2760, %v3048
    %v3050 = vpop.f32.mrb[0].mxu0
    %v3051 = vpop.f32.mrb[0].mxu0
    %v3052 = vadd.f32 %v2763, %v3051
    %v3053 = vpop.f32.mrb[0].mxu0
    %3054 = vmatprep.mubr.bf16.mxu0 %v1603
    %3055 = vmatmul.mubr.bf16.gmra.mrb[0].mxu0 %v1602
    %v3056 = vpop.f32.mrb[0].mxu0
    %v3057 = vadd.f32 %v2768, %v3056
    %v3058 = vpop.f32.mrb[0].mxu0
    %v3059 = vpop.f32.mrb[0].mxu0
    %v3060 = vadd.f32 %v2771, %v3059
    %v3061 = vpop.f32.mrb[0].mxu0
    %3062 = vmatprep.mubr.bf16.mxu0 %v1612
    %3063 = vmatmul.mubr.bf16.gmra.mrb[0].mxu0 %v1611
    %v3064 = vpop.f32.mrb[0].mxu0
    %v3065 = vadd.f32 %v2776, %v3064
    %v3066 = vpop.f32.mrb[0].mxu0
    %v3067 = vpop.f32.mrb[0].mxu0
    %v3068 = vadd.f32 %v2779, %v3067
    %v3069 = vpop.f32.mrb[0].mxu0
    %3070 = vmatprep.mubr.bf16.mxu0 %v1621
    %3071 = vmatmul.mubr.bf16.gmra.mrb[0].mxu0 %v1620
    %v3072 = vpop.f32.mrb[0].mxu0
    %v3073 = vadd.f32 %v2784, %v3072
    %v3074 = vpop.f32.mrb[0].mxu0
    %v3075 = vpop.f32.mrb[0].mxu0
    %v3076 = vadd.f32 %v2787, %v3075
    %v3077 = vpop.f32.mrb[0].mxu0
    %3078 = vmatprep.mubr.bf16.mxu0 %v1630
    %3079 = vmatmul.mubr.bf16.gmra.mrb[0].mxu0 %v1629
    %v3080 = vpop.f32.mrb[0].mxu0
    %v3081 = vadd.f32 %v2792, %v3080
    %v3082 = vpop.f32.mrb[0].mxu0
    %v3083 = vpop.f32.mrb[0].mxu0
    %v3084 = vadd.f32 %v2795, %v3083
    %v3085 = vpop.f32.mrb[0].mxu0
    %3086 = vmatprep.mubr.bf16.mxu0 %v1639
    %3087 = vmatmul.mubr.bf16.gmra.mrb[0].mxu0 %v1638
    %v3088 = vpop.f32.mrb[0].mxu0
    %v3089 = vadd.f32 %v2800, %v3088
    %v3090 = vpop.f32.mrb[0].mxu0
    %v3091 = vpop.f32.mrb[0].mxu0
    %v3092 = vadd.f32 %v2803, %v3091
    %v3093 = vpop.f32.mrb[0].mxu0
    %3094 = vmatprep.mubr.bf16.mxu0 %v1648
    %3095 = vmatmul.mubr.bf16.gmra.mrb[0].mxu0 %v1647
    %v3096 = vpop.f32.mrb[0].mxu0
    %v3097 = vadd.f32 %v2808, %v3096
    %v3098 = vpop.f32.mrb[0].mxu0
    %v3099 = vpop.f32.mrb[0].mxu0
    %v3100 = vadd.f32 %v2811, %v3099
    %v3101 = vpop.f32.mrb[0].mxu0
    %3102 = vmatprep.mubr.bf16.mxu0 %v1657
    %3103 = vmatmul.mubr.bf16.gmra.mrb[0].mxu0 %v1656
    %v3104 = vpop.f32.mrb[0].mxu0
    %v3105 = vadd.f32 %v2816, %v3104
    %v3106 = vpop.f32.mrb[0].mxu0
    %v3107 = vpop.f32.mrb[0].mxu0
    %v3108 = vadd.f32 %v2819, %v3107
    %v3109 = vpop.f32.mrb[0].mxu0
    %3110 = vmatprep.mubr.bf16.mxu0 %v1666
    %3111 = vmatmul.mubr.bf16.gmra.mrb[0].mxu0 %v1665
    %v3112 = vpop.f32.mrb[0].mxu0
    %v3113 = vadd.f32 %v2824, %v3112
    %v3114 = vpop.f32.mrb[0].mxu0
    %v3115 = vpop.f32.mrb[0].mxu0
    %v3116 = vadd.f32 %v2827, %v3115
    %v3117 = vpop.f32.mrb[0].mxu0
    %3118 = vmatprep.mubr.bf16.mxu0 %v1675
    %3119 = vmatmul.mubr.bf16.gmra.mrb[0].mxu0 %v1674
    %v3120 = vpop.f32.mrb[0].mxu0
    %v3121 = vadd.f32 %v2832, %v3120
    %v3122 = vpop.f32.mrb[0].mxu0
    %v3123 = vpop.f32.mrb[0].mxu0
    %v3124 = vadd.f32 %v2835, %v3123
    %v3125 = vpop.f32.mrb[0].mxu0
    %3126 = vmatprep.mubr.bf16.mxu0 %v1684
    %3127 = vmatmul.mubr.bf16.gmra.mrb[0].mxu0 %v1683
    %v3128 = vpop.f32.mrb[0].mxu0
    %v3129 = vadd.f32 %v2840, %v3128
    %v3130 = vpop.f32.mrb[0].mxu0
    %v3131 = vpop.f32.mrb[0].mxu0
    %v3132 = vadd.f32 %v2843, %v3131
    %v3133 = vpop.f32.mrb[0].mxu0
    %3134 = vmatprep.mubr.bf16.mxu0 %v1693
    %3135 = vmatmul.mubr.bf16.gmra.mrb[0].mxu0 %v1692
    %v3136 = vpop.f32.mrb[0].mxu0
    %v3137 = vadd.f32 %v2848, %v3136
    %v3138 = vpop.f32.mrb[0].mxu0
    %v3139 = vpop.f32.mrb[0].mxu0
    %v3140 = vadd.f32 %v2851, %v3139
    %v3141 = vpop.f32.mrb[0].mxu0
    %3142 = vmatprep.mubr.bf16.mxu0 %v1702
    %3143 = vmatmul.mubr.bf16.gmra.mrb[0].mxu0 %v1701
    %v3144 = vpop.f32.mrb[0].mxu0
    %v3145 = vadd.f32 %v2856, %v3144
    %v3146 = vpop.f32.mrb[0].mxu0
    %v3147 = vpop.f32.mrb[0].mxu0
    %v3148 = vadd.f32 %v2859, %v3147
    %v3149 = vpop.f32.mrb[0].mxu0
    %3150 = vmatprep.mubr.bf16.mxu0 %v1711
    %3151 = vmatmul.mubr.bf16.gmra.mrb[0].mxu0 %v1710
    %v3152 = vpop.f32.mrb[0].mxu0
    %v3153 = vadd.f32 %v2864, %v3152
    %v3154 = vpop.f32.mrb[0].mxu0
    %v3155 = vpop.f32.mrb[0].mxu0
    %v3156 = vadd.f32 %v2867, %v3155
    %v3157 = vpop.f32.mrb[0].mxu0
    %3158 = vmatprep.mubr.bf16.mxu0 %v1720
    %3159 = vmatmul.mubr.bf16.gmra.mrb[0].mxu0 %v1719
    %v3160 = vpop.f32.mrb[0].mxu0
    %v3161 = vadd.f32 %v2872, %v3160
    %v3162 = vpop.f32.mrb[0].mxu0
    %v3163 = vpop.f32.mrb[0].mxu0
    %v3164 = vadd.f32 %v2875, %v3163
    %v3165 = vpop.f32.mrb[0].mxu0
    %3166 = vdwg.mxu0
    %3167 = vmatprep.subr.bf16.mxu0 0
    %3168 = vmatpush1.bf16.msra.mxu0 %v2204
    %3169 = vmatprep.subr.bf16.mxu0 0
    %3170 = vmatpush1.bf16.msra.mxu0 %v2205
    %3171 = vmatprep.subr.bf16.mxu0 0
    %3172 = vmatpush1.bf16.msra.mxu0 %v2206
    %3173 = vmatprep.subr.bf16.mxu0 0
    %3174 = vmatpush1.bf16.msra.mxu0 %v2207
    %3175 = vmatprep.subr.bf16.mxu0 0
    %3176 = vmatpush1.bf16.msra.mxu0 %v2208
    %3177 = vmatprep.subr.bf16.mxu0 0
    %3178 = vmatpush1.bf16.msra.mxu0 %v2209
    %3179 = vmatprep.subr.bf16.mxu0 0
    %3180 = vmatpush1.bf16.msra.mxu0 %v2210
    %3181 = vmatprep.subr.bf16.mxu0 0
    %3182 = vmatpush1.bf16.msra.mxu0 %v2211
    %3183 = vmatprep.subr.bf16.mxu0 0
    %3184 = vmatpush1.bf16.msra.mxu0 %v2212
    %3185 = vmatprep.subr.bf16.mxu0 0
    %3186 = vmatpush1.bf16.msra.mxu0 %v2213
    %3187 = vmatprep.subr.bf16.mxu0 0
    %3188 = vmatpush1.bf16.msra.mxu0 %v2214
    %3189 = vmatprep.subr.bf16.mxu0 0
    %3190 = vmatpush1.bf16.msra.mxu0 %v2215
    %3191 = vmatprep.subr.bf16.mxu0 0
    %3192 = vmatpush1.bf16.msra.mxu0 %v2216
    %3193 = vmatprep.subr.bf16.mxu0 0
    %3194 = vmatpush1.bf16.msra.mxu0 %v2217
    %3195 = vmatprep.subr.bf16.mxu0 0
    %3196 = vmatpush1.bf16.msra.mxu0 %v2218
    %3197 = vmatprep.subr.bf16.mxu0 0
    %3198 = vmatpush1.bf16.msra.mxu0 %v2219
    %3199 = vmatprep.mubr.bf16.mxu0 %v1443
    %3200 = vmatmul.mubr.bf16.gmra.mrb[0].mxu0 %v1442
    %v3201 = vpop.f32.mrb[0].mxu0
    %v3202 = vadd.f32 %v2913, %v3201
    %v3203 = vpop.f32.mrb[0].mxu0
    %v3204 = vpop.f32.mrb[0].mxu0
    %v3205 = vadd.f32 %v2916, %v3204
    %v3206 = vpop.f32.mrb[0].mxu0
    %3207 = vmatprep.mubr.bf16.mxu0 %v1452
    %3208 = vmatmul.mubr.bf16.gmra.mrb[0].mxu0 %v1451
    %v3209 = vpop.f32.mrb[0].mxu0
    %v3210 = vadd.f32 %v2921, %v3209
    %v3211 = vpop.f32.mrb[0].mxu0
    %v3212 = vpop.f32.mrb[0].mxu0
    %v3213 = vadd.f32 %v2924, %v3212
    %v3214 = vpop.f32.mrb[0].mxu0
    %3215 = vmatprep.mubr.bf16.mxu0 %v1461
    %3216 = vmatmul.mubr.bf16.gmra.mrb[0].mxu0 %v1460
    %v3217 = vpop.f32.mrb[0].mxu0
    %v3218 = vadd.f32 %v2929, %v3217
    %v3219 = vpop.f32.mrb[0].mxu0
    %v3220 = vpop.f32.mrb[0].mxu0
    %v3221 = vadd.f32 %v2932, %v3220
    %v3222 = vpop.f32.mrb[0].mxu0
    %3223 = vmatprep.mubr.bf16.mxu0 %v1470
    %3224 = vmatmul.mubr.bf16.gmra.mrb[0].mxu0 %v1469
    %v3225 = vpop.f32.mrb[0].mxu0
    %v3226 = vadd.f32 %v2937, %v3225
    %v3227 = vpop.f32.mrb[0].mxu0
    %v3228 = vpop.f32.mrb[0].mxu0
    %v3229 = vadd.f32 %v2940, %v3228
    %v3230 = vpop.f32.mrb[0].mxu0
    %3231 = vmatprep.mubr.bf16.mxu0 %v1479
    %3232 = vmatmul.mubr.bf16.gmra.mrb[0].mxu0 %v1478
    %v3233 = vpop.f32.mrb[0].mxu0
    %v3234 = vadd.f32 %v2945, %v3233
    %v3235 = vpop.f32.mrb[0].mxu0
    %v3236 = vpop.f32.mrb[0].mxu0
    %v3237 = vadd.f32 %v2948, %v3236
    %v3238 = vpop.f32.mrb[0].mxu0
    %3239 = vmatprep.mubr.bf16.mxu0 %v1488
    %3240 = vmatmul.mubr.bf16.gmra.mrb[0].mxu0 %v1487
    %v3241 = vpop.f32.mrb[0].mxu0
    %v3242 = vadd.f32 %v2953, %v3241
    %v3243 = vpop.f32.mrb[0].mxu0
    %v3244 = vpop.f32.mrb[0].mxu0
    %v3245 = vadd.f32 %v2956, %v3244
    %v3246 = vpop.f32.mrb[0].mxu0
    %3247 = vmatprep.mubr.bf16.mxu0 %v1497
    %3248 = vmatmul.mubr.bf16.gmra.mrb[0].mxu0 %v1496
    %v3249 = vpop.f32.mrb[0].mxu0
    %v3250 = vadd.f32 %v2961, %v3249
    %v3251 = vpop.f32.mrb[0].mxu0
    %v3252 = vpop.f32.mrb[0].mxu0
    %v3253 = vadd.f32 %v2964, %v3252
    %v3254 = vpop.f32.mrb[0].mxu0
    %3255 = vmatprep.mubr.bf16.mxu0 %v1506
    %3256 = vmatmul.mubr.bf16.gmra.mrb[0].mxu0 %v1505
    %v3257 = vpop.f32.mrb[0].mxu0
    %v3258 = vadd.f32 %v2969, %v3257
    %v3259 = vpop.f32.mrb[0].mxu0
    %v3260 = vpop.f32.mrb[0].mxu0
    %v3261 = vadd.f32 %v2972, %v3260
    %v3262 = vpop.f32.mrb[0].mxu0
    %3263 = vmatprep.mubr.bf16.mxu0 %v1515
    %3264 = vmatmul.mubr.bf16.gmra.mrb[0].mxu0 %v1514
    %v3265 = vpop.f32.mrb[0].mxu0
    %v3266 = vadd.f32 %v2977, %v3265
    %v3267 = vpop.f32.mrb[0].mxu0
    %v3268 = vpop.f32.mrb[0].mxu0
    %v3269 = vadd.f32 %v2980, %v3268
    %v3270 = vpop.f32.mrb[0].mxu0
    %3271 = vmatprep.mubr.bf16.mxu0 %v1524
    %3272 = vmatmul.mubr.bf16.gmra.mrb[0].mxu0 %v1523
    %v3273 = vpop.f32.mrb[0].mxu0
    %v3274 = vadd.f32 %v2985, %v3273
    %v3275 = vpop.f32.mrb[0].mxu0
    %v3276 = vpop.f32.mrb[0].mxu0
    %v3277 = vadd.f32 %v2988, %v3276
    %v3278 = vpop.f32.mrb[0].mxu0
    %3279 = vmatprep.mubr.bf16.mxu0 %v1533
    %3280 = vmatmul.mubr.bf16.gmra.mrb[0].mxu0 %v1532
    %v3281 = vpop.f32.mrb[0].mxu0
    %v3282 = vadd.f32 %v2993, %v3281
    %v3283 = vpop.f32.mrb[0].mxu0
    %v3284 = vpop.f32.mrb[0].mxu0
    %v3285 = vadd.f32 %v2996, %v3284
    %v3286 = vpop.f32.mrb[0].mxu0
    %3287 = vmatprep.mubr.bf16.mxu0 %v1542
    %3288 = vmatmul.mubr.bf16.gmra.mrb[0].mxu0 %v1541
    %v3289 = vpop.f32.mrb[0].mxu0
    %v3290 = vadd.f32 %v3001, %v3289
    %v3291 = vpop.f32.mrb[0].mxu0
    %v3292 = vpop.f32.mrb[0].mxu0
    %v3293 = vadd.f32 %v3004, %v3292
    %v3294 = vpop.f32.mrb[0].mxu0
    %3295 = vmatprep.mubr.bf16.mxu0 %v1551
    %3296 = vmatmul.mubr.bf16.gmra.mrb[0].mxu0 %v1550
    %v3297 = vpop.f32.mrb[0].mxu0
    %v3298 = vadd.f32 %v3009, %v3297
    %v3299 = vpop.f32.mrb[0].mxu0
    %v3300 = vpop.f32.mrb[0].mxu0
    %v3301 = vadd.f32 %v3012, %v3300
    %v3302 = vpop.f32.mrb[0].mxu0
    %3303 = vmatprep.mubr.bf16.mxu0 %v1560
    %3304 = vmatmul.mubr.bf16.gmra.mrb[0].mxu0 %v1559
    %v3305 = vpop.f32.mrb[0].mxu0
    %v3306 = vadd.f32 %v3017, %v3305
    %v3307 = vpop.f32.mrb[0].mxu0
    %v3308 = vpop.f32.mrb[0].mxu0
    %v3309 = vadd.f32 %v3020, %v3308
    %v3310 = vpop.f32.mrb[0].mxu0
    %3311 = vmatprep.mubr.bf16.mxu0 %v1569
    %3312 = vmatmul.mubr.bf16.gmra.mrb[0].mxu0 %v1568
    %v3313 = vpop.f32.mrb[0].mxu0
    %v3314 = vadd.f32 %v3025, %v3313
    %v3315 = vpop.f32.mrb[0].mxu0
    %v3316 = vpop.f32.mrb[0].mxu0
    %v3317 = vadd.f32 %v3028, %v3316
    %v3318 = vpop.f32.mrb[0].mxu0
    %3319 = vmatprep.mubr.bf16.mxu0 %v1578
    %3320 = vmatmul.mubr.bf16.gmra.mrb[0].mxu0 %v1577
    %v3321 = vpop.f32.mrb[0].mxu0
    %v3322 = vadd.f32 %v3033, %v3321
    %v3323 = vpop.f32.mrb[0].mxu0
    %v3324 = vpop.f32.mrb[0].mxu0
    %v3325 = vadd.f32 %v3036, %v3324
    %v3326 = vpop.f32.mrb[0].mxu0
    %3327 = vmatprep.mubr.bf16.mxu0 %v1587
    %3328 = vmatmul.mubr.bf16.gmra.mrb[0].mxu0 %v1586
    %v3329 = vpop.f32.mrb[0].mxu0
    %v3330 = vadd.f32 %v3041, %v3329
    %v3331 = vpop.f32.mrb[0].mxu0
    %v3332 = vpop.f32.mrb[0].mxu0
    %v3333 = vadd.f32 %v3044, %v3332
    %v3334 = vpop.f32.mrb[0].mxu0
    %3335 = vmatprep.mubr.bf16.mxu0 %v1596
    %3336 = vmatmul.mubr.bf16.gmra.mrb[0].mxu0 %v1595
    %v3337 = vpop.f32.mrb[0].mxu0
    %v3338 = vadd.f32 %v3049, %v3337
    %v3339 = vpop.f32.mrb[0].mxu0
    %v3340 = vpop.f32.mrb[0].mxu0
    %v3341 = vadd.f32 %v3052, %v3340
    %v3342 = vpop.f32.mrb[0].mxu0
    %3343 = vmatprep.mubr.bf16.mxu0 %v1605
    %3344 = vmatmul.mubr.bf16.gmra.mrb[0].mxu0 %v1604
    %v3345 = vpop.f32.mrb[0].mxu0
    %v3346 = vadd.f32 %v3057, %v3345
    %v3347 = vpop.f32.mrb[0].mxu0
    %v3348 = vpop.f32.mrb[0].mxu0
    %v3349 = vadd.f32 %v3060, %v3348
    %v3350 = vpop.f32.mrb[0].mxu0
    %3351 = vmatprep.mubr.bf16.mxu0 %v1614
    %3352 = vmatmul.mubr.bf16.gmra.mrb[0].mxu0 %v1613
    %v3353 = vpop.f32.mrb[0].mxu0
    %v3354 = vadd.f32 %v3065, %v3353
    %v3355 = vpop.f32.mrb[0].mxu0
    %v3356 = vpop.f32.mrb[0].mxu0
    %v3357 = vadd.f32 %v3068, %v3356
    %v3358 = vpop.f32.mrb[0].mxu0
    %3359 = vmatprep.mubr.bf16.mxu0 %v1623
    %3360 = vmatmul.mubr.bf16.gmra.mrb[0].mxu0 %v1622
    %v3361 = vpop.f32.mrb[0].mxu0
    %v3362 = vadd.f32 %v3073, %v3361
    %v3363 = vpop.f32.mrb[0].mxu0
    %v3364 = vpop.f32.mrb[0].mxu0
    %v3365 = vadd.f32 %v3076, %v3364
    %v3366 = vpop.f32.mrb[0].mxu0
    %3367 = vmatprep.mubr.bf16.mxu0 %v1632
    %3368 = vmatmul.mubr.bf16.gmra.mrb[0].mxu0 %v1631
    %v3369 = vpop.f32.mrb[0].mxu0
    %v3370 = vadd.f32 %v3081, %v3369
    %v3371 = vpop.f32.mrb[0].mxu0
    %v3372 = vpop.f32.mrb[0].mxu0
    %v3373 = vadd.f32 %v3084, %v3372
    %v3374 = vpop.f32.mrb[0].mxu0
    %3375 = vmatprep.mubr.bf16.mxu0 %v1641
    %3376 = vmatmul.mubr.bf16.gmra.mrb[0].mxu0 %v1640
    %v3377 = vpop.f32.mrb[0].mxu0
    %v3378 = vadd.f32 %v3089, %v3377
    %v3379 = vpop.f32.mrb[0].mxu0
    %v3380 = vpop.f32.mrb[0].mxu0
    %v3381 = vadd.f32 %v3092, %v3380
    %v3382 = vpop.f32.mrb[0].mxu0
    %3383 = vmatprep.mubr.bf16.mxu0 %v1650
    %3384 = vmatmul.mubr.bf16.gmra.mrb[0].mxu0 %v1649
    %v3385 = vpop.f32.mrb[0].mxu0
    %v3386 = vadd.f32 %v3097, %v3385
    %v3387 = vpop.f32.mrb[0].mxu0
    %v3388 = vpop.f32.mrb[0].mxu0
    %v3389 = vadd.f32 %v3100, %v3388
    %v3390 = vpop.f32.mrb[0].mxu0
    %3391 = vmatprep.mubr.bf16.mxu0 %v1659
    %3392 = vmatmul.mubr.bf16.gmra.mrb[0].mxu0 %v1658
    %v3393 = vpop.f32.mrb[0].mxu0
    %v3394 = vadd.f32 %v3105, %v3393
    %v3395 = vpop.f32.mrb[0].mxu0
    %v3396 = vpop.f32.mrb[0].mxu0
    %v3397 = vadd.f32 %v3108, %v3396
    %v3398 = vpop.f32.mrb[0].mxu0
    %3399 = vmatprep.mubr.bf16.mxu0 %v1668
    %3400 = vmatmul.mubr.bf16.gmra.mrb[0].mxu0 %v1667
    %v3401 = vpop.f32.mrb[0].mxu0
    %v3402 = vadd.f32 %v3113, %v3401
    %v3403 = vpop.f32.mrb[0].mxu0
    %v3404 = vpop.f32.mrb[0].mxu0
    %v3405 = vadd.f32 %v3116, %v3404
    %v3406 = vpop.f32.mrb[0].mxu0
    %3407 = vmatprep.mubr.bf16.mxu0 %v1677
    %3408 = vmatmul.mubr.bf16.gmra.mrb[0].mxu0 %v1676
    %v3409 = vpop.f32.mrb[0].mxu0
    %v3410 = vadd.f32 %v3121, %v3409
    %v3411 = vpop.f32.mrb[0].mxu0
    %v3412 = vpop.f32.mrb[0].mxu0
    %v3413 = vadd.f32 %v3124, %v3412
    %v3414 = vpop.f32.mrb[0].mxu0
    %3415 = vmatprep.mubr.bf16.mxu0 %v1686
    %3416 = vmatmul.mubr.bf16.gmra.mrb[0].mxu0 %v1685
    %v3417 = vpop.f32.mrb[0].mxu0
    %v3418 = vadd.f32 %v3129, %v3417
    %v3419 = vpop.f32.mrb[0].mxu0
    %v3420 = vpop.f32.mrb[0].mxu0
    %v3421 = vadd.f32 %v3132, %v3420
    %v3422 = vpop.f32.mrb[0].mxu0
    %3423 = vmatprep.mubr.bf16.mxu0 %v1695
    %3424 = vmatmul.mubr.bf16.gmra.mrb[0].mxu0 %v1694
    %v3425 = vpop.f32.mrb[0].mxu0
    %v3426 = vadd.f32 %v3137, %v3425
    %v3427 = vpop.f32.mrb[0].mxu0
    %v3428 = vpop.f32.mrb[0].mxu0
    %v3429 = vadd.f32 %v3140, %v3428
    %v3430 = vpop.f32.mrb[0].mxu0
    %3431 = vmatprep.mubr.bf16.mxu0 %v1704
    %3432 = vmatmul.mubr.bf16.gmra.mrb[0].mxu0 %v1703
    %v3433 = vpop.f32.mrb[0].mxu0
    %v3434 = vadd.f32 %v3145, %v3433
    %v3435 = vpop.f32.mrb[0].mxu0
    %v3436 = vpop.f32.mrb[0].mxu0
    %v3437 = vadd.f32 %v3148, %v3436
    %v3438 = vpop.f32.mrb[0].mxu0
    %3439 = vmatprep.mubr.bf16.mxu0 %v1713
    %3440 = vmatmul.mubr.bf16.gmra.mrb[0].mxu0 %v1712
    %v3441 = vpop.f32.mrb[0].mxu0
    %v3442 = vadd.f32 %v3153, %v3441
    %v3443 = vpop.f32.mrb[0].mxu0
    %v3444 = vpop.f32.mrb[0].mxu0
    %v3445 = vadd.f32 %v3156, %v3444
    %v3446 = vpop.f32.mrb[0].mxu0
    %3447 = vmatprep.mubr.bf16.mxu0 %v1722
    %3448 = vmatmul.mubr.bf16.gmra.mrb[0].mxu0 %v1721
    %v3449 = vpop.f32.mrb[0].mxu0
    %v3450 = vadd.f32 %v3161, %v3449
    %v3451 = vpop.f32.mrb[0].mxu0
    %v3452 = vpop.f32.mrb[0].mxu0
    %v3453 = vadd.f32 %v3164, %v3452
    %v3454 = vpop.f32.mrb[0].mxu0
    %3455 = vdwg.mxu0
    %3456 = vmatprep.subr.bf16.mxu0 0
    %3457 = vmatpush1.bf16.msra.mxu0 %v2220
    %3458 = vmatprep.subr.bf16.mxu0 0
    %3459 = vmatpush1.bf16.msra.mxu0 %v2221
    %3460 = vmatprep.subr.bf16.mxu0 0
    %3461 = vmatpush1.bf16.msra.mxu0 %v2222
    %3462 = vmatprep.subr.bf16.mxu0 0
    %3463 = vmatpush1.bf16.msra.mxu0 %v2223
    %3464 = vmatprep.subr.bf16.mxu0 0
    %3465 = vmatpush1.bf16.msra.mxu0 %v2224
    %3466 = vmatprep.subr.bf16.mxu0 0
    %3467 = vmatpush1.bf16.msra.mxu0 %v2225
    %3468 = vmatprep.subr.bf16.mxu0 0
    %3469 = vmatpush1.bf16.msra.mxu0 %v2226
    %3470 = vmatprep.subr.bf16.mxu0 0
    %3471 = vmatpush1.bf16.msra.mxu0 %v2227
    %3472 = vmatprep.subr.bf16.mxu0 0
    %3473 = vmatpush1.bf16.msra.mxu0 0
    %3474 = vmatprep.subr.bf16.mxu0 0
    %3475 = vmatpush1.bf16.msra.mxu0 0
    %3476 = vmatprep.subr.bf16.mxu0 0
    %3477 = vmatpush1.bf16.msra.mxu0 0
    %3478 = vmatprep.subr.bf16.mxu0 0
    %3479 = vmatpush1.bf16.msra.mxu0 0
    %3480 = vmatprep.subr.bf16.mxu0 0
    %3481 = vmatpush1.bf16.msra.mxu0 0
    %3482 = vmatprep.subr.bf16.mxu0 0
    %3483 = vmatpush1.bf16.msra.mxu0 0
    %3484 = vmatprep.subr.bf16.mxu0 0
    %3485 = vmatpush1.bf16.msra.mxu0 0
    %3486 = vmatprep.subr.bf16.mxu0 0
    %3487 = vmatpush1.bf16.msra.mxu0 0
    %3488 = vmatprep.mubr.bf16.mxu0 0
    %3489 = vmatmul.mubr.bf16.gmra.mrb[0].mxu0 %v1444
    %v3490 = vpop.f32.mrb[0].mxu0
    %v3491 = vadd.f32 %v3202, %v3490
    %v3492 = vpop.f32.mrb[0].mxu0
    %v3493 = vpop.f32.mrb[0].mxu0
    %v3494 = vadd.f32 %v3205, %v3493
    %v3495 = vpop.f32.mrb[0].mxu0
    %3496 = vmatprep.mubr.bf16.mxu0 0
    %3497 = vmatmul.mubr.bf16.gmra.mrb[0].mxu0 %v1453
    %v3498 = vpop.f32.mrb[0].mxu0
    %v3499 = vadd.f32 %v3210, %v3498
    %v3500 = vpop.f32.mrb[0].mxu0
    %v3501 = vpop.f32.mrb[0].mxu0
    %v3502 = vadd.f32 %v3213, %v3501
    %v3503 = vpop.f32.mrb[0].mxu0
    %3504 = vmatprep.mubr.bf16.mxu0 0
    %3505 = vmatmul.mubr.bf16.gmra.mrb[0].mxu0 %v1462
    %v3506 = vpop.f32.mrb[0].mxu0
    %v3507 = vadd.f32 %v3218, %v3506
    %v3508 = vpop.f32.mrb[0].mxu0
    %v3509 = vpop.f32.mrb[0].mxu0
    %v3510 = vadd.f32 %v3221, %v3509
    %v3511 = vpop.f32.mrb[0].mxu0
    %3512 = vmatprep.mubr.bf16.mxu0 0
    %3513 = vmatmul.mubr.bf16.gmra.mrb[0].mxu0 %v1471
    %v3514 = vpop.f32.mrb[0].mxu0
    %v3515 = vadd.f32 %v3226, %v3514
    %v3516 = vpop.f32.mrb[0].mxu0
    %v3517 = vpop.f32.mrb[0].mxu0
    %v3518 = vadd.f32 %v3229, %v3517
    %v3519 = vpop.f32.mrb[0].mxu0
    %3520 = vmatprep.mubr.bf16.mxu0 0
    %3521 = vmatmul.mubr.bf16.gmra.mrb[0].mxu0 %v1480
    %v3522 = vpop.f32.mrb[0].mxu0
    %v3523 = vadd.f32 %v3234, %v3522
    %v3524 = vpop.f32.mrb[0].mxu0
    %v3525 = vpop.f32.mrb[0].mxu0
    %v3526 = vadd.f32 %v3237, %v3525
    %v3527 = vpop.f32.mrb[0].mxu0
    %3528 = vmatprep.mubr.bf16.mxu0 0
    %3529 = vmatmul.mubr.bf16.gmra.mrb[0].mxu0 %v1489
    %v3530 = vpop.f32.mrb[0].mxu0
    %v3531 = vadd.f32 %v3242, %v3530
    %v3532 = vpop.f32.mrb[0].mxu0
    %v3533 = vpop.f32.mrb[0].mxu0
    %v3534 = vadd.f32 %v3245, %v3533
    %v3535 = vpop.f32.mrb[0].mxu0
    %3536 = vmatprep.mubr.bf16.mxu0 0
    %3537 = vmatmul.mubr.bf16.gmra.mrb[0].mxu0 %v1498
    %v3538 = vpop.f32.mrb[0].mxu0
    %v3539 = vadd.f32 %v3250, %v3538
    %v3540 = vpop.f32.mrb[0].mxu0
    %v3541 = vpop.f32.mrb[0].mxu0
    %v3542 = vadd.f32 %v3253, %v3541
    %v3543 = vpop.f32.mrb[0].mxu0
    %3544 = vmatprep.mubr.bf16.mxu0 0
    %3545 = vmatmul.mubr.bf16.gmra.mrb[0].mxu0 %v1507
    %v3546 = vpop.f32.mrb[0].mxu0
    %v3547 = vadd.f32 %v3258, %v3546
    %v3548 = vpop.f32.mrb[0].mxu0
    %v3549 = vpop.f32.mrb[0].mxu0
    %v3550 = vadd.f32 %v3261, %v3549
    %v3551 = vpop.f32.mrb[0].mxu0
    %3552 = vmatprep.mubr.bf16.mxu0 0
    %3553 = vmatmul.mubr.bf16.gmra.mrb[0].mxu0 %v1516
    %v3554 = vpop.f32.mrb[0].mxu0
    %v3555 = vadd.f32 %v3266, %v3554
    %v3556 = vpop.f32.mrb[0].mxu0
    %v3557 = vpop.f32.mrb[0].mxu0
    %v3558 = vadd.f32 %v3269, %v3557
    %v3559 = vpop.f32.mrb[0].mxu0
    %3560 = vmatprep.mubr.bf16.mxu0 0
    %3561 = vmatmul.mubr.bf16.gmra.mrb[0].mxu0 %v1525
    %v3562 = vpop.f32.mrb[0].mxu0
    %v3563 = vadd.f32 %v3274, %v3562
    %v3564 = vpop.f32.mrb[0].mxu0
    %v3565 = vpop.f32.mrb[0].mxu0
    %v3566 = vadd.f32 %v3277, %v3565
    %v3567 = vpop.f32.mrb[0].mxu0
    %3568 = vmatprep.mubr.bf16.mxu0 0
    %3569 = vmatmul.mubr.bf16.gmra.mrb[0].mxu0 %v1534
    %v3570 = vpop.f32.mrb[0].mxu0
    %v3571 = vadd.f32 %v3282, %v3570
    %v3572 = vpop.f32.mrb[0].mxu0
    %v3573 = vpop.f32.mrb[0].mxu0
    %v3574 = vadd.f32 %v3285, %v3573
    %v3575 = vpop.f32.mrb[0].mxu0
    %3576 = vmatprep.mubr.bf16.mxu0 0
    %3577 = vmatmul.mubr.bf16.gmra.mrb[0].mxu0 %v1543
    %v3578 = vpop.f32.mrb[0].mxu0
    %v3579 = vadd.f32 %v3290, %v3578
    %v3580 = vpop.f32.mrb[0].mxu0
    %v3581 = vpop.f32.mrb[0].mxu0
    %v3582 = vadd.f32 %v3293, %v3581
    %v3583 = vpop.f32.mrb[0].mxu0
    %3584 = vmatprep.mubr.bf16.mxu0 0
    %3585 = vmatmul.mubr.bf16.gmra.mrb[0].mxu0 %v1552
    %v3586 = vpop.f32.mrb[0].mxu0
    %v3587 = vadd.f32 %v3298, %v3586
    %v3588 = vpop.f32.mrb[0].mxu0
    %v3589 = vpop.f32.mrb[0].mxu0
    %v3590 = vadd.f32 %v3301, %v3589
    %v3591 = vpop.f32.mrb[0].mxu0
    %3592 = vmatprep.mubr.bf16.mxu0 0
    %3593 = vmatmul.mubr.bf16.gmra.mrb[0].mxu0 %v1561
    %v3594 = vpop.f32.mrb[0].mxu0
    %v3595 = vadd.f32 %v3306, %v3594
    %v3596 = vpop.f32.mrb[0].mxu0
    %v3597 = vpop.f32.mrb[0].mxu0
    %v3598 = vadd.f32 %v3309, %v3597
    %v3599 = vpop.f32.mrb[0].mxu0
    %3600 = vmatprep.mubr.bf16.mxu0 0
    %3601 = vmatmul.mubr.bf16.gmra.mrb[0].mxu0 %v1570
    %v3602 = vpop.f32.mrb[0].mxu0
    %v3603 = vadd.f32 %v3314, %v3602
    %v3604 = vpop.f32.mrb[0].mxu0
    %v3605 = vpop.f32.mrb[0].mxu0
    %v3606 = vadd.f32 %v3317, %v3605
    %v3607 = vpop.f32.mrb[0].mxu0
    %3608 = vmatprep.mubr.bf16.mxu0 0
    %3609 = vmatmul.mubr.bf16.gmra.mrb[0].mxu0 %v1579
    %v3610 = vpop.f32.mrb[0].mxu0
    %v3611 = vadd.f32 %v3322, %v3610
    %v3612 = vpop.f32.mrb[0].mxu0
    %v3613 = vpop.f32.mrb[0].mxu0
    %v3614 = vadd.f32 %v3325, %v3613
    %v3615 = vpop.f32.mrb[0].mxu0
    %3616 = vmatprep.mubr.bf16.mxu0 0
    %3617 = vmatmul.mubr.bf16.gmra.mrb[0].mxu0 %v1588
    %v3618 = vpop.f32.mrb[0].mxu0
    %v3619 = vadd.f32 %v3330, %v3618
    %v3620 = vpop.f32.mrb[0].mxu0
    %v3621 = vpop.f32.mrb[0].mxu0
    %v3622 = vadd.f32 %v3333, %v3621
    %v3623 = vpop.f32.mrb[0].mxu0
    %3624 = vmatprep.mubr.bf16.mxu0 0
    %3625 = vmatmul.mubr.bf16.gmra.mrb[0].mxu0 %v1597
    %v3626 = vpop.f32.mrb[0].mxu0
    %v3627 = vadd.f32 %v3338, %v3626
    %v3628 = vpop.f32.mrb[0].mxu0
    %v3629 = vpop.f32.mrb[0].mxu0
    %v3630 = vadd.f32 %v3341, %v3629
    %v3631 = vpop.f32.mrb[0].mxu0
    %3632 = vmatprep.mubr.bf16.mxu0 0
    %3633 = vmatmul.mubr.bf16.gmra.mrb[0].mxu0 %v1606
    %v3634 = vpop.f32.mrb[0].mxu0
    %v3635 = vadd.f32 %v3346, %v3634
    %v3636 = vpop.f32.mrb[0].mxu0
    %v3637 = vpop.f32.mrb[0].mxu0
    %v3638 = vadd.f32 %v3349, %v3637
    %v3639 = vpop.f32.mrb[0].mxu0
    %3640 = vmatprep.mubr.bf16.mxu0 0
    %3641 = vmatmul.mubr.bf16.gmra.mrb[0].mxu0 %v1615
    %v3642 = vpop.f32.mrb[0].mxu0
    %v3643 = vadd.f32 %v3354, %v3642
    %v3644 = vpop.f32.mrb[0].mxu0
    %v3645 = vpop.f32.mrb[0].mxu0
    %v3646 = vadd.f32 %v3357, %v3645
    %v3647 = vpop.f32.mrb[0].mxu0
    %3648 = vmatprep.mubr.bf16.mxu0 0
    %3649 = vmatmul.mubr.bf16.gmra.mrb[0].mxu0 %v1624
    %v3650 = vpop.f32.mrb[0].mxu0
    %v3651 = vadd.f32 %v3362, %v3650
    %v3652 = vpop.f32.mrb[0].mxu0
    %v3653 = vpop.f32.mrb[0].mxu0
    %v3654 = vadd.f32 %v3365, %v3653
    %v3655 = vpop.f32.mrb[0].mxu0
    %3656 = vmatprep.mubr.bf16.mxu0 0
    %3657 = vmatmul.mubr.bf16.gmra.mrb[0].mxu0 %v1633
    %v3658 = vpop.f32.mrb[0].mxu0
    %v3659 = vadd.f32 %v3370, %v3658
    %v3660 = vpop.f32.mrb[0].mxu0
    %v3661 = vpop.f32.mrb[0].mxu0
    %v3662 = vadd.f32 %v3373, %v3661
    %v3663 = vpop.f32.mrb[0].mxu0
    %3664 = vmatprep.mubr.bf16.mxu0 0
    %3665 = vmatmul.mubr.bf16.gmra.mrb[0].mxu0 %v1642
    %v3666 = vpop.f32.mrb[0].mxu0
    %v3667 = vadd.f32 %v3378, %v3666
    %v3668 = vpop.f32.mrb[0].mxu0
    %v3669 = vpop.f32.mrb[0].mxu0
    %v3670 = vadd.f32 %v3381, %v3669
    %v3671 = vpop.f32.mrb[0].mxu0
    %3672 = vmatprep.mubr.bf16.mxu0 0
    %3673 = vmatmul.mubr.bf16.gmra.mrb[0].mxu0 %v1651
    %v3674 = vpop.f32.mrb[0].mxu0
    %v3675 = vadd.f32 %v3386, %v3674
    %v3676 = vpop.f32.mrb[0].mxu0
    %v3677 = vpop.f32.mrb[0].mxu0
    %v3678 = vadd.f32 %v3389, %v3677
    %v3679 = vpop.f32.mrb[0].mxu0
    %3680 = vmatprep.mubr.bf16.mxu0 0
    %3681 = vmatmul.mubr.bf16.gmra.mrb[0].mxu0 %v1660
    %v3682 = vpop.f32.mrb[0].mxu0
    %v3683 = vadd.f32 %v3394, %v3682
    %v3684 = vpop.f32.mrb[0].mxu0
    %v3685 = vpop.f32.mrb[0].mxu0
    %v3686 = vadd.f32 %v3397, %v3685
    %v3687 = vpop.f32.mrb[0].mxu0
    %3688 = vmatprep.mubr.bf16.mxu0 0
    %3689 = vmatmul.mubr.bf16.gmra.mrb[0].mxu0 %v1669
    %v3690 = vpop.f32.mrb[0].mxu0
    %v3691 = vadd.f32 %v3402, %v3690
    %v3692 = vpop.f32.mrb[0].mxu0
    %v3693 = vpop.f32.mrb[0].mxu0
    %v3694 = vadd.f32 %v3405, %v3693
    %v3695 = vpop.f32.mrb[0].mxu0
    %3696 = vmatprep.mubr.bf16.mxu0 0
    %3697 = vmatmul.mubr.bf16.gmra.mrb[0].mxu0 %v1678
    %v3698 = vpop.f32.mrb[0].mxu0
    %v3699 = vadd.f32 %v3410, %v3698
    %v3700 = vpop.f32.mrb[0].mxu0
    %v3701 = vpop.f32.mrb[0].mxu0
    %v3702 = vadd.f32 %v3413, %v3701
    %v3703 = vpop.f32.mrb[0].mxu0
    %3704 = vmatprep.mubr.bf16.mxu0 0
    %3705 = vmatmul.mubr.bf16.gmra.mrb[0].mxu0 %v1687
    %v3706 = vpop.f32.mrb[0].mxu0
    %v3707 = vadd.f32 %v3418, %v3706
    %v3708 = vpop.f32.mrb[0].mxu0
    %v3709 = vpop.f32.mrb[0].mxu0
    %v3710 = vadd.f32 %v3421, %v3709
    %v3711 = vpop.f32.mrb[0].mxu0
    %3712 = vmatprep.mubr.bf16.mxu0 0
    %3713 = vmatmul.mubr.bf16.gmra.mrb[0].mxu0 %v1696
    %v3714 = vpop.f32.mrb[0].mxu0
    %v3715 = vadd.f32 %v3426, %v3714
    %v3716 = vpop.f32.mrb[0].mxu0
    %v3717 = vpop.f32.mrb[0].mxu0
    %v3718 = vadd.f32 %v3429, %v3717
    %v3719 = vpop.f32.mrb[0].mxu0
    %3720 = vmatprep.mubr.bf16.mxu0 0
    %3721 = vmatmul.mubr.bf16.gmra.mrb[0].mxu0 %v1705
    %v3722 = vpop.f32.mrb[0].mxu0
    %v3723 = vadd.f32 %v3434, %v3722
    %v3724 = vpop.f32.mrb[0].mxu0
    %v3725 = vpop.f32.mrb[0].mxu0
    %v3726 = vadd.f32 %v3437, %v3725
    %v3727 = vpop.f32.mrb[0].mxu0
    %3728 = vmatprep.mubr.bf16.mxu0 0
    %3729 = vmatmul.mubr.bf16.gmra.mrb[0].mxu0 %v1714
    %v3730 = vpop.f32.mrb[0].mxu0
    %v3731 = vadd.f32 %v3442, %v3730
    %v3732 = vpop.f32.mrb[0].mxu0
    %v3733 = vpop.f32.mrb[0].mxu0
    %v3734 = vadd.f32 %v3445, %v3733
    %v3735 = vpop.f32.mrb[0].mxu0
    %3736 = vmatprep.mubr.bf16.mxu0 0
    %3737 = vmatmul.mubr.bf16.gmra.mrb[0].mxu0 %v1723
    %v3738 = vpop.f32.mrb[0].mxu0
    %v3739 = vadd.f32 %v3450, %v3738
    %v3740 = vpop.f32.mrb[0].mxu0
    %v3741 = vpop.f32.mrb[0].mxu0
    %v3742 = vadd.f32 %v3453, %v3741
    %v3743 = vpop.f32.mrb[0].mxu0
    %3744 = vdwg.mxu0
    %v3745 = vadd.f32 %v3491, %v3494
    %v3746 = vadd.f32 %v3745, %v3499
    %v3747 = vadd.f32 %v3746, %v3502
    %v3748 = vadd.f32 %v3747, %v3507
    %v3749 = vadd.f32 %v3748, %v3510
    %v3750 = vadd.f32 %v3749, %v3515
    %v3751 = vadd.f32 %v3750, %v3518
    %v3752 = vadd.f32 %v3751, %v3523
    %v3753 = vadd.f32 %v3752, %v3526
    %v3754 = vadd.f32 %v3753, %v3531
    %v3755 = vadd.f32 %v3754, %v3534
    %v3756 = vadd.f32 %v3755, %v3539
    %v3757 = vadd.f32 %v3756, %v3542
    %v3758 = vadd.f32 %v3757, %v3547
    %v3759 = vadd.f32 %v3758, %v3550
    %v3760 = vadd.f32 %v3759, %v3555
    %v3761 = vadd.f32 %v3760, %v3558
    %v3762 = vadd.f32 %v3761, %v3563
    %v3763 = vadd.f32 %v3762, %v3566
    %v3764 = vadd.f32 %v3763, %v3571
    %v3765 = vadd.f32 %v3764, %v3574
    %v3766 = vadd.f32 %v3765, %v3579
    %v3767 = vadd.f32 %v3766, %v3582
    %v3768 = vadd.f32 %v3767, %v3587
    %v3769 = vadd.f32 %v3768, %v3590
    %v3770 = vadd.f32 %v3769, %v3595
    %v3771 = vadd.f32 %v3770, %v3598
    %v3772 = vadd.f32 %v3771, %v3603
    %v3773 = vadd.f32 %v3772, %v3606
    %v3774 = vadd.f32 %v3773, %v3611
    %v3775 = vadd.f32 %v3774, %v3614
    %v3776 = vadd.f32 %v3775, %v3619
    %v3777 = vadd.f32 %v3776, %v3622
    %v3778 = vadd.f32 %v3777, %v3627
    %v3779 = vadd.f32 %v3778, %v3630
    %v3780 = vadd.f32 %v3779, %v3635
    %v3781 = vadd.f32 %v3780, %v3638
    %v3782 = vadd.f32 %v3781, %v3643
    %v3783 = vadd.f32 %v3782, %v3646
    %v3784 = vadd.f32 %v3783, %v3651
    %v3785 = vadd.f32 %v3784, %v3654
    %v3786 = vadd.f32 %v3785, %v3659
    %v3787 = vadd.f32 %v3786, %v3662
    %v3788 = vadd.f32 %v3787, %v3667
    %v3789 = vadd.f32 %v3788, %v3670
    %v3790 = vadd.f32 %v3789, %v3675
    %v3791 = vadd.f32 %v3790, %v3678
    %v3792 = vadd.f32 %v3791, %v3683
    %v3793 = vadd.f32 %v3792, %v3686
    %v3794 = vadd.f32 %v3793, %v3691
    %v3795 = vadd.f32 %v3794, %v3694
    %v3796 = vadd.f32 %v3795, %v3699
    %v3797 = vadd.f32 %v3796, %v3702
    %v3798 = vadd.f32 %v3797, %v3707
    %v3799 = vadd.f32 %v3798, %v3710
    %v3800 = vadd.f32 %v3799, %v3715
    %v3801 = vadd.f32 %v3800, %v3718
    %v3802 = vadd.f32 %v3801, %v3723
    %v3803 = vadd.f32 %v3802, %v3726
    %v3804 = vadd.f32 %v3803, %v3731
    %v3805 = vadd.f32 %v3804, %v3734
    %v3806 = vadd.f32 %v3805, %v3739
    %v3807 = vadd.f32 %v3806, %v3742
    %v3808 = vrot.slane %v3807, 4
    %v3809 = vadd.f32 %v3807, %v3808
    %v3810 = vrot.slane %v3809, 2
    %v3811 = vadd.f32 %v3809, %v3810
    %v3812 = vrot.slane %v3811, 1
    %v3813 = vadd.f32 %v3811, %v3812
    %v3814 = vmul.f32 %v3813, 0.001953125
    %v3815 = vmul.f32 %v3491, %v3491
    %v3816 = vmul.f32 %v3494, %v3494
    %v3817 = vmul.f32 %v3499, %v3499
    %v3818 = vmul.f32 %v3502, %v3502
    %v3819 = vmul.f32 %v3507, %v3507
    %v3820 = vmul.f32 %v3510, %v3510
    %v3821 = vmul.f32 %v3515, %v3515
    %v3822 = vmul.f32 %v3518, %v3518
    %v3823 = vmul.f32 %v3523, %v3523
    %v3824 = vmul.f32 %v3526, %v3526
    %v3825 = vmul.f32 %v3531, %v3531
    %v3826 = vmul.f32 %v3534, %v3534
    %v3827 = vmul.f32 %v3539, %v3539
    %v3828 = vmul.f32 %v3542, %v3542
    %v3829 = vmul.f32 %v3547, %v3547
    %v3830 = vmul.f32 %v3550, %v3550
    %v3831 = vmul.f32 %v3555, %v3555
    %v3832 = vmul.f32 %v3558, %v3558
    %v3833 = vmul.f32 %v3563, %v3563
    %v3834 = vmul.f32 %v3566, %v3566
    %v3835 = vmul.f32 %v3571, %v3571
    %v3836 = vmul.f32 %v3574, %v3574
    %v3837 = vmul.f32 %v3579, %v3579
    %v3838 = vmul.f32 %v3582, %v3582
    %v3839 = vmul.f32 %v3587, %v3587
    %v3840 = vmul.f32 %v3590, %v3590
    %v3841 = vmul.f32 %v3595, %v3595
    %v3842 = vmul.f32 %v3598, %v3598
    %v3843 = vmul.f32 %v3603, %v3603
    %v3844 = vmul.f32 %v3606, %v3606
    %v3845 = vmul.f32 %v3611, %v3611
    %v3846 = vmul.f32 %v3614, %v3614
    %v3847 = vmul.f32 %v3619, %v3619
    %v3848 = vmul.f32 %v3622, %v3622
    %v3849 = vmul.f32 %v3627, %v3627
    %v3850 = vmul.f32 %v3630, %v3630
    %v3851 = vmul.f32 %v3635, %v3635
    %v3852 = vmul.f32 %v3638, %v3638
    %v3853 = vmul.f32 %v3643, %v3643
    %v3854 = vmul.f32 %v3646, %v3646
    %v3855 = vmul.f32 %v3651, %v3651
    %v3856 = vmul.f32 %v3654, %v3654
    %v3857 = vmul.f32 %v3659, %v3659
    %v3858 = vmul.f32 %v3662, %v3662
    %v3859 = vmul.f32 %v3667, %v3667
    %v3860 = vmul.f32 %v3670, %v3670
    %v3861 = vmul.f32 %v3675, %v3675
    %v3862 = vmul.f32 %v3678, %v3678
    %v3863 = vmul.f32 %v3683, %v3683
    %v3864 = vmul.f32 %v3686, %v3686
    %v3865 = vmul.f32 %v3691, %v3691
    %v3866 = vmul.f32 %v3694, %v3694
    %v3867 = vmul.f32 %v3699, %v3699
    %v3868 = vmul.f32 %v3702, %v3702
    %v3869 = vmul.f32 %v3707, %v3707
    %v3870 = vmul.f32 %v3710, %v3710
    %v3871 = vmul.f32 %v3715, %v3715
    %v3872 = vmul.f32 %v3718, %v3718
    %v3873 = vmul.f32 %v3723, %v3723
    %v3874 = vmul.f32 %v3726, %v3726
    %v3875 = vmul.f32 %v3731, %v3731
    %v3876 = vmul.f32 %v3734, %v3734
    %v3877 = vmul.f32 %v3739, %v3739
    %v3878 = vmul.f32 %v3742, %v3742
    %v3879 = vadd.f32 %v3815, %v3816
    %v3880 = vadd.f32 %v3879, %v3817
    %v3881 = vadd.f32 %v3880, %v3818
    %v3882 = vadd.f32 %v3881, %v3819
    %v3883 = vadd.f32 %v3882, %v3820
    %v3884 = vadd.f32 %v3883, %v3821
    %v3885 = vadd.f32 %v3884, %v3822
    %v3886 = vadd.f32 %v3885, %v3823
    %v3887 = vadd.f32 %v3886, %v3824
    %v3888 = vadd.f32 %v3887, %v3825
    %v3889 = vadd.f32 %v3888, %v3826
    %v3890 = vadd.f32 %v3889, %v3827
    %v3891 = vadd.f32 %v3890, %v3828
    %v3892 = vadd.f32 %v3891, %v3829
    %v3893 = vadd.f32 %v3892, %v3830
    %v3894 = vadd.f32 %v3893, %v3831
    %v3895 = vadd.f32 %v3894, %v3832
    %v3896 = vadd.f32 %v3895, %v3833
    %v3897 = vadd.f32 %v3896, %v3834
    %v3898 = vadd.f32 %v3897, %v3835
    %v3899 = vadd.f32 %v3898, %v3836
    %v3900 = vadd.f32 %v3899, %v3837
    %v3901 = vadd.f32 %v3900, %v3838
    %v3902 = vadd.f32 %v3901, %v3839
    %v3903 = vadd.f32 %v3902, %v3840
    %v3904 = vadd.f32 %v3903, %v3841
    %v3905 = vadd.f32 %v3904, %v3842
    %v3906 = vadd.f32 %v3905, %v3843
    %v3907 = vadd.f32 %v3906, %v3844
    %v3908 = vadd.f32 %v3907, %v3845
    %v3909 = vadd.f32 %v3908, %v3846
    %v3910 = vadd.f32 %v3909, %v3847
    %v3911 = vadd.f32 %v3910, %v3848
    %v3912 = vadd.f32 %v3911, %v3849
    %v3913 = vadd.f32 %v3912, %v3850
    %v3914 = vadd.f32 %v3913, %v3851
    %v3915 = vadd.f32 %v3914, %v3852
    %v3916 = vadd.f32 %v3915, %v3853
    %v3917 = vadd.f32 %v3916, %v3854
    %v3918 = vadd.f32 %v3917, %v3855
    %v3919 = vadd.f32 %v3918, %v3856
    %v3920 = vadd.f32 %v3919, %v3857
    %v3921 = vadd.f32 %v3920, %v3858
    %v3922 = vadd.f32 %v3921, %v3859
    %v3923 = vadd.f32 %v3922, %v3860
    %v3924 = vadd.f32 %v3923, %v3861
    %v3925 = vadd.f32 %v3924, %v3862
    %v3926 = vadd.f32 %v3925, %v3863
    %v3927 = vadd.f32 %v3926, %v3864
    %v3928 = vadd.f32 %v3927, %v3865
    %v3929 = vadd.f32 %v3928, %v3866
    %v3930 = vadd.f32 %v3929, %v3867
    %v3931 = vadd.f32 %v3930, %v3868
    %v3932 = vadd.f32 %v3931, %v3869
    %v3933 = vadd.f32 %v3932, %v3870
    %v3934 = vadd.f32 %v3933, %v3871
    %v3935 = vadd.f32 %v3934, %v3872
    %v3936 = vadd.f32 %v3935, %v3873
    %v3937 = vadd.f32 %v3936, %v3874
    %v3938 = vadd.f32 %v3937, %v3875
    %v3939 = vadd.f32 %v3938, %v3876
    %v3940 = vadd.f32 %v3939, %v3877
    %v3941 = vadd.f32 %v3940, %v3878
    %v3942 = vrot.slane %v3941, 4
    %v3943 = vadd.f32 %v3941, %v3942
    %v3944 = vrot.slane %v3943, 2
    %v3945 = vadd.f32 %v3943, %v3944
    %v3946 = vrot.slane %v3945, 1
    %v3947 = vadd.f32 %v3945, %v3946
    %v3948 = vmul.f32 %v3947, 0.001953125
    %v3949 = vmul.f32 %v3814, %v3814
    %v3950 = vsub.f32 %v3948, %v3949
    %v3951 = vmax.f32 %v3950, 0.0
    %v3952 = vld [vmem:[%s2] sm:$0x1]
    %v3953 = vadd.f32 %v3951, 1e-05
    %v3954 = vrsqrt.pop %v3953
    %v3955 = vmul.f32 %v3952, %v3954
    %v3956 = vld [vmem:[%s3] sm:$0x1]
    %v3957 = vmul.f32 %v3814, %v3955
    %v3958 = vsub.f32 %v3956, %v3957
    %v3960 = vlaneseq
    %v3961 = vshrl.u32 %v3960, 7
    %v3962 = vsub.s32 0, %v3961
    %v3963 = vrot.slane %v3955, %v3962
    %v3965 = vmul.f32 %v3491, %v3963
    %v3966 = vmul.f32 %v3494, %v3963
    %v3967 = vmul.f32 %v3499, %v3963
    %v3968 = vmul.f32 %v3502, %v3963
    %v3969 = vmul.f32 %v3507, %v3963
    %v3970 = vmul.f32 %v3510, %v3963
    %v3971 = vmul.f32 %v3515, %v3963
    %v3972 = vmul.f32 %v3518, %v3963
    %v3973 = vmul.f32 %v3523, %v3963
    %v3974 = vmul.f32 %v3526, %v3963
    %v3975 = vmul.f32 %v3531, %v3963
    %v3976 = vmul.f32 %v3534, %v3963
    %v3977 = vmul.f32 %v3539, %v3963
    %v3978 = vmul.f32 %v3542, %v3963
    %v3979 = vmul.f32 %v3547, %v3963
    %v3980 = vmul.f32 %v3550, %v3963
    %v3981 = vmul.f32 %v3555, %v3963
    %v3982 = vmul.f32 %v3558, %v3963
    %v3983 = vmul.f32 %v3563, %v3963
    %v3984 = vmul.f32 %v3566, %v3963
    %v3985 = vmul.f32 %v3571, %v3963
    %v3986 = vmul.f32 %v3574, %v3963
    %v3987 = vmul.f32 %v3579, %v3963
    %v3988 = vmul.f32 %v3582, %v3963
    %v3989 = vmul.f32 %v3587, %v3963
    %v3990 = vmul.f32 %v3590, %v3963
    %v3991 = vmul.f32 %v3595, %v3963
    %v3992 = vmul.f32 %v3598, %v3963
    %v3993 = vmul.f32 %v3603, %v3963
    %v3994 = vmul.f32 %v3606, %v3963
    %v3995 = vmul.f32 %v3611, %v3963
    %v3996 = vmul.f32 %v3614, %v3963
    %v3997 = vmul.f32 %v3619, %v3963
    %v3998 = vmul.f32 %v3622, %v3963
    %v3999 = vmul.f32 %v3627, %v3963
    %v4000 = vmul.f32 %v3630, %v3963
    %v4001 = vmul.f32 %v3635, %v3963
    %v4002 = vmul.f32 %v3638, %v3963
    %v4003 = vmul.f32 %v3643, %v3963
    %v4004 = vmul.f32 %v3646, %v3963
    %v4005 = vmul.f32 %v3651, %v3963
    %v4006 = vmul.f32 %v3654, %v3963
    %v4007 = vmul.f32 %v3659, %v3963
    %v4008 = vmul.f32 %v3662, %v3963
    %v4009 = vmul.f32 %v3667, %v3963
    %v4010 = vmul.f32 %v3670, %v3963
    %v4011 = vmul.f32 %v3675, %v3963
    %v4012 = vmul.f32 %v3678, %v3963
    %v4013 = vmul.f32 %v3683, %v3963
    %v4014 = vmul.f32 %v3686, %v3963
    %v4015 = vmul.f32 %v3691, %v3963
    %v4016 = vmul.f32 %v3694, %v3963
    %v4017 = vmul.f32 %v3699, %v3963
    %v4018 = vmul.f32 %v3702, %v3963
    %v4019 = vmul.f32 %v3707, %v3963
    %v4020 = vmul.f32 %v3710, %v3963
    %v4021 = vmul.f32 %v3715, %v3963
    %v4022 = vmul.f32 %v3718, %v3963
    %v4023 = vmul.f32 %v3723, %v3963
    %v4024 = vmul.f32 %v3726, %v3963
    %v4025 = vmul.f32 %v3731, %v3963
    %v4026 = vmul.f32 %v3734, %v3963
    %v4027 = vmul.f32 %v3739, %v3963
    %v4028 = vmul.f32 %v3742, %v3963
    %v4030 = vlaneseq
    %v4031 = vshrl.u32 %v4030, 7
    %v4032 = vsub.s32 0, %v4031
    %v4033 = vrot.slane %v3958, %v4032
    %v4035 = vadd.f32 %v3965, %v4033
    %v4036 = vadd.f32 %v3966, %v4033
    %v4037 = vadd.f32 %v3967, %v4033
    %v4038 = vadd.f32 %v3968, %v4033
    %v4039 = vadd.f32 %v3969, %v4033
    %v4040 = vadd.f32 %v3970, %v4033
    %v4041 = vadd.f32 %v3971, %v4033
    %v4042 = vadd.f32 %v3972, %v4033
    %v4043 = vadd.f32 %v3973, %v4033
    %v4044 = vadd.f32 %v3974, %v4033
    %v4045 = vadd.f32 %v3975, %v4033
    %v4046 = vadd.f32 %v3976, %v4033
    %v4047 = vadd.f32 %v3977, %v4033
    %v4048 = vadd.f32 %v3978, %v4033
    %v4049 = vadd.f32 %v3979, %v4033
    %v4050 = vadd.f32 %v3980, %v4033
    %v4051 = vadd.f32 %v3981, %v4033
    %v4052 = vadd.f32 %v3982, %v4033
    %v4053 = vadd.f32 %v3983, %v4033
    %v4054 = vadd.f32 %v3984, %v4033
    %v4055 = vadd.f32 %v3985, %v4033
    %v4056 = vadd.f32 %v3986, %v4033
    %v4057 = vadd.f32 %v3987, %v4033
    %v4058 = vadd.f32 %v3988, %v4033
    %v4059 = vadd.f32 %v3989, %v4033
    %v4060 = vadd.f32 %v3990, %v4033
    %v4061 = vadd.f32 %v3991, %v4033
    %v4062 = vadd.f32 %v3992, %v4033
    %v4063 = vadd.f32 %v3993, %v4033
    %v4064 = vadd.f32 %v3994, %v4033
    %v4065 = vadd.f32 %v3995, %v4033
    %v4066 = vadd.f32 %v3996, %v4033
    %v4067 = vadd.f32 %v3997, %v4033
    %v4068 = vadd.f32 %v3998, %v4033
    %v4069 = vadd.f32 %v3999, %v4033
    %v4070 = vadd.f32 %v4000, %v4033
    %v4071 = vadd.f32 %v4001, %v4033
    %v4072 = vadd.f32 %v4002, %v4033
    %v4073 = vadd.f32 %v4003, %v4033
    %v4074 = vadd.f32 %v4004, %v4033
    %v4075 = vadd.f32 %v4005, %v4033
    %v4076 = vadd.f32 %v4006, %v4033
    %v4077 = vadd.f32 %v4007, %v4033
    %v4078 = vadd.f32 %v4008, %v4033
    %v4079 = vadd.f32 %v4009, %v4033
    %v4080 = vadd.f32 %v4010, %v4033
    %v4081 = vadd.f32 %v4011, %v4033
    %v4082 = vadd.f32 %v4012, %v4033
    %v4083 = vadd.f32 %v4013, %v4033
    %v4084 = vadd.f32 %v4014, %v4033
    %v4085 = vadd.f32 %v4015, %v4033
    %v4086 = vadd.f32 %v4016, %v4033
    %v4087 = vadd.f32 %v4017, %v4033
    %v4088 = vadd.f32 %v4018, %v4033
    %v4089 = vadd.f32 %v4019, %v4033
    %v4090 = vadd.f32 %v4020, %v4033
    %v4091 = vadd.f32 %v4021, %v4033
    %v4092 = vadd.f32 %v4022, %v4033
    %v4093 = vadd.f32 %v4023, %v4033
    %v4094 = vadd.f32 %v4024, %v4033
    %v4095 = vadd.f32 %v4025, %v4033
    %v4096 = vadd.f32 %v4026, %v4033
    %v4097 = vadd.f32 %v4027, %v4033
    %v4098 = vadd.f32 %v4028, %v4033
    %v4099 = vmax.f32 %v4035, 0.0
    %v4100 = vmax.f32 %v4036, 0.0
    %v4101 = vmax.f32 %v4037, 0.0
    %v4102 = vmax.f32 %v4038, 0.0
    %v4103 = vmax.f32 %v4039, 0.0
    %v4104 = vmax.f32 %v4040, 0.0
    %v4105 = vmax.f32 %v4041, 0.0
    %v4106 = vmax.f32 %v4042, 0.0
    %v4107 = vmax.f32 %v4043, 0.0
    %v4108 = vmax.f32 %v4044, 0.0
    %v4109 = vmax.f32 %v4045, 0.0
    %v4110 = vmax.f32 %v4046, 0.0
    %v4111 = vmax.f32 %v4047, 0.0
    %v4112 = vmax.f32 %v4048, 0.0
    %v4113 = vmax.f32 %v4049, 0.0
    %v4114 = vmax.f32 %v4050, 0.0
    %v4115 = vmax.f32 %v4051, 0.0
    %v4116 = vmax.f32 %v4052, 0.0
    %v4117 = vmax.f32 %v4053, 0.0
    %v4118 = vmax.f32 %v4054, 0.0
    %v4119 = vmax.f32 %v4055, 0.0
    %v4120 = vmax.f32 %v4056, 0.0
    %v4121 = vmax.f32 %v4057, 0.0
    %v4122 = vmax.f32 %v4058, 0.0
    %v4123 = vmax.f32 %v4059, 0.0
    %v4124 = vmax.f32 %v4060, 0.0
    %v4125 = vmax.f32 %v4061, 0.0
    %v4126 = vmax.f32 %v4062, 0.0
    %v4127 = vmax.f32 %v4063, 0.0
    %v4128 = vmax.f32 %v4064, 0.0
    %v4129 = vmax.f32 %v4065, 0.0
    %v4130 = vmax.f32 %v4066, 0.0
    %v4131 = vmax.f32 %v4067, 0.0
    %v4132 = vmax.f32 %v4068, 0.0
    %v4133 = vmax.f32 %v4069, 0.0
    %v4134 = vmax.f32 %v4070, 0.0
    %v4135 = vmax.f32 %v4071, 0.0
    %v4136 = vmax.f32 %v4072, 0.0
    %v4137 = vmax.f32 %v4073, 0.0
    %v4138 = vmax.f32 %v4074, 0.0
    %v4139 = vmax.f32 %v4075, 0.0
    %v4140 = vmax.f32 %v4076, 0.0
    %v4141 = vmax.f32 %v4077, 0.0
    %v4142 = vmax.f32 %v4078, 0.0
    %v4143 = vmax.f32 %v4079, 0.0
    %v4144 = vmax.f32 %v4080, 0.0
    %v4145 = vmax.f32 %v4081, 0.0
    %v4146 = vmax.f32 %v4082, 0.0
    %v4147 = vmax.f32 %v4083, 0.0
    %v4148 = vmax.f32 %v4084, 0.0
    %v4149 = vmax.f32 %v4085, 0.0
    %v4150 = vmax.f32 %v4086, 0.0
    %v4151 = vmax.f32 %v4087, 0.0
    %v4152 = vmax.f32 %v4088, 0.0
    %v4153 = vmax.f32 %v4089, 0.0
    %v4154 = vmax.f32 %v4090, 0.0
    %v4155 = vmax.f32 %v4091, 0.0
    %v4156 = vmax.f32 %v4092, 0.0
    %v4157 = vmax.f32 %v4093, 0.0
    %v4158 = vmax.f32 %v4094, 0.0
    %v4159 = vmax.f32 %v4095, 0.0
    %v4160 = vmax.f32 %v4096, 0.0
    %v4161 = vmax.f32 %v4097, 0.0
    %v4162 = vmax.f32 %v4098, 0.0
    %4163 = vst [vmem:[%s218 + $0x1] sm:$0xff] %v4099
    %4164 = vst [vmem:[%s218 + $0x9] sm:$0xff] %v4100
    %4165 = vst [vmem:[%s218 + $0x19] sm:$0xff] %v4101
    %4166 = vst [vmem:[%s218 + $0x21] sm:$0xff] %v4102
    %4167 = vst [vmem:[%s218 + $0x31] sm:$0xff] %v4103
    %4168 = vst [vmem:[%s218 + $0x39] sm:$0xff] %v4104
    %4169 = vst [vmem:[%s218 + $0x49] sm:$0xff] %v4105
    %4170 = vst [vmem:[%s218 + $0x51] sm:$0xff] %v4106
    %4171 = vst [vmem:[%s218 + $0x61] sm:$0xff] %v4107
    %4172 = vst [vmem:[%s218 + $0x69] sm:$0xff] %v4108
    %4173 = vst [vmem:[%s218 + $0x79] sm:$0xff] %v4109
    %4174 = vst [vmem:[%s218 + $0x81] sm:$0xff] %v4110
    %4175 = vst [vmem:[%s218 + $0x91] sm:$0xff] %v4111
    %4176 = vst [vmem:[%s218 + $0x99] sm:$0xff] %v4112
    %4177 = vst [vmem:[%s218 + $0xa9] sm:$0xff] %v4113
    %4178 = vst [vmem:[%s218 + $0xb1] sm:$0xff] %v4114
    %4179 = vst [vmem:[%s218 + $0xc1] sm:$0xff] %v4115
    %4180 = vst [vmem:[%s218 + $0xc9] sm:$0xff] %v4116
    %4181 = vst [vmem:[%s218 + $0xd9] sm:$0xff] %v4117
    %4182 = vst [vmem:[%s218 + $0xe1] sm:$0xff] %v4118
    %4183 = vst [vmem:[%s218 + $0xf1] sm:$0xff] %v4119
    %4184 = vst [vmem:[%s218 + $0xf9] sm:$0xff] %v4120
    %4185 = vst [vmem:[%s218 + $0x109] sm:$0xff] %v4121
    %4186 = vst [vmem:[%s218 + $0x111] sm:$0xff] %v4122
    %4187 = vst [vmem:[%s218 + $0x121] sm:$0xff] %v4123
    %4188 = vst [vmem:[%s218 + $0x129] sm:$0xff] %v4124
    %4189 = vst [vmem:[%s218 + $0x139] sm:$0xff] %v4125
    %4190 = vst [vmem:[%s218 + $0x141] sm:$0xff] %v4126
    %4191 = vst [vmem:[%s218 + $0x151] sm:$0xff] %v4127
    %4192 = vst [vmem:[%s218 + $0x159] sm:$0xff] %v4128
    %4193 = vst [vmem:[%s218 + $0x169] sm:$0xff] %v4129
    %4194 = vst [vmem:[%s218 + $0x171] sm:$0xff] %v4130
    %4195 = vst [vmem:[%s218 + $0x1b1] sm:$0xff] %v4131
    %4196 = vst [vmem:[%s218 + $0x1b9] sm:$0xff] %v4132
    %4197 = vst [vmem:[%s218 + $0x1c9] sm:$0xff] %v4133
    %4198 = vst [vmem:[%s218 + $0x1d1] sm:$0xff] %v4134
    %4199 = vst [vmem:[%s218 + $0x1e1] sm:$0xff] %v4135
    %4200 = vst [vmem:[%s218 + $0x1e9] sm:$0xff] %v4136
    %4201 = vst [vmem:[%s218 + $0x1f9] sm:$0xff] %v4137
    %4202 = vst [vmem:[%s218 + $0x201] sm:$0xff] %v4138
    %4203 = vst [vmem:[%s218 + $0x211] sm:$0xff] %v4139
    %4204 = vst [vmem:[%s218 + $0x219] sm:$0xff] %v4140
    %4205 = vst [vmem:[%s218 + $0x229] sm:$0xff] %v4141
    %4206 = vst [vmem:[%s218 + $0x231] sm:$0xff] %v4142
    %4207 = vst [vmem:[%s218 + $0x241] sm:$0xff] %v4143
    %4208 = vst [vmem:[%s218 + $0x249] sm:$0xff] %v4144
    %4209 = vst [vmem:[%s218 + $0x259] sm:$0xff] %v4145
    %4210 = vst [vmem:[%s218 + $0x261] sm:$0xff] %v4146
    %4211 = vst [vmem:[%s218 + $0x271] sm:$0xff] %v4147
    %4212 = vst [vmem:[%s218 + $0x279] sm:$0xff] %v4148
    %4213 = vst [vmem:[%s218 + $0x289] sm:$0xff] %v4149
    %4214 = vst [vmem:[%s218 + $0x291] sm:$0xff] %v4150
    %4215 = vst [vmem:[%s218 + $0x2a1] sm:$0xff] %v4151
    %4216 = vst [vmem:[%s218 + $0x2a9] sm:$0xff] %v4152
    %4217 = vst [vmem:[%s218 + $0x2b9] sm:$0xff] %v4153
    %4218 = vst [vmem:[%s218 + $0x2c1] sm:$0xff] %v4154
    %4219 = vst [vmem:[%s218 + $0x2d1] sm:$0xff] %v4155
    %4220 = vst [vmem:[%s218 + $0x2d9] sm:$0xff] %v4156
    %4221 = vst [vmem:[%s218 + $0x2e9] sm:$0xff] %v4157
    %4222 = vst [vmem:[%s218 + $0x2f1] sm:$0xff] %v4158
    %4223 = vst [vmem:[%s218 + $0x301] sm:$0xff] %v4159
    %4224 = vst [vmem:[%s218 + $0x309] sm:$0xff] %v4160
    %4225 = vst [vmem:[%s218 + $0x319] sm:$0xff] %v4161
    %4226 = vst [vmem:[%s218 + $0x321] sm:$0xff] %v4162
    %v4227 = vld [vmem:[#allocation2] sm:$0xff]
    %v4228 = vld [vmem:[#allocation2 + $0x8] sm:$0xff]
    %v4229 = vld [vmem:[#allocation2 + $0x18] sm:$0xff]
    %v4230 = vld [vmem:[#allocation2 + $0x20] sm:$0xff]
    %v4231 = vld [vmem:[#allocation2 + $0x30] sm:$0xff]
    %v4232 = vld [vmem:[#allocation2 + $0x38] sm:$0xff]
    %v4233 = vld [vmem:[#allocation2 + $0x48] sm:$0xff]
    %v4234 = vld [vmem:[#allocation2 + $0x50] sm:$0xff]
    %v4235 = vld [vmem:[#allocation2 + $0x60] sm:$0xff]
    %v4236 = vld [vmem:[#allocation2 + $0x68] sm:$0xff]
    %v4237 = vld [vmem:[#allocation2 + $0x78] sm:$0xff]
    %v4238 = vld [vmem:[#allocation2 + $0x80] sm:$0xff]
    %v4239 = vld [vmem:[#allocation2 + $0x90] sm:$0xff]
    %v4240 = vld [vmem:[#allocation2 + $0x98] sm:$0xff]
    %v4241 = vld [vmem:[#allocation2 + $0xa8] sm:$0xff]
    %v4242 = vld [vmem:[#allocation2 + $0xb0] sm:$0xff]
    %v4243 = vld [vmem:[#allocation2 + $0xc0] sm:$0xff]
    %v4244 = vld [vmem:[#allocation2 + $0xc8] sm:$0xff]
    %v4245 = vld [vmem:[#allocation2 + $0xd8] sm:$0xff]
    %v4246 = vld [vmem:[#allocation2 + $0xe0] sm:$0xff]
    %v4247 = vld [vmem:[#allocation2 + $0xf0] sm:$0xff]
    %v4248 = vld [vmem:[#allocation2 + $0xf8] sm:$0xff]
    %v4249 = vld [vmem:[#allocation2 + $0x108] sm:$0xff]
    %v4250 = vld [vmem:[#allocation2 + $0x110] sm:$0xff]
    %v4251 = vld [vmem:[#allocation2 + $0x120] sm:$0xff]
    %v4252 = vld [vmem:[#allocation2 + $0x128] sm:$0xff]
    %v4253 = vld [vmem:[#allocation2 + $0x138] sm:$0xff]
    %v4254 = vld [vmem:[#allocation2 + $0x140] sm:$0xff]
    %v4255 = vld [vmem:[#allocation2 + $0x150] sm:$0xff]
    %v4256 = vld [vmem:[#allocation2 + $0x158] sm:$0xff]
    %v4257 = vld [vmem:[#allocation2 + $0x168] sm:$0xff]
    %v4258 = vld [vmem:[#allocation2 + $0x170] sm:$0xff]
    %v4259 = vld [vmem:[#allocation2 + $0x1b0] sm:$0xff]
    %v4260 = vld [vmem:[#allocation2 + $0x1b8] sm:$0xff]
    %v4261 = vld [vmem:[#allocation2 + $0x1c8] sm:$0xff]
    %v4262 = vld [vmem:[#allocation2 + $0x1d0] sm:$0xff]
    %v4263 = vld [vmem:[#allocation2 + $0x1e0] sm:$0xff]
    %v4264 = vld [vmem:[#allocation2 + $0x1e8] sm:$0xff]
    %v4265 = vld [vmem:[#allocation2 + $0x1f8] sm:$0xff]
    %v4266 = vld [vmem:[#allocation2 + $0x200] sm:$0xff]
    %v4267 = vld [vmem:[#allocation2 + $0x210] sm:$0xff]
    %v4268 = vld [vmem:[#allocation2 + $0x218] sm:$0xff]
    %v4269 = vld [vmem:[#allocation2 + $0x228] sm:$0xff]
    %v4270 = vld [vmem:[#allocation2 + $0x230] sm:$0xff]
    %v4271 = vld [vmem:[#allocation2 + $0x240] sm:$0xff]
    %v4272 = vld [vmem:[#allocation2 + $0x248] sm:$0xff]
    %v4273 = vld [vmem:[#allocation2 + $0x258] sm:$0xff]
    %v4274 = vld [vmem:[#allocation2 + $0x260] sm:$0xff]
    %v4275 = vld [vmem:[#allocation2 + $0x270] sm:$0xff]
    %v4276 = vld [vmem:[#allocation2 + $0x278] sm:$0xff]
    %v4277 = vld [vmem:[#allocation2 + $0x288] sm:$0xff]
    %v4278 = vld [vmem:[#allocation2 + $0x290] sm:$0xff]
    %v4279 = vld [vmem:[#allocation2 + $0x2a0] sm:$0xff]
    %v4280 = vld [vmem:[#allocation2 + $0x2a8] sm:$0xff]
    %v4281 = vld [vmem:[#allocation2 + $0x2b8] sm:$0xff]
    %v4282 = vld [vmem:[#allocation2 + $0x2c0] sm:$0xff]
    %v4283 = vld [vmem:[#allocation2 + $0x2d0] sm:$0xff]
    %v4284 = vld [vmem:[#allocation2 + $0x2d8] sm:$0xff]
    %v4285 = vld [vmem:[#allocation2 + $0x2e8] sm:$0xff]
    %v4286 = vld [vmem:[#allocation2 + $0x2f0] sm:$0xff]
    %v4287 = vld [vmem:[#allocation2 + $0x300] sm:$0xff]
    %v4288 = vld [vmem:[#allocation2 + $0x308] sm:$0xff]
    %v4289 = vld [vmem:[#allocation2 + $0x318] sm:$0xff]
    %v4290 = vld [vmem:[#allocation2 + $0x320] sm:$0xff]
    %v4291 = vpack.c.bf16 %v4228, %v4227
    %v4292 = vpack.c.bf16 %v4230, %v4229
    %v4293 = vpack.c.bf16 %v4232, %v4231
    %v4294 = vpack.c.bf16 %v4234, %v4233
    %v4295 = vpack.c.bf16 %v4236, %v4235
    %v4296 = vpack.c.bf16 %v4238, %v4237
    %v4297 = vpack.c.bf16 %v4240, %v4239
    %v4298 = vpack.c.bf16 %v4242, %v4241
    %v4299 = vpack.c.bf16 %v4244, %v4243
    %v4300 = vpack.c.bf16 %v4246, %v4245
    %v4301 = vpack.c.bf16 %v4248, %v4247
    %v4302 = vpack.c.bf16 %v4250, %v4249
    %v4303 = vpack.c.bf16 %v4252, %v4251
    %v4304 = vpack.c.bf16 %v4254, %v4253
    %v4305 = vpack.c.bf16 %v4256, %v4255
    %v4306 = vpack.c.bf16 %v4258, %v4257
    %v4307 = vpack.c.bf16 %v4260, %v4259
    %v4308 = vpack.c.bf16 %v4262, %v4261
    %v4309 = vpack.c.bf16 %v4264, %v4263
    %v4310 = vpack.c.bf16 %v4266, %v4265
    %v4311 = vpack.c.bf16 %v4268, %v4267
    %v4312 = vpack.c.bf16 %v4270, %v4269
    %v4313 = vpack.c.bf16 %v4272, %v4271
    %v4314 = vpack.c.bf16 %v4274, %v4273
    %v4315 = vpack.c.bf16 %v4276, %v4275
    %v4316 = vpack.c.bf16 %v4278, %v4277
    %v4317 = vpack.c.bf16 %v4280, %v4279
    %v4318 = vpack.c.bf16 %v4282, %v4281
    %v4319 = vpack.c.bf16 %v4284, %v4283
    %v4320 = vpack.c.bf16 %v4286, %v4285
    %v4321 = vpack.c.bf16 %v4288, %v4287
    %v4322 = vpack.c.bf16 %v4290, %v4289
    %4323 = vst [vmem:[#allocation3] sm:$0xff] %v4291
    %4324 = vst [vmem:[#allocation3 + $0x48] sm:$0xff] %v4292
    %4325 = vst [vmem:[#allocation3 + $0x90] sm:$0xff] %v4293
    %4326 = vst [vmem:[#allocation3 + $0xd8] sm:$0xff] %v4294
    %4327 = vst [vmem:[#allocation3 + $0x120] sm:$0xff] %v4295
    %4328 = vst [vmem:[#allocation3 + $0x168] sm:$0xff] %v4296
    %4329 = vst [vmem:[#allocation3 + $0x1b0] sm:$0xff] %v4297
    %4330 = vst [vmem:[#allocation3 + $0x1f8] sm:$0xff] %v4298
    %4331 = vst [vmem:[#allocation3 + $0x240] sm:$0xff] %v4299
    %4332 = vst [vmem:[#allocation3 + $0x288] sm:$0xff] %v4300
    %4333 = vst [vmem:[#allocation3 + $0x2d0] sm:$0xff] %v4301
    %4334 = vst [vmem:[#allocation3 + $0x318] sm:$0xff] %v4302
    %4335 = vst [vmem:[#allocation3 + $0x360] sm:$0xff] %v4303
    %4336 = vst [vmem:[#allocation3 + $0x3a8] sm:$0xff] %v4304
    %4337 = vst [vmem:[#allocation3 + $0x3f0] sm:$0xff] %v4305
    %4338 = vst [vmem:[#allocation3 + $0x438] sm:$0xff] %v4306
    %4339 = vst [vmem:[#allocation3 + $0x480] sm:$0xff] %v4307
    %4340 = vst [vmem:[#allocation3 + $0x4c8] sm:$0xff] %v4308
    %4341 = vst [vmem:[#allocation3 + $0x510] sm:$0xff] %v4309
    %4342 = vst [vmem:[#allocation3 + $0x558] sm:$0xff] %v4310
    %4343 = vst [vmem:[#allocation3 + $0x5a0] sm:$0xff] %v4311
    %4344 = vst [vmem:[#allocation3 + $0x5e8] sm:$0xff] %v4312
    %4345 = vst [vmem:[#allocation3 + $0x630] sm:$0xff] %v4313
    %4346 = vst [vmem:[#allocation3 + $0x678] sm:$0xff] %v4314
    %4347 = vst [vmem:[#allocation3 + $0x6c0] sm:$0xff] %v4315
    %4348 = vst [vmem:[#allocation3 + $0x708] sm:$0xff] %v4316
    %4349 = vst [vmem:[#allocation3 + $0x750] sm:$0xff] %v4317
    %4350 = vst [vmem:[#allocation3 + $0x798] sm:$0xff] %v4318
    %4351 = vst [vmem:[#allocation3 + $0x7e0] sm:$0xff] %v4319
    %4352 = vst [vmem:[#allocation3 + $0x828] sm:$0xff] %v4320
    %4353 = vst [vmem:[#allocation3 + $0x870] sm:$0xff] %v4321
    %4354 = vst [vmem:[#allocation3 + $0x8b8] sm:$0xff] %v4322
    %v4355 = vld [vmem:[#allocation2 + $0x1] sm:$0xff]
    %v4356 = vld [vmem:[#allocation2 + $0x9] sm:$0xff]
    %v4357 = vld [vmem:[#allocation2 + $0x19] sm:$0xff]
    %v4358 = vld [vmem:[#allocation2 + $0x21] sm:$0xff]
    %v4359 = vld [vmem:[#allocation2 + $0x31] sm:$0xff]
    %v4360 = vld [vmem:[#allocation2 + $0x39] sm:$0xff]
    %v4361 = vld [vmem:[#allocation2 + $0x49] sm:$0xff]
    %v4362 = vld [vmem:[#allocation2 + $0x51] sm:$0xff]
    %v4363 = vld [vmem:[#allocation2 + $0x61] sm:$0xff]
    %v4364 = vld [vmem:[#allocation2 + $0x69] sm:$0xff]
    %v4365 = vld [vmem:[#allocation2 + $0x79] sm:$0xff]
    %v4366 = vld [vmem:[#allocation2 + $0x81] sm:$0xff]
    %v4367 = vld [vmem:[#allocation2 + $0x91] sm:$0xff]
    %v4368 = vld [vmem:[#allocation2 + $0x99] sm:$0xff]
    %v4369 = vld [vmem:[#allocation2 + $0xa9] sm:$0xff]
    %v4370 = vld [vmem:[#allocation2 + $0xb1] sm:$0xff]
    %v4371 = vld [vmem:[#allocation2 + $0xc1] sm:$0xff]
    %v4372 = vld [vmem:[#allocation2 + $0xc9] sm:$0xff]
    %v4373 = vld [vmem:[#allocation2 + $0xd9] sm:$0xff]
    %v4374 = vld [vmem:[#allocation2 + $0xe1] sm:$0xff]
    %v4375 = vld [vmem:[#allocation2 + $0xf1] sm:$0xff]
    %v4376 = vld [vmem:[#allocation2 + $0xf9] sm:$0xff]
    %v4377 = vld [vmem:[#allocation2 + $0x109] sm:$0xff]
    %v4378 = vld [vmem:[#allocation2 + $0x111] sm:$0xff]
    %v4379 = vld [vmem:[#allocation2 + $0x121] sm:$0xff]
    %v4380 = vld [vmem:[#allocation2 + $0x129] sm:$0xff]
    %v4381 = vld [vmem:[#allocation2 + $0x139] sm:$0xff]
    %v4382 = vld [vmem:[#allocation2 + $0x141] sm:$0xff]
    %v4383 = vld [vmem:[#allocation2 + $0x151] sm:$0xff]
    %v4384 = vld [vmem:[#allocation2 + $0x159] sm:$0xff]
    %v4385 = vld [vmem:[#allocation2 + $0x169] sm:$0xff]
    %v4386 = vld [vmem:[#allocation2 + $0x171] sm:$0xff]
    %v4387 = vld [vmem:[#allocation2 + $0x1b1] sm:$0xff]
    %v4388 = vld [vmem:[#allocation2 + $0x1b9] sm:$0xff]
    %v4389 = vld [vmem:[#allocation2 + $0x1c9] sm:$0xff]
    %v4390 = vld [vmem:[#allocation2 + $0x1d1] sm:$0xff]
    %v4391 = vld [vmem:[#allocation2 + $0x1e1] sm:$0xff]
    %v4392 = vld [vmem:[#allocation2 + $0x1e9] sm:$0xff]
    %v4393 = vld [vmem:[#allocation2 + $0x1f9] sm:$0xff]
    %v4394 = vld [vmem:[#allocation2 + $0x201] sm:$0xff]
    %v4395 = vld [vmem:[#allocation2 + $0x211] sm:$0xff]
    %v4396 = vld [vmem:[#allocation2 + $0x219] sm:$0xff]
    %v4397 = vld [vmem:[#allocation2 + $0x229] sm:$0xff]
    %v4398 = vld [vmem:[#allocation2 + $0x231] sm:$0xff]
    %v4399 = vld [vmem:[#allocation2 + $0x241] sm:$0xff]
    %v4400 = vld [vmem:[#allocation2 + $0x249] sm:$0xff]
    %v4401 = vld [vmem:[#allocation2 + $0x259] sm:$0xff]
    %v4402 = vld [vmem:[#allocation2 + $0x261] sm:$0xff]
    %v4403 = vld [vmem:[#allocation2 + $0x271] sm:$0xff]
    %v4404 = vld [vmem:[#allocation2 + $0x279] sm:$0xff]
    %v4405 = vld [vmem:[#allocation2 + $0x289] sm:$0xff]
    %v4406 = vld [vmem:[#allocation2 + $0x291] sm:$0xff]
    %v4407 = vld [vmem:[#allocation2 + $0x2a1] sm:$0xff]
    %v4408 = vld [vmem:[#allocation2 + $0x2a9] sm:$0xff]
    %v4409 = vld [vmem:[#allocation2 + $0x2b9] sm:$0xff]
    %v4410 = vld [vmem:[#allocation2 + $0x2c1] sm:$0xff]
    %v4411 = vld [vmem:[#allocation2 + $0x2d1] sm:$0xff]
    %v4412 = vld [vmem:[#allocation2 + $0x2d9] sm:$0xff]
    %v4413 = vld [vmem:[#allocation2 + $0x2e9] sm:$0xff]
    %v4414 = vld [vmem:[#allocation2 + $0x2f1] sm:$0xff]
    %v4415 = vld [vmem:[#allocation2 + $0x301] sm:$0xff]
    %v4416 = vld [vmem:[#allocation2 + $0x309] sm:$0xff]
    %v4417 = vld [vmem:[#allocation2 + $0x319] sm:$0xff]
    %v4418 = vld [vmem:[#allocation2 + $0x321] sm:$0xff]
    %v4419 = vpack.c.bf16 %v4356, %v4355
    %v4420 = vpack.c.bf16 %v4358, %v4357
    %v4421 = vpack.c.bf16 %v4360, %v4359
    %v4422 = vpack.c.bf16 %v4362, %v4361
    %v4423 = vpack.c.bf16 %v4364, %v4363
    %v4424 = vpack.c.bf16 %v4366, %v4365
    %v4425 = vpack.c.bf16 %v4368, %v4367
    %v4426 = vpack.c.bf16 %v4370, %v4369
    %v4427 = vpack.c.bf16 %v4372, %v4371
    %v4428 = vpack.c.bf16 %v4374, %v4373
    %v4429 = vpack.c.bf16 %v4376, %v4375
    %v4430 = vpack.c.bf16 %v4378, %v4377
    %v4431 = vpack.c.bf16 %v4380, %v4379
    %v4432 = vpack.c.bf16 %v4382, %v4381
    %v4433 = vpack.c.bf16 %v4384, %v4383
    %v4434 = vpack.c.bf16 %v4386, %v4385
    %v4435 = vpack.c.bf16 %v4388, %v4387
    %v4436 = vpack.c.bf16 %v4390, %v4389
    %v4437 = vpack.c.bf16 %v4392, %v4391
    %v4438 = vpack.c.bf16 %v4394, %v4393
    %v4439 = vpack.c.bf16 %v4396, %v4395
    %v4440 = vpack.c.bf16 %v4398, %v4397
    %v4441 = vpack.c.bf16 %v4400, %v4399
    %v4442 = vpack.c.bf16 %v4402, %v4401
    %v4443 = vpack.c.bf16 %v4404, %v4403
    %v4444 = vpack.c.bf16 %v4406, %v4405
    %v4445 = vpack.c.bf16 %v4408, %v4407
    %v4446 = vpack.c.bf16 %v4410, %v4409
    %v4447 = vpack.c.bf16 %v4412, %v4411
    %v4448 = vpack.c.bf16 %v4414, %v4413
    %v4449 = vpack.c.bf16 %v4416, %v4415
    %v4450 = vpack.c.bf16 %v4418, %v4417
    %4451 = vst [vmem:[#allocation3 + $0x8] sm:$0xff] %v4419
    %4452 = vst [vmem:[#allocation3 + $0x50] sm:$0xff] %v4420
    %4453 = vst [vmem:[#allocation3 + $0x98] sm:$0xff] %v4421
    %4454 = vst [vmem:[#allocation3 + $0xe0] sm:$0xff] %v4422
    %4455 = vst [vmem:[#allocation3 + $0x128] sm:$0xff] %v4423
    %4456 = vst [vmem:[#allocation3 + $0x170] sm:$0xff] %v4424
    %4457 = vst [vmem:[#allocation3 + $0x1b8] sm:$0xff] %v4425
    %4458 = vst [vmem:[#allocation3 + $0x200] sm:$0xff] %v4426
    %4459 = vst [vmem:[#allocation3 + $0x248] sm:$0xff] %v4427
    %4460 = vst [vmem:[#allocation3 + $0x290] sm:$0xff] %v4428
    %4461 = vst [vmem:[#allocation3 + $0x2d8] sm:$0xff] %v4429
    %4462 = vst [vmem:[#allocation3 + $0x320] sm:$0xff] %v4430
    %4463 = vst [vmem:[#allocation3 + $0x368] sm:$0xff] %v4431
    %4464 = vst [vmem:[#allocation3 + $0x3b0] sm:$0xff] %v4432
    %4465 = vst [vmem:[#allocation3 + $0x3f8] sm:$0xff] %v4433
    %4466 = vst [vmem:[#allocation3 + $0x440] sm:$0xff] %v4434
    %4467 = vst [vmem:[#allocation3 + $0x488] sm:$0xff] %v4435
    %4468 = vst [vmem:[#allocation3 + $0x4d0] sm:$0xff] %v4436
    %4469 = vst [vmem:[#allocation3 + $0x518] sm:$0xff] %v4437
    %4470 = vst [vmem:[#allocation3 + $0x560] sm:$0xff] %v4438
    %4471 = vst [vmem:[#allocation3 + $0x5a8] sm:$0xff] %v4439
    %4472 = vst [vmem:[#allocation3 + $0x5f0] sm:$0xff] %v4440
    %4473 = vst [vmem:[#allocation3 + $0x638] sm:$0xff] %v4441
    %4474 = vst [vmem:[#allocation3 + $0x680] sm:$0xff] %v4442
    %4475 = vst [vmem:[#allocation3 + $0x6c8] sm:$0xff] %v4443
    %4476 = vst [vmem:[#allocation3 + $0x710] sm:$0xff] %v4444
    %4477 = vst [vmem:[#allocation3 + $0x758] sm:$0xff] %v4445
    %4478 = vst [vmem:[#allocation3 + $0x7a0] sm:$0xff] %v4446
    %4479 = vst [vmem:[#allocation3 + $0x7e8] sm:$0xff] %v4447
    %4480 = vst [vmem:[#allocation3 + $0x830] sm:$0xff] %v4448
    %4481 = vst [vmem:[#allocation3 + $0x878] sm:$0xff] %v4449
    %4482 = vst [vmem:[#allocation3 + $0x8c0] sm:$0xff] %v4450
    %v4483 = vld [vmem:[#allocation2 + $0x2] sm:$0xff]
    %v4484 = vld [vmem:[#allocation2 + $0xa] sm:$0xff]
    %v4485 = vld [vmem:[#allocation2 + $0x1a] sm:$0xff]
    %v4486 = vld [vmem:[#allocation2 + $0x22] sm:$0xff]
    %v4487 = vld [vmem:[#allocation2 + $0x32] sm:$0xff]
    %v4488 = vld [vmem:[#allocation2 + $0x3a] sm:$0xff]
    %v4489 = vld [vmem:[#allocation2 + $0x4a] sm:$0xff]
    %v4490 = vld [vmem:[#allocation2 + $0x52] sm:$0xff]
    %v4491 = vld [vmem:[#allocation2 + $0x62] sm:$0xff]
    %v4492 = vld [vmem:[#allocation2 + $0x6a] sm:$0xff]
    %v4493 = vld [vmem:[#allocation2 + $0x7a] sm:$0xff]
    %v4494 = vld [vmem:[#allocation2 + $0x82] sm:$0xff]
    %v4495 = vld [vmem:[#allocation2 + $0x92] sm:$0xff]
    %v4496 = vld [vmem:[#allocation2 + $0x9a] sm:$0xff]
    %v4497 = vld [vmem:[#allocation2 + $0xaa] sm:$0xff]
    %v4498 = vld [vmem:[#allocation2 + $0xb2] sm:$0xff]
    %v4499 = vld [vmem:[#allocation2 + $0xc2] sm:$0xff]
    %v4500 = vld [vmem:[#allocation2 + $0xca] sm:$0xff]
    %v4501 = vld [vmem:[#allocation2 + $0xda] sm:$0xff]
    %v4502 = vld [vmem:[#allocation2 + $0xe2] sm:$0xff]
    %v4503 = vld [vmem:[#allocation2 + $0xf2] sm:$0xff]
    %v4504 = vld [vmem:[#allocation2 + $0xfa] sm:$0xff]
    %v4505 = vld [vmem:[#allocation2 + $0x10a] sm:$0xff]
    %v4506 = vld [vmem:[#allocation2 + $0x112] sm:$0xff]
    %v4507 = vld [vmem:[#allocation2 + $0x122] sm:$0xff]
    %v4508 = vld [vmem:[#allocation2 + $0x12a] sm:$0xff]
    %v4509 = vld [vmem:[#allocation2 + $0x13a] sm:$0xff]
    %v4510 = vld [vmem:[#allocation2 + $0x142] sm:$0xff]
    %v4511 = vld [vmem:[#allocation2 + $0x152] sm:$0xff]
    %v4512 = vld [vmem:[#allocation2 + $0x15a] sm:$0xff]
    %v4513 = vld [vmem:[#allocation2 + $0x16a] sm:$0xff]
    %v4514 = vld [vmem:[#allocation2 + $0x172] sm:$0xff]
    %v4515 = vld [vmem:[#allocation2 + $0x1b2] sm:$0xff]
    %v4516 = vld [vmem:[#allocation2 + $0x1ba] sm:$0xff]
    %v4517 = vld [vmem:[#allocation2 + $0x1ca] sm:$0xff]
    %v4518 = vld [vmem:[#allocation2 + $0x1d2] sm:$0xff]
    %v4519 = vld [vmem:[#allocation2 + $0x1e2] sm:$0xff]
    %v4520 = vld [vmem:[#allocation2 + $0x1ea] sm:$0xff]
    %v4521 = vld [vmem:[#allocation2 + $0x1fa] sm:$0xff]
    %v4522 = vld [vmem:[#allocation2 + $0x202] sm:$0xff]
    %v4523 = vld [vmem:[#allocation2 + $0x212] sm:$0xff]
    %v4524 = vld [vmem:[#allocation2 + $0x21a] sm:$0xff]
    %v4525 = vld [vmem:[#allocation2 + $0x22a] sm:$0xff]
    %v4526 = vld [vmem:[#allocation2 + $0x232] sm:$0xff]
    %v4527 = vld [vmem:[#allocation2 + $0x242] sm:$0xff]
    %v4528 = vld [vmem:[#allocation2 + $0x24a] sm:$0xff]
    %v4529 = vld [vmem:[#allocation2 + $0x25a] sm:$0xff]
    %v4530 = vld [vmem:[#allocation2 + $0x262] sm:$0xff]
    %v4531 = vld [vmem:[#allocation2 + $0x272] sm:$0xff]
    %v4532 = vld [vmem:[#allocation2 + $0x27a] sm:$0xff]
    %v4533 = vld [vmem:[#allocation2 + $0x28a] sm:$0xff]
    %v4534 = vld [vmem:[#allocation2 + $0x292] sm:$0xff]
    %v4535 = vld [vmem:[#allocation2 + $0x2a2] sm:$0xff]
    %v4536 = vld [vmem:[#allocation2 + $0x2aa] sm:$0xff]
    %v4537 = vld [vmem:[#allocation2 + $0x2ba] sm:$0xff]
    %v4538 = vld [vmem:[#allocation2 + $0x2c2] sm:$0xff]
    %v4539 = vld [vmem:[#allocation2 + $0x2d2] sm:$0xff]
    %v4540 = vld [vmem:[#allocation2 + $0x2da] sm:$0xff]
    %v4541 = vld [vmem:[#allocation2 + $0x2ea] sm:$0xff]
    %v4542 = vld [vmem:[#allocation2 + $0x2f2] sm:$0xff]
    %v4543 = vld [vmem:[#allocation2 + $0x302] sm:$0xff]
    %v4544 = vld [vmem:[#allocation2 + $0x30a] sm:$0xff]
    %v4545 = vld [vmem:[#allocation2 + $0x31a] sm:$0xff]
    %v4546 = vld [vmem:[#allocation2 + $0x322] sm:$0xff]
    %v4547 = vpack.c.bf16 %v4484, %v4483
    %v4548 = vpack.c.bf16 %v4486, %v4485
    %v4549 = vpack.c.bf16 %v4488, %v4487
    %v4550 = vpack.c.bf16 %v4490, %v4489
    %v4551 = vpack.c.bf16 %v4492, %v4491
    %v4552 = vpack.c.bf16 %v4494, %v4493
    %v4553 = vpack.c.bf16 %v4496, %v4495
    %v4554 = vpack.c.bf16 %v4498, %v4497
    %v4555 = vpack.c.bf16 %v4500, %v4499
    %v4556 = vpack.c.bf16 %v4502, %v4501
    %v4557 = vpack.c.bf16 %v4504, %v4503
    %v4558 = vpack.c.bf16 %v4506, %v4505
    %v4559 = vpack.c.bf16 %v4508, %v4507
    %v4560 = vpack.c.bf16 %v4510, %v4509
    %v4561 = vpack.c.bf16 %v4512, %v4511
    %v4562 = vpack.c.bf16 %v4514, %v4513
    %v4563 = vpack.c.bf16 %v4516, %v4515
    %v4564 = vpack.c.bf16 %v4518, %v4517
    %v4565 = vpack.c.bf16 %v4520, %v4519
    %v4566 = vpack.c.bf16 %v4522, %v4521
    %v4567 = vpack.c.bf16 %v4524, %v4523
    %v4568 = vpack.c.bf16 %v4526, %v4525
    %v4569 = vpack.c.bf16 %v4528, %v4527
    %v4570 = vpack.c.bf16 %v4530, %v4529
    %v4571 = vpack.c.bf16 %v4532, %v4531
    %v4572 = vpack.c.bf16 %v4534, %v4533
    %v4573 = vpack.c.bf16 %v4536, %v4535
    %v4574 = vpack.c.bf16 %v4538, %v4537
    %v4575 = vpack.c.bf16 %v4540, %v4539
    %v4576 = vpack.c.bf16 %v4542, %v4541
    %v4577 = vpack.c.bf16 %v4544, %v4543
    %v4578 = vpack.c.bf16 %v4546, %v4545
    %4579 = vst [vmem:[#allocation3 + $0x10] sm:$0xff] %v4547
    %4580 = vst [vmem:[#allocation3 + $0x58] sm:$0xff] %v4548
    %4581 = vst [vmem:[#allocation3 + $0xa0] sm:$0xff] %v4549
    %4582 = vst [vmem:[#allocation3 + $0xe8] sm:$0xff] %v4550
    %4583 = vst [vmem:[#allocation3 + $0x130] sm:$0xff] %v4551
    %4584 = vst [vmem:[#allocation3 + $0x178] sm:$0xff] %v4552
    %4585 = vst [vmem:[#allocation3 + $0x1c0] sm:$0xff] %v4553
    %4586 = vst [vmem:[#allocation3 + $0x208] sm:$0xff] %v4554
    %4587 = vst [vmem:[#allocation3 + $0x250] sm:$0xff] %v4555
    %4588 = vst [vmem:[#allocation3 + $0x298] sm:$0xff] %v4556
    %4589 = vst [vmem:[#allocation3 + $0x2e0] sm:$0xff] %v4557
    %4590 = vst [vmem:[#allocation3 + $0x328] sm:$0xff] %v4558
    %4591 = vst [vmem:[#allocation3 + $0x370] sm:$0xff] %v4559
    %4592 = vst [vmem:[#allocation3 + $0x3b8] sm:$0xff] %v4560
    %4593 = vst [vmem:[#allocation3 + $0x400] sm:$0xff] %v4561
    %4594 = vst [vmem:[#allocation3 + $0x448] sm:$0xff] %v4562
    %4595 = vst [vmem:[#allocation3 + $0x490] sm:$0xff] %v4563
    %4596 = vst [vmem:[#allocation3 + $0x4d8] sm:$0xff] %v4564
    %4597 = vst [vmem:[#allocation3 + $0x520] sm:$0xff] %v4565
    %4598 = vst [vmem:[#allocation3 + $0x568] sm:$0xff] %v4566
    %4599 = vst [vmem:[#allocation3 + $0x5b0] sm:$0xff] %v4567
    %4600 = vst [vmem:[#allocation3 + $0x5f8] sm:$0xff] %v4568
    %4601 = vst [vmem:[#allocation3 + $0x640] sm:$0xff] %v4569
    %4602 = vst [vmem:[#allocation3 + $0x688] sm:$0xff] %v4570
    %4603 = vst [vmem:[#allocation3 + $0x6d0] sm:$0xff] %v4571
    %4604 = vst [vmem:[#allocation3 + $0x718] sm:$0xff] %v4572
    %4605 = vst [vmem:[#allocation3 + $0x760] sm:$0xff] %v4573
    %4606 = vst [vmem:[#allocation3 + $0x7a8] sm:$0xff] %v4574
    %4607 = vst [vmem:[#allocation3 + $0x7f0] sm:$0xff] %v4575
    %4608 = vst [vmem:[#allocation3 + $0x838] sm:$0xff] %v4576
    %4609 = vst [vmem:[#allocation3 + $0x880] sm:$0xff] %v4577
    %4610 = vst [vmem:[#allocation3 + $0x8c8] sm:$0xff] %v4578
    %v4611 = vld [vmem:[%s218] sm:$0xff]
    %v4612 = vld [vmem:[%s218 + $0x8] sm:$0xff]
    %v4613 = vld [vmem:[%s218 + $0x18] sm:$0xff]
    %v4614 = vld [vmem:[%s218 + $0x20] sm:$0xff]
    %v4615 = vld [vmem:[%s218 + $0x30] sm:$0xff]
    %v4616 = vld [vmem:[%s218 + $0x38] sm:$0xff]
    %v4617 = vld [vmem:[%s218 + $0x48] sm:$0xff]
    %v4618 = vld [vmem:[%s218 + $0x50] sm:$0xff]
    %v4619 = vld [vmem:[%s218 + $0x60] sm:$0xff]
    %v4620 = vld [vmem:[%s218 + $0x68] sm:$0xff]
    %v4621 = vld [vmem:[%s218 + $0x78] sm:$0xff]
    %v4622 = vld [vmem:[%s218 + $0x80] sm:$0xff]
    %v4623 = vld [vmem:[%s218 + $0x90] sm:$0xff]
    %v4624 = vld [vmem:[%s218 + $0x98] sm:$0xff]
    %v4625 = vld [vmem:[%s218 + $0xa8] sm:$0xff]
    %v4626 = vld [vmem:[%s218 + $0xb0] sm:$0xff]
    %v4627 = vld [vmem:[%s218 + $0xc0] sm:$0xff]
    %v4628 = vld [vmem:[%s218 + $0xc8] sm:$0xff]
    %v4629 = vld [vmem:[%s218 + $0xd8] sm:$0xff]
    %v4630 = vld [vmem:[%s218 + $0xe0] sm:$0xff]
    %v4631 = vld [vmem:[%s218 + $0xf0] sm:$0xff]
    %v4632 = vld [vmem:[%s218 + $0xf8] sm:$0xff]
    %v4633 = vld [vmem:[%s218 + $0x108] sm:$0xff]
    %v4634 = vld [vmem:[%s218 + $0x110] sm:$0xff]
    %v4635 = vld [vmem:[%s218 + $0x120] sm:$0xff]
    %v4636 = vld [vmem:[%s218 + $0x128] sm:$0xff]
    %v4637 = vld [vmem:[%s218 + $0x138] sm:$0xff]
    %v4638 = vld [vmem:[%s218 + $0x140] sm:$0xff]
    %v4639 = vld [vmem:[%s218 + $0x150] sm:$0xff]
    %v4640 = vld [vmem:[%s218 + $0x158] sm:$0xff]
    %v4641 = vld [vmem:[%s218 + $0x168] sm:$0xff]
    %v4642 = vld [vmem:[%s218 + $0x170] sm:$0xff]
    %v4643 = vld [vmem:[%s218 + $0x1b0] sm:$0xff]
    %v4644 = vld [vmem:[%s218 + $0x1b8] sm:$0xff]
    %v4645 = vld [vmem:[%s218 + $0x1c8] sm:$0xff]
    %v4646 = vld [vmem:[%s218 + $0x1d0] sm:$0xff]
    %v4647 = vld [vmem:[%s218 + $0x1e0] sm:$0xff]
    %v4648 = vld [vmem:[%s218 + $0x1e8] sm:$0xff]
    %v4649 = vld [vmem:[%s218 + $0x1f8] sm:$0xff]
    %v4650 = vld [vmem:[%s218 + $0x200] sm:$0xff]
    %v4651 = vld [vmem:[%s218 + $0x210] sm:$0xff]
    %v4652 = vld [vmem:[%s218 + $0x218] sm:$0xff]
    %v4653 = vld [vmem:[%s218 + $0x228] sm:$0xff]
    %v4654 = vld [vmem:[%s218 + $0x230] sm:$0xff]
    %v4655 = vld [vmem:[%s218 + $0x240] sm:$0xff]
    %v4656 = vld [vmem:[%s218 + $0x248] sm:$0xff]
    %v4657 = vld [vmem:[%s218 + $0x258] sm:$0xff]
    %v4658 = vld [vmem:[%s218 + $0x260] sm:$0xff]
    %v4659 = vld [vmem:[%s218 + $0x270] sm:$0xff]
    %v4660 = vld [vmem:[%s218 + $0x278] sm:$0xff]
    %v4661 = vld [vmem:[%s218 + $0x288] sm:$0xff]
    %v4662 = vld [vmem:[%s218 + $0x290] sm:$0xff]
    %v4663 = vld [vmem:[%s218 + $0x2a0] sm:$0xff]
    %v4664 = vld [vmem:[%s218 + $0x2a8] sm:$0xff]
    %v4665 = vld [vmem:[%s218 + $0x2b8] sm:$0xff]
    %v4666 = vld [vmem:[%s218 + $0x2c0] sm:$0xff]
    %v4667 = vld [vmem:[%s218 + $0x2d0] sm:$0xff]
    %v4668 = vld [vmem:[%s218 + $0x2d8] sm:$0xff]
    %v4669 = vld [vmem:[%s218 + $0x2e8] sm:$0xff]
    %v4670 = vld [vmem:[%s218 + $0x2f0] sm:$0xff]
    %v4671 = vld [vmem:[%s218 + $0x300] sm:$0xff]
    %v4672 = vld [vmem:[%s218 + $0x308] sm:$0xff]
    %v4673 = vld [vmem:[%s218 + $0x318] sm:$0xff]
    %v4674 = vld [vmem:[%s218 + $0x320] sm:$0xff]
    %v4675 = vpack.c.bf16 %v4612, %v4611
    %v4676 = vpack.c.bf16 %v4614, %v4613
    %v4677 = vpack.c.bf16 %v4616, %v4615
    %v4678 = vpack.c.bf16 %v4618, %v4617
    %v4679 = vpack.c.bf16 %v4620, %v4619
    %v4680 = vpack.c.bf16 %v4622, %v4621
    %v4681 = vpack.c.bf16 %v4624, %v4623
    %v4682 = vpack.c.bf16 %v4626, %v4625
    %v4683 = vpack.c.bf16 %v4628, %v4627
    %v4684 = vpack.c.bf16 %v4630, %v4629
    %v4685 = vpack.c.bf16 %v4632, %v4631
    %v4686 = vpack.c.bf16 %v4634, %v4633
    %v4687 = vpack.c.bf16 %v4636, %v4635
    %v4688 = vpack.c.bf16 %v4638, %v4637
    %v4689 = vpack.c.bf16 %v4640, %v4639
    %v4690 = vpack.c.bf16 %v4642, %v4641
    %v4691 = vpack.c.bf16 %v4644, %v4643
    %v4692 = vpack.c.bf16 %v4646, %v4645
    %v4693 = vpack.c.bf16 %v4648, %v4647
    %v4694 = vpack.c.bf16 %v4650, %v4649
    %v4695 = vpack.c.bf16 %v4652, %v4651
    %v4696 = vpack.c.bf16 %v4654, %v4653
    %v4697 = vpack.c.bf16 %v4656, %v4655
    %v4698 = vpack.c.bf16 %v4658, %v4657
    %v4699 = vpack.c.bf16 %v4660, %v4659
    %v4700 = vpack.c.bf16 %v4662, %v4661
    %v4701 = vpack.c.bf16 %v4664, %v4663
    %v4702 = vpack.c.bf16 %v4666, %v4665
    %v4703 = vpack.c.bf16 %v4668, %v4667
    %v4704 = vpack.c.bf16 %v4670, %v4669
    %v4705 = vpack.c.bf16 %v4672, %v4671
    %v4706 = vpack.c.bf16 %v4674, %v4673
    %4707 = vst [vmem:[#allocation3 + $0x18] sm:$0xff] %v4675
    %4708 = vst [vmem:[#allocation3 + $0x60] sm:$0xff] %v4676
    %4709 = vst [vmem:[#allocation3 + $0xa8] sm:$0xff] %v4677
    %4710 = vst [vmem:[#allocation3 + $0xf0] sm:$0xff] %v4678
    %4711 = vst [vmem:[#allocation3 + $0x138] sm:$0xff] %v4679
    %4712 = vst [vmem:[#allocation3 + $0x180] sm:$0xff] %v4680
    %4713 = vst [vmem:[#allocation3 + $0x1c8] sm:$0xff] %v4681
    %4714 = vst [vmem:[#allocation3 + $0x210] sm:$0xff] %v4682
    %4715 = vst [vmem:[#allocation3 + $0x258] sm:$0xff] %v4683
    %4716 = vst [vmem:[#allocation3 + $0x2a0] sm:$0xff] %v4684
    %4717 = vst [vmem:[#allocation3 + $0x2e8] sm:$0xff] %v4685
    %4718 = vst [vmem:[#allocation3 + $0x330] sm:$0xff] %v4686
    %4719 = vst [vmem:[#allocation3 + $0x378] sm:$0xff] %v4687
    %4720 = vst [vmem:[#allocation3 + $0x3c0] sm:$0xff] %v4688
    %4721 = vst [vmem:[#allocation3 + $0x408] sm:$0xff] %v4689
    %4722 = vst [vmem:[#allocation3 + $0x450] sm:$0xff] %v4690
    %4723 = vst [vmem:[#allocation3 + $0x498] sm:$0xff] %v4691
    %4724 = vst [vmem:[#allocation3 + $0x4e0] sm:$0xff] %v4692
    %4725 = vst [vmem:[#allocation3 + $0x528] sm:$0xff] %v4693
    %4726 = vst [vmem:[#allocation3 + $0x570] sm:$0xff] %v4694
    %4727 = vst [vmem:[#allocation3 + $0x5b8] sm:$0xff] %v4695
    %4728 = vst [vmem:[#allocation3 + $0x600] sm:$0xff] %v4696
    %4729 = vst [vmem:[#allocation3 + $0x648] sm:$0xff] %v4697
    %4730 = vst [vmem:[#allocation3 + $0x690] sm:$0xff] %v4698
    %4731 = vst [vmem:[#allocation3 + $0x6d8] sm:$0xff] %v4699
    %4732 = vst [vmem:[#allocation3 + $0x720] sm:$0xff] %v4700
    %4733 = vst [vmem:[#allocation3 + $0x768] sm:$0xff] %v4701
    %4734 = vst [vmem:[#allocation3 + $0x7b0] sm:$0xff] %v4702
    %4735 = vst [vmem:[#allocation3 + $0x7f8] sm:$0xff] %v4703
    %4736 = vst [vmem:[#allocation3 + $0x840] sm:$0xff] %v4704
    %4737 = vst [vmem:[#allocation3 + $0x888] sm:$0xff] %v4705
    %4738 = vst [vmem:[#allocation3 + $0x8d0] sm:$0xff] %v4706
    %v4739 = vld [vmem:[%s218 + $0x1] sm:$0xff]
    %v4740 = vld [vmem:[%s218 + $0x9] sm:$0xff]
    %v4741 = vld [vmem:[%s218 + $0x19] sm:$0xff]
    %v4742 = vld [vmem:[%s218 + $0x21] sm:$0xff]
    %v4743 = vld [vmem:[%s218 + $0x31] sm:$0xff]
    %v4744 = vld [vmem:[%s218 + $0x39] sm:$0xff]
    %v4745 = vld [vmem:[%s218 + $0x49] sm:$0xff]
    %v4746 = vld [vmem:[%s218 + $0x51] sm:$0xff]
    %v4747 = vld [vmem:[%s218 + $0x61] sm:$0xff]
    %v4748 = vld [vmem:[%s218 + $0x69] sm:$0xff]
    %v4749 = vld [vmem:[%s218 + $0x79] sm:$0xff]
    %v4750 = vld [vmem:[%s218 + $0x81] sm:$0xff]
    %v4751 = vld [vmem:[%s218 + $0x91] sm:$0xff]
    %v4752 = vld [vmem:[%s218 + $0x99] sm:$0xff]
    %v4753 = vld [vmem:[%s218 + $0xa9] sm:$0xff]
    %v4754 = vld [vmem:[%s218 + $0xb1] sm:$0xff]
    %v4755 = vld [vmem:[%s218 + $0xc1] sm:$0xff]
    %v4756 = vld [vmem:[%s218 + $0xc9] sm:$0xff]
    %v4757 = vld [vmem:[%s218 + $0xd9] sm:$0xff]
    %v4758 = vld [vmem:[%s218 + $0xe1] sm:$0xff]
    %v4759 = vld [vmem:[%s218 + $0xf1] sm:$0xff]
    %v4760 = vld [vmem:[%s218 + $0xf9] sm:$0xff]
    %v4761 = vld [vmem:[%s218 + $0x109] sm:$0xff]
    %v4762 = vld [vmem:[%s218 + $0x111] sm:$0xff]
    %v4763 = vld [vmem:[%s218 + $0x121] sm:$0xff]
    %v4764 = vld [vmem:[%s218 + $0x129] sm:$0xff]
    %v4765 = vld [vmem:[%s218 + $0x139] sm:$0xff]
    %v4766 = vld [vmem:[%s218 + $0x141] sm:$0xff]
    %v4767 = vld [vmem:[%s218 + $0x151] sm:$0xff]
    %v4768 = vld [vmem:[%s218 + $0x159] sm:$0xff]
    %v4769 = vld [vmem:[%s218 + $0x169] sm:$0xff]
    %v4770 = vld [vmem:[%s218 + $0x171] sm:$0xff]
    %v4771 = vld [vmem:[%s218 + $0x1b1] sm:$0xff]
    %v4772 = vld [vmem:[%s218 + $0x1b9] sm:$0xff]
    %v4773 = vld [vmem:[%s218 + $0x1c9] sm:$0xff]
    %v4774 = vld [vmem:[%s218 + $0x1d1] sm:$0xff]
    %v4775 = vld [vmem:[%s218 + $0x1e1] sm:$0xff]
    %v4776 = vld [vmem:[%s218 + $0x1e9] sm:$0xff]
    %v4777 = vld [vmem:[%s218 + $0x1f9] sm:$0xff]
    %v4778 = vld [vmem:[%s218 + $0x201] sm:$0xff]
    %v4779 = vld [vmem:[%s218 + $0x211] sm:$0xff]
    %v4780 = vld [vmem:[%s218 + $0x219] sm:$0xff]
    %v4781 = vld [vmem:[%s218 + $0x229] sm:$0xff]
    %v4782 = vld [vmem:[%s218 + $0x231] sm:$0xff]
    %v4783 = vld [vmem:[%s218 + $0x241] sm:$0xff]
    %v4784 = vld [vmem:[%s218 + $0x249] sm:$0xff]
    %v4785 = vld [vmem:[%s218 + $0x259] sm:$0xff]
    %v4786 = vld [vmem:[%s218 + $0x261] sm:$0xff]
    %v4787 = vld [vmem:[%s218 + $0x271] sm:$0xff]
    %v4788 = vld [vmem:[%s218 + $0x279] sm:$0xff]
    %v4789 = vld [vmem:[%s218 + $0x289] sm:$0xff]
    %v4790 = vld [vmem:[%s218 + $0x291] sm:$0xff]
    %v4791 = vld [vmem:[%s218 + $0x2a1] sm:$0xff]
    %v4792 = vld [vmem:[%s218 + $0x2a9] sm:$0xff]
    %v4793 = vld [vmem:[%s218 + $0x2b9] sm:$0xff]
    %v4794 = vld [vmem:[%s218 + $0x2c1] sm:$0xff]
    %v4795 = vld [vmem:[%s218 + $0x2d1] sm:$0xff]
    %v4796 = vld [vmem:[%s218 + $0x2d9] sm:$0xff]
    %v4797 = vld [vmem:[%s218 + $0x2e9] sm:$0xff]
    %v4798 = vld [vmem:[%s218 + $0x2f1] sm:$0xff]
    %v4799 = vld [vmem:[%s218 + $0x301] sm:$0xff]
    %v4800 = vld [vmem:[%s218 + $0x309] sm:$0xff]
    %v4801 = vld [vmem:[%s218 + $0x319] sm:$0xff]
    %v4802 = vld [vmem:[%s218 + $0x321] sm:$0xff]
    %v4803 = vpack.c.bf16 %v4740, %v4739
    %v4804 = vpack.c.bf16 %v4742, %v4741
    %v4805 = vpack.c.bf16 %v4744, %v4743
    %v4806 = vpack.c.bf16 %v4746, %v4745
    %v4807 = vpack.c.bf16 %v4748, %v4747
    %v4808 = vpack.c.bf16 %v4750, %v4749
    %v4809 = vpack.c.bf16 %v4752, %v4751
    %v4810 = vpack.c.bf16 %v4754, %v4753
    %v4811 = vpack.c.bf16 %v4756, %v4755
    %v4812 = vpack.c.bf16 %v4758, %v4757
    %v4813 = vpack.c.bf16 %v4760, %v4759
    %v4814 = vpack.c.bf16 %v4762, %v4761
    %v4815 = vpack.c.bf16 %v4764, %v4763
    %v4816 = vpack.c.bf16 %v4766, %v4765
    %v4817 = vpack.c.bf16 %v4768, %v4767
    %v4818 = vpack.c.bf16 %v4770, %v4769
    %v4819 = vpack.c.bf16 %v4772, %v4771
    %v4820 = vpack.c.bf16 %v4774, %v4773
    %v4821 = vpack.c.bf16 %v4776, %v4775
    %v4822 = vpack.c.bf16 %v4778, %v4777
    %v4823 = vpack.c.bf16 %v4780, %v4779
    %v4824 = vpack.c.bf16 %v4782, %v4781
    %v4825 = vpack.c.bf16 %v4784, %v4783
    %v4826 = vpack.c.bf16 %v4786, %v4785
    %v4827 = vpack.c.bf16 %v4788, %v4787
    %v4828 = vpack.c.bf16 %v4790, %v4789
    %v4829 = vpack.c.bf16 %v4792, %v4791
    %v4830 = vpack.c.bf16 %v4794, %v4793
    %v4831 = vpack.c.bf16 %v4796, %v4795
    %v4832 = vpack.c.bf16 %v4798, %v4797
    %v4833 = vpack.c.bf16 %v4800, %v4799
    %v4834 = vpack.c.bf16 %v4802, %v4801
    %4835 = vst [vmem:[#allocation3 + $0x20] sm:$0xff] %v4803
    %4836 = vst [vmem:[#allocation3 + $0x68] sm:$0xff] %v4804
    %4837 = vst [vmem:[#allocation3 + $0xb0] sm:$0xff] %v4805
    %4838 = vst [vmem:[#allocation3 + $0xf8] sm:$0xff] %v4806
    %4839 = vst [vmem:[#allocation3 + $0x140] sm:$0xff] %v4807
    %4840 = vst [vmem:[#allocation3 + $0x188] sm:$0xff] %v4808
    %4841 = vst [vmem:[#allocation3 + $0x1d0] sm:$0xff] %v4809
    %4842 = vst [vmem:[#allocation3 + $0x218] sm:$0xff] %v4810
    %4843 = vst [vmem:[#allocation3 + $0x260] sm:$0xff] %v4811
    %4844 = vst [vmem:[#allocation3 + $0x2a8] sm:$0xff] %v4812
    %4845 = vst [vmem:[#allocation3 + $0x2f0] sm:$0xff] %v4813
    %4846 = vst [vmem:[#allocation3 + $0x338] sm:$0xff] %v4814
    %4847 = vst [vmem:[#allocation3 + $0x380] sm:$0xff] %v4815
    %4848 = vst [vmem:[#allocation3 + $0x3c8] sm:$0xff] %v4816
    %4849 = vst [vmem:[#allocation3 + $0x410] sm:$0xff] %v4817
    %4850 = vst [vmem:[#allocation3 + $0x458] sm:$0xff] %v4818
    %4851 = vst [vmem:[#allocation3 + $0x4a0] sm:$0xff] %v4819
    %4852 = vst [vmem:[#allocation3 + $0x4e8] sm:$0xff] %v4820
    %4853 = vst [vmem:[#allocation3 + $0x530] sm:$0xff] %v4821
    %4854 = vst [vmem:[#allocation3 + $0x578] sm:$0xff] %v4822
    %4855 = vst [vmem:[#allocation3 + $0x5c0] sm:$0xff] %v4823
    %4856 = vst [vmem:[#allocation3 + $0x608] sm:$0xff] %v4824
    %4857 = vst [vmem:[#allocation3 + $0x650] sm:$0xff] %v4825
    %4858 = vst [vmem:[#allocation3 + $0x698] sm:$0xff] %v4826
    %4859 = vst [vmem:[#allocation3 + $0x6e0] sm:$0xff] %v4827
    %4860 = vst [vmem:[#allocation3 + $0x728] sm:$0xff] %v4828
    %4861 = vst [vmem:[#allocation3 + $0x770] sm:$0xff] %v4829
    %4862 = vst [vmem:[#allocation3 + $0x7b8] sm:$0xff] %v4830
    %4863 = vst [vmem:[#allocation3 + $0x800] sm:$0xff] %v4831
    %4864 = vst [vmem:[#allocation3 + $0x848] sm:$0xff] %v4832
    %4865 = vst [vmem:[#allocation3 + $0x890] sm:$0xff] %v4833
    %4866 = vst [vmem:[#allocation3 + $0x8d8] sm:$0xff] %v4834
    %v4867 = vld [vmem:[%s218 + $0x2] sm:$0xff]
    %v4868 = vld [vmem:[%s218 + $0xa] sm:$0xff]
    %v4869 = vld [vmem:[%s218 + $0x1a] sm:$0xff]
    %v4870 = vld [vmem:[%s218 + $0x22] sm:$0xff]
    %v4871 = vld [vmem:[%s218 + $0x32] sm:$0xff]
    %v4872 = vld [vmem:[%s218 + $0x3a] sm:$0xff]
    %v4873 = vld [vmem:[%s218 + $0x4a] sm:$0xff]
    %v4874 = vld [vmem:[%s218 + $0x52] sm:$0xff]
    %v4875 = vld [vmem:[%s218 + $0x62] sm:$0xff]
    %v4876 = vld [vmem:[%s218 + $0x6a] sm:$0xff]
    %v4877 = vld [vmem:[%s218 + $0x7a] sm:$0xff]
    %v4878 = vld [vmem:[%s218 + $0x82] sm:$0xff]
    %v4879 = vld [vmem:[%s218 + $0x92] sm:$0xff]
    %v4880 = vld [vmem:[%s218 + $0x9a] sm:$0xff]
    %v4881 = vld [vmem:[%s218 + $0xaa] sm:$0xff]
    %v4882 = vld [vmem:[%s218 + $0xb2] sm:$0xff]
    %v4883 = vld [vmem:[%s218 + $0xc2] sm:$0xff]
    %v4884 = vld [vmem:[%s218 + $0xca] sm:$0xff]
    %v4885 = vld [vmem:[%s218 + $0xda] sm:$0xff]
    %v4886 = vld [vmem:[%s218 + $0xe2] sm:$0xff]
    %v4887 = vld [vmem:[%s218 + $0xf2] sm:$0xff]
    %v4888 = vld [vmem:[%s218 + $0xfa] sm:$0xff]
    %v4889 = vld [vmem:[%s218 + $0x10a] sm:$0xff]
    %v4890 = vld [vmem:[%s218 + $0x112] sm:$0xff]
    %v4891 = vld [vmem:[%s218 + $0x122] sm:$0xff]
    %v4892 = vld [vmem:[%s218 + $0x12a] sm:$0xff]
    %v4893 = vld [vmem:[%s218 + $0x13a] sm:$0xff]
    %v4894 = vld [vmem:[%s218 + $0x142] sm:$0xff]
    %v4895 = vld [vmem:[%s218 + $0x152] sm:$0xff]
    %v4896 = vld [vmem:[%s218 + $0x15a] sm:$0xff]
    %v4897 = vld [vmem:[%s218 + $0x16a] sm:$0xff]
    %v4898 = vld [vmem:[%s218 + $0x172] sm:$0xff]
    %v4899 = vld [vmem:[%s218 + $0x1b2] sm:$0xff]
    %v4900 = vld [vmem:[%s218 + $0x1ba] sm:$0xff]
    %v4901 = vld [vmem:[%s218 + $0x1ca] sm:$0xff]
    %v4902 = vld [vmem:[%s218 + $0x1d2] sm:$0xff]
    %v4903 = vld [vmem:[%s218 + $0x1e2] sm:$0xff]
    %v4904 = vld [vmem:[%s218 + $0x1ea] sm:$0xff]
    %v4905 = vld [vmem:[%s218 + $0x1fa] sm:$0xff]
    %v4906 = vld [vmem:[%s218 + $0x202] sm:$0xff]
    %v4907 = vld [vmem:[%s218 + $0x212] sm:$0xff]
    %v4908 = vld [vmem:[%s218 + $0x21a] sm:$0xff]
    %v4909 = vld [vmem:[%s218 + $0x22a] sm:$0xff]
    %v4910 = vld [vmem:[%s218 + $0x232] sm:$0xff]
    %v4911 = vld [vmem:[%s218 + $0x242] sm:$0xff]
    %v4912 = vld [vmem:[%s218 + $0x24a] sm:$0xff]
    %v4913 = vld [vmem:[%s218 + $0x25a] sm:$0xff]
    %v4914 = vld [vmem:[%s218 + $0x262] sm:$0xff]
    %v4915 = vld [vmem:[%s218 + $0x272] sm:$0xff]
    %v4916 = vld [vmem:[%s218 + $0x27a] sm:$0xff]
    %v4917 = vld [vmem:[%s218 + $0x28a] sm:$0xff]
    %v4918 = vld [vmem:[%s218 + $0x292] sm:$0xff]
    %v4919 = vld [vmem:[%s218 + $0x2a2] sm:$0xff]
    %v4920 = vld [vmem:[%s218 + $0x2aa] sm:$0xff]
    %v4921 = vld [vmem:[%s218 + $0x2ba] sm:$0xff]
    %v4922 = vld [vmem:[%s218 + $0x2c2] sm:$0xff]
    %v4923 = vld [vmem:[%s218 + $0x2d2] sm:$0xff]
    %v4924 = vld [vmem:[%s218 + $0x2da] sm:$0xff]
    %v4925 = vld [vmem:[%s218 + $0x2ea] sm:$0xff]
    %v4926 = vld [vmem:[%s218 + $0x2f2] sm:$0xff]
    %v4927 = vld [vmem:[%s218 + $0x302] sm:$0xff]
    %v4928 = vld [vmem:[%s218 + $0x30a] sm:$0xff]
    %v4929 = vld [vmem:[%s218 + $0x31a] sm:$0xff]
    %v4930 = vld [vmem:[%s218 + $0x322] sm:$0xff]
    %v4931 = vpack.c.bf16 %v4868, %v4867
    %v4932 = vpack.c.bf16 %v4870, %v4869
    %v4933 = vpack.c.bf16 %v4872, %v4871
    %v4934 = vpack.c.bf16 %v4874, %v4873
    %v4935 = vpack.c.bf16 %v4876, %v4875
    %v4936 = vpack.c.bf16 %v4878, %v4877
    %v4937 = vpack.c.bf16 %v4880, %v4879
    %v4938 = vpack.c.bf16 %v4882, %v4881
    %v4939 = vpack.c.bf16 %v4884, %v4883
    %v4940 = vpack.c.bf16 %v4886, %v4885
    %v4941 = vpack.c.bf16 %v4888, %v4887
    %v4942 = vpack.c.bf16 %v4890, %v4889
    %v4943 = vpack.c.bf16 %v4892, %v4891
    %v4944 = vpack.c.bf16 %v4894, %v4893
    %v4945 = vpack.c.bf16 %v4896, %v4895
    %v4946 = vpack.c.bf16 %v4898, %v4897
    %v4947 = vpack.c.bf16 %v4900, %v4899
    %v4948 = vpack.c.bf16 %v4902, %v4901
    %v4949 = vpack.c.bf16 %v4904, %v4903
    %v4950 = vpack.c.bf16 %v4906, %v4905
    %v4951 = vpack.c.bf16 %v4908, %v4907
    %v4952 = vpack.c.bf16 %v4910, %v4909
    %v4953 = vpack.c.bf16 %v4912, %v4911
    %v4954 = vpack.c.bf16 %v4914, %v4913
    %v4955 = vpack.c.bf16 %v4916, %v4915
    %v4956 = vpack.c.bf16 %v4918, %v4917
    %v4957 = vpack.c.bf16 %v4920, %v4919
    %v4958 = vpack.c.bf16 %v4922, %v4921
    %v4959 = vpack.c.bf16 %v4924, %v4923
    %v4960 = vpack.c.bf16 %v4926, %v4925
    %v4961 = vpack.c.bf16 %v4928, %v4927
    %v4962 = vpack.c.bf16 %v4930, %v4929
    %4963 = vst [vmem:[#allocation3 + $0x28] sm:$0xff] %v4931
    %4964 = vst [vmem:[#allocation3 + $0x70] sm:$0xff] %v4932
    %4965 = vst [vmem:[#allocation3 + $0xb8] sm:$0xff] %v4933
    %4966 = vst [vmem:[#allocation3 + $0x100] sm:$0xff] %v4934
    %4967 = vst [vmem:[#allocation3 + $0x148] sm:$0xff] %v4935
    %4968 = vst [vmem:[#allocation3 + $0x190] sm:$0xff] %v4936
    %4969 = vst [vmem:[#allocation3 + $0x1d8] sm:$0xff] %v4937
    %4970 = vst [vmem:[#allocation3 + $0x220] sm:$0xff] %v4938
    %4971 = vst [vmem:[#allocation3 + $0x268] sm:$0xff] %v4939
    %4972 = vst [vmem:[#allocation3 + $0x2b0] sm:$0xff] %v4940
    %4973 = vst [vmem:[#allocation3 + $0x2f8] sm:$0xff] %v4941
    %4974 = vst [vmem:[#allocation3 + $0x340] sm:$0xff] %v4942
    %4975 = vst [vmem:[#allocation3 + $0x388] sm:$0xff] %v4943
    %4976 = vst [vmem:[#allocation3 + $0x3d0] sm:$0xff] %v4944
    %4977 = vst [vmem:[#allocation3 + $0x418] sm:$0xff] %v4945
    %4978 = vst [vmem:[#allocation3 + $0x460] sm:$0xff] %v4946
    %4979 = vst [vmem:[#allocation3 + $0x4a8] sm:$0xff] %v4947
    %4980 = vst [vmem:[#allocation3 + $0x4f0] sm:$0xff] %v4948
    %4981 = vst [vmem:[#allocation3 + $0x538] sm:$0xff] %v4949
    %4982 = vst [vmem:[#allocation3 + $0x580] sm:$0xff] %v4950
    %4983 = vst [vmem:[#allocation3 + $0x5c8] sm:$0xff] %v4951
    %4984 = vst [vmem:[#allocation3 + $0x610] sm:$0xff] %v4952
    %4985 = vst [vmem:[#allocation3 + $0x658] sm:$0xff] %v4953
    %4986 = vst [vmem:[#allocation3 + $0x6a0] sm:$0xff] %v4954
    %4987 = vst [vmem:[#allocation3 + $0x6e8] sm:$0xff] %v4955
    %4988 = vst [vmem:[#allocation3 + $0x730] sm:$0xff] %v4956
    %4989 = vst [vmem:[#allocation3 + $0x778] sm:$0xff] %v4957
    %4990 = vst [vmem:[#allocation3 + $0x7c0] sm:$0xff] %v4958
    %4991 = vst [vmem:[#allocation3 + $0x808] sm:$0xff] %v4959
    %4992 = vst [vmem:[#allocation3 + $0x850] sm:$0xff] %v4960
    %4993 = vst [vmem:[#allocation3 + $0x898] sm:$0xff] %v4961
    %4994 = vst [vmem:[#allocation3 + $0x8e0] sm:$0xff] %v4962
    %v4995 = vld [vmem:[%s1051] sm:$0xff]
    %v4996 = vld [vmem:[%s1051 + $0x8] sm:$0xff]
    %v4997 = vld [vmem:[%s1051 + $0x18] sm:$0xff]
    %v4998 = vld [vmem:[%s1051 + $0x20] sm:$0xff]
    %v4999 = vld [vmem:[%s1051 + $0x30] sm:$0xff]
    %v5000 = vld [vmem:[%s1051 + $0x38] sm:$0xff]
    %v5001 = vld [vmem:[%s1051 + $0x48] sm:$0xff]
    %v5002 = vld [vmem:[%s1051 + $0x50] sm:$0xff]
    %v5003 = vld [vmem:[%s1051 + $0x60] sm:$0xff]
    %v5004 = vld [vmem:[%s1051 + $0x68] sm:$0xff]
    %v5005 = vld [vmem:[%s1051 + $0x78] sm:$0xff]
    %v5006 = vld [vmem:[%s1051 + $0x80] sm:$0xff]
    %v5007 = vld [vmem:[%s1051 + $0x90] sm:$0xff]
    %v5008 = vld [vmem:[%s1051 + $0x98] sm:$0xff]
    %v5009 = vld [vmem:[%s1051 + $0xa8] sm:$0xff]
    %v5010 = vld [vmem:[%s1051 + $0xb0] sm:$0xff]
    %v5011 = vld [vmem:[%s1051 + $0xc0] sm:$0xff]
    %v5012 = vld [vmem:[%s1051 + $0xc8] sm:$0xff]
    %v5013 = vld [vmem:[%s1051 + $0xd8] sm:$0xff]
    %v5014 = vld [vmem:[%s1051 + $0xe0] sm:$0xff]
    %v5015 = vld [vmem:[%s1051 + $0xf0] sm:$0xff]
    %v5016 = vld [vmem:[%s1051 + $0xf8] sm:$0xff]
    %v5017 = vld [vmem:[%s1051 + $0x108] sm:$0xff]
    %v5018 = vld [vmem:[%s1051 + $0x110] sm:$0xff]
    %v5019 = vld [vmem:[%s1051 + $0x120] sm:$0xff]
    %v5020 = vld [vmem:[%s1051 + $0x128] sm:$0xff]
    %v5021 = vld [vmem:[%s1051 + $0x138] sm:$0xff]
    %v5022 = vld [vmem:[%s1051 + $0x140] sm:$0xff]
    %v5023 = vld [vmem:[%s1051 + $0x150] sm:$0xff]
    %v5024 = vld [vmem:[%s1051 + $0x158] sm:$0xff]
    %v5025 = vld [vmem:[%s1051 + $0x168] sm:$0xff]
    %v5026 = vld [vmem:[%s1051 + $0x170] sm:$0xff]
    %v5027 = vld [vmem:[%s1051 + $0x1b0] sm:$0xff]
    %v5028 = vld [vmem:[%s1051 + $0x1b8] sm:$0xff]
    %v5029 = vld [vmem:[%s1051 + $0x1c8] sm:$0xff]
    %v5030 = vld [vmem:[%s1051 + $0x1d0] sm:$0xff]
    %v5031 = vld [vmem:[%s1051 + $0x1e0] sm:$0xff]
    %v5032 = vld [vmem:[%s1051 + $0x1e8] sm:$0xff]
    %v5033 = vld [vmem:[%s1051 + $0x1f8] sm:$0xff]
    %v5034 = vld [vmem:[%s1051 + $0x200] sm:$0xff]
    %v5035 = vld [vmem:[%s1051 + $0x210] sm:$0xff]
    %v5036 = vld [vmem:[%s1051 + $0x218] sm:$0xff]
    %v5037 = vld [vmem:[%s1051 + $0x228] sm:$0xff]
    %v5038 = vld [vmem:[%s1051 + $0x230] sm:$0xff]
    %v5039 = vld [vmem:[%s1051 + $0x240] sm:$0xff]
    %v5040 = vld [vmem:[%s1051 + $0x248] sm:$0xff]
    %v5041 = vld [vmem:[%s1051 + $0x258] sm:$0xff]
    %v5042 = vld [vmem:[%s1051 + $0x260] sm:$0xff]
    %v5043 = vld [vmem:[%s1051 + $0x270] sm:$0xff]
    %v5044 = vld [vmem:[%s1051 + $0x278] sm:$0xff]
    %v5045 = vld [vmem:[%s1051 + $0x288] sm:$0xff]
    %v5046 = vld [vmem:[%s1051 + $0x290] sm:$0xff]
    %v5047 = vld [vmem:[%s1051 + $0x2a0] sm:$0xff]
    %v5048 = vld [vmem:[%s1051 + $0x2a8] sm:$0xff]
    %v5049 = vld [vmem:[%s1051 + $0x2b8] sm:$0xff]
    %v5050 = vld [vmem:[%s1051 + $0x2c0] sm:$0xff]
    %v5051 = vld [vmem:[%s1051 + $0x2d0] sm:$0xff]
    %v5052 = vld [vmem:[%s1051 + $0x2d8] sm:$0xff]
    %v5053 = vld [vmem:[%s1051 + $0x2e8] sm:$0xff]
    %v5054 = vld [vmem:[%s1051 + $0x2f0] sm:$0xff]
    %v5055 = vld [vmem:[%s1051 + $0x300] sm:$0xff]
    %v5056 = vld [vmem:[%s1051 + $0x308] sm:$0xff]
    %v5057 = vld [vmem:[%s1051 + $0x318] sm:$0xff]
    %v5058 = vld [vmem:[%s1051 + $0x320] sm:$0xff]
    %v5059 = vpack.c.bf16 %v4996, %v4995
    %v5060 = vpack.c.bf16 %v4998, %v4997
    %v5061 = vpack.c.bf16 %v5000, %v4999
    %v5062 = vpack.c.bf16 %v5002, %v5001
    %v5063 = vpack.c.bf16 %v5004, %v5003
    %v5064 = vpack.c.bf16 %v5006, %v5005
    %v5065 = vpack.c.bf16 %v5008, %v5007
    %v5066 = vpack.c.bf16 %v5010, %v5009
    %v5067 = vpack.c.bf16 %v5012, %v5011
    %v5068 = vpack.c.bf16 %v5014, %v5013
    %v5069 = vpack.c.bf16 %v5016, %v5015
    %v5070 = vpack.c.bf16 %v5018, %v5017
    %v5071 = vpack.c.bf16 %v5020, %v5019
    %v5072 = vpack.c.bf16 %v5022, %v5021
    %v5073 = vpack.c.bf16 %v5024, %v5023
    %v5074 = vpack.c.bf16 %v5026, %v5025
    %v5075 = vpack.c.bf16 %v5028, %v5027
    %v5076 = vpack.c.bf16 %v5030, %v5029
    %v5077 = vpack.c.bf16 %v5032, %v5031
    %v5078 = vpack.c.bf16 %v5034, %v5033
    %v5079 = vpack.c.bf16 %v5036, %v5035
    %v5080 = vpack.c.bf16 %v5038, %v5037
    %v5081 = vpack.c.bf16 %v5040, %v5039
    %v5082 = vpack.c.bf16 %v5042, %v5041
    %v5083 = vpack.c.bf16 %v5044, %v5043
    %v5084 = vpack.c.bf16 %v5046, %v5045
    %v5085 = vpack.c.bf16 %v5048, %v5047
    %v5086 = vpack.c.bf16 %v5050, %v5049
    %v5087 = vpack.c.bf16 %v5052, %v5051
    %v5088 = vpack.c.bf16 %v5054, %v5053
    %v5089 = vpack.c.bf16 %v5056, %v5055
    %v5090 = vpack.c.bf16 %v5058, %v5057
    %5091 = vst [vmem:[#allocation3 + $0x30] sm:$0xff] %v5059
    %5092 = vst [vmem:[#allocation3 + $0x78] sm:$0xff] %v5060
    %5093 = vst [vmem:[#allocation3 + $0xc0] sm:$0xff] %v5061
    %5094 = vst [vmem:[#allocation3 + $0x108] sm:$0xff] %v5062
    %5095 = vst [vmem:[#allocation3 + $0x150] sm:$0xff] %v5063
    %5096 = vst [vmem:[#allocation3 + $0x198] sm:$0xff] %v5064
    %5097 = vst [vmem:[#allocation3 + $0x1e0] sm:$0xff] %v5065
    %5098 = vst [vmem:[#allocation3 + $0x228] sm:$0xff] %v5066
    %5099 = vst [vmem:[#allocation3 + $0x270] sm:$0xff] %v5067
    %5100 = vst [vmem:[#allocation3 + $0x2b8] sm:$0xff] %v5068
    %5101 = vst [vmem:[#allocation3 + $0x300] sm:$0xff] %v5069
    %5102 = vst [vmem:[#allocation3 + $0x348] sm:$0xff] %v5070
    %5103 = vst [vmem:[#allocation3 + $0x390] sm:$0xff] %v5071
    %5104 = vst [vmem:[#allocation3 + $0x3d8] sm:$0xff] %v5072
    %5105 = vst [vmem:[#allocation3 + $0x420] sm:$0xff] %v5073
    %5106 = vst [vmem:[#allocation3 + $0x468] sm:$0xff] %v5074
    %5107 = vst [vmem:[#allocation3 + $0x4b0] sm:$0xff] %v5075
    %5108 = vst [vmem:[#allocation3 + $0x4f8] sm:$0xff] %v5076
    %5109 = vst [vmem:[#allocation3 + $0x540] sm:$0xff] %v5077
    %5110 = vst [vmem:[#allocation3 + $0x588] sm:$0xff] %v5078
    %5111 = vst [vmem:[#allocation3 + $0x5d0] sm:$0xff] %v5079
    %5112 = vst [vmem:[#allocation3 + $0x618] sm:$0xff] %v5080
    %5113 = vst [vmem:[#allocation3 + $0x660] sm:$0xff] %v5081
    %5114 = vst [vmem:[#allocation3 + $0x6a8] sm:$0xff] %v5082
    %5115 = vst [vmem:[#allocation3 + $0x6f0] sm:$0xff] %v5083
    %5116 = vst [vmem:[#allocation3 + $0x738] sm:$0xff] %v5084
    %5117 = vst [vmem:[#allocation3 + $0x780] sm:$0xff] %v5085
    %5118 = vst [vmem:[#allocation3 + $0x7c8] sm:$0xff] %v5086
    %5119 = vst [vmem:[#allocation3 + $0x810] sm:$0xff] %v5087
    %5120 = vst [vmem:[#allocation3 + $0x858] sm:$0xff] %v5088
    %5121 = vst [vmem:[#allocation3 + $0x8a0] sm:$0xff] %v5089
    %5122 = vst [vmem:[#allocation3 + $0x8e8] sm:$0xff] %v5090
    %v5123 = vld [vmem:[%s1051 + $0x1] sm:$0xff]
    %v5124 = vld [vmem:[%s1051 + $0x9] sm:$0xff]
    %v5125 = vld [vmem:[%s1051 + $0x19] sm:$0xff]
    %v5126 = vld [vmem:[%s1051 + $0x21] sm:$0xff]
    %v5127 = vld [vmem:[%s1051 + $0x31] sm:$0xff]
    %v5128 = vld [vmem:[%s1051 + $0x39] sm:$0xff]
    %v5129 = vld [vmem:[%s1051 + $0x49] sm:$0xff]
    %v5130 = vld [vmem:[%s1051 + $0x51] sm:$0xff]
    %v5131 = vld [vmem:[%s1051 + $0x61] sm:$0xff]
    %v5132 = vld [vmem:[%s1051 + $0x69] sm:$0xff]
    %v5133 = vld [vmem:[%s1051 + $0x79] sm:$0xff]
    %v5134 = vld [vmem:[%s1051 + $0x81] sm:$0xff]
    %v5135 = vld [vmem:[%s1051 + $0x91] sm:$0xff]
    %v5136 = vld [vmem:[%s1051 + $0x99] sm:$0xff]
    %v5137 = vld [vmem:[%s1051 + $0xa9] sm:$0xff]
    %v5138 = vld [vmem:[%s1051 + $0xb1] sm:$0xff]
    %v5139 = vld [vmem:[%s1051 + $0xc1] sm:$0xff]
    %v5140 = vld [vmem:[%s1051 + $0xc9] sm:$0xff]
    %v5141 = vld [vmem:[%s1051 + $0xd9] sm:$0xff]
    %v5142 = vld [vmem:[%s1051 + $0xe1] sm:$0xff]
    %v5143 = vld [vmem:[%s1051 + $0xf1] sm:$0xff]
    %v5144 = vld [vmem:[%s1051 + $0xf9] sm:$0xff]
    %v5145 = vld [vmem:[%s1051 + $0x109] sm:$0xff]
    %v5146 = vld [vmem:[%s1051 + $0x111] sm:$0xff]
    %v5147 = vld [vmem:[%s1051 + $0x121] sm:$0xff]
    %v5148 = vld [vmem:[%s1051 + $0x129] sm:$0xff]
    %v5149 = vld [vmem:[%s1051 + $0x139] sm:$0xff]
    %v5150 = vld [vmem:[%s1051 + $0x141] sm:$0xff]
    %v5151 = vld [vmem:[%s1051 + $0x151] sm:$0xff]
    %v5152 = vld [vmem:[%s1051 + $0x159] sm:$0xff]
    %v5153 = vld [vmem:[%s1051 + $0x169] sm:$0xff]
    %v5154 = vld [vmem:[%s1051 + $0x171] sm:$0xff]
    %v5155 = vld [vmem:[%s1051 + $0x1b1] sm:$0xff]
    %v5156 = vld [vmem:[%s1051 + $0x1b9] sm:$0xff]
    %v5157 = vld [vmem:[%s1051 + $0x1c9] sm:$0xff]
    %v5158 = vld [vmem:[%s1051 + $0x1d1] sm:$0xff]
    %v5159 = vld [vmem:[%s1051 + $0x1e1] sm:$0xff]
    %v5160 = vld [vmem:[%s1051 + $0x1e9] sm:$0xff]
    %v5161 = vld [vmem:[%s1051 + $0x1f9] sm:$0xff]
    %v5162 = vld [vmem:[%s1051 + $0x201] sm:$0xff]
    %v5163 = vld [vmem:[%s1051 + $0x211] sm:$0xff]
    %v5164 = vld [vmem:[%s1051 + $0x219] sm:$0xff]
    %v5165 = vld [vmem:[%s1051 + $0x229] sm:$0xff]
    %v5166 = vld [vmem:[%s1051 + $0x231] sm:$0xff]
    %v5167 = vld [vmem:[%s1051 + $0x241] sm:$0xff]
    %v5168 = vld [vmem:[%s1051 + $0x249] sm:$0xff]
    %v5169 = vld [vmem:[%s1051 + $0x259] sm:$0xff]
    %v5170 = vld [vmem:[%s1051 + $0x261] sm:$0xff]
    %v5171 = vld [vmem:[%s1051 + $0x271] sm:$0xff]
    %v5172 = vld [vmem:[%s1051 + $0x279] sm:$0xff]
    %v5173 = vld [vmem:[%s1051 + $0x289] sm:$0xff]
    %v5174 = vld [vmem:[%s1051 + $0x291] sm:$0xff]
    %v5175 = vld [vmem:[%s1051 + $0x2a1] sm:$0xff]
    %v5176 = vld [vmem:[%s1051 + $0x2a9] sm:$0xff]
    %v5177 = vld [vmem:[%s1051 + $0x2b9] sm:$0xff]
    %v5178 = vld [vmem:[%s1051 + $0x2c1] sm:$0xff]
    %v5179 = vld [vmem:[%s1051 + $0x2d1] sm:$0xff]
    %v5180 = vld [vmem:[%s1051 + $0x2d9] sm:$0xff]
    %v5181 = vld [vmem:[%s1051 + $0x2e9] sm:$0xff]
    %v5182 = vld [vmem:[%s1051 + $0x2f1] sm:$0xff]
    %v5183 = vld [vmem:[%s1051 + $0x301] sm:$0xff]
    %v5184 = vld [vmem:[%s1051 + $0x309] sm:$0xff]
    %v5185 = vld [vmem:[%s1051 + $0x319] sm:$0xff]
    %v5186 = vld [vmem:[%s1051 + $0x321] sm:$0xff]
    %v5187 = vpack.c.bf16 %v5124, %v5123
    %v5188 = vpack.c.bf16 %v5126, %v5125
    %v5189 = vpack.c.bf16 %v5128, %v5127
    %v5190 = vpack.c.bf16 %v5130, %v5129
    %v5191 = vpack.c.bf16 %v5132, %v5131
    %v5192 = vpack.c.bf16 %v5134, %v5133
    %v5193 = vpack.c.bf16 %v5136, %v5135
    %v5194 = vpack.c.bf16 %v5138, %v5137
    %v5195 = vpack.c.bf16 %v5140, %v5139
    %v5196 = vpack.c.bf16 %v5142, %v5141
    %v5197 = vpack.c.bf16 %v5144, %v5143
    %v5198 = vpack.c.bf16 %v5146, %v5145
    %v5199 = vpack.c.bf16 %v5148, %v5147
    %v5200 = vpack.c.bf16 %v5150, %v5149
    %v5201 = vpack.c.bf16 %v5152, %v5151
    %v5202 = vpack.c.bf16 %v5154, %v5153
    %v5203 = vpack.c.bf16 %v5156, %v5155
    %v5204 = vpack.c.bf16 %v5158, %v5157
    %v5205 = vpack.c.bf16 %v5160, %v5159
    %v5206 = vpack.c.bf16 %v5162, %v5161
    %v5207 = vpack.c.bf16 %v5164, %v5163
    %v5208 = vpack.c.bf16 %v5166, %v5165
    %v5209 = vpack.c.bf16 %v5168, %v5167
    %v5210 = vpack.c.bf16 %v5170, %v5169
    %v5211 = vpack.c.bf16 %v5172, %v5171
    %v5212 = vpack.c.bf16 %v5174, %v5173
    %v5213 = vpack.c.bf16 %v5176, %v5175
    %v5214 = vpack.c.bf16 %v5178, %v5177
    %v5215 = vpack.c.bf16 %v5180, %v5179
    %v5216 = vpack.c.bf16 %v5182, %v5181
    %v5217 = vpack.c.bf16 %v5184, %v5183
    %v5218 = vpack.c.bf16 %v5186, %v5185
    %5219 = vst [vmem:[#allocation3 + $0x38] sm:$0xff] %v5187
    %5220 = vst [vmem:[#allocation3 + $0x80] sm:$0xff] %v5188
    %5221 = vst [vmem:[#allocation3 + $0xc8] sm:$0xff] %v5189
    %5222 = vst [vmem:[#allocation3 + $0x110] sm:$0xff] %v5190
    %5223 = vst [vmem:[#allocation3 + $0x158] sm:$0xff] %v5191
    %5224 = vst [vmem:[#allocation3 + $0x1a0] sm:$0xff] %v5192
    %5225 = vst [vmem:[#allocation3 + $0x1e8] sm:$0xff] %v5193
    %5226 = vst [vmem:[#allocation3 + $0x230] sm:$0xff] %v5194
    %5227 = vst [vmem:[#allocation3 + $0x278] sm:$0xff] %v5195
    %5228 = vst [vmem:[#allocation3 + $0x2c0] sm:$0xff] %v5196
    %5229 = vst [vmem:[#allocation3 + $0x308] sm:$0xff] %v5197
    %5230 = vst [vmem:[#allocation3 + $0x350] sm:$0xff] %v5198
    %5231 = vst [vmem:[#allocation3 + $0x398] sm:$0xff] %v5199
    %5232 = vst [vmem:[#allocation3 + $0x3e0] sm:$0xff] %v5200
    %5233 = vst [vmem:[#allocation3 + $0x428] sm:$0xff] %v5201
    %5234 = vst [vmem:[#allocation3 + $0x470] sm:$0xff] %v5202
    %5235 = vst [vmem:[#allocation3 + $0x4b8] sm:$0xff] %v5203
    %5236 = vst [vmem:[#allocation3 + $0x500] sm:$0xff] %v5204
    %5237 = vst [vmem:[#allocation3 + $0x548] sm:$0xff] %v5205
    %5238 = vst [vmem:[#allocation3 + $0x590] sm:$0xff] %v5206
    %5239 = vst [vmem:[#allocation3 + $0x5d8] sm:$0xff] %v5207
    %5240 = vst [vmem:[#allocation3 + $0x620] sm:$0xff] %v5208
    %5241 = vst [vmem:[#allocation3 + $0x668] sm:$0xff] %v5209
    %5242 = vst [vmem:[#allocation3 + $0x6b0] sm:$0xff] %v5210
    %5243 = vst [vmem:[#allocation3 + $0x6f8] sm:$0xff] %v5211
    %5244 = vst [vmem:[#allocation3 + $0x740] sm:$0xff] %v5212
    %5245 = vst [vmem:[#allocation3 + $0x788] sm:$0xff] %v5213
    %5246 = vst [vmem:[#allocation3 + $0x7d0] sm:$0xff] %v5214
    %5247 = vst [vmem:[#allocation3 + $0x818] sm:$0xff] %v5215
    %5248 = vst [vmem:[#allocation3 + $0x860] sm:$0xff] %v5216
    %5249 = vst [vmem:[#allocation3 + $0x8a8] sm:$0xff] %v5217
    %5250 = vst [vmem:[#allocation3 + $0x8f0] sm:$0xff] %v5218
    %v5251 = vld [vmem:[%s1051 + $0x2] sm:$0xff]
    %v5252 = vld [vmem:[%s1051 + $0xa] sm:$0xff]
    %v5253 = vld [vmem:[%s1051 + $0x1a] sm:$0xff]
    %v5254 = vld [vmem:[%s1051 + $0x22] sm:$0xff]
    %v5255 = vld [vmem:[%s1051 + $0x32] sm:$0xff]
    %v5256 = vld [vmem:[%s1051 + $0x3a] sm:$0xff]
    %v5257 = vld [vmem:[%s1051 + $0x4a] sm:$0xff]
    %v5258 = vld [vmem:[%s1051 + $0x52] sm:$0xff]
    %v5259 = vld [vmem:[%s1051 + $0x62] sm:$0xff]
    %v5260 = vld [vmem:[%s1051 + $0x6a] sm:$0xff]
    %v5261 = vld [vmem:[%s1051 + $0x7a] sm:$0xff]
    %v5262 = vld [vmem:[%s1051 + $0x82] sm:$0xff]
    %v5263 = vld [vmem:[%s1051 + $0x92] sm:$0xff]
    %v5264 = vld [vmem:[%s1051 + $0x9a] sm:$0xff]
    %v5265 = vld [vmem:[%s1051 + $0xaa] sm:$0xff]
    %v5266 = vld [vmem:[%s1051 + $0xb2] sm:$0xff]
    %v5267 = vld [vmem:[%s1051 + $0xc2] sm:$0xff]
    %v5268 = vld [vmem:[%s1051 + $0xca] sm:$0xff]
    %v5269 = vld [vmem:[%s1051 + $0xda] sm:$0xff]
    %v5270 = vld [vmem:[%s1051 + $0xe2] sm:$0xff]
    %v5271 = vld [vmem:[%s1051 + $0xf2] sm:$0xff]
    %v5272 = vld [vmem:[%s1051 + $0xfa] sm:$0xff]
    %v5273 = vld [vmem:[%s1051 + $0x10a] sm:$0xff]
    %v5274 = vld [vmem:[%s1051 + $0x112] sm:$0xff]
    %v5275 = vld [vmem:[%s1051 + $0x122] sm:$0xff]
    %v5276 = vld [vmem:[%s1051 + $0x12a] sm:$0xff]
    %v5277 = vld [vmem:[%s1051 + $0x13a] sm:$0xff]
    %v5278 = vld [vmem:[%s1051 + $0x142] sm:$0xff]
    %v5279 = vld [vmem:[%s1051 + $0x152] sm:$0xff]
    %v5280 = vld [vmem:[%s1051 + $0x15a] sm:$0xff]
    %v5281 = vld [vmem:[%s1051 + $0x16a] sm:$0xff]
    %v5282 = vld [vmem:[%s1051 + $0x172] sm:$0xff]
    %v5283 = vld [vmem:[%s1051 + $0x1b2] sm:$0xff]
    %v5284 = vld [vmem:[%s1051 + $0x1ba] sm:$0xff]
    %v5285 = vld [vmem:[%s1051 + $0x1ca] sm:$0xff]
    %v5286 = vld [vmem:[%s1051 + $0x1d2] sm:$0xff]
    %v5287 = vld [vmem:[%s1051 + $0x1e2] sm:$0xff]
    %v5288 = vld [vmem:[%s1051 + $0x1ea] sm:$0xff]
    %v5289 = vld [vmem:[%s1051 + $0x1fa] sm:$0xff]
    %v5290 = vld [vmem:[%s1051 + $0x202] sm:$0xff]
    %v5291 = vld [vmem:[%s1051 + $0x212] sm:$0xff]
    %v5292 = vld [vmem:[%s1051 + $0x21a] sm:$0xff]
    %v5293 = vld [vmem:[%s1051 + $0x22a] sm:$0xff]
    %v5294 = vld [vmem:[%s1051 + $0x232] sm:$0xff]
    %v5295 = vld [vmem:[%s1051 + $0x242] sm:$0xff]
    %v5296 = vld [vmem:[%s1051 + $0x24a] sm:$0xff]
    %v5297 = vld [vmem:[%s1051 + $0x25a] sm:$0xff]
    %v5298 = vld [vmem:[%s1051 + $0x262] sm:$0xff]
    %v5299 = vld [vmem:[%s1051 + $0x272] sm:$0xff]
    %v5300 = vld [vmem:[%s1051 + $0x27a] sm:$0xff]
    %v5301 = vld [vmem:[%s1051 + $0x28a] sm:$0xff]
    %v5302 = vld [vmem:[%s1051 + $0x292] sm:$0xff]
    %v5303 = vld [vmem:[%s1051 + $0x2a2] sm:$0xff]
    %v5304 = vld [vmem:[%s1051 + $0x2aa] sm:$0xff]
    %v5305 = vld [vmem:[%s1051 + $0x2ba] sm:$0xff]
    %v5306 = vld [vmem:[%s1051 + $0x2c2] sm:$0xff]
    %v5307 = vld [vmem:[%s1051 + $0x2d2] sm:$0xff]
    %v5308 = vld [vmem:[%s1051 + $0x2da] sm:$0xff]
    %v5309 = vld [vmem:[%s1051 + $0x2ea] sm:$0xff]
    %v5310 = vld [vmem:[%s1051 + $0x2f2] sm:$0xff]
    %v5311 = vld [vmem:[%s1051 + $0x302] sm:$0xff]
    %v5312 = vld [vmem:[%s1051 + $0x30a] sm:$0xff]
    %v5313 = vld [vmem:[%s1051 + $0x31a] sm:$0xff]
    %v5314 = vld [vmem:[%s1051 + $0x322] sm:$0xff]
    %v5315 = vpack.c.bf16 %v5252, %v5251
    %v5316 = vpack.c.bf16 %v5254, %v5253
    %v5317 = vpack.c.bf16 %v5256, %v5255
    %v5318 = vpack.c.bf16 %v5258, %v5257
    %v5319 = vpack.c.bf16 %v5260, %v5259
    %v5320 = vpack.c.bf16 %v5262, %v5261
    %v5321 = vpack.c.bf16 %v5264, %v5263
    %v5322 = vpack.c.bf16 %v5266, %v5265
    %v5323 = vpack.c.bf16 %v5268, %v5267
    %v5324 = vpack.c.bf16 %v5270, %v5269
    %v5325 = vpack.c.bf16 %v5272, %v5271
    %v5326 = vpack.c.bf16 %v5274, %v5273
    %v5327 = vpack.c.bf16 %v5276, %v5275
    %v5328 = vpack.c.bf16 %v5278, %v5277
    %v5329 = vpack.c.bf16 %v5280, %v5279
    %v5330 = vpack.c.bf16 %v5282, %v5281
    %v5331 = vpack.c.bf16 %v5284, %v5283
    %v5332 = vpack.c.bf16 %v5286, %v5285
    %v5333 = vpack.c.bf16 %v5288, %v5287
    %v5334 = vpack.c.bf16 %v5290, %v5289
    %v5335 = vpack.c.bf16 %v5292, %v5291
    %v5336 = vpack.c.bf16 %v5294, %v5293
    %v5337 = vpack.c.bf16 %v5296, %v5295
    %v5338 = vpack.c.bf16 %v5298, %v5297
    %v5339 = vpack.c.bf16 %v5300, %v5299
    %v5340 = vpack.c.bf16 %v5302, %v5301
    %v5341 = vpack.c.bf16 %v5304, %v5303
    %v5342 = vpack.c.bf16 %v5306, %v5305
    %v5343 = vpack.c.bf16 %v5308, %v5307
    %v5344 = vpack.c.bf16 %v5310, %v5309
    %v5345 = vpack.c.bf16 %v5312, %v5311
    %v5346 = vpack.c.bf16 %v5314, %v5313
    %5347 = vst [vmem:[#allocation3 + $0x40] sm:$0xff] %v5315
    %5348 = vst [vmem:[#allocation3 + $0x88] sm:$0xff] %v5316
    %5349 = vst [vmem:[#allocation3 + $0xd0] sm:$0xff] %v5317
    %5350 = vst [vmem:[#allocation3 + $0x118] sm:$0xff] %v5318
    %5351 = vst [vmem:[#allocation3 + $0x160] sm:$0xff] %v5319
    %5352 = vst [vmem:[#allocation3 + $0x1a8] sm:$0xff] %v5320
    %5353 = vst [vmem:[#allocation3 + $0x1f0] sm:$0xff] %v5321
    %5354 = vst [vmem:[#allocation3 + $0x238] sm:$0xff] %v5322
    %5355 = vst [vmem:[#allocation3 + $0x280] sm:$0xff] %v5323
    %5356 = vst [vmem:[#allocation3 + $0x2c8] sm:$0xff] %v5324
    %5357 = vst [vmem:[#allocation3 + $0x310] sm:$0xff] %v5325
    %5358 = vst [vmem:[#allocation3 + $0x358] sm:$0xff] %v5326
    %5359 = vst [vmem:[#allocation3 + $0x3a0] sm:$0xff] %v5327
    %5360 = vst [vmem:[#allocation3 + $0x3e8] sm:$0xff] %v5328
    %5361 = vst [vmem:[#allocation3 + $0x430] sm:$0xff] %v5329
    %5362 = vst [vmem:[#allocation3 + $0x478] sm:$0xff] %v5330
    %5363 = vst [vmem:[#allocation3 + $0x4c0] sm:$0xff] %v5331
    %5364 = vst [vmem:[#allocation3 + $0x508] sm:$0xff] %v5332
    %5365 = vst [vmem:[#allocation3 + $0x550] sm:$0xff] %v5333
    %5366 = vst [vmem:[#allocation3 + $0x598] sm:$0xff] %v5334
    %5367 = vst [vmem:[#allocation3 + $0x5e0] sm:$0xff] %v5335
    %5368 = vst [vmem:[#allocation3 + $0x628] sm:$0xff] %v5336
    %5369 = vst [vmem:[#allocation3 + $0x670] sm:$0xff] %v5337
    %5370 = vst [vmem:[#allocation3 + $0x6b8] sm:$0xff] %v5338
    %5371 = vst [vmem:[#allocation3 + $0x700] sm:$0xff] %v5339
    %5372 = vst [vmem:[#allocation3 + $0x748] sm:$0xff] %v5340
    %5373 = vst [vmem:[#allocation3 + $0x790] sm:$0xff] %v5341
    %5374 = vst [vmem:[#allocation3 + $0x7d8] sm:$0xff] %v5342
    %5375 = vst [vmem:[#allocation3 + $0x820] sm:$0xff] %v5343
    %5376 = vst [vmem:[#allocation3 + $0x868] sm:$0xff] %v5344
    %5377 = vst [vmem:[#allocation3 + $0x8b0] sm:$0xff] %v5345
    %5378 = vst [vmem:[#allocation3 + $0x8f8] sm:$0xff] %v5346
    %v5379 = vld [vmem:[#allocation3] sm:$0xff]
    %v5380 = vld [vmem:[#allocation3 + $0x8] sm:$0xff]
    %v5381 = vld [vmem:[#allocation3 + $0x10] sm:$0xff]
    %v5382 = vld [vmem:[#allocation3 + $0x18] sm:$0xff]
    %v5383 = vld [vmem:[#allocation3 + $0x20] sm:$0xff]
    %v5384 = vld [vmem:[#allocation3 + $0x28] sm:$0xff]
    %v5385 = vld [vmem:[#allocation3 + $0x30] sm:$0xff]
    %v5386 = vld [vmem:[#allocation3 + $0x38] sm:$0xff]
    %v5387 = vld [vmem:[#allocation3 + $0x40] sm:$0xff]
    %v5388 = vld [vmem:[#allocation3 + $0x48] sm:$0xff]
    %v5389 = vld [vmem:[#allocation3 + $0x50] sm:$0xff]
    %v5390 = vld [vmem:[#allocation3 + $0x58] sm:$0xff]
    %v5391 = vld [vmem:[#allocation3 + $0x60] sm:$0xff]
    %v5392 = vld [vmem:[#allocation3 + $0x68] sm:$0xff]
    %v5393 = vld [vmem:[#allocation3 + $0x70] sm:$0xff]
    %v5394 = vld [vmem:[#allocation3 + $0x78] sm:$0xff]
    %v5395 = vld [vmem:[#allocation3 + $0x80] sm:$0xff]
    %v5396 = vld [vmem:[#allocation3 + $0x88] sm:$0xff]
    %v5397 = vld [vmem:[#allocation3 + $0x90] sm:$0xff]
    %v5398 = vld [vmem:[#allocation3 + $0x98] sm:$0xff]
    %v5399 = vld [vmem:[#allocation3 + $0xa0] sm:$0xff]
    %v5400 = vld [vmem:[#allocation3 + $0xa8] sm:$0xff]
    %v5401 = vld [vmem:[#allocation3 + $0xb0] sm:$0xff]
    %v5402 = vld [vmem:[#allocation3 + $0xb8] sm:$0xff]
    %v5403 = vld [vmem:[#allocation3 + $0xc0] sm:$0xff]
    %v5404 = vld [vmem:[#allocation3 + $0xc8] sm:$0xff]
    %v5405 = vld [vmem:[#allocation3 + $0xd0] sm:$0xff]
    %v5406 = vld [vmem:[#allocation3 + $0xd8] sm:$0xff]
    %v5407 = vld [vmem:[#allocation3 + $0xe0] sm:$0xff]
    %v5408 = vld [vmem:[#allocation3 + $0xe8] sm:$0xff]
    %v5409 = vld [vmem:[#allocation3 + $0xf0] sm:$0xff]
    %v5410 = vld [vmem:[#allocation3 + $0xf8] sm:$0xff]
    %v5411 = vld [vmem:[#allocation3 + $0x100] sm:$0xff]
    %v5412 = vld [vmem:[#allocation3 + $0x108] sm:$0xff]
    %v5413 = vld [vmem:[#allocation3 + $0x110] sm:$0xff]
    %v5414 = vld [vmem:[#allocation3 + $0x118] sm:$0xff]
    %v5415 = vld [vmem:[#allocation3 + $0x120] sm:$0xff]
    %v5416 = vld [vmem:[#allocation3 + $0x128] sm:$0xff]
    %v5417 = vld [vmem:[#allocation3 + $0x130] sm:$0xff]
    %v5418 = vld [vmem:[#allocation3 + $0x138] sm:$0xff]
    %v5419 = vld [vmem:[#allocation3 + $0x140] sm:$0xff]
    %v5420 = vld [vmem:[#allocation3 + $0x148] sm:$0xff]
    %v5421 = vld [vmem:[#allocation3 + $0x150] sm:$0xff]
    %v5422 = vld [vmem:[#allocation3 + $0x158] sm:$0xff]
    %v5423 = vld [vmem:[#allocation3 + $0x160] sm:$0xff]
    %v5424 = vld [vmem:[#allocation3 + $0x168] sm:$0xff]
    %v5425 = vld [vmem:[#allocation3 + $0x170] sm:$0xff]
    %v5426 = vld [vmem:[#allocation3 + $0x178] sm:$0xff]
    %v5427 = vld [vmem:[#allocation3 + $0x180] sm:$0xff]
    %v5428 = vld [vmem:[#allocation3 + $0x188] sm:$0xff]
    %v5429 = vld [vmem:[#allocation3 + $0x190] sm:$0xff]
    %v5430 = vld [vmem:[#allocation3 + $0x198] sm:$0xff]
    %v5431 = vld [vmem:[#allocation3 + $0x1a0] sm:$0xff]
    %v5432 = vld [vmem:[#allocation3 + $0x1a8] sm:$0xff]
    %v5433 = vld [vmem:[#allocation3 + $0x1b0] sm:$0xff]
    %v5434 = vld [vmem:[#allocation3 + $0x1b8] sm:$0xff]
    %v5435 = vld [vmem:[#allocation3 + $0x1c0] sm:$0xff]
    %v5436 = vld [vmem:[#allocation3 + $0x1c8] sm:$0xff]
    %v5437 = vld [vmem:[#allocation3 + $0x1d0] sm:$0xff]
    %v5438 = vld [vmem:[#allocation3 + $0x1d8] sm:$0xff]
    %v5439 = vld [vmem:[#allocation3 + $0x1e0] sm:$0xff]
    %v5440 = vld [vmem:[#allocation3 + $0x1e8] sm:$0xff]
    %v5441 = vld [vmem:[#allocation3 + $0x1f0] sm:$0xff]
    %v5442 = vld [vmem:[#allocation3 + $0x1f8] sm:$0xff]
    %v5443 = vld [vmem:[#allocation3 + $0x200] sm:$0xff]
    %v5444 = vld [vmem:[#allocation3 + $0x208] sm:$0xff]
    %v5445 = vld [vmem:[#allocation3 + $0x210] sm:$0xff]
    %v5446 = vld [vmem:[#allocation3 + $0x218] sm:$0xff]
    %v5447 = vld [vmem:[#allocation3 + $0x220] sm:$0xff]
    %v5448 = vld [vmem:[#allocation3 + $0x228] sm:$0xff]
    %v5449 = vld [vmem:[#allocation3 + $0x230] sm:$0xff]
    %v5450 = vld [vmem:[#allocation3 + $0x238] sm:$0xff]
    %v5451 = vld [vmem:[#allocation3 + $0x240] sm:$0xff]
    %v5452 = vld [vmem:[#allocation3 + $0x248] sm:$0xff]
    %v5453 = vld [vmem:[#allocation3 + $0x250] sm:$0xff]
    %v5454 = vld [vmem:[#allocation3 + $0x258] sm:$0xff]
    %v5455 = vld [vmem:[#allocation3 + $0x260] sm:$0xff]
    %v5456 = vld [vmem:[#allocation3 + $0x268] sm:$0xff]
    %v5457 = vld [vmem:[#allocation3 + $0x270] sm:$0xff]
    %v5458 = vld [vmem:[#allocation3 + $0x278] sm:$0xff]
    %v5459 = vld [vmem:[#allocation3 + $0x280] sm:$0xff]
    %v5460 = vld [vmem:[#allocation3 + $0x288] sm:$0xff]
    %v5461 = vld [vmem:[#allocation3 + $0x290] sm:$0xff]
    %v5462 = vld [vmem:[#allocation3 + $0x298] sm:$0xff]
    %v5463 = vld [vmem:[#allocation3 + $0x2a0] sm:$0xff]
    %v5464 = vld [vmem:[#allocation3 + $0x2a8] sm:$0xff]
    %v5465 = vld [vmem:[#allocation3 + $0x2b0] sm:$0xff]
    %v5466 = vld [vmem:[#allocation3 + $0x2b8] sm:$0xff]
    %v5467 = vld [vmem:[#allocation3 + $0x2c0] sm:$0xff]
    %v5468 = vld [vmem:[#allocation3 + $0x2c8] sm:$0xff]
    %v5469 = vld [vmem:[#allocation3 + $0x2d0] sm:$0xff]
    %v5470 = vld [vmem:[#allocation3 + $0x2d8] sm:$0xff]
    %v5471 = vld [vmem:[#allocation3 + $0x2e0] sm:$0xff]
    %v5472 = vld [vmem:[#allocation3 + $0x2e8] sm:$0xff]
    %v5473 = vld [vmem:[#allocation3 + $0x2f0] sm:$0xff]
    %v5474 = vld [vmem:[#allocation3 + $0x2f8] sm:$0xff]
    %v5475 = vld [vmem:[#allocation3 + $0x300] sm:$0xff]
    %v5476 = vld [vmem:[#allocation3 + $0x308] sm:$0xff]
    %v5477 = vld [vmem:[#allocation3 + $0x310] sm:$0xff]
    %v5478 = vld [vmem:[#allocation3 + $0x318] sm:$0xff]
    %v5479 = vld [vmem:[#allocation3 + $0x320] sm:$0xff]
    %v5480 = vld [vmem:[#allocation3 + $0x328] sm:$0xff]
    %v5481 = vld [vmem:[#allocation3 + $0x330] sm:$0xff]
    %v5482 = vld [vmem:[#allocation3 + $0x338] sm:$0xff]
    %v5483 = vld [vmem:[#allocation3 + $0x340] sm:$0xff]
    %v5484 = vld [vmem:[#allocation3 + $0x348] sm:$0xff]
    %v5485 = vld [vmem:[#allocation3 + $0x350] sm:$0xff]
    %v5486 = vld [vmem:[#allocation3 + $0x358] sm:$0xff]
    %v5487 = vld [vmem:[#allocation3 + $0x360] sm:$0xff]
    %v5488 = vld [vmem:[#allocation3 + $0x368] sm:$0xff]
    %v5489 = vld [vmem:[#allocation3 + $0x370] sm:$0xff]
    %v5490 = vld [vmem:[#allocation3 + $0x378] sm:$0xff]
    %v5491 = vld [vmem:[#allocation3 + $0x380] sm:$0xff]
    %v5492 = vld [vmem:[#allocation3 + $0x388] sm:$0xff]
    %v5493 = vld [vmem:[#allocation3 + $0x390] sm:$0xff]
    %v5494 = vld [vmem:[#allocation3 + $0x398] sm:$0xff]
    %v5495 = vld [vmem:[#allocation3 + $0x3a0] sm:$0xff]
    %v5496 = vld [vmem:[#allocation3 + $0x3a8] sm:$0xff]
    %v5497 = vld [vmem:[#allocation3 + $0x3b0] sm:$0xff]
    %v5498 = vld [vmem:[#allocation3 + $0x3b8] sm:$0xff]
    %v5499 = vld [vmem:[#allocation3 + $0x3c0] sm:$0xff]
    %v5500 = vld [vmem:[#allocation3 + $0x3c8] sm:$0xff]
    %v5501 = vld [vmem:[#allocation3 + $0x3d0] sm:$0xff]
    %v5502 = vld [vmem:[#allocation3 + $0x3d8] sm:$0xff]
    %v5503 = vld [vmem:[#allocation3 + $0x3e0] sm:$0xff]
    %v5504 = vld [vmem:[#allocation3 + $0x3e8] sm:$0xff]
    %v5505 = vld [vmem:[#allocation3 + $0x3f0] sm:$0xff]
    %v5506 = vld [vmem:[#allocation3 + $0x3f8] sm:$0xff]
    %v5507 = vld [vmem:[#allocation3 + $0x400] sm:$0xff]
    %v5508 = vld [vmem:[#allocation3 + $0x408] sm:$0xff]
    %v5509 = vld [vmem:[#allocation3 + $0x410] sm:$0xff]
    %v5510 = vld [vmem:[#allocation3 + $0x418] sm:$0xff]
    %v5511 = vld [vmem:[#allocation3 + $0x420] sm:$0xff]
    %v5512 = vld [vmem:[#allocation3 + $0x428] sm:$0xff]
    %v5513 = vld [vmem:[#allocation3 + $0x430] sm:$0xff]
    %v5514 = vld [vmem:[#allocation3 + $0x438] sm:$0xff]
    %v5515 = vld [vmem:[#allocation3 + $0x440] sm:$0xff]
    %v5516 = vld [vmem:[#allocation3 + $0x448] sm:$0xff]
    %v5517 = vld [vmem:[#allocation3 + $0x450] sm:$0xff]
    %v5518 = vld [vmem:[#allocation3 + $0x458] sm:$0xff]
    %v5519 = vld [vmem:[#allocation3 + $0x460] sm:$0xff]
    %v5520 = vld [vmem:[#allocation3 + $0x468] sm:$0xff]
    %v5521 = vld [vmem:[#allocation3 + $0x470] sm:$0xff]
    %v5522 = vld [vmem:[#allocation3 + $0x478] sm:$0xff]
    %v5523 = vld [vmem:[#allocation3 + $0x480] sm:$0xff]
    %v5524 = vld [vmem:[#allocation3 + $0x488] sm:$0xff]
    %v5525 = vld [vmem:[#allocation3 + $0x490] sm:$0xff]
    %v5526 = vld [vmem:[#allocation3 + $0x498] sm:$0xff]
    %v5527 = vld [vmem:[#allocation3 + $0x4a0] sm:$0xff]
    %v5528 = vld [vmem:[#allocation3 + $0x4a8] sm:$0xff]
    %v5529 = vld [vmem:[#allocation3 + $0x4b0] sm:$0xff]
    %v5530 = vld [vmem:[#allocation3 + $0x4b8] sm:$0xff]
    %v5531 = vld [vmem:[#allocation3 + $0x4c0] sm:$0xff]
    %v5532 = vld [vmem:[#allocation3 + $0x4c8] sm:$0xff]
    %v5533 = vld [vmem:[#allocation3 + $0x4d0] sm:$0xff]
    %v5534 = vld [vmem:[#allocation3 + $0x4d8] sm:$0xff]
    %v5535 = vld [vmem:[#allocation3 + $0x4e0] sm:$0xff]
    %v5536 = vld [vmem:[#allocation3 + $0x4e8] sm:$0xff]
    %v5537 = vld [vmem:[#allocation3 + $0x4f0] sm:$0xff]
    %v5538 = vld [vmem:[#allocation3 + $0x4f8] sm:$0xff]
    %v5539 = vld [vmem:[#allocation3 + $0x500] sm:$0xff]
    %v5540 = vld [vmem:[#allocation3 + $0x508] sm:$0xff]
    %v5541 = vld [vmem:[#allocation3 + $0x510] sm:$0xff]
    %v5542 = vld [vmem:[#allocation3 + $0x518] sm:$0xff]
    %v5543 = vld [vmem:[#allocation3 + $0x520] sm:$0xff]
    %v5544 = vld [vmem:[#allocation3 + $0x528] sm:$0xff]
    %v5545 = vld [vmem:[#allocation3 + $0x530] sm:$0xff]
    %v5546 = vld [vmem:[#allocation3 + $0x538] sm:$0xff]
    %v5547 = vld [vmem:[#allocation3 + $0x540] sm:$0xff]
    %v5548 = vld [vmem:[#allocation3 + $0x548] sm:$0xff]
    %v5549 = vld [vmem:[#allocation3 + $0x550] sm:$0xff]
    %v5550 = vld [vmem:[#allocation3 + $0x558] sm:$0xff]
    %v5551 = vld [vmem:[#allocation3 + $0x560] sm:$0xff]
    %v5552 = vld [vmem:[#allocation3 + $0x568] sm:$0xff]
    %v5553 = vld [vmem:[#allocation3 + $0x570] sm:$0xff]
    %v5554 = vld [vmem:[#allocation3 + $0x578] sm:$0xff]
    %v5555 = vld [vmem:[#allocation3 + $0x580] sm:$0xff]
    %v5556 = vld [vmem:[#allocation3 + $0x588] sm:$0xff]
    %v5557 = vld [vmem:[#allocation3 + $0x590] sm:$0xff]
    %v5558 = vld [vmem:[#allocation3 + $0x598] sm:$0xff]
    %v5559 = vld [vmem:[#allocation3 + $0x5a0] sm:$0xff]
    %v5560 = vld [vmem:[#allocation3 + $0x5a8] sm:$0xff]
    %v5561 = vld [vmem:[#allocation3 + $0x5b0] sm:$0xff]
    %v5562 = vld [vmem:[#allocation3 + $0x5b8] sm:$0xff]
    %v5563 = vld [vmem:[#allocation3 + $0x5c0] sm:$0xff]
    %v5564 = vld [vmem:[#allocation3 + $0x5c8] sm:$0xff]
    %v5565 = vld [vmem:[#allocation3 + $0x5d0] sm:$0xff]
    %v5566 = vld [vmem:[#allocation3 + $0x5d8] sm:$0xff]
    %v5567 = vld [vmem:[#allocation3 + $0x5e0] sm:$0xff]
    %v5568 = vld [vmem:[#allocation3 + $0x5e8] sm:$0xff]
    %v5569 = vld [vmem:[#allocation3 + $0x5f0] sm:$0xff]
    %v5570 = vld [vmem:[#allocation3 + $0x5f8] sm:$0xff]
    %v5571 = vld [vmem:[#allocation3 + $0x600] sm:$0xff]
    %v5572 = vld [vmem:[#allocation3 + $0x608] sm:$0xff]
    %v5573 = vld [vmem:[#allocation3 + $0x610] sm:$0xff]
    %v5574 = vld [vmem:[#allocation3 + $0x618] sm:$0xff]
    %v5575 = vld [vmem:[#allocation3 + $0x620] sm:$0xff]
    %v5576 = vld [vmem:[#allocation3 + $0x628] sm:$0xff]
    %v5577 = vld [vmem:[#allocation3 + $0x630] sm:$0xff]
    %v5578 = vld [vmem:[#allocation3 + $0x638] sm:$0xff]
    %v5579 = vld [vmem:[#allocation3 + $0x640] sm:$0xff]
    %v5580 = vld [vmem:[#allocation3 + $0x648] sm:$0xff]
    %v5581 = vld [vmem:[#allocation3 + $0x650] sm:$0xff]
    %v5582 = vld [vmem:[#allocation3 + $0x658] sm:$0xff]
    %v5583 = vld [vmem:[#allocation3 + $0x660] sm:$0xff]
    %v5584 = vld [vmem:[#allocation3 + $0x668] sm:$0xff]
    %v5585 = vld [vmem:[#allocation3 + $0x670] sm:$0xff]
    %v5586 = vld [vmem:[#allocation3 + $0x678] sm:$0xff]
    %v5587 = vld [vmem:[#allocation3 + $0x680] sm:$0xff]
    %v5588 = vld [vmem:[#allocation3 + $0x688] sm:$0xff]
    %v5589 = vld [vmem:[#allocation3 + $0x690] sm:$0xff]
    %v5590 = vld [vmem:[#allocation3 + $0x698] sm:$0xff]
    %v5591 = vld [vmem:[#allocation3 + $0x6a0] sm:$0xff]
    %v5592 = vld [vmem:[#allocation3 + $0x6a8] sm:$0xff]
    %v5593 = vld [vmem:[#allocation3 + $0x6b0] sm:$0xff]
    %v5594 = vld [vmem:[#allocation3 + $0x6b8] sm:$0xff]
    %v5595 = vld [vmem:[#allocation3 + $0x6c0] sm:$0xff]
    %v5596 = vld [vmem:[#allocation3 + $0x6c8] sm:$0xff]
    %v5597 = vld [vmem:[#allocation3 + $0x6d0] sm:$0xff]
    %v5598 = vld [vmem:[#allocation3 + $0x6d8] sm:$0xff]
    %v5599 = vld [vmem:[#allocation3 + $0x6e0] sm:$0xff]
    %v5600 = vld [vmem:[#allocation3 + $0x6e8] sm:$0xff]
    %v5601 = vld [vmem:[#allocation3 + $0x6f0] sm:$0xff]
    %v5602 = vld [vmem:[#allocation3 + $0x6f8] sm:$0xff]
    %v5603 = vld [vmem:[#allocation3 + $0x700] sm:$0xff]
    %v5604 = vld [vmem:[#allocation3 + $0x708] sm:$0xff]
    %v5605 = vld [vmem:[#allocation3 + $0x710] sm:$0xff]
    %v5606 = vld [vmem:[#allocation3 + $0x718] sm:$0xff]
    %v5607 = vld [vmem:[#allocation3 + $0x720] sm:$0xff]
    %v5608 = vld [vmem:[#allocation3 + $0x728] sm:$0xff]
    %v5609 = vld [vmem:[#allocation3 + $0x730] sm:$0xff]
    %v5610 = vld [vmem:[#allocation3 + $0x738] sm:$0xff]
    %v5611 = vld [vmem:[#allocation3 + $0x740] sm:$0xff]
    %v5612 = vld [vmem:[#allocation3 + $0x748] sm:$0xff]
    %v5613 = vld [vmem:[#allocation3 + $0x750] sm:$0xff]
    %v5614 = vld [vmem:[#allocation3 + $0x758] sm:$0xff]
    %v5615 = vld [vmem:[#allocation3 + $0x760] sm:$0xff]
    %v5616 = vld [vmem:[#allocation3 + $0x768] sm:$0xff]
    %v5617 = vld [vmem:[#allocation3 + $0x770] sm:$0xff]
    %v5618 = vld [vmem:[#allocation3 + $0x778] sm:$0xff]
    %v5619 = vld [vmem:[#allocation3 + $0x780] sm:$0xff]
    %v5620 = vld [vmem:[#allocation3 + $0x788] sm:$0xff]
    %v5621 = vld [vmem:[#allocation3 + $0x790] sm:$0xff]
    %v5622 = vld [vmem:[#allocation3 + $0x798] sm:$0xff]
    %v5623 = vld [vmem:[#allocation3 + $0x7a0] sm:$0xff]
    %v5624 = vld [vmem:[#allocation3 + $0x7a8] sm:$0xff]
    %v5625 = vld [vmem:[#allocation3 + $0x7b0] sm:$0xff]
    %v5626 = vld [vmem:[#allocation3 + $0x7b8] sm:$0xff]
    %v5627 = vld [vmem:[#allocation3 + $0x7c0] sm:$0xff]
    %v5628 = vld [vmem:[#allocation3 + $0x7c8] sm:$0xff]
    %v5629 = vld [vmem:[#allocation3 + $0x7d0] sm:$0xff]
    %v5630 = vld [vmem:[#allocation3 + $0x7d8] sm:$0xff]
    %v5631 = vld [vmem:[#allocation3 + $0x7e0] sm:$0xff]
    %v5632 = vld [vmem:[#allocation3 + $0x7e8] sm:$0xff]
    %v5633 = vld [vmem:[#allocation3 + $0x7f0] sm:$0xff]
    %v5634 = vld [vmem:[#allocation3 + $0x7f8] sm:$0xff]
    %v5635 = vld [vmem:[#allocation3 + $0x800] sm:$0xff]
    %v5636 = vld [vmem:[#allocation3 + $0x808] sm:$0xff]
    %v5637 = vld [vmem:[#allocation3 + $0x810] sm:$0xff]
    %v5638 = vld [vmem:[#allocation3 + $0x818] sm:$0xff]
    %v5639 = vld [vmem:[#allocation3 + $0x820] sm:$0xff]
    %v5640 = vld [vmem:[#allocation3 + $0x828] sm:$0xff]
    %v5641 = vld [vmem:[#allocation3 + $0x830] sm:$0xff]
    %v5642 = vld [vmem:[#allocation3 + $0x838] sm:$0xff]
    %v5643 = vld [vmem:[#allocation3 + $0x840] sm:$0xff]
    %v5644 = vld [vmem:[#allocation3 + $0x848] sm:$0xff]
    %v5645 = vld [vmem:[#allocation3 + $0x850] sm:$0xff]
    %v5646 = vld [vmem:[#allocation3 + $0x858] sm:$0xff]
    %v5647 = vld [vmem:[#allocation3 + $0x860] sm:$0xff]
    %v5648 = vld [vmem:[#allocation3 + $0x868] sm:$0xff]
    %v5649 = vld [vmem:[#allocation3 + $0x870] sm:$0xff]
    %v5650 = vld [vmem:[#allocation3 + $0x878] sm:$0xff]
    %v5651 = vld [vmem:[#allocation3 + $0x880] sm:$0xff]
    %v5652 = vld [vmem:[#allocation3 + $0x888] sm:$0xff]
    %v5653 = vld [vmem:[#allocation3 + $0x890] sm:$0xff]
    %v5654 = vld [vmem:[#allocation3 + $0x898] sm:$0xff]
    %v5655 = vld [vmem:[#allocation3 + $0x8a0] sm:$0xff]
    %v5656 = vld [vmem:[#allocation3 + $0x8a8] sm:$0xff]
    %v5657 = vld [vmem:[#allocation3 + $0x8b0] sm:$0xff]
    %v5658 = vld [vmem:[#allocation3 + $0x8b8] sm:$0xff]
    %v5659 = vld [vmem:[#allocation3 + $0x8c0] sm:$0xff]
    %v5660 = vld [vmem:[#allocation3 + $0x8c8] sm:$0xff]
    %v5661 = vld [vmem:[#allocation3 + $0x8d0] sm:$0xff]
    %v5662 = vld [vmem:[#allocation3 + $0x8d8] sm:$0xff]
    %v5663 = vld [vmem:[#allocation3 + $0x8e0] sm:$0xff]
    %v5664 = vld [vmem:[#allocation3 + $0x8e8] sm:$0xff]
    %v5665 = vld [vmem:[#allocation3 + $0x8f0] sm:$0xff]
    %v5666 = vld [vmem:[#allocation3 + $0x8f8] sm:$0xff]
    %v5667 = vld [vmem:[#allocation9] sm:$0xf]
    %v5668 = vld [vmem:[#allocation9 + $0x4] sm:$0xf]
    %v5669 = vld [vmem:[#allocation9 + $0x8] sm:$0xf]
    %v5670 = vld [vmem:[#allocation9 + $0xc] sm:$0xf]
    %v5671 = vld [vmem:[#allocation9 + $0x10] sm:$0xf]
    %v5672 = vld [vmem:[#allocation9 + $0x14] sm:$0xf]
    %v5673 = vld [vmem:[#allocation9 + $0x18] sm:$0xf]
    %v5674 = vld [vmem:[#allocation9 + $0x1c] sm:$0xf]
    %v5675 = vld [vmem:[#allocation9 + $0x20] sm:$0xf]
    %v5676 = vld [vmem:[#allocation9 + $0x24] sm:$0xf]
    %v5677 = vld [vmem:[#allocation9 + $0x28] sm:$0xf]
    %v5678 = vld [vmem:[#allocation9 + $0x2c] sm:$0xf]
    %v5679 = vld [vmem:[#allocation9 + $0x30] sm:$0xf]
    %v5680 = vld [vmem:[#allocation9 + $0x34] sm:$0xf]
    %v5681 = vld [vmem:[#allocation9 + $0x38] sm:$0xf]
    %v5682 = vld [vmem:[#allocation9 + $0x3c] sm:$0xf]
    %v5683 = vld [vmem:[#allocation9 + $0x40] sm:$0xf]
    %v5684 = vld [vmem:[#allocation9 + $0x44] sm:$0xf]
    %v5685 = vld [vmem:[#allocation9 + $0x48] sm:$0xf]
    %v5686 = vld [vmem:[#allocation9 + $0x4c] sm:$0xf]
    %v5687 = vld [vmem:[#allocation9 + $0x50] sm:$0xf]
    %v5688 = vld [vmem:[#allocation9 + $0x54] sm:$0xf]
    %v5689 = vld [vmem:[#allocation9 + $0x58] sm:$0xf]
    %v5690 = vld [vmem:[#allocation9 + $0x5c] sm:$0xf]
    %v5691 = vld [vmem:[#allocation9 + $0x60] sm:$0xf]
    %v5692 = vld [vmem:[#allocation9 + $0x64] sm:$0xf]
    %v5693 = vld [vmem:[#allocation9 + $0x68] sm:$0xf]
    %v5694 = vld [vmem:[#allocation9 + $0x6c] sm:$0xf]
    %v5695 = vld [vmem:[#allocation9 + $0x70] sm:$0xf]
    %v5696 = vld [vmem:[#allocation9 + $0x74] sm:$0xf]
    %v5697 = vld [vmem:[#allocation9 + $0x78] sm:$0xf]
    %v5698 = vld [vmem:[#allocation9 + $0x7c] sm:$0xf]
    %v5699 = vld [vmem:[#allocation9 + $0x80] sm:$0xf]
    %v5700 = vld [vmem:[#allocation9 + $0x84] sm:$0xf]
    %v5701 = vld [vmem:[#allocation9 + $0x88] sm:$0xf]
    %v5702 = vld [vmem:[#allocation9 + $0x8c] sm:$0xf]
    %v5703 = vld [vmem:[#allocation9 + $0x90] sm:$0xf]
    %v5704 = vld [vmem:[#allocation9 + $0x94] sm:$0xf]
    %v5705 = vld [vmem:[#allocation9 + $0x98] sm:$0xf]
    %v5706 = vld [vmem:[#allocation9 + $0x9c] sm:$0xf]
    %v5707 = vld [vmem:[#allocation9 + $0xa0] sm:$0xf]
    %v5708 = vld [vmem:[#allocation9 + $0xa4] sm:$0xf]
    %v5709 = vld [vmem:[#allocation9 + $0xa8] sm:$0xf]
    %v5710 = vld [vmem:[#allocation9 + $0xac] sm:$0xf]
    %v5711 = vld [vmem:[#allocation9 + $0xb0] sm:$0xf]
    %v5712 = vld [vmem:[#allocation9 + $0xb4] sm:$0xf]
    %v5713 = vld [vmem:[#allocation9 + $0xb8] sm:$0xf]
    %v5714 = vld [vmem:[#allocation9 + $0xbc] sm:$0xf]
    %v5715 = vld [vmem:[#allocation9 + $0xc0] sm:$0xf]
    %v5716 = vld [vmem:[#allocation9 + $0xc4] sm:$0xf]
    %v5717 = vld [vmem:[#allocation9 + $0xc8] sm:$0xf]
    %v5718 = vld [vmem:[#allocation9 + $0xcc] sm:$0xf]
    %v5719 = vld [vmem:[#allocation9 + $0xd0] sm:$0xf]
    %v5720 = vld [vmem:[#allocation9 + $0xd4] sm:$0xf]
    %v5721 = vld [vmem:[#allocation9 + $0xd8] sm:$0xf]
    %v5722 = vld [vmem:[#allocation9 + $0xdc] sm:$0xf]
    %v5723 = vld [vmem:[#allocation9 + $0xe0] sm:$0xf]
    %v5724 = vld [vmem:[#allocation9 + $0xe4] sm:$0xf]
    %v5725 = vld [vmem:[#allocation9 + $0xe8] sm:$0xf]
    %v5726 = vld [vmem:[#allocation9 + $0xec] sm:$0xf]
    %v5727 = vld [vmem:[#allocation9 + $0xf0] sm:$0xf]
    %v5728 = vld [vmem:[#allocation9 + $0xf4] sm:$0xf]
    %v5729 = vld [vmem:[#allocation9 + $0xf8] sm:$0xf]
    %v5730 = vld [vmem:[#allocation9 + $0xfc] sm:$0xf]
    %v5731 = vld [vmem:[#allocation9 + $0x100] sm:$0xf]
    %v5732 = vld [vmem:[#allocation9 + $0x104] sm:$0xf]
    %v5733 = vld [vmem:[#allocation9 + $0x108] sm:$0xf]
    %v5734 = vld [vmem:[#allocation9 + $0x10c] sm:$0xf]
    %v5735 = vld [vmem:[#allocation9 + $0x110] sm:$0xf]
    %v5736 = vld [vmem:[#allocation9 + $0x114] sm:$0xf]
    %v5737 = vld [vmem:[#allocation9 + $0x118] sm:$0xf]
    %v5738 = vld [vmem:[#allocation9 + $0x11c] sm:$0xf]
    %v5739 = vld [vmem:[#allocation9 + $0x120] sm:$0xf]
    %v5740 = vld [vmem:[#allocation9 + $0x124] sm:$0xf]
    %v5741 = vld [vmem:[#allocation9 + $0x128] sm:$0xf]
    %v5742 = vld [vmem:[#allocation9 + $0x12c] sm:$0xf]
    %v5743 = vld [vmem:[#allocation9 + $0x130] sm:$0xf]
    %v5744 = vld [vmem:[#allocation9 + $0x134] sm:$0xf]
    %v5745 = vld [vmem:[#allocation9 + $0x138] sm:$0xf]
    %v5746 = vld [vmem:[#allocation9 + $0x13c] sm:$0xf]
    %v5747 = vld [vmem:[#allocation9 + $0x140] sm:$0xf]
    %v5748 = vld [vmem:[#allocation9 + $0x144] sm:$0xf]
    %v5749 = vld [vmem:[#allocation9 + $0x148] sm:$0xf]
    %v5750 = vld [vmem:[#allocation9 + $0x14c] sm:$0xf]
    %v5751 = vld [vmem:[#allocation9 + $0x150] sm:$0xf]
    %v5752 = vld [vmem:[#allocation9 + $0x154] sm:$0xf]
    %v5753 = vld [vmem:[#allocation9 + $0x158] sm:$0xf]
    %v5754 = vld [vmem:[#allocation9 + $0x15c] sm:$0xf]
    %v5755 = vld [vmem:[#allocation9 + $0x160] sm:$0xf]
    %v5756 = vld [vmem:[#allocation9 + $0x164] sm:$0xf]
    %v5757 = vld [vmem:[#allocation9 + $0x168] sm:$0xf]
    %v5758 = vld [vmem:[#allocation9 + $0x16c] sm:$0xf]
    %v5759 = vld [vmem:[#allocation9 + $0x170] sm:$0xf]
    %v5760 = vld [vmem:[#allocation9 + $0x174] sm:$0xf]
    %v5761 = vld [vmem:[#allocation9 + $0x178] sm:$0xf]
    %v5762 = vld [vmem:[#allocation9 + $0x17c] sm:$0xf]
    %v5763 = vld [vmem:[#allocation9 + $0x180] sm:$0xf]
    %v5764 = vld [vmem:[#allocation9 + $0x184] sm:$0xf]
    %v5765 = vld [vmem:[#allocation9 + $0x188] sm:$0xf]
    %v5766 = vld [vmem:[#allocation9 + $0x18c] sm:$0xf]
    %v5767 = vld [vmem:[#allocation9 + $0x190] sm:$0xf]
    %v5768 = vld [vmem:[#allocation9 + $0x194] sm:$0xf]
    %v5769 = vld [vmem:[#allocation9 + $0x198] sm:$0xf]
    %v5770 = vld [vmem:[#allocation9 + $0x19c] sm:$0xf]
    %v5771 = vld [vmem:[#allocation9 + $0x1a0] sm:$0xf]
    %v5772 = vld [vmem:[#allocation9 + $0x1a4] sm:$0xf]
    %v5773 = vld [vmem:[#allocation9 + $0x1a8] sm:$0xf]
    %v5774 = vld [vmem:[#allocation9 + $0x1ac] sm:$0xf]
    %v5775 = vld [vmem:[#allocation9 + $0x1b0] sm:$0xf]
    %v5776 = vld [vmem:[#allocation9 + $0x1b4] sm:$0xf]
    %v5777 = vld [vmem:[#allocation9 + $0x1b8] sm:$0xf]
    %v5778 = vld [vmem:[#allocation9 + $0x1bc] sm:$0xf]
    %v5779 = vld [vmem:[#allocation9 + $0x1c0] sm:$0xf]
    %v5780 = vld [vmem:[#allocation9 + $0x1c4] sm:$0xf]
    %v5781 = vld [vmem:[#allocation9 + $0x1c8] sm:$0xf]
    %v5782 = vld [vmem:[#allocation9 + $0x1cc] sm:$0xf]
    %v5783 = vld [vmem:[#allocation9 + $0x1d0] sm:$0xf]
    %v5784 = vld [vmem:[#allocation9 + $0x1d4] sm:$0xf]
    %v5785 = vld [vmem:[#allocation9 + $0x1d8] sm:$0xf]
    %v5786 = vld [vmem:[#allocation9 + $0x1dc] sm:$0xf]
    %v5787 = vld [vmem:[#allocation9 + $0x1e0] sm:$0xf]
    %v5788 = vld [vmem:[#allocation9 + $0x1e4] sm:$0xf]
    %v5789 = vld [vmem:[#allocation9 + $0x1e8] sm:$0xf]
    %v5790 = vld [vmem:[#allocation9 + $0x1ec] sm:$0xf]
    %v5791 = vld [vmem:[#allocation9 + $0x1f0] sm:$0xf]
    %v5792 = vld [vmem:[#allocation9 + $0x1f4] sm:$0xf]
    %v5793 = vld [vmem:[#allocation9 + $0x1f8] sm:$0xf]
    %v5794 = vld [vmem:[#allocation9 + $0x1fc] sm:$0xf]
    %v5795 = vld [vmem:[#allocation9 + $0x200] sm:$0xf]
    %v5796 = vld [vmem:[#allocation9 + $0x204] sm:$0xf]
    %v5797 = vld [vmem:[#allocation9 + $0x208] sm:$0xf]
    %v5798 = vld [vmem:[#allocation9 + $0x20c] sm:$0xf]
    %v5799 = vld [vmem:[#allocation9 + $0x210] sm:$0xf]
    %v5800 = vld [vmem:[#allocation9 + $0x214] sm:$0xf]
    %v5801 = vld [vmem:[#allocation9 + $0x218] sm:$0xf]
    %v5802 = vld [vmem:[#allocation9 + $0x21c] sm:$0xf]
    %v5803 = vld [vmem:[#allocation9 + $0x220] sm:$0xf]
    %v5804 = vld [vmem:[#allocation9 + $0x224] sm:$0xf]
    %v5805 = vld [vmem:[#allocation9 + $0x228] sm:$0xf]
    %v5806 = vld [vmem:[#allocation9 + $0x22c] sm:$0xf]
    %v5807 = vld [vmem:[#allocation9 + $0x230] sm:$0xf]
    %v5808 = vld [vmem:[#allocation9 + $0x234] sm:$0xf]
    %v5809 = vld [vmem:[#allocation9 + $0x238] sm:$0xf]
    %v5810 = vld [vmem:[#allocation9 + $0x23c] sm:$0xf]
    %v5955 = vunpack.c.l.b16 %v5667
    %v5956 = vunpack.c.l.b16 %v5668
    %v5957 = vunpack.c.l.b16 %v5669
    %v5958 = vunpack.c.l.b16 %v5670
    %v5959 = vunpack.c.l.b16 %v5671
    %v5960 = vunpack.c.l.b16 %v5672
    %v5961 = vunpack.c.l.b16 %v5673
    %v5962 = vunpack.c.l.b16 %v5674
    %v5963 = vunpack.c.l.b16 %v5675
    %v5964 = vunpack.c.l.b16 %v5676
    %v5965 = vunpack.c.l.b16 %v5677
    %v5966 = vunpack.c.l.b16 %v5678
    %v5967 = vunpack.c.l.b16 %v5679
    %v5968 = vunpack.c.l.b16 %v5680
    %v5969 = vunpack.c.l.b16 %v5681
    %v5970 = vunpack.c.l.b16 %v5682
    %v5971 = vunpack.c.l.b16 %v5683
    %v5972 = vunpack.c.l.b16 %v5684
    %v5973 = vunpack.c.l.b16 %v5685
    %v5974 = vunpack.c.l.b16 %v5686
    %v5975 = vunpack.c.l.b16 %v5687
    %v5976 = vunpack.c.l.b16 %v5688
    %v5977 = vunpack.c.l.b16 %v5689
    %v5978 = vunpack.c.l.b16 %v5690
    %v5979 = vunpack.c.l.b16 %v5691
    %v5980 = vunpack.c.l.b16 %v5692
    %v5981 = vunpack.c.l.b16 %v5693
    %v5982 = vunpack.c.l.b16 %v5694
    %v5983 = vunpack.c.l.b16 %v5695
    %v5984 = vunpack.c.l.b16 %v5696
    %v5985 = vunpack.c.l.b16 %v5697
    %v5986 = vunpack.c.l.b16 %v5698
    %v5987 = vunpack.c.l.b16 %v5699
    %v5988 = vunpack.c.l.b16 %v5700
    %v5989 = vunpack.c.l.b16 %v5701
    %v5990 = vunpack.c.l.b16 %v5702
    %v5991 = vunpack.c.l.b16 %v5703
    %v5992 = vunpack.c.l.b16 %v5704
    %v5993 = vunpack.c.l.b16 %v5705
    %v5994 = vunpack.c.l.b16 %v5706
    %v5995 = vunpack.c.l.b16 %v5707
    %v5996 = vunpack.c.l.b16 %v5708
    %v5997 = vunpack.c.l.b16 %v5709
    %v5998 = vunpack.c.l.b16 %v5710
    %v5999 = vunpack.c.l.b16 %v5711
    %v6000 = vunpack.c.l.b16 %v5712
    %v6001 = vunpack.c.l.b16 %v5713
    %v6002 = vunpack.c.l.b16 %v5714
    %v6003 = vunpack.c.l.b16 %v5715
    %v6004 = vunpack.c.l.b16 %v5716
    %v6005 = vunpack.c.l.b16 %v5717
    %v6006 = vunpack.c.l.b16 %v5718
    %v6007 = vunpack.c.l.b16 %v5719
    %v6008 = vunpack.c.l.b16 %v5720
    %v6009 = vunpack.c.l.b16 %v5721
    %v6010 = vunpack.c.l.b16 %v5722
    %v6011 = vunpack.c.l.b16 %v5723
    %v6012 = vunpack.c.l.b16 %v5724
    %v6013 = vunpack.c.l.b16 %v5725
    %v6014 = vunpack.c.l.b16 %v5726
    %v6015 = vunpack.c.l.b16 %v5727
    %v6016 = vunpack.c.l.b16 %v5728
    %v6017 = vunpack.c.l.b16 %v5729
    %v6018 = vunpack.c.l.b16 %v5730
    %v6019 = vunpack.c.l.b16 %v5731
    %v6020 = vunpack.c.l.b16 %v5732
    %v6021 = vunpack.c.l.b16 %v5733
    %v6022 = vunpack.c.l.b16 %v5734
    %v6023 = vunpack.c.l.b16 %v5735
    %v6024 = vunpack.c.l.b16 %v5736
    %v6025 = vunpack.c.l.b16 %v5737
    %v6026 = vunpack.c.l.b16 %v5738
    %v6027 = vunpack.c.l.b16 %v5739
    %v6028 = vunpack.c.l.b16 %v5740
    %v6029 = vunpack.c.l.b16 %v5741
    %v6030 = vunpack.c.l.b16 %v5742
    %v6031 = vunpack.c.l.b16 %v5743
    %v6032 = vunpack.c.l.b16 %v5744
    %v6033 = vunpack.c.l.b16 %v5745
    %v6034 = vunpack.c.l.b16 %v5746
    %v6035 = vunpack.c.l.b16 %v5747
    %v6036 = vunpack.c.l.b16 %v5748
    %v6037 = vunpack.c.l.b16 %v5749
    %v6038 = vunpack.c.l.b16 %v5750
    %v6039 = vunpack.c.l.b16 %v5751
    %v6040 = vunpack.c.l.b16 %v5752
    %v6041 = vunpack.c.l.b16 %v5753
    %v6042 = vunpack.c.l.b16 %v5754
    %v6043 = vunpack.c.l.b16 %v5755
    %v6044 = vunpack.c.l.b16 %v5756
    %v6045 = vunpack.c.l.b16 %v5757
    %v6046 = vunpack.c.l.b16 %v5758
    %v6047 = vunpack.c.l.b16 %v5759
    %v6048 = vunpack.c.l.b16 %v5760
    %v6049 = vunpack.c.l.b16 %v5761
    %v6050 = vunpack.c.l.b16 %v5762
    %v6051 = vunpack.c.l.b16 %v5763
    %v6052 = vunpack.c.l.b16 %v5764
    %v6053 = vunpack.c.l.b16 %v5765
    %v6054 = vunpack.c.l.b16 %v5766
    %v6055 = vunpack.c.l.b16 %v5767
    %v6056 = vunpack.c.l.b16 %v5768
    %v6057 = vunpack.c.l.b16 %v5769
    %v6058 = vunpack.c.l.b16 %v5770
    %v6059 = vunpack.c.l.b16 %v5771
    %v6060 = vunpack.c.l.b16 %v5772
    %v6061 = vunpack.c.l.b16 %v5773
    %v6062 = vunpack.c.l.b16 %v5774
    %v6063 = vunpack.c.l.b16 %v5775
    %v6064 = vunpack.c.l.b16 %v5776
    %v6065 = vunpack.c.l.b16 %v5777
    %v6066 = vunpack.c.l.b16 %v5778
    %v6067 = vunpack.c.l.b16 %v5779
    %v6068 = vunpack.c.l.b16 %v5780
    %v6069 = vunpack.c.l.b16 %v5781
    %v6070 = vunpack.c.l.b16 %v5782
    %v6071 = vunpack.c.l.b16 %v5783
    %v6072 = vunpack.c.l.b16 %v5784
    %v6073 = vunpack.c.l.b16 %v5785
    %v6074 = vunpack.c.l.b16 %v5786
    %v6075 = vunpack.c.l.b16 %v5787
    %v6076 = vunpack.c.l.b16 %v5788
    %v6077 = vunpack.c.l.b16 %v5789
    %v6078 = vunpack.c.l.b16 %v5790
    %v6079 = vunpack.c.l.b16 %v5791
    %v6080 = vunpack.c.l.b16 %v5792
    %v6081 = vunpack.c.l.b16 %v5793
    %v6082 = vunpack.c.l.b16 %v5794
    %v6083 = vunpack.c.l.b16 %v5795
    %v6084 = vunpack.c.l.b16 %v5796
    %v6085 = vunpack.c.l.b16 %v5797
    %v6086 = vunpack.c.l.b16 %v5798
    %v6087 = vunpack.c.l.b16 %v5799
    %v6088 = vunpack.c.l.b16 %v5800
    %v6089 = vunpack.c.l.b16 %v5801
    %v6090 = vunpack.c.l.b16 %v5802
    %v6091 = vunpack.c.l.b16 %v5803
    %v6092 = vunpack.c.l.b16 %v5804
    %v6093 = vunpack.c.l.b16 %v5805
    %v6094 = vunpack.c.l.b16 %v5806
    %v6095 = vunpack.c.l.b16 %v5807
    %v6096 = vunpack.c.l.b16 %v5808
    %v6097 = vunpack.c.l.b16 %v5809
    %v6098 = vunpack.c.l.b16 %v5810
    %v6099 = vpack.c.b16 %v5956, %v5955
    %v6100 = vpack.c.b16 %v5958, %v5957
    %v6101 = vpack.c.b16 %v5960, %v5959
    %v6102 = vpack.c.b16 %v5962, %v5961
    %v6103 = vpack.c.b16 %v5964, %v5963
    %v6104 = vpack.c.b16 %v5966, %v5965
    %v6105 = vpack.c.b16 %v5968, %v5967
    %v6106 = vpack.c.b16 %v5970, %v5969
    %v6107 = vpack.c.b16 %v5972, %v5971
    %v6108 = vpack.c.b16 %v5974, %v5973
    %v6109 = vpack.c.b16 %v5976, %v5975
    %v6110 = vpack.c.b16 %v5978, %v5977
    %v6111 = vpack.c.b16 %v5980, %v5979
    %v6112 = vpack.c.b16 %v5982, %v5981
    %v6113 = vpack.c.b16 %v5984, %v5983
    %v6114 = vpack.c.b16 %v5986, %v5985
    %v6115 = vpack.c.b16 %v5988, %v5987
    %v6116 = vpack.c.b16 %v5990, %v5989
    %v6117 = vpack.c.b16 %v5992, %v5991
    %v6118 = vpack.c.b16 %v5994, %v5993
    %v6119 = vpack.c.b16 %v5996, %v5995
    %v6120 = vpack.c.b16 %v5998, %v5997
    %v6121 = vpack.c.b16 %v6000, %v5999
    %v6122 = vpack.c.b16 %v6002, %v6001
    %v6123 = vpack.c.b16 %v6004, %v6003
    %v6124 = vpack.c.b16 %v6006, %v6005
    %v6125 = vpack.c.b16 %v6008, %v6007
    %v6126 = vpack.c.b16 %v6010, %v6009
    %v6127 = vpack.c.b16 %v6012, %v6011
    %v6128 = vpack.c.b16 %v6014, %v6013
    %v6129 = vpack.c.b16 %v6016, %v6015
    %v6130 = vpack.c.b16 %v6018, %v6017
    %v6131 = vpack.c.b16 %v6020, %v6019
    %v6132 = vpack.c.b16 %v6022, %v6021
    %v6133 = vpack.c.b16 %v6024, %v6023
    %v6134 = vpack.c.b16 %v6026, %v6025
    %v6135 = vpack.c.b16 %v6028, %v6027
    %v6136 = vpack.c.b16 %v6030, %v6029
    %v6137 = vpack.c.b16 %v6032, %v6031
    %v6138 = vpack.c.b16 %v6034, %v6033
    %v6139 = vpack.c.b16 %v6036, %v6035
    %v6140 = vpack.c.b16 %v6038, %v6037
    %v6141 = vpack.c.b16 %v6040, %v6039
    %v6142 = vpack.c.b16 %v6042, %v6041
    %v6143 = vpack.c.b16 %v6044, %v6043
    %v6144 = vpack.c.b16 %v6046, %v6045
    %v6145 = vpack.c.b16 %v6048, %v6047
    %v6146 = vpack.c.b16 %v6050, %v6049
    %v6147 = vpack.c.b16 %v6052, %v6051
    %v6148 = vpack.c.b16 %v6054, %v6053
    %v6149 = vpack.c.b16 %v6056, %v6055
    %v6150 = vpack.c.b16 %v6058, %v6057
    %v6151 = vpack.c.b16 %v6060, %v6059
    %v6152 = vpack.c.b16 %v6062, %v6061
    %v6153 = vpack.c.b16 %v6064, %v6063
    %v6154 = vpack.c.b16 %v6066, %v6065
    %v6155 = vpack.c.b16 %v6068, %v6067
    %v6156 = vpack.c.b16 %v6070, %v6069
    %v6157 = vpack.c.b16 %v6072, %v6071
    %v6158 = vpack.c.b16 %v6074, %v6073
    %v6159 = vpack.c.b16 %v6076, %v6075
    %v6160 = vpack.c.b16 %v6078, %v6077
    %v6161 = vpack.c.b16 %v6080, %v6079
    %v6162 = vpack.c.b16 %v6082, %v6081
    %v6163 = vpack.c.b16 %v6084, %v6083
    %v6164 = vpack.c.b16 %v6086, %v6085
    %v6165 = vpack.c.b16 %v6088, %v6087
    %v6166 = vpack.c.b16 %v6090, %v6089
    %v6167 = vpack.c.b16 %v6092, %v6091
    %v6168 = vpack.c.b16 %v6094, %v6093
    %v6169 = vpack.c.b16 %v6096, %v6095
    %v6170 = vpack.c.b16 %v6098, %v6097
    %6243 = vmatprep.subr.bf16.mxu0 0
    %6244 = vmatpush1.bf16.msra.mxu0 %v6099
    %6245 = vmatprep.subr.bf16.mxu0 0
    %6246 = vmatpush1.bf16.msra.mxu0 %v6100
    %6247 = vmatprep.subr.bf16.mxu0 0
    %6248 = vmatpush1.bf16.msra.mxu0 %v6101
    %6249 = vmatprep.subr.bf16.mxu0 0
    %6250 = vmatpush1.bf16.msra.mxu0 %v6102
    %6251 = vmatprep.subr.bf16.mxu0 0
    %6252 = vmatpush1.bf16.msra.mxu0 %v6103
    %6253 = vmatprep.subr.bf16.mxu0 0
    %6254 = vmatpush1.bf16.msra.mxu0 %v6104
    %6255 = vmatprep.subr.bf16.mxu0 0
    %6256 = vmatpush1.bf16.msra.mxu0 %v6105
    %6257 = vmatprep.subr.bf16.mxu0 0
    %6258 = vmatpush1.bf16.msra.mxu0 %v6106
    %6259 = vmatprep.subr.bf16.mxu0 0
    %6260 = vmatpush1.bf16.msra.mxu0 %v6107
    %6261 = vmatprep.subr.bf16.mxu0 0
    %6262 = vmatpush1.bf16.msra.mxu0 %v6108
    %6263 = vmatprep.subr.bf16.mxu0 0
    %6264 = vmatpush1.bf16.msra.mxu0 %v6109
    %6265 = vmatprep.subr.bf16.mxu0 0
    %6266 = vmatpush1.bf16.msra.mxu0 %v6110
    %6267 = vmatprep.subr.bf16.mxu0 0
    %6268 = vmatpush1.bf16.msra.mxu0 %v6111
    %6269 = vmatprep.subr.bf16.mxu0 0
    %6270 = vmatpush1.bf16.msra.mxu0 %v6112
    %6271 = vmatprep.subr.bf16.mxu0 0
    %6272 = vmatpush1.bf16.msra.mxu0 %v6113
    %6273 = vmatprep.subr.bf16.mxu0 0
    %6274 = vmatpush1.bf16.msra.mxu0 %v6114
    %6275 = vmatprep.mubr.bf16.mxu0 %v5380
    %6276 = vmatmul.mubr.bf16.gmra.mrb[0].mxu0 %v5379
    %v6277 = vpop.f32.mrb[0].mxu0
    %v6278 = vadd.f32 0.0, %v6277
    %v6279 = vpop.f32.mrb[0].mxu0
    %v6280 = vpop.f32.mrb[0].mxu0
    %v6281 = vadd.f32 0.0, %v6280
    %v6282 = vpop.f32.mrb[0].mxu0
    %6283 = vmatprep.mubr.bf16.mxu0 %v5389
    %6284 = vmatmul.mubr.bf16.gmra.mrb[0].mxu0 %v5388
    %v6285 = vpop.f32.mrb[0].mxu0
    %v6286 = vadd.f32 0.0, %v6285
    %v6287 = vpop.f32.mrb[0].mxu0
    %v6288 = vpop.f32.mrb[0].mxu0
    %v6289 = vadd.f32 0.0, %v6288
    %v6290 = vpop.f32.mrb[0].mxu0
    %6291 = vmatprep.mubr.bf16.mxu0 %v5398
    %6292 = vmatmul.mubr.bf16.gmra.mrb[0].mxu0 %v5397
    %v6293 = vpop.f32.mrb[0].mxu0
    %v6294 = vadd.f32 0.0, %v6293
    %v6295 = vpop.f32.mrb[0].mxu0
    %v6296 = vpop.f32.mrb[0].mxu0
    %v6297 = vadd.f32 0.0, %v6296
    %v6298 = vpop.f32.mrb[0].mxu0
    %6299 = vmatprep.mubr.bf16.mxu0 %v5407
    %6300 = vmatmul.mubr.bf16.gmra.mrb[0].mxu0 %v5406
    %v6301 = vpop.f32.mrb[0].mxu0
    %v6302 = vadd.f32 0.0, %v6301
    %v6303 = vpop.f32.mrb[0].mxu0
    %v6304 = vpop.f32.mrb[0].mxu0
    %v6305 = vadd.f32 0.0, %v6304
    %v6306 = vpop.f32.mrb[0].mxu0
    %6307 = vmatprep.mubr.bf16.mxu0 %v5416
    %6308 = vmatmul.mubr.bf16.gmra.mrb[0].mxu0 %v5415
    %v6309 = vpop.f32.mrb[0].mxu0
    %v6310 = vadd.f32 0.0, %v6309
    %v6311 = vpop.f32.mrb[0].mxu0
    %v6312 = vpop.f32.mrb[0].mxu0
    %v6313 = vadd.f32 0.0, %v6312
    %v6314 = vpop.f32.mrb[0].mxu0
    %6315 = vmatprep.mubr.bf16.mxu0 %v5425
    %6316 = vmatmul.mubr.bf16.gmra.mrb[0].mxu0 %v5424
    %v6317 = vpop.f32.mrb[0].mxu0
    %v6318 = vadd.f32 0.0, %v6317
    %v6319 = vpop.f32.mrb[0].mxu0
    %v6320 = vpop.f32.mrb[0].mxu0
    %v6321 = vadd.f32 0.0, %v6320
    %v6322 = vpop.f32.mrb[0].mxu0
    %6323 = vmatprep.mubr.bf16.mxu0 %v5434
    %6324 = vmatmul.mubr.bf16.gmra.mrb[0].mxu0 %v5433
    %v6325 = vpop.f32.mrb[0].mxu0
    %v6326 = vadd.f32 0.0, %v6325
    %v6327 = vpop.f32.mrb[0].mxu0
    %v6328 = vpop.f32.mrb[0].mxu0
    %v6329 = vadd.f32 0.0, %v6328
    %v6330 = vpop.f32.mrb[0].mxu0
    %6331 = vmatprep.mubr.bf16.mxu0 %v5443
    %6332 = vmatmul.mubr.bf16.gmra.mrb[0].mxu0 %v5442
    %v6333 = vpop.f32.mrb[0].mxu0
    %v6334 = vadd.f32 0.0, %v6333
    %v6335 = vpop.f32.mrb[0].mxu0
    %v6336 = vpop.f32.mrb[0].mxu0
    %v6337 = vadd.f32 0.0, %v6336
    %v6338 = vpop.f32.mrb[0].mxu0
    %6339 = vmatprep.mubr.bf16.mxu0 %v5452
    %6340 = vmatmul.mubr.bf16.gmra.mrb[0].mxu0 %v5451
    %v6341 = vpop.f32.mrb[0].mxu0
    %v6342 = vadd.f32 0.0, %v6341
    %v6343 = vpop.f32.mrb[0].mxu0
    %v6344 = vpop.f32.mrb[0].mxu0
    %v6345 = vadd.f32 0.0, %v6344
    %v6346 = vpop.f32.mrb[0].mxu0
    %6347 = vmatprep.mubr.bf16.mxu0 %v5461
    %6348 = vmatmul.mubr.bf16.gmra.mrb[0].mxu0 %v5460
    %v6349 = vpop.f32.mrb[0].mxu0
    %v6350 = vadd.f32 0.0, %v6349
    %v6351 = vpop.f32.mrb[0].mxu0
    %v6352 = vpop.f32.mrb[0].mxu0
    %v6353 = vadd.f32 0.0, %v6352
    %v6354 = vpop.f32.mrb[0].mxu0
    %6355 = vmatprep.mubr.bf16.mxu0 %v5470
    %6356 = vmatmul.mubr.bf16.gmra.mrb[0].mxu0 %v5469
    %v6357 = vpop.f32.mrb[0].mxu0
    %v6358 = vadd.f32 0.0, %v6357
    %v6359 = vpop.f32.mrb[0].mxu0
    %v6360 = vpop.f32.mrb[0].mxu0
    %v6361 = vadd.f32 0.0, %v6360
    %v6362 = vpop.f32.mrb[0].mxu0
    %6363 = vmatprep.mubr.bf16.mxu0 %v5479
    %6364 = vmatmul.mubr.bf16.gmra.mrb[0].mxu0 %v5478
    %v6365 = vpop.f32.mrb[0].mxu0
    %v6366 = vadd.f32 0.0, %v6365
    %v6367 = vpop.f32.mrb[0].mxu0
    %v6368 = vpop.f32.mrb[0].mxu0
    %v6369 = vadd.f32 0.0, %v6368
    %v6370 = vpop.f32.mrb[0].mxu0
    %6371 = vmatprep.mubr.bf16.mxu0 %v5488
    %6372 = vmatmul.mubr.bf16.gmra.mrb[0].mxu0 %v5487
    %v6373 = vpop.f32.mrb[0].mxu0
    %v6374 = vadd.f32 0.0, %v6373
    %v6375 = vpop.f32.mrb[0].mxu0
    %v6376 = vpop.f32.mrb[0].mxu0
    %v6377 = vadd.f32 0.0, %v6376
    %v6378 = vpop.f32.mrb[0].mxu0
    %6379 = vmatprep.mubr.bf16.mxu0 %v5497
    %6380 = vmatmul.mubr.bf16.gmra.mrb[0].mxu0 %v5496
    %v6381 = vpop.f32.mrb[0].mxu0
    %v6382 = vadd.f32 0.0, %v6381
    %v6383 = vpop.f32.mrb[0].mxu0
    %v6384 = vpop.f32.mrb[0].mxu0
    %v6385 = vadd.f32 0.0, %v6384
    %v6386 = vpop.f32.mrb[0].mxu0
    %6387 = vmatprep.mubr.bf16.mxu0 %v5506
    %6388 = vmatmul.mubr.bf16.gmra.mrb[0].mxu0 %v5505
    %v6389 = vpop.f32.mrb[0].mxu0
    %v6390 = vadd.f32 0.0, %v6389
    %v6391 = vpop.f32.mrb[0].mxu0
    %v6392 = vpop.f32.mrb[0].mxu0
    %v6393 = vadd.f32 0.0, %v6392
    %v6394 = vpop.f32.mrb[0].mxu0
    %6395 = vmatprep.mubr.bf16.mxu0 %v5515
    %6396 = vmatmul.mubr.bf16.gmra.mrb[0].mxu0 %v5514
    %v6397 = vpop.f32.mrb[0].mxu0
    %v6398 = vadd.f32 0.0, %v6397
    %v6399 = vpop.f32.mrb[0].mxu0
    %v6400 = vpop.f32.mrb[0].mxu0
    %v6401 = vadd.f32 0.0, %v6400
    %v6402 = vpop.f32.mrb[0].mxu0
    %6403 = vmatprep.mubr.bf16.mxu0 %v5524
    %6404 = vmatmul.mubr.bf16.gmra.mrb[0].mxu0 %v5523
    %v6405 = vpop.f32.mrb[0].mxu0
    %v6406 = vadd.f32 0.0, %v6405
    %v6407 = vpop.f32.mrb[0].mxu0
    %v6408 = vpop.f32.mrb[0].mxu0
    %v6409 = vadd.f32 0.0, %v6408
    %v6410 = vpop.f32.mrb[0].mxu0
    %6411 = vmatprep.mubr.bf16.mxu0 %v5533
    %6412 = vmatmul.mubr.bf16.gmra.mrb[0].mxu0 %v5532
    %v6413 = vpop.f32.mrb[0].mxu0
    %v6414 = vadd.f32 0.0, %v6413
    %v6415 = vpop.f32.mrb[0].mxu0
    %v6416 = vpop.f32.mrb[0].mxu0
    %v6417 = vadd.f32 0.0, %v6416
    %v6418 = vpop.f32.mrb[0].mxu0
    %6419 = vmatprep.mubr.bf16.mxu0 %v5542
    %6420 = vmatmul.mubr.bf16.gmra.mrb[0].mxu0 %v5541
    %v6421 = vpop.f32.mrb[0].mxu0
    %v6422 = vadd.f32 0.0, %v6421
    %v6423 = vpop.f32.mrb[0].mxu0
    %v6424 = vpop.f32.mrb[0].mxu0
    %v6425 = vadd.f32 0.0, %v6424
    %v6426 = vpop.f32.mrb[0].mxu0
    %6427 = vmatprep.mubr.bf16.mxu0 %v5551
    %6428 = vmatmul.mubr.bf16.gmra.mrb[0].mxu0 %v5550
    %v6429 = vpop.f32.mrb[0].mxu0
    %v6430 = vadd.f32 0.0, %v6429
    %v6431 = vpop.f32.mrb[0].mxu0
    %v6432 = vpop.f32.mrb[0].mxu0
    %v6433 = vadd.f32 0.0, %v6432
    %v6434 = vpop.f32.mrb[0].mxu0
    %6435 = vmatprep.mubr.bf16.mxu0 %v5560
    %6436 = vmatmul.mubr.bf16.gmra.mrb[0].mxu0 %v5559
    %v6437 = vpop.f32.mrb[0].mxu0
    %v6438 = vadd.f32 0.0, %v6437
    %v6439 = vpop.f32.mrb[0].mxu0
    %v6440 = vpop.f32.mrb[0].mxu0
    %v6441 = vadd.f32 0.0, %v6440
    %v6442 = vpop.f32.mrb[0].mxu0
    %6443 = vmatprep.mubr.bf16.mxu0 %v5569
    %6444 = vmatmul.mubr.bf16.gmra.mrb[0].mxu0 %v5568
    %v6445 = vpop.f32.mrb[0].mxu0
    %v6446 = vadd.f32 0.0, %v6445
    %v6447 = vpop.f32.mrb[0].mxu0
    %v6448 = vpop.f32.mrb[0].mxu0
    %v6449 = vadd.f32 0.0, %v6448
    %v6450 = vpop.f32.mrb[0].mxu0
    %6451 = vmatprep.mubr.bf16.mxu0 %v5578
    %6452 = vmatmul.mubr.bf16.gmra.mrb[0].mxu0 %v5577
    %v6453 = vpop.f32.mrb[0].mxu0
    %v6454 = vadd.f32 0.0, %v6453
    %v6455 = vpop.f32.mrb[0].mxu0
    %v6456 = vpop.f32.mrb[0].mxu0
    %v6457 = vadd.f32 0.0, %v6456
    %v6458 = vpop.f32.mrb[0].mxu0
    %6459 = vmatprep.mubr.bf16.mxu0 %v5587
    %6460 = vmatmul.mubr.bf16.gmra.mrb[0].mxu0 %v5586
    %v6461 = vpop.f32.mrb[0].mxu0
    %v6462 = vadd.f32 0.0, %v6461
    %v6463 = vpop.f32.mrb[0].mxu0
    %v6464 = vpop.f32.mrb[0].mxu0
    %v6465 = vadd.f32 0.0, %v6464
    %v6466 = vpop.f32.mrb[0].mxu0
    %6467 = vmatprep.mubr.bf16.mxu0 %v5596
    %6468 = vmatmul.mubr.bf16.gmra.mrb[0].mxu0 %v5595
    %v6469 = vpop.f32.mrb[0].mxu0
    %v6470 = vadd.f32 0.0, %v6469
    %v6471 = vpop.f32.mrb[0].mxu0
    %v6472 = vpop.f32.mrb[0].mxu0
    %v6473 = vadd.f32 0.0, %v6472
    %v6474 = vpop.f32.mrb[0].mxu0
    %6475 = vmatprep.mubr.bf16.mxu0 %v5605
    %6476 = vmatmul.mubr.bf16.gmra.mrb[0].mxu0 %v5604
    %v6477 = vpop.f32.mrb[0].mxu0
    %v6478 = vadd.f32 0.0, %v6477
    %v6479 = vpop.f32.mrb[0].mxu0
    %v6480 = vpop.f32.mrb[0].mxu0
    %v6481 = vadd.f32 0.0, %v6480
    %v6482 = vpop.f32.mrb[0].mxu0
    %6483 = vmatprep.mubr.bf16.mxu0 %v5614
    %6484 = vmatmul.mubr.bf16.gmra.mrb[0].mxu0 %v5613
    %v6485 = vpop.f32.mrb[0].mxu0
    %v6486 = vadd.f32 0.0, %v6485
    %v6487 = vpop.f32.mrb[0].mxu0
    %v6488 = vpop.f32.mrb[0].mxu0
    %v6489 = vadd.f32 0.0, %v6488
    %v6490 = vpop.f32.mrb[0].mxu0
    %6491 = vmatprep.mubr.bf16.mxu0 %v5623
    %6492 = vmatmul.mubr.bf16.gmra.mrb[0].mxu0 %v5622
    %v6493 = vpop.f32.mrb[0].mxu0
    %v6494 = vadd.f32 0.0, %v6493
    %v6495 = vpop.f32.mrb[0].mxu0
    %v6496 = vpop.f32.mrb[0].mxu0
    %v6497 = vadd.f32 0.0, %v6496
    %v6498 = vpop.f32.mrb[0].mxu0
    %6499 = vmatprep.mubr.bf16.mxu0 %v5632
    %6500 = vmatmul.mubr.bf16.gmra.mrb[0].mxu0 %v5631
    %v6501 = vpop.f32.mrb[0].mxu0
    %v6502 = vadd.f32 0.0, %v6501
    %v6503 = vpop.f32.mrb[0].mxu0
    %v6504 = vpop.f32.mrb[0].mxu0
    %v6505 = vadd.f32 0.0, %v6504
    %v6506 = vpop.f32.mrb[0].mxu0
    %6507 = vmatprep.mubr.bf16.mxu0 %v5641
    %6508 = vmatmul.mubr.bf16.gmra.mrb[0].mxu0 %v5640
    %v6509 = vpop.f32.mrb[0].mxu0
    %v6510 = vadd.f32 0.0, %v6509
    %v6511 = vpop.f32.mrb[0].mxu0
    %v6512 = vpop.f32.mrb[0].mxu0
    %v6513 = vadd.f32 0.0, %v6512
    %v6514 = vpop.f32.mrb[0].mxu0
    %6515 = vmatprep.mubr.bf16.mxu0 %v5650
    %6516 = vmatmul.mubr.bf16.gmra.mrb[0].mxu0 %v5649
    %v6517 = vpop.f32.mrb[0].mxu0
    %v6518 = vadd.f32 0.0, %v6517
    %v6519 = vpop.f32.mrb[0].mxu0
    %v6520 = vpop.f32.mrb[0].mxu0
    %v6521 = vadd.f32 0.0, %v6520
    %v6522 = vpop.f32.mrb[0].mxu0
    %6523 = vmatprep.mubr.bf16.mxu0 %v5659
    %6524 = vmatmul.mubr.bf16.gmra.mrb[0].mxu0 %v5658
    %v6525 = vpop.f32.mrb[0].mxu0
    %v6526 = vadd.f32 0.0, %v6525
    %v6527 = vpop.f32.mrb[0].mxu0
    %v6528 = vpop.f32.mrb[0].mxu0
    %v6529 = vadd.f32 0.0, %v6528
    %v6530 = vpop.f32.mrb[0].mxu0
    %6531 = vdwg.mxu0
    %6532 = vmatprep.subr.bf16.mxu0 0
    %6533 = vmatpush1.bf16.msra.mxu0 %v6115
    %6534 = vmatprep.subr.bf16.mxu0 0
    %6535 = vmatpush1.bf16.msra.mxu0 %v6116
    %6536 = vmatprep.subr.bf16.mxu0 0
    %6537 = vmatpush1.bf16.msra.mxu0 %v6117
    %6538 = vmatprep.subr.bf16.mxu0 0
    %6539 = vmatpush1.bf16.msra.mxu0 %v6118
    %6540 = vmatprep.subr.bf16.mxu0 0
    %6541 = vmatpush1.bf16.msra.mxu0 %v6119
    %6542 = vmatprep.subr.bf16.mxu0 0
    %6543 = vmatpush1.bf16.msra.mxu0 %v6120
    %6544 = vmatprep.subr.bf16.mxu0 0
    %6545 = vmatpush1.bf16.msra.mxu0 %v6121
    %6546 = vmatprep.subr.bf16.mxu0 0
    %6547 = vmatpush1.bf16.msra.mxu0 %v6122
    %6548 = vmatprep.subr.bf16.mxu0 0
    %6549 = vmatpush1.bf16.msra.mxu0 %v6123
    %6550 = vmatprep.subr.bf16.mxu0 0
    %6551 = vmatpush1.bf16.msra.mxu0 %v6124
    %6552 = vmatprep.subr.bf16.mxu0 0
    %6553 = vmatpush1.bf16.msra.mxu0 %v6125
    %6554 = vmatprep.subr.bf16.mxu0 0
    %6555 = vmatpush1.bf16.msra.mxu0 %v6126
    %6556 = vmatprep.subr.bf16.mxu0 0
    %6557 = vmatpush1.bf16.msra.mxu0 %v6127
    %6558 = vmatprep.subr.bf16.mxu0 0
    %6559 = vmatpush1.bf16.msra.mxu0 %v6128
    %6560 = vmatprep.subr.bf16.mxu0 0
    %6561 = vmatpush1.bf16.msra.mxu0 %v6129
    %6562 = vmatprep.subr.bf16.mxu0 0
    %6563 = vmatpush1.bf16.msra.mxu0 %v6130
    %6564 = vmatprep.mubr.bf16.mxu0 %v5382
    %6565 = vmatmul.mubr.bf16.gmra.mrb[0].mxu0 %v5381
    %v6566 = vpop.f32.mrb[0].mxu0
    %v6567 = vadd.f32 %v6278, %v6566
    %v6568 = vpop.f32.mrb[0].mxu0
    %v6569 = vpop.f32.mrb[0].mxu0
    %v6570 = vadd.f32 %v6281, %v6569
    %v6571 = vpop.f32.mrb[0].mxu0
    %6572 = vmatprep.mubr.bf16.mxu0 %v5391
    %6573 = vmatmul.mubr.bf16.gmra.mrb[0].mxu0 %v5390
    %v6574 = vpop.f32.mrb[0].mxu0
    %v6575 = vadd.f32 %v6286, %v6574
    %v6576 = vpop.f32.mrb[0].mxu0
    %v6577 = vpop.f32.mrb[0].mxu0
    %v6578 = vadd.f32 %v6289, %v6577
    %v6579 = vpop.f32.mrb[0].mxu0
    %6580 = vmatprep.mubr.bf16.mxu0 %v5400
    %6581 = vmatmul.mubr.bf16.gmra.mrb[0].mxu0 %v5399
    %v6582 = vpop.f32.mrb[0].mxu0
    %v6583 = vadd.f32 %v6294, %v6582
    %v6584 = vpop.f32.mrb[0].mxu0
    %v6585 = vpop.f32.mrb[0].mxu0
    %v6586 = vadd.f32 %v6297, %v6585
    %v6587 = vpop.f32.mrb[0].mxu0
    %6588 = vmatprep.mubr.bf16.mxu0 %v5409
    %6589 = vmatmul.mubr.bf16.gmra.mrb[0].mxu0 %v5408
    %v6590 = vpop.f32.mrb[0].mxu0
    %v6591 = vadd.f32 %v6302, %v6590
    %v6592 = vpop.f32.mrb[0].mxu0
    %v6593 = vpop.f32.mrb[0].mxu0
    %v6594 = vadd.f32 %v6305, %v6593
    %v6595 = vpop.f32.mrb[0].mxu0
    %6596 = vmatprep.mubr.bf16.mxu0 %v5418
    %6597 = vmatmul.mubr.bf16.gmra.mrb[0].mxu0 %v5417
    %v6598 = vpop.f32.mrb[0].mxu0
    %v6599 = vadd.f32 %v6310, %v6598
    %v6600 = vpop.f32.mrb[0].mxu0
    %v6601 = vpop.f32.mrb[0].mxu0
    %v6602 = vadd.f32 %v6313, %v6601
    %v6603 = vpop.f32.mrb[0].mxu0
    %6604 = vmatprep.mubr.bf16.mxu0 %v5427
    %6605 = vmatmul.mubr.bf16.gmra.mrb[0].mxu0 %v5426
    %v6606 = vpop.f32.mrb[0].mxu0
    %v6607 = vadd.f32 %v6318, %v6606
    %v6608 = vpop.f32.mrb[0].mxu0
    %v6609 = vpop.f32.mrb[0].mxu0
    %v6610 = vadd.f32 %v6321, %v6609
    %v6611 = vpop.f32.mrb[0].mxu0
    %6612 = vmatprep.mubr.bf16.mxu0 %v5436
    %6613 = vmatmul.mubr.bf16.gmra.mrb[0].mxu0 %v5435
    %v6614 = vpop.f32.mrb[0].mxu0
    %v6615 = vadd.f32 %v6326, %v6614
    %v6616 = vpop.f32.mrb[0].mxu0
    %v6617 = vpop.f32.mrb[0].mxu0
    %v6618 = vadd.f32 %v6329, %v6617
    %v6619 = vpop.f32.mrb[0].mxu0
    %6620 = vmatprep.mubr.bf16.mxu0 %v5445
    %6621 = vmatmul.mubr.bf16.gmra.mrb[0].mxu0 %v5444
    %v6622 = vpop.f32.mrb[0].mxu0
    %v6623 = vadd.f32 %v6334, %v6622
    %v6624 = vpop.f32.mrb[0].mxu0
    %v6625 = vpop.f32.mrb[0].mxu0
    %v6626 = vadd.f32 %v6337, %v6625
    %v6627 = vpop.f32.mrb[0].mxu0
    %6628 = vmatprep.mubr.bf16.mxu0 %v5454
    %6629 = vmatmul.mubr.bf16.gmra.mrb[0].mxu0 %v5453
    %v6630 = vpop.f32.mrb[0].mxu0
    %v6631 = vadd.f32 %v6342, %v6630
    %v6632 = vpop.f32.mrb[0].mxu0
    %v6633 = vpop.f32.mrb[0].mxu0
    %v6634 = vadd.f32 %v6345, %v6633
    %v6635 = vpop.f32.mrb[0].mxu0
    %6636 = vmatprep.mubr.bf16.mxu0 %v5463
    %6637 = vmatmul.mubr.bf16.gmra.mrb[0].mxu0 %v5462
    %v6638 = vpop.f32.mrb[0].mxu0
    %v6639 = vadd.f32 %v6350, %v6638
    %v6640 = vpop.f32.mrb[0].mxu0
    %v6641 = vpop.f32.mrb[0].mxu0
    %v6642 = vadd.f32 %v6353, %v6641
    %v6643 = vpop.f32.mrb[0].mxu0
    %6644 = vmatprep.mubr.bf16.mxu0 %v5472
    %6645 = vmatmul.mubr.bf16.gmra.mrb[0].mxu0 %v5471
    %v6646 = vpop.f32.mrb[0].mxu0
    %v6647 = vadd.f32 %v6358, %v6646
    %v6648 = vpop.f32.mrb[0].mxu0
    %v6649 = vpop.f32.mrb[0].mxu0
    %v6650 = vadd.f32 %v6361, %v6649
    %v6651 = vpop.f32.mrb[0].mxu0
    %6652 = vmatprep.mubr.bf16.mxu0 %v5481
    %6653 = vmatmul.mubr.bf16.gmra.mrb[0].mxu0 %v5480
    %v6654 = vpop.f32.mrb[0].mxu0
    %v6655 = vadd.f32 %v6366, %v6654
    %v6656 = vpop.f32.mrb[0].mxu0
    %v6657 = vpop.f32.mrb[0].mxu0
    %v6658 = vadd.f32 %v6369, %v6657
    %v6659 = vpop.f32.mrb[0].mxu0
    %6660 = vmatprep.mubr.bf16.mxu0 %v5490
    %6661 = vmatmul.mubr.bf16.gmra.mrb[0].mxu0 %v5489
    %v6662 = vpop.f32.mrb[0].mxu0
    %v6663 = vadd.f32 %v6374, %v6662
    %v6664 = vpop.f32.mrb[0].mxu0
    %v6665 = vpop.f32.mrb[0].mxu0
    %v6666 = vadd.f32 %v6377, %v6665
    %v6667 = vpop.f32.mrb[0].mxu0
    %6668 = vmatprep.mubr.bf16.mxu0 %v5499
    %6669 = vmatmul.mubr.bf16.gmra.mrb[0].mxu0 %v5498
    %v6670 = vpop.f32.mrb[0].mxu0
    %v6671 = vadd.f32 %v6382, %v6670
    %v6672 = vpop.f32.mrb[0].mxu0
    %v6673 = vpop.f32.mrb[0].mxu0
    %v6674 = vadd.f32 %v6385, %v6673
    %v6675 = vpop.f32.mrb[0].mxu0
    %6676 = vmatprep.mubr.bf16.mxu0 %v5508
    %6677 = vmatmul.mubr.bf16.gmra.mrb[0].mxu0 %v5507
    %v6678 = vpop.f32.mrb[0].mxu0
    %v6679 = vadd.f32 %v6390, %v6678
    %v6680 = vpop.f32.mrb[0].mxu0
    %v6681 = vpop.f32.mrb[0].mxu0
    %v6682 = vadd.f32 %v6393, %v6681
    %v6683 = vpop.f32.mrb[0].mxu0
    %6684 = vmatprep.mubr.bf16.mxu0 %v5517
    %6685 = vmatmul.mubr.bf16.gmra.mrb[0].mxu0 %v5516
    %v6686 = vpop.f32.mrb[0].mxu0
    %v6687 = vadd.f32 %v6398, %v6686
    %v6688 = vpop.f32.mrb[0].mxu0
    %v6689 = vpop.f32.mrb[0].mxu0
    %v6690 = vadd.f32 %v6401, %v6689
    %v6691 = vpop.f32.mrb[0].mxu0
    %6692 = vmatprep.mubr.bf16.mxu0 %v5526
    %6693 = vmatmul.mubr.bf16.gmra.mrb[0].mxu0 %v5525
    %v6694 = vpop.f32.mrb[0].mxu0
    %v6695 = vadd.f32 %v6406, %v6694
    %v6696 = vpop.f32.mrb[0].mxu0
    %v6697 = vpop.f32.mrb[0].mxu0
    %v6698 = vadd.f32 %v6409, %v6697
    %v6699 = vpop.f32.mrb[0].mxu0
    %6700 = vmatprep.mubr.bf16.mxu0 %v5535
    %6701 = vmatmul.mubr.bf16.gmra.mrb[0].mxu0 %v5534
    %v6702 = vpop.f32.mrb[0].mxu0
    %v6703 = vadd.f32 %v6414, %v6702
    %v6704 = vpop.f32.mrb[0].mxu0
    %v6705 = vpop.f32.mrb[0].mxu0
    %v6706 = vadd.f32 %v6417, %v6705
    %v6707 = vpop.f32.mrb[0].mxu0
    %6708 = vmatprep.mubr.bf16.mxu0 %v5544
    %6709 = vmatmul.mubr.bf16.gmra.mrb[0].mxu0 %v5543
    %v6710 = vpop.f32.mrb[0].mxu0
    %v6711 = vadd.f32 %v6422, %v6710
    %v6712 = vpop.f32.mrb[0].mxu0
    %v6713 = vpop.f32.mrb[0].mxu0
    %v6714 = vadd.f32 %v6425, %v6713
    %v6715 = vpop.f32.mrb[0].mxu0
    %6716 = vmatprep.mubr.bf16.mxu0 %v5553
    %6717 = vmatmul.mubr.bf16.gmra.mrb[0].mxu0 %v5552
    %v6718 = vpop.f32.mrb[0].mxu0
    %v6719 = vadd.f32 %v6430, %v6718
    %v6720 = vpop.f32.mrb[0].mxu0
    %v6721 = vpop.f32.mrb[0].mxu0
    %v6722 = vadd.f32 %v6433, %v6721
    %v6723 = vpop.f32.mrb[0].mxu0
    %6724 = vmatprep.mubr.bf16.mxu0 %v5562
    %6725 = vmatmul.mubr.bf16.gmra.mrb[0].mxu0 %v5561
    %v6726 = vpop.f32.mrb[0].mxu0
    %v6727 = vadd.f32 %v6438, %v6726
    %v6728 = vpop.f32.mrb[0].mxu0
    %v6729 = vpop.f32.mrb[0].mxu0
    %v6730 = vadd.f32 %v6441, %v6729
    %v6731 = vpop.f32.mrb[0].mxu0
    %6732 = vmatprep.mubr.bf16.mxu0 %v5571
    %6733 = vmatmul.mubr.bf16.gmra.mrb[0].mxu0 %v5570
    %v6734 = vpop.f32.mrb[0].mxu0
    %v6735 = vadd.f32 %v6446, %v6734
    %v6736 = vpop.f32.mrb[0].mxu0
    %v6737 = vpop.f32.mrb[0].mxu0
    %v6738 = vadd.f32 %v6449, %v6737
    %v6739 = vpop.f32.mrb[0].mxu0
    %6740 = vmatprep.mubr.bf16.mxu0 %v5580
    %6741 = vmatmul.mubr.bf16.gmra.mrb[0].mxu0 %v5579
    %v6742 = vpop.f32.mrb[0].mxu0
    %v6743 = vadd.f32 %v6454, %v6742
    %v6744 = vpop.f32.mrb[0].mxu0
    %v6745 = vpop.f32.mrb[0].mxu0
    %v6746 = vadd.f32 %v6457, %v6745
    %v6747 = vpop.f32.mrb[0].mxu0
    %6748 = vmatprep.mubr.bf16.mxu0 %v5589
    %6749 = vmatmul.mubr.bf16.gmra.mrb[0].mxu0 %v5588
    %v6750 = vpop.f32.mrb[0].mxu0
    %v6751 = vadd.f32 %v6462, %v6750
    %v6752 = vpop.f32.mrb[0].mxu0
    %v6753 = vpop.f32.mrb[0].mxu0
    %v6754 = vadd.f32 %v6465, %v6753
    %v6755 = vpop.f32.mrb[0].mxu0
    %6756 = vmatprep.mubr.bf16.mxu0 %v5598
    %6757 = vmatmul.mubr.bf16.gmra.mrb[0].mxu0 %v5597
    %v6758 = vpop.f32.mrb[0].mxu0
    %v6759 = vadd.f32 %v6470, %v6758
    %v6760 = vpop.f32.mrb[0].mxu0
    %v6761 = vpop.f32.mrb[0].mxu0
    %v6762 = vadd.f32 %v6473, %v6761
    %v6763 = vpop.f32.mrb[0].mxu0
    %6764 = vmatprep.mubr.bf16.mxu0 %v5607
    %6765 = vmatmul.mubr.bf16.gmra.mrb[0].mxu0 %v5606
    %v6766 = vpop.f32.mrb[0].mxu0
    %v6767 = vadd.f32 %v6478, %v6766
    %v6768 = vpop.f32.mrb[0].mxu0
    %v6769 = vpop.f32.mrb[0].mxu0
    %v6770 = vadd.f32 %v6481, %v6769
    %v6771 = vpop.f32.mrb[0].mxu0
    %6772 = vmatprep.mubr.bf16.mxu0 %v5616
    %6773 = vmatmul.mubr.bf16.gmra.mrb[0].mxu0 %v5615
    %v6774 = vpop.f32.mrb[0].mxu0
    %v6775 = vadd.f32 %v6486, %v6774
    %v6776 = vpop.f32.mrb[0].mxu0
    %v6777 = vpop.f32.mrb[0].mxu0
    %v6778 = vadd.f32 %v6489, %v6777
    %v6779 = vpop.f32.mrb[0].mxu0
    %6780 = vmatprep.mubr.bf16.mxu0 %v5625
    %6781 = vmatmul.mubr.bf16.gmra.mrb[0].mxu0 %v5624
    %v6782 = vpop.f32.mrb[0].mxu0
    %v6783 = vadd.f32 %v6494, %v6782
    %v6784 = vpop.f32.mrb[0].mxu0
    %v6785 = vpop.f32.mrb[0].mxu0
    %v6786 = vadd.f32 %v6497, %v6785
    %v6787 = vpop.f32.mrb[0].mxu0
    %6788 = vmatprep.mubr.bf16.mxu0 %v5634
    %6789 = vmatmul.mubr.bf16.gmra.mrb[0].mxu0 %v5633
    %v6790 = vpop.f32.mrb[0].mxu0
    %v6791 = vadd.f32 %v6502, %v6790
    %v6792 = vpop.f32.mrb[0].mxu0
    %v6793 = vpop.f32.mrb[0].mxu0
    %v6794 = vadd.f32 %v6505, %v6793
    %v6795 = vpop.f32.mrb[0].mxu0
    %6796 = vmatprep.mubr.bf16.mxu0 %v5643
    %6797 = vmatmul.mubr.bf16.gmra.mrb[0].mxu0 %v5642
    %v6798 = vpop.f32.mrb[0].mxu0
    %v6799 = vadd.f32 %v6510, %v6798
    %v6800 = vpop.f32.mrb[0].mxu0
    %v6801 = vpop.f32.mrb[0].mxu0
    %v6802 = vadd.f32 %v6513, %v6801
    %v6803 = vpop.f32.mrb[0].mxu0
    %6804 = vmatprep.mubr.bf16.mxu0 %v5652
    %6805 = vmatmul.mubr.bf16.gmra.mrb[0].mxu0 %v5651
    %v6806 = vpop.f32.mrb[0].mxu0
    %v6807 = vadd.f32 %v6518, %v6806
    %v6808 = vpop.f32.mrb[0].mxu0
    %v6809 = vpop.f32.mrb[0].mxu0
    %v6810 = vadd.f32 %v6521, %v6809
    %v6811 = vpop.f32.mrb[0].mxu0
    %6812 = vmatprep.mubr.bf16.mxu0 %v5661
    %6813 = vmatmul.mubr.bf16.gmra.mrb[0].mxu0 %v5660
    %v6814 = vpop.f32.mrb[0].mxu0
    %v6815 = vadd.f32 %v6526, %v6814
    %v6816 = vpop.f32.mrb[0].mxu0
    %v6817 = vpop.f32.mrb[0].mxu0
    %v6818 = vadd.f32 %v6529, %v6817
    %v6819 = vpop.f32.mrb[0].mxu0
    %6820 = vdwg.mxu0
    %6821 = vmatprep.subr.bf16.mxu0 0
    %6822 = vmatpush1.bf16.msra.mxu0 %v6131
    %6823 = vmatprep.subr.bf16.mxu0 0
    %6824 = vmatpush1.bf16.msra.mxu0 %v6132
    %6825 = vmatprep.subr.bf16.mxu0 0
    %6826 = vmatpush1.bf16.msra.mxu0 %v6133
    %6827 = vmatprep.subr.bf16.mxu0 0
    %6828 = vmatpush1.bf16.msra.mxu0 %v6134
    %6829 = vmatprep.subr.bf16.mxu0 0
    %6830 = vmatpush1.bf16.msra.mxu0 %v6135
    %6831 = vmatprep.subr.bf16.mxu0 0
    %6832 = vmatpush1.bf16.msra.mxu0 %v6136
    %6833 = vmatprep.subr.bf16.mxu0 0
    %6834 = vmatpush1.bf16.msra.mxu0 %v6137
    %6835 = vmatprep.subr.bf16.mxu0 0
    %6836 = vmatpush1.bf16.msra.mxu0 %v6138
    %6837 = vmatprep.subr.bf16.mxu0 0
    %6838 = vmatpush1.bf16.msra.mxu0 %v6139
    %6839 = vmatprep.subr.bf16.mxu0 0
    %6840 = vmatpush1.bf16.msra.mxu0 %v6140
    %6841 = vmatprep.subr.bf16.mxu0 0
    %6842 = vmatpush1.bf16.msra.mxu0 %v6141
    %6843 = vmatprep.subr.bf16.mxu0 0
    %6844 = vmatpush1.bf16.msra.mxu0 %v6142
    %6845 = vmatprep.subr.bf16.mxu0 0
    %6846 = vmatpush1.bf16.msra.mxu0 %v6143
    %6847 = vmatprep.subr.bf16.mxu0 0
    %6848 = vmatpush1.bf16.msra.mxu0 %v6144
    %6849 = vmatprep.subr.bf16.mxu0 0
    %6850 = vmatpush1.bf16.msra.mxu0 %v6145
    %6851 = vmatprep.subr.bf16.mxu0 0
    %6852 = vmatpush1.bf16.msra.mxu0 %v6146
    %6853 = vmatprep.mubr.bf16.mxu0 %v5384
    %6854 = vmatmul.mubr.bf16.gmra.mrb[0].mxu0 %v5383
    %v6855 = vpop.f32.mrb[0].mxu0
    %v6856 = vadd.f32 %v6567, %v6855
    %v6857 = vpop.f32.mrb[0].mxu0
    %v6858 = vpop.f32.mrb[0].mxu0
    %v6859 = vadd.f32 %v6570, %v6858
    %v6860 = vpop.f32.mrb[0].mxu0
    %6861 = vmatprep.mubr.bf16.mxu0 %v5393
    %6862 = vmatmul.mubr.bf16.gmra.mrb[0].mxu0 %v5392
    %v6863 = vpop.f32.mrb[0].mxu0
    %v6864 = vadd.f32 %v6575, %v6863
    %v6865 = vpop.f32.mrb[0].mxu0
    %v6866 = vpop.f32.mrb[0].mxu0
    %v6867 = vadd.f32 %v6578, %v6866
    %v6868 = vpop.f32.mrb[0].mxu0
    %6869 = vmatprep.mubr.bf16.mxu0 %v5402
    %6870 = vmatmul.mubr.bf16.gmra.mrb[0].mxu0 %v5401
    %v6871 = vpop.f32.mrb[0].mxu0
    %v6872 = vadd.f32 %v6583, %v6871
    %v6873 = vpop.f32.mrb[0].mxu0
    %v6874 = vpop.f32.mrb[0].mxu0
    %v6875 = vadd.f32 %v6586, %v6874
    %v6876 = vpop.f32.mrb[0].mxu0
    %6877 = vmatprep.mubr.bf16.mxu0 %v5411
    %6878 = vmatmul.mubr.bf16.gmra.mrb[0].mxu0 %v5410
    %v6879 = vpop.f32.mrb[0].mxu0
    %v6880 = vadd.f32 %v6591, %v6879
    %v6881 = vpop.f32.mrb[0].mxu0
    %v6882 = vpop.f32.mrb[0].mxu0
    %v6883 = vadd.f32 %v6594, %v6882
    %v6884 = vpop.f32.mrb[0].mxu0
    %6885 = vmatprep.mubr.bf16.mxu0 %v5420
    %6886 = vmatmul.mubr.bf16.gmra.mrb[0].mxu0 %v5419
    %v6887 = vpop.f32.mrb[0].mxu0
    %v6888 = vadd.f32 %v6599, %v6887
    %v6889 = vpop.f32.mrb[0].mxu0
    %v6890 = vpop.f32.mrb[0].mxu0
    %v6891 = vadd.f32 %v6602, %v6890
    %v6892 = vpop.f32.mrb[0].mxu0
    %6893 = vmatprep.mubr.bf16.mxu0 %v5429
    %6894 = vmatmul.mubr.bf16.gmra.mrb[0].mxu0 %v5428
    %v6895 = vpop.f32.mrb[0].mxu0
    %v6896 = vadd.f32 %v6607, %v6895
    %v6897 = vpop.f32.mrb[0].mxu0
    %v6898 = vpop.f32.mrb[0].mxu0
    %v6899 = vadd.f32 %v6610, %v6898
    %v6900 = vpop.f32.mrb[0].mxu0
    %6901 = vmatprep.mubr.bf16.mxu0 %v5438
    %6902 = vmatmul.mubr.bf16.gmra.mrb[0].mxu0 %v5437
    %v6903 = vpop.f32.mrb[0].mxu0
    %v6904 = vadd.f32 %v6615, %v6903
    %v6905 = vpop.f32.mrb[0].mxu0
    %v6906 = vpop.f32.mrb[0].mxu0
    %v6907 = vadd.f32 %v6618, %v6906
    %v6908 = vpop.f32.mrb[0].mxu0
    %6909 = vmatprep.mubr.bf16.mxu0 %v5447
    %6910 = vmatmul.mubr.bf16.gmra.mrb[0].mxu0 %v5446
    %v6911 = vpop.f32.mrb[0].mxu0
    %v6912 = vadd.f32 %v6623, %v6911
    %v6913 = vpop.f32.mrb[0].mxu0
    %v6914 = vpop.f32.mrb[0].mxu0
    %v6915 = vadd.f32 %v6626, %v6914
    %v6916 = vpop.f32.mrb[0].mxu0
    %6917 = vmatprep.mubr.bf16.mxu0 %v5456
    %6918 = vmatmul.mubr.bf16.gmra.mrb[0].mxu0 %v5455
    %v6919 = vpop.f32.mrb[0].mxu0
    %v6920 = vadd.f32 %v6631, %v6919
    %v6921 = vpop.f32.mrb[0].mxu0
    %v6922 = vpop.f32.mrb[0].mxu0
    %v6923 = vadd.f32 %v6634, %v6922
    %v6924 = vpop.f32.mrb[0].mxu0
    %6925 = vmatprep.mubr.bf16.mxu0 %v5465
    %6926 = vmatmul.mubr.bf16.gmra.mrb[0].mxu0 %v5464
    %v6927 = vpop.f32.mrb[0].mxu0
    %v6928 = vadd.f32 %v6639, %v6927
    %v6929 = vpop.f32.mrb[0].mxu0
    %v6930 = vpop.f32.mrb[0].mxu0
    %v6931 = vadd.f32 %v6642, %v6930
    %v6932 = vpop.f32.mrb[0].mxu0
    %6933 = vmatprep.mubr.bf16.mxu0 %v5474
    %6934 = vmatmul.mubr.bf16.gmra.mrb[0].mxu0 %v5473
    %v6935 = vpop.f32.mrb[0].mxu0
    %v6936 = vadd.f32 %v6647, %v6935
    %v6937 = vpop.f32.mrb[0].mxu0
    %v6938 = vpop.f32.mrb[0].mxu0
    %v6939 = vadd.f32 %v6650, %v6938
    %v6940 = vpop.f32.mrb[0].mxu0
    %6941 = vmatprep.mubr.bf16.mxu0 %v5483
    %6942 = vmatmul.mubr.bf16.gmra.mrb[0].mxu0 %v5482
    %v6943 = vpop.f32.mrb[0].mxu0
    %v6944 = vadd.f32 %v6655, %v6943
    %v6945 = vpop.f32.mrb[0].mxu0
    %v6946 = vpop.f32.mrb[0].mxu0
    %v6947 = vadd.f32 %v6658, %v6946
    %v6948 = vpop.f32.mrb[0].mxu0
    %6949 = vmatprep.mubr.bf16.mxu0 %v5492
    %6950 = vmatmul.mubr.bf16.gmra.mrb[0].mxu0 %v5491
    %v6951 = vpop.f32.mrb[0].mxu0
    %v6952 = vadd.f32 %v6663, %v6951
    %v6953 = vpop.f32.mrb[0].mxu0
    %v6954 = vpop.f32.mrb[0].mxu0
    %v6955 = vadd.f32 %v6666, %v6954
    %v6956 = vpop.f32.mrb[0].mxu0
    %6957 = vmatprep.mubr.bf16.mxu0 %v5501
    %6958 = vmatmul.mubr.bf16.gmra.mrb[0].mxu0 %v5500
    %v6959 = vpop.f32.mrb[0].mxu0
    %v6960 = vadd.f32 %v6671, %v6959
    %v6961 = vpop.f32.mrb[0].mxu0
    %v6962 = vpop.f32.mrb[0].mxu0
    %v6963 = vadd.f32 %v6674, %v6962
    %v6964 = vpop.f32.mrb[0].mxu0
    %6965 = vmatprep.mubr.bf16.mxu0 %v5510
    %6966 = vmatmul.mubr.bf16.gmra.mrb[0].mxu0 %v5509
    %v6967 = vpop.f32.mrb[0].mxu0
    %v6968 = vadd.f32 %v6679, %v6967
    %v6969 = vpop.f32.mrb[0].mxu0
    %v6970 = vpop.f32.mrb[0].mxu0
    %v6971 = vadd.f32 %v6682, %v6970
    %v6972 = vpop.f32.mrb[0].mxu0
    %6973 = vmatprep.mubr.bf16.mxu0 %v5519
    %6974 = vmatmul.mubr.bf16.gmra.mrb[0].mxu0 %v5518
    %v6975 = vpop.f32.mrb[0].mxu0
    %v6976 = vadd.f32 %v6687, %v6975
    %v6977 = vpop.f32.mrb[0].mxu0
    %v6978 = vpop.f32.mrb[0].mxu0
    %v6979 = vadd.f32 %v6690, %v6978
    %v6980 = vpop.f32.mrb[0].mxu0
    %6981 = vmatprep.mubr.bf16.mxu0 %v5528
    %6982 = vmatmul.mubr.bf16.gmra.mrb[0].mxu0 %v5527
    %v6983 = vpop.f32.mrb[0].mxu0
    %v6984 = vadd.f32 %v6695, %v6983
    %v6985 = vpop.f32.mrb[0].mxu0
    %v6986 = vpop.f32.mrb[0].mxu0
    %v6987 = vadd.f32 %v6698, %v6986
    %v6988 = vpop.f32.mrb[0].mxu0
    %6989 = vmatprep.mubr.bf16.mxu0 %v5537
    %6990 = vmatmul.mubr.bf16.gmra.mrb[0].mxu0 %v5536
    %v6991 = vpop.f32.mrb[0].mxu0
    %v6992 = vadd.f32 %v6703, %v6991
    %v6993 = vpop.f32.mrb[0].mxu0
    %v6994 = vpop.f32.mrb[0].mxu0
    %v6995 = vadd.f32 %v6706, %v6994
    %v6996 = vpop.f32.mrb[0].mxu0
    %6997 = vmatprep.mubr.bf16.mxu0 %v5546
    %6998 = vmatmul.mubr.bf16.gmra.mrb[0].mxu0 %v5545
    %v6999 = vpop.f32.mrb[0].mxu0
    %v7000 = vadd.f32 %v6711, %v6999
    %v7001 = vpop.f32.mrb[0].mxu0
    %v7002 = vpop.f32.mrb[0].mxu0
    %v7003 = vadd.f32 %v6714, %v7002
    %v7004 = vpop.f32.mrb[0].mxu0
    %7005 = vmatprep.mubr.bf16.mxu0 %v5555
    %7006 = vmatmul.mubr.bf16.gmra.mrb[0].mxu0 %v5554
    %v7007 = vpop.f32.mrb[0].mxu0
    %v7008 = vadd.f32 %v6719, %v7007
    %v7009 = vpop.f32.mrb[0].mxu0
    %v7010 = vpop.f32.mrb[0].mxu0
    %v7011 = vadd.f32 %v6722, %v7010
    %v7012 = vpop.f32.mrb[0].mxu0
    %7013 = vmatprep.mubr.bf16.mxu0 %v5564
    %7014 = vmatmul.mubr.bf16.gmra.mrb[0].mxu0 %v5563
    %v7015 = vpop.f32.mrb[0].mxu0
    %v7016 = vadd.f32 %v6727, %v7015
    %v7017 = vpop.f32.mrb[0].mxu0
    %v7018 = vpop.f32.mrb[0].mxu0
    %v7019 = vadd.f32 %v6730, %v7018
    %v7020 = vpop.f32.mrb[0].mxu0
    %7021 = vmatprep.mubr.bf16.mxu0 %v5573
    %7022 = vmatmul.mubr.bf16.gmra.mrb[0].mxu0 %v5572
    %v7023 = vpop.f32.mrb[0].mxu0
    %v7024 = vadd.f32 %v6735, %v7023
    %v7025 = vpop.f32.mrb[0].mxu0
    %v7026 = vpop.f32.mrb[0].mxu0
    %v7027 = vadd.f32 %v6738, %v7026
    %v7028 = vpop.f32.mrb[0].mxu0
    %7029 = vmatprep.mubr.bf16.mxu0 %v5582
    %7030 = vmatmul.mubr.bf16.gmra.mrb[0].mxu0 %v5581
    %v7031 = vpop.f32.mrb[0].mxu0
    %v7032 = vadd.f32 %v6743, %v7031
    %v7033 = vpop.f32.mrb[0].mxu0
    %v7034 = vpop.f32.mrb[0].mxu0
    %v7035 = vadd.f32 %v6746, %v7034
    %v7036 = vpop.f32.mrb[0].mxu0
    %7037 = vmatprep.mubr.bf16.mxu0 %v5591
    %7038 = vmatmul.mubr.bf16.gmra.mrb[0].mxu0 %v5590
    %v7039 = vpop.f32.mrb[0].mxu0
    %v7040 = vadd.f32 %v6751, %v7039
    %v7041 = vpop.f32.mrb[0].mxu0
    %v7042 = vpop.f32.mrb[0].mxu0
    %v7043 = vadd.f32 %v6754, %v7042
    %v7044 = vpop.f32.mrb[0].mxu0
    %7045 = vmatprep.mubr.bf16.mxu0 %v5600
    %7046 = vmatmul.mubr.bf16.gmra.mrb[0].mxu0 %v5599
    %v7047 = vpop.f32.mrb[0].mxu0
    %v7048 = vadd.f32 %v6759, %v7047
    %v7049 = vpop.f32.mrb[0].mxu0
    %v7050 = vpop.f32.mrb[0].mxu0
    %v7051 = vadd.f32 %v6762, %v7050
    %v7052 = vpop.f32.mrb[0].mxu0
    %7053 = vmatprep.mubr.bf16.mxu0 %v5609
    %7054 = vmatmul.mubr.bf16.gmra.mrb[0].mxu0 %v5608
    %v7055 = vpop.f32.mrb[0].mxu0
    %v7056 = vadd.f32 %v6767, %v7055
    %v7057 = vpop.f32.mrb[0].mxu0
    %v7058 = vpop.f32.mrb[0].mxu0
    %v7059 = vadd.f32 %v6770, %v7058
    %v7060 = vpop.f32.mrb[0].mxu0
    %7061 = vmatprep.mubr.bf16.mxu0 %v5618
    %7062 = vmatmul.mubr.bf16.gmra.mrb[0].mxu0 %v5617
    %v7063 = vpop.f32.mrb[0].mxu0
    %v7064 = vadd.f32 %v6775, %v7063
    %v7065 = vpop.f32.mrb[0].mxu0
    %v7066 = vpop.f32.mrb[0].mxu0
    %v7067 = vadd.f32 %v6778, %v7066
    %v7068 = vpop.f32.mrb[0].mxu0
    %7069 = vmatprep.mubr.bf16.mxu0 %v5627
    %7070 = vmatmul.mubr.bf16.gmra.mrb[0].mxu0 %v5626
    %v7071 = vpop.f32.mrb[0].mxu0
    %v7072 = vadd.f32 %v6783, %v7071
    %v7073 = vpop.f32.mrb[0].mxu0
    %v7074 = vpop.f32.mrb[0].mxu0
    %v7075 = vadd.f32 %v6786, %v7074
    %v7076 = vpop.f32.mrb[0].mxu0
    %7077 = vmatprep.mubr.bf16.mxu0 %v5636
    %7078 = vmatmul.mubr.bf16.gmra.mrb[0].mxu0 %v5635
    %v7079 = vpop.f32.mrb[0].mxu0
    %v7080 = vadd.f32 %v6791, %v7079
    %v7081 = vpop.f32.mrb[0].mxu0
    %v7082 = vpop.f32.mrb[0].mxu0
    %v7083 = vadd.f32 %v6794, %v7082
    %v7084 = vpop.f32.mrb[0].mxu0
    %7085 = vmatprep.mubr.bf16.mxu0 %v5645
    %7086 = vmatmul.mubr.bf16.gmra.mrb[0].mxu0 %v5644
    %v7087 = vpop.f32.mrb[0].mxu0
    %v7088 = vadd.f32 %v6799, %v7087
    %v7089 = vpop.f32.mrb[0].mxu0
    %v7090 = vpop.f32.mrb[0].mxu0
    %v7091 = vadd.f32 %v6802, %v7090
    %v7092 = vpop.f32.mrb[0].mxu0
    %7093 = vmatprep.mubr.bf16.mxu0 %v5654
    %7094 = vmatmul.mubr.bf16.gmra.mrb[0].mxu0 %v5653
    %v7095 = vpop.f32.mrb[0].mxu0
    %v7096 = vadd.f32 %v6807, %v7095
    %v7097 = vpop.f32.mrb[0].mxu0
    %v7098 = vpop.f32.mrb[0].mxu0
    %v7099 = vadd.f32 %v6810, %v7098
    %v7100 = vpop.f32.mrb[0].mxu0
    %7101 = vmatprep.mubr.bf16.mxu0 %v5663
    %7102 = vmatmul.mubr.bf16.gmra.mrb[0].mxu0 %v5662
    %v7103 = vpop.f32.mrb[0].mxu0
    %v7104 = vadd.f32 %v6815, %v7103
    %v7105 = vpop.f32.mrb[0].mxu0
    %v7106 = vpop.f32.mrb[0].mxu0
    %v7107 = vadd.f32 %v6818, %v7106
    %v7108 = vpop.f32.mrb[0].mxu0
    %7109 = vdwg.mxu0
    %7110 = vmatprep.subr.bf16.mxu0 0
    %7111 = vmatpush1.bf16.msra.mxu0 %v6147
    %7112 = vmatprep.subr.bf16.mxu0 0
    %7113 = vmatpush1.bf16.msra.mxu0 %v6148
    %7114 = vmatprep.subr.bf16.mxu0 0
    %7115 = vmatpush1.bf16.msra.mxu0 %v6149
    %7116 = vmatprep.subr.bf16.mxu0 0
    %7117 = vmatpush1.bf16.msra.mxu0 %v6150
    %7118 = vmatprep.subr.bf16.mxu0 0
    %7119 = vmatpush1.bf16.msra.mxu0 %v6151
    %7120 = vmatprep.subr.bf16.mxu0 0
    %7121 = vmatpush1.bf16.msra.mxu0 %v6152
    %7122 = vmatprep.subr.bf16.mxu0 0
    %7123 = vmatpush1.bf16.msra.mxu0 %v6153
    %7124 = vmatprep.subr.bf16.mxu0 0
    %7125 = vmatpush1.bf16.msra.mxu0 %v6154
    %7126 = vmatprep.subr.bf16.mxu0 0
    %7127 = vmatpush1.bf16.msra.mxu0 %v6155
    %7128 = vmatprep.subr.bf16.mxu0 0
    %7129 = vmatpush1.bf16.msra.mxu0 %v6156
    %7130 = vmatprep.subr.bf16.mxu0 0
    %7131 = vmatpush1.bf16.msra.mxu0 %v6157
    %7132 = vmatprep.subr.bf16.mxu0 0
    %7133 = vmatpush1.bf16.msra.mxu0 %v6158
    %7134 = vmatprep.subr.bf16.mxu0 0
    %7135 = vmatpush1.bf16.msra.mxu0 %v6159
    %7136 = vmatprep.subr.bf16.mxu0 0
    %7137 = vmatpush1.bf16.msra.mxu0 %v6160
    %7138 = vmatprep.subr.bf16.mxu0 0
    %7139 = vmatpush1.bf16.msra.mxu0 %v6161
    %7140 = vmatprep.subr.bf16.mxu0 0
    %7141 = vmatpush1.bf16.msra.mxu0 %v6162
    %7142 = vmatprep.mubr.bf16.mxu0 %v5386
    %7143 = vmatmul.mubr.bf16.gmra.mrb[0].mxu0 %v5385
    %v7144 = vpop.f32.mrb[0].mxu0
    %v7145 = vadd.f32 %v6856, %v7144
    %v7146 = vpop.f32.mrb[0].mxu0
    %v7147 = vpop.f32.mrb[0].mxu0
    %v7148 = vadd.f32 %v6859, %v7147
    %v7149 = vpop.f32.mrb[0].mxu0
    %7150 = vmatprep.mubr.bf16.mxu0 %v5395
    %7151 = vmatmul.mubr.bf16.gmra.mrb[0].mxu0 %v5394
    %v7152 = vpop.f32.mrb[0].mxu0
    %v7153 = vadd.f32 %v6864, %v7152
    %v7154 = vpop.f32.mrb[0].mxu0
    %v7155 = vpop.f32.mrb[0].mxu0
    %v7156 = vadd.f32 %v6867, %v7155
    %v7157 = vpop.f32.mrb[0].mxu0
    %7158 = vmatprep.mubr.bf16.mxu0 %v5404
    %7159 = vmatmul.mubr.bf16.gmra.mrb[0].mxu0 %v5403
    %v7160 = vpop.f32.mrb[0].mxu0
    %v7161 = vadd.f32 %v6872, %v7160
    %v7162 = vpop.f32.mrb[0].mxu0
    %v7163 = vpop.f32.mrb[0].mxu0
    %v7164 = vadd.f32 %v6875, %v7163
    %v7165 = vpop.f32.mrb[0].mxu0
    %7166 = vmatprep.mubr.bf16.mxu0 %v5413
    %7167 = vmatmul.mubr.bf16.gmra.mrb[0].mxu0 %v5412
    %v7168 = vpop.f32.mrb[0].mxu0
    %v7169 = vadd.f32 %v6880, %v7168
    %v7170 = vpop.f32.mrb[0].mxu0
    %v7171 = vpop.f32.mrb[0].mxu0
    %v7172 = vadd.f32 %v6883, %v7171
    %v7173 = vpop.f32.mrb[0].mxu0
    %7174 = vmatprep.mubr.bf16.mxu0 %v5422
    %7175 = vmatmul.mubr.bf16.gmra.mrb[0].mxu0 %v5421
    %v7176 = vpop.f32.mrb[0].mxu0
    %v7177 = vadd.f32 %v6888, %v7176
    %v7178 = vpop.f32.mrb[0].mxu0
    %v7179 = vpop.f32.mrb[0].mxu0
    %v7180 = vadd.f32 %v6891, %v7179
    %v7181 = vpop.f32.mrb[0].mxu0
    %7182 = vmatprep.mubr.bf16.mxu0 %v5431
    %7183 = vmatmul.mubr.bf16.gmra.mrb[0].mxu0 %v5430
    %v7184 = vpop.f32.mrb[0].mxu0
    %v7185 = vadd.f32 %v6896, %v7184
    %v7186 = vpop.f32.mrb[0].mxu0
    %v7187 = vpop.f32.mrb[0].mxu0
    %v7188 = vadd.f32 %v6899, %v7187
    %v7189 = vpop.f32.mrb[0].mxu0
    %7190 = vmatprep.mubr.bf16.mxu0 %v5440
    %7191 = vmatmul.mubr.bf16.gmra.mrb[0].mxu0 %v5439
    %v7192 = vpop.f32.mrb[0].mxu0
    %v7193 = vadd.f32 %v6904, %v7192
    %v7194 = vpop.f32.mrb[0].mxu0
    %v7195 = vpop.f32.mrb[0].mxu0
    %v7196 = vadd.f32 %v6907, %v7195
    %v7197 = vpop.f32.mrb[0].mxu0
    %7198 = vmatprep.mubr.bf16.mxu0 %v5449
    %7199 = vmatmul.mubr.bf16.gmra.mrb[0].mxu0 %v5448
    %v7200 = vpop.f32.mrb[0].mxu0
    %v7201 = vadd.f32 %v6912, %v7200
    %v7202 = vpop.f32.mrb[0].mxu0
    %v7203 = vpop.f32.mrb[0].mxu0
    %v7204 = vadd.f32 %v6915, %v7203
    %v7205 = vpop.f32.mrb[0].mxu0
    %7206 = vmatprep.mubr.bf16.mxu0 %v5458
    %7207 = vmatmul.mubr.bf16.gmra.mrb[0].mxu0 %v5457
    %v7208 = vpop.f32.mrb[0].mxu0
    %v7209 = vadd.f32 %v6920, %v7208
    %v7210 = vpop.f32.mrb[0].mxu0
    %v7211 = vpop.f32.mrb[0].mxu0
    %v7212 = vadd.f32 %v6923, %v7211
    %v7213 = vpop.f32.mrb[0].mxu0
    %7214 = vmatprep.mubr.bf16.mxu0 %v5467
    %7215 = vmatmul.mubr.bf16.gmra.mrb[0].mxu0 %v5466
    %v7216 = vpop.f32.mrb[0].mxu0
    %v7217 = vadd.f32 %v6928, %v7216
    %v7218 = vpop.f32.mrb[0].mxu0
    %v7219 = vpop.f32.mrb[0].mxu0
    %v7220 = vadd.f32 %v6931, %v7219
    %v7221 = vpop.f32.mrb[0].mxu0
    %7222 = vmatprep.mubr.bf16.mxu0 %v5476
    %7223 = vmatmul.mubr.bf16.gmra.mrb[0].mxu0 %v5475
    %v7224 = vpop.f32.mrb[0].mxu0
    %v7225 = vadd.f32 %v6936, %v7224
    %v7226 = vpop.f32.mrb[0].mxu0
    %v7227 = vpop.f32.mrb[0].mxu0
    %v7228 = vadd.f32 %v6939, %v7227
    %v7229 = vpop.f32.mrb[0].mxu0
    %7230 = vmatprep.mubr.bf16.mxu0 %v5485
    %7231 = vmatmul.mubr.bf16.gmra.mrb[0].mxu0 %v5484
    %v7232 = vpop.f32.mrb[0].mxu0
    %v7233 = vadd.f32 %v6944, %v7232
    %v7234 = vpop.f32.mrb[0].mxu0
    %v7235 = vpop.f32.mrb[0].mxu0
    %v7236 = vadd.f32 %v6947, %v7235
    %v7237 = vpop.f32.mrb[0].mxu0
    %7238 = vmatprep.mubr.bf16.mxu0 %v5494
    %7239 = vmatmul.mubr.bf16.gmra.mrb[0].mxu0 %v5493
    %v7240 = vpop.f32.mrb[0].mxu0
    %v7241 = vadd.f32 %v6952, %v7240
    %v7242 = vpop.f32.mrb[0].mxu0
    %v7243 = vpop.f32.mrb[0].mxu0
    %v7244 = vadd.f32 %v6955, %v7243
    %v7245 = vpop.f32.mrb[0].mxu0
    %7246 = vmatprep.mubr.bf16.mxu0 %v5503
    %7247 = vmatmul.mubr.bf16.gmra.mrb[0].mxu0 %v5502
    %v7248 = vpop.f32.mrb[0].mxu0
    %v7249 = vadd.f32 %v6960, %v7248
    %v7250 = vpop.f32.mrb[0].mxu0
    %v7251 = vpop.f32.mrb[0].mxu0
    %v7252 = vadd.f32 %v6963, %v7251
    %v7253 = vpop.f32.mrb[0].mxu0
    %7254 = vmatprep.mubr.bf16.mxu0 %v5512
    %7255 = vmatmul.mubr.bf16.gmra.mrb[0].mxu0 %v5511
    %v7256 = vpop.f32.mrb[0].mxu0
    %v7257 = vadd.f32 %v6968, %v7256
    %v7258 = vpop.f32.mrb[0].mxu0
    %v7259 = vpop.f32.mrb[0].mxu0
    %v7260 = vadd.f32 %v6971, %v7259
    %v7261 = vpop.f32.mrb[0].mxu0
    %7262 = vmatprep.mubr.bf16.mxu0 %v5521
    %7263 = vmatmul.mubr.bf16.gmra.mrb[0].mxu0 %v5520
    %v7264 = vpop.f32.mrb[0].mxu0
    %v7265 = vadd.f32 %v6976, %v7264
    %v7266 = vpop.f32.mrb[0].mxu0
    %v7267 = vpop.f32.mrb[0].mxu0
    %v7268 = vadd.f32 %v6979, %v7267
    %v7269 = vpop.f32.mrb[0].mxu0
    %7270 = vmatprep.mubr.bf16.mxu0 %v5530
    %7271 = vmatmul.mubr.bf16.gmra.mrb[0].mxu0 %v5529
    %v7272 = vpop.f32.mrb[0].mxu0
    %v7273 = vadd.f32 %v6984, %v7272
    %v7274 = vpop.f32.mrb[0].mxu0
    %v7275 = vpop.f32.mrb[0].mxu0
    %v7276 = vadd.f32 %v6987, %v7275
    %v7277 = vpop.f32.mrb[0].mxu0
    %7278 = vmatprep.mubr.bf16.mxu0 %v5539
    %7279 = vmatmul.mubr.bf16.gmra.mrb[0].mxu0 %v5538
    %v7280 = vpop.f32.mrb[0].mxu0
    %v7281 = vadd.f32 %v6992, %v7280
    %v7282 = vpop.f32.mrb[0].mxu0
    %v7283 = vpop.f32.mrb[0].mxu0
    %v7284 = vadd.f32 %v6995, %v7283
    %v7285 = vpop.f32.mrb[0].mxu0
    %7286 = vmatprep.mubr.bf16.mxu0 %v5548
    %7287 = vmatmul.mubr.bf16.gmra.mrb[0].mxu0 %v5547
    %v7288 = vpop.f32.mrb[0].mxu0
    %v7289 = vadd.f32 %v7000, %v7288
    %v7290 = vpop.f32.mrb[0].mxu0
    %v7291 = vpop.f32.mrb[0].mxu0
    %v7292 = vadd.f32 %v7003, %v7291
    %v7293 = vpop.f32.mrb[0].mxu0
    %7294 = vmatprep.mubr.bf16.mxu0 %v5557
    %7295 = vmatmul.mubr.bf16.gmra.mrb[0].mxu0 %v5556
    %v7296 = vpop.f32.mrb[0].mxu0
    %v7297 = vadd.f32 %v7008, %v7296
    %v7298 = vpop.f32.mrb[0].mxu0
    %v7299 = vpop.f32.mrb[0].mxu0
    %v7300 = vadd.f32 %v7011, %v7299
    %v7301 = vpop.f32.mrb[0].mxu0
    %7302 = vmatprep.mubr.bf16.mxu0 %v5566
    %7303 = vmatmul.mubr.bf16.gmra.mrb[0].mxu0 %v5565
    %v7304 = vpop.f32.mrb[0].mxu0
    %v7305 = vadd.f32 %v7016, %v7304
    %v7306 = vpop.f32.mrb[0].mxu0
    %v7307 = vpop.f32.mrb[0].mxu0
    %v7308 = vadd.f32 %v7019, %v7307
    %v7309 = vpop.f32.mrb[0].mxu0
    %7310 = vmatprep.mubr.bf16.mxu0 %v5575
    %7311 = vmatmul.mubr.bf16.gmra.mrb[0].mxu0 %v5574
    %v7312 = vpop.f32.mrb[0].mxu0
    %v7313 = vadd.f32 %v7024, %v7312
    %v7314 = vpop.f32.mrb[0].mxu0
    %v7315 = vpop.f32.mrb[0].mxu0
    %v7316 = vadd.f32 %v7027, %v7315
    %v7317 = vpop.f32.mrb[0].mxu0
    %7318 = vmatprep.mubr.bf16.mxu0 %v5584
    %7319 = vmatmul.mubr.bf16.gmra.mrb[0].mxu0 %v5583
    %v7320 = vpop.f32.mrb[0].mxu0
    %v7321 = vadd.f32 %v7032, %v7320
    %v7322 = vpop.f32.mrb[0].mxu0
    %v7323 = vpop.f32.mrb[0].mxu0
    %v7324 = vadd.f32 %v7035, %v7323
    %v7325 = vpop.f32.mrb[0].mxu0
    %7326 = vmatprep.mubr.bf16.mxu0 %v5593
    %7327 = vmatmul.mubr.bf16.gmra.mrb[0].mxu0 %v5592
    %v7328 = vpop.f32.mrb[0].mxu0
    %v7329 = vadd.f32 %v7040, %v7328
    %v7330 = vpop.f32.mrb[0].mxu0
    %v7331 = vpop.f32.mrb[0].mxu0
    %v7332 = vadd.f32 %v7043, %v7331
    %v7333 = vpop.f32.mrb[0].mxu0
    %7334 = vmatprep.mubr.bf16.mxu0 %v5602
    %7335 = vmatmul.mubr.bf16.gmra.mrb[0].mxu0 %v5601
    %v7336 = vpop.f32.mrb[0].mxu0
    %v7337 = vadd.f32 %v7048, %v7336
    %v7338 = vpop.f32.mrb[0].mxu0
    %v7339 = vpop.f32.mrb[0].mxu0
    %v7340 = vadd.f32 %v7051, %v7339
    %v7341 = vpop.f32.mrb[0].mxu0
    %7342 = vmatprep.mubr.bf16.mxu0 %v5611
    %7343 = vmatmul.mubr.bf16.gmra.mrb[0].mxu0 %v5610
    %v7344 = vpop.f32.mrb[0].mxu0
    %v7345 = vadd.f32 %v7056, %v7344
    %v7346 = vpop.f32.mrb[0].mxu0
    %v7347 = vpop.f32.mrb[0].mxu0
    %v7348 = vadd.f32 %v7059, %v7347
    %v7349 = vpop.f32.mrb[0].mxu0
    %7350 = vmatprep.mubr.bf16.mxu0 %v5620
    %7351 = vmatmul.mubr.bf16.gmra.mrb[0].mxu0 %v5619
    %v7352 = vpop.f32.mrb[0].mxu0
    %v7353 = vadd.f32 %v7064, %v7352
    %v7354 = vpop.f32.mrb[0].mxu0
    %v7355 = vpop.f32.mrb[0].mxu0
    %v7356 = vadd.f32 %v7067, %v7355
    %v7357 = vpop.f32.mrb[0].mxu0
    %7358 = vmatprep.mubr.bf16.mxu0 %v5629
    %7359 = vmatmul.mubr.bf16.gmra.mrb[0].mxu0 %v5628
    %v7360 = vpop.f32.mrb[0].mxu0
    %v7361 = vadd.f32 %v7072, %v7360
    %v7362 = vpop.f32.mrb[0].mxu0
    %v7363 = vpop.f32.mrb[0].mxu0
    %v7364 = vadd.f32 %v7075, %v7363
    %v7365 = vpop.f32.mrb[0].mxu0
    %7366 = vmatprep.mubr.bf16.mxu0 %v5638
    %7367 = vmatmul.mubr.bf16.gmra.mrb[0].mxu0 %v5637
    %v7368 = vpop.f32.mrb[0].mxu0
    %v7369 = vadd.f32 %v7080, %v7368
    %v7370 = vpop.f32.mrb[0].mxu0
    %v7371 = vpop.f32.mrb[0].mxu0
    %v7372 = vadd.f32 %v7083, %v7371
    %v7373 = vpop.f32.mrb[0].mxu0
    %7374 = vmatprep.mubr.bf16.mxu0 %v5647
    %7375 = vmatmul.mubr.bf16.gmra.mrb[0].mxu0 %v5646
    %v7376 = vpop.f32.mrb[0].mxu0
    %v7377 = vadd.f32 %v7088, %v7376
    %v7378 = vpop.f32.mrb[0].mxu0
    %v7379 = vpop.f32.mrb[0].mxu0
    %v7380 = vadd.f32 %v7091, %v7379
    %v7381 = vpop.f32.mrb[0].mxu0
    %7382 = vmatprep.mubr.bf16.mxu0 %v5656
    %7383 = vmatmul.mubr.bf16.gmra.mrb[0].mxu0 %v5655
    %v7384 = vpop.f32.mrb[0].mxu0
    %v7385 = vadd.f32 %v7096, %v7384
    %v7386 = vpop.f32.mrb[0].mxu0
    %v7387 = vpop.f32.mrb[0].mxu0
    %v7388 = vadd.f32 %v7099, %v7387
    %v7389 = vpop.f32.mrb[0].mxu0
    %7390 = vmatprep.mubr.bf16.mxu0 %v5665
    %7391 = vmatmul.mubr.bf16.gmra.mrb[0].mxu0 %v5664
    %v7392 = vpop.f32.mrb[0].mxu0
    %v7393 = vadd.f32 %v7104, %v7392
    %v7394 = vpop.f32.mrb[0].mxu0
    %v7395 = vpop.f32.mrb[0].mxu0
    %v7396 = vadd.f32 %v7107, %v7395
    %v7397 = vpop.f32.mrb[0].mxu0
    %7398 = vdwg.mxu0
    %7399 = vmatprep.subr.bf16.mxu0 0
    %7400 = vmatpush1.bf16.msra.mxu0 %v6163
    %7401 = vmatprep.subr.bf16.mxu0 0
    %7402 = vmatpush1.bf16.msra.mxu0 %v6164
    %7403 = vmatprep.subr.bf16.mxu0 0
    %7404 = vmatpush1.bf16.msra.mxu0 %v6165
    %7405 = vmatprep.subr.bf16.mxu0 0
    %7406 = vmatpush1.bf16.msra.mxu0 %v6166
    %7407 = vmatprep.subr.bf16.mxu0 0
    %7408 = vmatpush1.bf16.msra.mxu0 %v6167
    %7409 = vmatprep.subr.bf16.mxu0 0
    %7410 = vmatpush1.bf16.msra.mxu0 %v6168
    %7411 = vmatprep.subr.bf16.mxu0 0
    %7412 = vmatpush1.bf16.msra.mxu0 %v6169
    %7413 = vmatprep.subr.bf16.mxu0 0
    %7414 = vmatpush1.bf16.msra.mxu0 %v6170
    %7415 = vmatprep.subr.bf16.mxu0 0
    %7416 = vmatpush1.bf16.msra.mxu0 0
    %7417 = vmatprep.subr.bf16.mxu0 0
    %7418 = vmatpush1.bf16.msra.mxu0 0
    %7419 = vmatprep.subr.bf16.mxu0 0
    %7420 = vmatpush1.bf16.msra.mxu0 0
    %7421 = vmatprep.subr.bf16.mxu0 0
    %7422 = vmatpush1.bf16.msra.mxu0 0
    %7423 = vmatprep.subr.bf16.mxu0 0
    %7424 = vmatpush1.bf16.msra.mxu0 0
    %7425 = vmatprep.subr.bf16.mxu0 0
    %7426 = vmatpush1.bf16.msra.mxu0 0
    %7427 = vmatprep.subr.bf16.mxu0 0
    %7428 = vmatpush1.bf16.msra.mxu0 0
    %7429 = vmatprep.subr.bf16.mxu0 0
    %7430 = vmatpush1.bf16.msra.mxu0 0
    %7431 = vmatprep.mubr.bf16.mxu0 0
    %7432 = vmatmul.mubr.bf16.gmra.mrb[0].mxu0 %v5387
    %v7433 = vpop.f32.mrb[0].mxu0
    %v7434 = vadd.f32 %v7145, %v7433
    %v7435 = vpop.f32.mrb[0].mxu0
    %v7436 = vpop.f32.mrb[0].mxu0
    %v7437 = vadd.f32 %v7148, %v7436
    %v7438 = vpop.f32.mrb[0].mxu0
    %7439 = vmatprep.mubr.bf16.mxu0 0
    %7440 = vmatmul.mubr.bf16.gmra.mrb[0].mxu0 %v5396
    %v7441 = vpop.f32.mrb[0].mxu0
    %v7442 = vadd.f32 %v7153, %v7441
    %v7443 = vpop.f32.mrb[0].mxu0
    %v7444 = vpop.f32.mrb[0].mxu0
    %v7445 = vadd.f32 %v7156, %v7444
    %v7446 = vpop.f32.mrb[0].mxu0
    %7447 = vmatprep.mubr.bf16.mxu0 0
    %7448 = vmatmul.mubr.bf16.gmra.mrb[0].mxu0 %v5405
    %v7449 = vpop.f32.mrb[0].mxu0
    %v7450 = vadd.f32 %v7161, %v7449
    %v7451 = vpop.f32.mrb[0].mxu0
    %v7452 = vpop.f32.mrb[0].mxu0
    %v7453 = vadd.f32 %v7164, %v7452
    %v7454 = vpop.f32.mrb[0].mxu0
    %7455 = vmatprep.mubr.bf16.mxu0 0
    %7456 = vmatmul.mubr.bf16.gmra.mrb[0].mxu0 %v5414
    %v7457 = vpop.f32.mrb[0].mxu0
    %v7458 = vadd.f32 %v7169, %v7457
    %v7459 = vpop.f32.mrb[0].mxu0
    %v7460 = vpop.f32.mrb[0].mxu0
    %v7461 = vadd.f32 %v7172, %v7460
    %v7462 = vpop.f32.mrb[0].mxu0
    %7463 = vmatprep.mubr.bf16.mxu0 0
    %7464 = vmatmul.mubr.bf16.gmra.mrb[0].mxu0 %v5423
    %v7465 = vpop.f32.mrb[0].mxu0
    %v7466 = vadd.f32 %v7177, %v7465
    %v7467 = vpop.f32.mrb[0].mxu0
    %v7468 = vpop.f32.mrb[0].mxu0
    %v7469 = vadd.f32 %v7180, %v7468
    %v7470 = vpop.f32.mrb[0].mxu0
    %7471 = vmatprep.mubr.bf16.mxu0 0
    %7472 = vmatmul.mubr.bf16.gmra.mrb[0].mxu0 %v5432
    %v7473 = vpop.f32.mrb[0].mxu0
    %v7474 = vadd.f32 %v7185, %v7473
    %v7475 = vpop.f32.mrb[0].mxu0
    %v7476 = vpop.f32.mrb[0].mxu0
    %v7477 = vadd.f32 %v7188, %v7476
    %v7478 = vpop.f32.mrb[0].mxu0
    %7479 = vmatprep.mubr.bf16.mxu0 0
    %7480 = vmatmul.mubr.bf16.gmra.mrb[0].mxu0 %v5441
    %v7481 = vpop.f32.mrb[0].mxu0
    %v7482 = vadd.f32 %v7193, %v7481
    %v7483 = vpop.f32.mrb[0].mxu0
    %v7484 = vpop.f32.mrb[0].mxu0
    %v7485 = vadd.f32 %v7196, %v7484
    %v7486 = vpop.f32.mrb[0].mxu0
    %7487 = vmatprep.mubr.bf16.mxu0 0
    %7488 = vmatmul.mubr.bf16.gmra.mrb[0].mxu0 %v5450
    %v7489 = vpop.f32.mrb[0].mxu0
    %v7490 = vadd.f32 %v7201, %v7489
    %v7491 = vpop.f32.mrb[0].mxu0
    %v7492 = vpop.f32.mrb[0].mxu0
    %v7493 = vadd.f32 %v7204, %v7492
    %v7494 = vpop.f32.mrb[0].mxu0
    %7495 = vmatprep.mubr.bf16.mxu0 0
    %7496 = vmatmul.mubr.bf16.gmra.mrb[0].mxu0 %v5459
    %v7497 = vpop.f32.mrb[0].mxu0
    %v7498 = vadd.f32 %v7209, %v7497
    %v7499 = vpop.f32.mrb[0].mxu0
    %v7500 = vpop.f32.mrb[0].mxu0
    %v7501 = vadd.f32 %v7212, %v7500
    %v7502 = vpop.f32.mrb[0].mxu0
    %7503 = vmatprep.mubr.bf16.mxu0 0
    %7504 = vmatmul.mubr.bf16.gmra.mrb[0].mxu0 %v5468
    %v7505 = vpop.f32.mrb[0].mxu0
    %v7506 = vadd.f32 %v7217, %v7505
    %v7507 = vpop.f32.mrb[0].mxu0
    %v7508 = vpop.f32.mrb[0].mxu0
    %v7509 = vadd.f32 %v7220, %v7508
    %v7510 = vpop.f32.mrb[0].mxu0
    %7511 = vmatprep.mubr.bf16.mxu0 0
    %7512 = vmatmul.mubr.bf16.gmra.mrb[0].mxu0 %v5477
    %v7513 = vpop.f32.mrb[0].mxu0
    %v7514 = vadd.f32 %v7225, %v7513
    %v7515 = vpop.f32.mrb[0].mxu0
    %v7516 = vpop.f32.mrb[0].mxu0
    %v7517 = vadd.f32 %v7228, %v7516
    %v7518 = vpop.f32.mrb[0].mxu0
    %7519 = vmatprep.mubr.bf16.mxu0 0
    %7520 = vmatmul.mubr.bf16.gmra.mrb[0].mxu0 %v5486
    %v7521 = vpop.f32.mrb[0].mxu0
    %v7522 = vadd.f32 %v7233, %v7521
    %v7523 = vpop.f32.mrb[0].mxu0
    %v7524 = vpop.f32.mrb[0].mxu0
    %v7525 = vadd.f32 %v7236, %v7524
    %v7526 = vpop.f32.mrb[0].mxu0
    %7527 = vmatprep.mubr.bf16.mxu0 0
    %7528 = vmatmul.mubr.bf16.gmra.mrb[0].mxu0 %v5495
    %v7529 = vpop.f32.mrb[0].mxu0
    %v7530 = vadd.f32 %v7241, %v7529
    %v7531 = vpop.f32.mrb[0].mxu0
    %v7532 = vpop.f32.mrb[0].mxu0
    %v7533 = vadd.f32 %v7244, %v7532
    %v7534 = vpop.f32.mrb[0].mxu0
    %7535 = vmatprep.mubr.bf16.mxu0 0
    %7536 = vmatmul.mubr.bf16.gmra.mrb[0].mxu0 %v5504
    %v7537 = vpop.f32.mrb[0].mxu0
    %v7538 = vadd.f32 %v7249, %v7537
    %v7539 = vpop.f32.mrb[0].mxu0
    %v7540 = vpop.f32.mrb[0].mxu0
    %v7541 = vadd.f32 %v7252, %v7540
    %v7542 = vpop.f32.mrb[0].mxu0
    %7543 = vmatprep.mubr.bf16.mxu0 0
    %7544 = vmatmul.mubr.bf16.gmra.mrb[0].mxu0 %v5513
    %v7545 = vpop.f32.mrb[0].mxu0
    %v7546 = vadd.f32 %v7257, %v7545
    %v7547 = vpop.f32.mrb[0].mxu0
    %v7548 = vpop.f32.mrb[0].mxu0
    %v7549 = vadd.f32 %v7260, %v7548
    %v7550 = vpop.f32.mrb[0].mxu0
    %7551 = vmatprep.mubr.bf16.mxu0 0
    %7552 = vmatmul.mubr.bf16.gmra.mrb[0].mxu0 %v5522
    %v7553 = vpop.f32.mrb[0].mxu0
    %v7554 = vadd.f32 %v7265, %v7553
    %v7555 = vpop.f32.mrb[0].mxu0
    %v7556 = vpop.f32.mrb[0].mxu0
    %v7557 = vadd.f32 %v7268, %v7556
    %v7558 = vpop.f32.mrb[0].mxu0
    %7559 = vmatprep.mubr.bf16.mxu0 0
    %7560 = vmatmul.mubr.bf16.gmra.mrb[0].mxu0 %v5531
    %v7561 = vpop.f32.mrb[0].mxu0
    %v7562 = vadd.f32 %v7273, %v7561
    %v7563 = vpop.f32.mrb[0].mxu0
    %v7564 = vpop.f32.mrb[0].mxu0
    %v7565 = vadd.f32 %v7276, %v7564
    %v7566 = vpop.f32.mrb[0].mxu0
    %7567 = vmatprep.mubr.bf16.mxu0 0
    %7568 = vmatmul.mubr.bf16.gmra.mrb[0].mxu0 %v5540
    %v7569 = vpop.f32.mrb[0].mxu0
    %v7570 = vadd.f32 %v7281, %v7569
    %v7571 = vpop.f32.mrb[0].mxu0
    %v7572 = vpop.f32.mrb[0].mxu0
    %v7573 = vadd.f32 %v7284, %v7572
    %v7574 = vpop.f32.mrb[0].mxu0
    %7575 = vmatprep.mubr.bf16.mxu0 0
    %7576 = vmatmul.mubr.bf16.gmra.mrb[0].mxu0 %v5549
    %v7577 = vpop.f32.mrb[0].mxu0
    %v7578 = vadd.f32 %v7289, %v7577
    %v7579 = vpop.f32.mrb[0].mxu0
    %v7580 = vpop.f32.mrb[0].mxu0
    %v7581 = vadd.f32 %v7292, %v7580
    %v7582 = vpop.f32.mrb[0].mxu0
    %7583 = vmatprep.mubr.bf16.mxu0 0
    %7584 = vmatmul.mubr.bf16.gmra.mrb[0].mxu0 %v5558
    %v7585 = vpop.f32.mrb[0].mxu0
    %v7586 = vadd.f32 %v7297, %v7585
    %v7587 = vpop.f32.mrb[0].mxu0
    %v7588 = vpop.f32.mrb[0].mxu0
    %v7589 = vadd.f32 %v7300, %v7588
    %v7590 = vpop.f32.mrb[0].mxu0
    %7591 = vmatprep.mubr.bf16.mxu0 0
    %7592 = vmatmul.mubr.bf16.gmra.mrb[0].mxu0 %v5567
    %v7593 = vpop.f32.mrb[0].mxu0
    %v7594 = vadd.f32 %v7305, %v7593
    %v7595 = vpop.f32.mrb[0].mxu0
    %v7596 = vpop.f32.mrb[0].mxu0
    %v7597 = vadd.f32 %v7308, %v7596
    %v7598 = vpop.f32.mrb[0].mxu0
    %7599 = vmatprep.mubr.bf16.mxu0 0
    %7600 = vmatmul.mubr.bf16.gmra.mrb[0].mxu0 %v5576
    %v7601 = vpop.f32.mrb[0].mxu0
    %v7602 = vadd.f32 %v7313, %v7601
    %v7603 = vpop.f32.mrb[0].mxu0
    %v7604 = vpop.f32.mrb[0].mxu0
    %v7605 = vadd.f32 %v7316, %v7604
    %v7606 = vpop.f32.mrb[0].mxu0
    %7607 = vmatprep.mubr.bf16.mxu0 0
    %7608 = vmatmul.mubr.bf16.gmra.mrb[0].mxu0 %v5585
    %v7609 = vpop.f32.mrb[0].mxu0
    %v7610 = vadd.f32 %v7321, %v7609
    %v7611 = vpop.f32.mrb[0].mxu0
    %v7612 = vpop.f32.mrb[0].mxu0
    %v7613 = vadd.f32 %v7324, %v7612
    %v7614 = vpop.f32.mrb[0].mxu0
    %7615 = vmatprep.mubr.bf16.mxu0 0
    %7616 = vmatmul.mubr.bf16.gmra.mrb[0].mxu0 %v5594
    %v7617 = vpop.f32.mrb[0].mxu0
    %v7618 = vadd.f32 %v7329, %v7617
    %v7619 = vpop.f32.mrb[0].mxu0
    %v7620 = vpop.f32.mrb[0].mxu0
    %v7621 = vadd.f32 %v7332, %v7620
    %v7622 = vpop.f32.mrb[0].mxu0
    %7623 = vmatprep.mubr.bf16.mxu0 0
    %7624 = vmatmul.mubr.bf16.gmra.mrb[0].mxu0 %v5603
    %v7625 = vpop.f32.mrb[0].mxu0
    %v7626 = vadd.f32 %v7337, %v7625
    %v7627 = vpop.f32.mrb[0].mxu0
    %v7628 = vpop.f32.mrb[0].mxu0
    %v7629 = vadd.f32 %v7340, %v7628
    %v7630 = vpop.f32.mrb[0].mxu0
    %7631 = vmatprep.mubr.bf16.mxu0 0
    %7632 = vmatmul.mubr.bf16.gmra.mrb[0].mxu0 %v5612
    %v7633 = vpop.f32.mrb[0].mxu0
    %v7634 = vadd.f32 %v7345, %v7633
    %v7635 = vpop.f32.mrb[0].mxu0
    %v7636 = vpop.f32.mrb[0].mxu0
    %v7637 = vadd.f32 %v7348, %v7636
    %v7638 = vpop.f32.mrb[0].mxu0
    %7639 = vmatprep.mubr.bf16.mxu0 0
    %7640 = vmatmul.mubr.bf16.gmra.mrb[0].mxu0 %v5621
    %v7641 = vpop.f32.mrb[0].mxu0
    %v7642 = vadd.f32 %v7353, %v7641
    %v7643 = vpop.f32.mrb[0].mxu0
    %v7644 = vpop.f32.mrb[0].mxu0
    %v7645 = vadd.f32 %v7356, %v7644
    %v7646 = vpop.f32.mrb[0].mxu0
    %7647 = vmatprep.mubr.bf16.mxu0 0
    %7648 = vmatmul.mubr.bf16.gmra.mrb[0].mxu0 %v5630
    %v7649 = vpop.f32.mrb[0].mxu0
    %v7650 = vadd.f32 %v7361, %v7649
    %v7651 = vpop.f32.mrb[0].mxu0
    %v7652 = vpop.f32.mrb[0].mxu0
    %v7653 = vadd.f32 %v7364, %v7652
    %v7654 = vpop.f32.mrb[0].mxu0
    %7655 = vmatprep.mubr.bf16.mxu0 0
    %7656 = vmatmul.mubr.bf16.gmra.mrb[0].mxu0 %v5639
    %v7657 = vpop.f32.mrb[0].mxu0
    %v7658 = vadd.f32 %v7369, %v7657
    %v7659 = vpop.f32.mrb[0].mxu0
    %v7660 = vpop.f32.mrb[0].mxu0
    %v7661 = vadd.f32 %v7372, %v7660
    %v7662 = vpop.f32.mrb[0].mxu0
    %7663 = vmatprep.mubr.bf16.mxu0 0
    %7664 = vmatmul.mubr.bf16.gmra.mrb[0].mxu0 %v5648
    %v7665 = vpop.f32.mrb[0].mxu0
    %v7666 = vadd.f32 %v7377, %v7665
    %v7667 = vpop.f32.mrb[0].mxu0
    %v7668 = vpop.f32.mrb[0].mxu0
    %v7669 = vadd.f32 %v7380, %v7668
    %v7670 = vpop.f32.mrb[0].mxu0
    %7671 = vmatprep.mubr.bf16.mxu0 0
    %7672 = vmatmul.mubr.bf16.gmra.mrb[0].mxu0 %v5657
    %v7673 = vpop.f32.mrb[0].mxu0
    %v7674 = vadd.f32 %v7385, %v7673
    %v7675 = vpop.f32.mrb[0].mxu0
    %v7676 = vpop.f32.mrb[0].mxu0
    %v7677 = vadd.f32 %v7388, %v7676
    %v7678 = vpop.f32.mrb[0].mxu0
    %7679 = vmatprep.mubr.bf16.mxu0 0
    %7680 = vmatmul.mubr.bf16.gmra.mrb[0].mxu0 %v5666
    %v7681 = vpop.f32.mrb[0].mxu0
    %v7682 = vadd.f32 %v7393, %v7681
    %v7683 = vpop.f32.mrb[0].mxu0
    %v7684 = vpop.f32.mrb[0].mxu0
    %v7685 = vadd.f32 %v7396, %v7684
    %v7686 = vpop.f32.mrb[0].mxu0
    %7687 = vdwg.mxu0
    %v7688 = vadd.f32 %v7434, %v7437
    %v7689 = vadd.f32 %v7688, %v7442
    %v7690 = vadd.f32 %v7689, %v7445
    %v7691 = vadd.f32 %v7690, %v7450
    %v7692 = vadd.f32 %v7691, %v7453
    %v7693 = vadd.f32 %v7692, %v7458
    %v7694 = vadd.f32 %v7693, %v7461
    %v7695 = vadd.f32 %v7694, %v7466
    %v7696 = vadd.f32 %v7695, %v7469
    %v7697 = vadd.f32 %v7696, %v7474
    %v7698 = vadd.f32 %v7697, %v7477
    %v7699 = vadd.f32 %v7698, %v7482
    %v7700 = vadd.f32 %v7699, %v7485
    %v7701 = vadd.f32 %v7700, %v7490
    %v7702 = vadd.f32 %v7701, %v7493
    %v7703 = vadd.f32 %v7702, %v7498
    %v7704 = vadd.f32 %v7703, %v7501
    %v7705 = vadd.f32 %v7704, %v7506
    %v7706 = vadd.f32 %v7705, %v7509
    %v7707 = vadd.f32 %v7706, %v7514
    %v7708 = vadd.f32 %v7707, %v7517
    %v7709 = vadd.f32 %v7708, %v7522
    %v7710 = vadd.f32 %v7709, %v7525
    %v7711 = vadd.f32 %v7710, %v7530
    %v7712 = vadd.f32 %v7711, %v7533
    %v7713 = vadd.f32 %v7712, %v7538
    %v7714 = vadd.f32 %v7713, %v7541
    %v7715 = vadd.f32 %v7714, %v7546
    %v7716 = vadd.f32 %v7715, %v7549
    %v7717 = vadd.f32 %v7716, %v7554
    %v7718 = vadd.f32 %v7717, %v7557
    %v7719 = vadd.f32 %v7718, %v7562
    %v7720 = vadd.f32 %v7719, %v7565
    %v7721 = vadd.f32 %v7720, %v7570
    %v7722 = vadd.f32 %v7721, %v7573
    %v7723 = vadd.f32 %v7722, %v7578
    %v7724 = vadd.f32 %v7723, %v7581
    %v7725 = vadd.f32 %v7724, %v7586
    %v7726 = vadd.f32 %v7725, %v7589
    %v7727 = vadd.f32 %v7726, %v7594
    %v7728 = vadd.f32 %v7727, %v7597
    %v7729 = vadd.f32 %v7728, %v7602
    %v7730 = vadd.f32 %v7729, %v7605
    %v7731 = vadd.f32 %v7730, %v7610
    %v7732 = vadd.f32 %v7731, %v7613
    %v7733 = vadd.f32 %v7732, %v7618
    %v7734 = vadd.f32 %v7733, %v7621
    %v7735 = vadd.f32 %v7734, %v7626
    %v7736 = vadd.f32 %v7735, %v7629
    %v7737 = vadd.f32 %v7736, %v7634
    %v7738 = vadd.f32 %v7737, %v7637
    %v7739 = vadd.f32 %v7738, %v7642
    %v7740 = vadd.f32 %v7739, %v7645
    %v7741 = vadd.f32 %v7740, %v7650
    %v7742 = vadd.f32 %v7741, %v7653
    %v7743 = vadd.f32 %v7742, %v7658
    %v7744 = vadd.f32 %v7743, %v7661
    %v7745 = vadd.f32 %v7744, %v7666
    %v7746 = vadd.f32 %v7745, %v7669
    %v7747 = vadd.f32 %v7746, %v7674
    %v7748 = vadd.f32 %v7747, %v7677
    %v7749 = vadd.f32 %v7748, %v7682
    %v7750 = vadd.f32 %v7749, %v7685
    %v7751 = vrot.slane %v7750, 4
    %v7752 = vadd.f32 %v7750, %v7751
    %v7753 = vrot.slane %v7752, 2
    %v7754 = vadd.f32 %v7752, %v7753
    %v7755 = vrot.slane %v7754, 1
    %v7756 = vadd.f32 %v7754, %v7755
    %v7757 = vmul.f32 %v7756, 0.001953125
    %v7758 = vmul.f32 %v7434, %v7434
    %v7759 = vmul.f32 %v7437, %v7437
    %v7760 = vmul.f32 %v7442, %v7442
    %v7761 = vmul.f32 %v7445, %v7445
    %v7762 = vmul.f32 %v7450, %v7450
    %v7763 = vmul.f32 %v7453, %v7453
    %v7764 = vmul.f32 %v7458, %v7458
    %v7765 = vmul.f32 %v7461, %v7461
    %v7766 = vmul.f32 %v7466, %v7466
    %v7767 = vmul.f32 %v7469, %v7469
    %v7768 = vmul.f32 %v7474, %v7474
    %v7769 = vmul.f32 %v7477, %v7477
    %v7770 = vmul.f32 %v7482, %v7482
    %v7771 = vmul.f32 %v7485, %v7485
    %v7772 = vmul.f32 %v7490, %v7490
    %v7773 = vmul.f32 %v7493, %v7493
    %v7774 = vmul.f32 %v7498, %v7498
    %v7775 = vmul.f32 %v7501, %v7501
    %v7776 = vmul.f32 %v7506, %v7506
    %v7777 = vmul.f32 %v7509, %v7509
    %v7778 = vmul.f32 %v7514, %v7514
    %v7779 = vmul.f32 %v7517, %v7517
    %v7780 = vmul.f32 %v7522, %v7522
    %v7781 = vmul.f32 %v7525, %v7525
    %v7782 = vmul.f32 %v7530, %v7530
    %v7783 = vmul.f32 %v7533, %v7533
    %v7784 = vmul.f32 %v7538, %v7538
    %v7785 = vmul.f32 %v7541, %v7541
    %v7786 = vmul.f32 %v7546, %v7546
    %v7787 = vmul.f32 %v7549, %v7549
    %v7788 = vmul.f32 %v7554, %v7554
    %v7789 = vmul.f32 %v7557, %v7557
    %v7790 = vmul.f32 %v7562, %v7562
    %v7791 = vmul.f32 %v7565, %v7565
    %v7792 = vmul.f32 %v7570, %v7570
    %v7793 = vmul.f32 %v7573, %v7573
    %v7794 = vmul.f32 %v7578, %v7578
    %v7795 = vmul.f32 %v7581, %v7581
    %v7796 = vmul.f32 %v7586, %v7586
    %v7797 = vmul.f32 %v7589, %v7589
    %v7798 = vmul.f32 %v7594, %v7594
    %v7799 = vmul.f32 %v7597, %v7597
    %v7800 = vmul.f32 %v7602, %v7602
    %v7801 = vmul.f32 %v7605, %v7605
    %v7802 = vmul.f32 %v7610, %v7610
    %v7803 = vmul.f32 %v7613, %v7613
    %v7804 = vmul.f32 %v7618, %v7618
    %v7805 = vmul.f32 %v7621, %v7621
    %v7806 = vmul.f32 %v7626, %v7626
    %v7807 = vmul.f32 %v7629, %v7629
    %v7808 = vmul.f32 %v7634, %v7634
    %v7809 = vmul.f32 %v7637, %v7637
    %v7810 = vmul.f32 %v7642, %v7642
    %v7811 = vmul.f32 %v7645, %v7645
    %v7812 = vmul.f32 %v7650, %v7650
    %v7813 = vmul.f32 %v7653, %v7653
    %v7814 = vmul.f32 %v7658, %v7658
    %v7815 = vmul.f32 %v7661, %v7661
    %v7816 = vmul.f32 %v7666, %v7666
    %v7817 = vmul.f32 %v7669, %v7669
    %v7818 = vmul.f32 %v7674, %v7674
    %v7819 = vmul.f32 %v7677, %v7677
    %v7820 = vmul.f32 %v7682, %v7682
    %v7821 = vmul.f32 %v7685, %v7685
    %v7822 = vadd.f32 %v7758, %v7759
    %v7823 = vadd.f32 %v7822, %v7760
    %v7824 = vadd.f32 %v7823, %v7761
    %v7825 = vadd.f32 %v7824, %v7762
    %v7826 = vadd.f32 %v7825, %v7763
    %v7827 = vadd.f32 %v7826, %v7764
    %v7828 = vadd.f32 %v7827, %v7765
    %v7829 = vadd.f32 %v7828, %v7766
    %v7830 = vadd.f32 %v7829, %v7767
    %v7831 = vadd.f32 %v7830, %v7768
    %v7832 = vadd.f32 %v7831, %v7769
    %v7833 = vadd.f32 %v7832, %v7770
    %v7834 = vadd.f32 %v7833, %v7771
    %v7835 = vadd.f32 %v7834, %v7772
    %v7836 = vadd.f32 %v7835, %v7773
    %v7837 = vadd.f32 %v7836, %v7774
    %v7838 = vadd.f32 %v7837, %v7775
    %v7839 = vadd.f32 %v7838, %v7776
    %v7840 = vadd.f32 %v7839, %v7777
    %v7841 = vadd.f32 %v7840, %v7778
    %v7842 = vadd.f32 %v7841, %v7779
    %v7843 = vadd.f32 %v7842, %v7780
    %v7844 = vadd.f32 %v7843, %v7781
    %v7845 = vadd.f32 %v7844, %v7782
    %v7846 = vadd.f32 %v7845, %v7783
    %v7847 = vadd.f32 %v7846, %v7784
    %v7848 = vadd.f32 %v7847, %v7785
    %v7849 = vadd.f32 %v7848, %v7786
    %v7850 = vadd.f32 %v7849, %v7787
    %v7851 = vadd.f32 %v7850, %v7788
    %v7852 = vadd.f32 %v7851, %v7789
    %v7853 = vadd.f32 %v7852, %v7790
    %v7854 = vadd.f32 %v7853, %v7791
    %v7855 = vadd.f32 %v7854, %v7792
    %v7856 = vadd.f32 %v7855, %v7793
    %v7857 = vadd.f32 %v7856, %v7794
    %v7858 = vadd.f32 %v7857, %v7795
    %v7859 = vadd.f32 %v7858, %v7796
    %v7860 = vadd.f32 %v7859, %v7797
    %v7861 = vadd.f32 %v7860, %v7798
    %v7862 = vadd.f32 %v7861, %v7799
    %v7863 = vadd.f32 %v7862, %v7800
    %v7864 = vadd.f32 %v7863, %v7801
    %v7865 = vadd.f32 %v7864, %v7802
    %v7866 = vadd.f32 %v7865, %v7803
    %v7867 = vadd.f32 %v7866, %v7804
    %v7868 = vadd.f32 %v7867, %v7805
    %v7869 = vadd.f32 %v7868, %v7806
    %v7870 = vadd.f32 %v7869, %v7807
    %v7871 = vadd.f32 %v7870, %v7808
    %v7872 = vadd.f32 %v7871, %v7809
    %v7873 = vadd.f32 %v7872, %v7810
    %v7874 = vadd.f32 %v7873, %v7811
    %v7875 = vadd.f32 %v7874, %v7812
    %v7876 = vadd.f32 %v7875, %v7813
    %v7877 = vadd.f32 %v7876, %v7814
    %v7878 = vadd.f32 %v7877, %v7815
    %v7879 = vadd.f32 %v7878, %v7816
    %v7880 = vadd.f32 %v7879, %v7817
    %v7881 = vadd.f32 %v7880, %v7818
    %v7882 = vadd.f32 %v7881, %v7819
    %v7883 = vadd.f32 %v7882, %v7820
    %v7884 = vadd.f32 %v7883, %v7821
    %v7885 = vrot.slane %v7884, 4
    %v7886 = vadd.f32 %v7884, %v7885
    %v7887 = vrot.slane %v7886, 2
    %v7888 = vadd.f32 %v7886, %v7887
    %v7889 = vrot.slane %v7888, 1
    %v7890 = vadd.f32 %v7888, %v7889
    %v7891 = vmul.f32 %v7890, 0.001953125
    %v7892 = vmul.f32 %v7757, %v7757
    %v7893 = vsub.f32 %v7891, %v7892
    %v7894 = vmax.f32 %v7893, 0.0
    %v7895 = vld [vmem:[%s5] sm:$0x1]
    %v7896 = vadd.f32 %v7894, 1e-05
    %v7897 = vrsqrt.pop %v7896
    %v7898 = vmul.f32 %v7895, %v7897
    %v7899 = vld [vmem:[%s6] sm:$0x1]
    %v7900 = vmul.f32 %v7757, %v7898
    %v7901 = vsub.f32 %v7899, %v7900
    %v7903 = vlaneseq
    %v7904 = vshrl.u32 %v7903, 7
    %v7905 = vsub.s32 0, %v7904
    %v7906 = vrot.slane %v7898, %v7905
    %v7908 = vmul.f32 %v7434, %v7906
    %v7909 = vmul.f32 %v7437, %v7906
    %v7910 = vmul.f32 %v7442, %v7906
    %v7911 = vmul.f32 %v7445, %v7906
    %v7912 = vmul.f32 %v7450, %v7906
    %v7913 = vmul.f32 %v7453, %v7906
    %v7914 = vmul.f32 %v7458, %v7906
    %v7915 = vmul.f32 %v7461, %v7906
    %v7916 = vmul.f32 %v7466, %v7906
    %v7917 = vmul.f32 %v7469, %v7906
    %v7918 = vmul.f32 %v7474, %v7906
    %v7919 = vmul.f32 %v7477, %v7906
    %v7920 = vmul.f32 %v7482, %v7906
    %v7921 = vmul.f32 %v7485, %v7906
    %v7922 = vmul.f32 %v7490, %v7906
    %v7923 = vmul.f32 %v7493, %v7906
    %v7924 = vmul.f32 %v7498, %v7906
    %v7925 = vmul.f32 %v7501, %v7906
    %v7926 = vmul.f32 %v7506, %v7906
    %v7927 = vmul.f32 %v7509, %v7906
    %v7928 = vmul.f32 %v7514, %v7906
    %v7929 = vmul.f32 %v7517, %v7906
    %v7930 = vmul.f32 %v7522, %v7906
    %v7931 = vmul.f32 %v7525, %v7906
    %v7932 = vmul.f32 %v7530, %v7906
    %v7933 = vmul.f32 %v7533, %v7906
    %v7934 = vmul.f32 %v7538, %v7906
    %v7935 = vmul.f32 %v7541, %v7906
    %v7936 = vmul.f32 %v7546, %v7906
    %v7937 = vmul.f32 %v7549, %v7906
    %v7938 = vmul.f32 %v7554, %v7906
    %v7939 = vmul.f32 %v7557, %v7906
    %v7940 = vmul.f32 %v7562, %v7906
    %v7941 = vmul.f32 %v7565, %v7906
    %v7942 = vmul.f32 %v7570, %v7906
    %v7943 = vmul.f32 %v7573, %v7906
    %v7944 = vmul.f32 %v7578, %v7906
    %v7945 = vmul.f32 %v7581, %v7906
    %v7946 = vmul.f32 %v7586, %v7906
    %v7947 = vmul.f32 %v7589, %v7906
    %v7948 = vmul.f32 %v7594, %v7906
    %v7949 = vmul.f32 %v7597, %v7906
    %v7950 = vmul.f32 %v7602, %v7906
    %v7951 = vmul.f32 %v7605, %v7906
    %v7952 = vmul.f32 %v7610, %v7906
    %v7953 = vmul.f32 %v7613, %v7906
    %v7954 = vmul.f32 %v7618, %v7906
    %v7955 = vmul.f32 %v7621, %v7906
    %v7956 = vmul.f32 %v7626, %v7906
    %v7957 = vmul.f32 %v7629, %v7906
    %v7958 = vmul.f32 %v7634, %v7906
    %v7959 = vmul.f32 %v7637, %v7906
    %v7960 = vmul.f32 %v7642, %v7906
    %v7961 = vmul.f32 %v7645, %v7906
    %v7962 = vmul.f32 %v7650, %v7906
    %v7963 = vmul.f32 %v7653, %v7906
    %v7964 = vmul.f32 %v7658, %v7906
    %v7965 = vmul.f32 %v7661, %v7906
    %v7966 = vmul.f32 %v7666, %v7906
    %v7967 = vmul.f32 %v7669, %v7906
    %v7968 = vmul.f32 %v7674, %v7906
    %v7969 = vmul.f32 %v7677, %v7906
    %v7970 = vmul.f32 %v7682, %v7906
    %v7971 = vmul.f32 %v7685, %v7906
    %v7973 = vlaneseq
    %v7974 = vshrl.u32 %v7973, 7
    %v7975 = vsub.s32 0, %v7974
    %v7976 = vrot.slane %v7901, %v7975
    %v7978 = vadd.f32 %v7908, %v7976
    %v7979 = vadd.f32 %v7909, %v7976
    %v7980 = vadd.f32 %v7910, %v7976
    %v7981 = vadd.f32 %v7911, %v7976
    %v7982 = vadd.f32 %v7912, %v7976
    %v7983 = vadd.f32 %v7913, %v7976
    %v7984 = vadd.f32 %v7914, %v7976
    %v7985 = vadd.f32 %v7915, %v7976
    %v7986 = vadd.f32 %v7916, %v7976
    %v7987 = vadd.f32 %v7917, %v7976
    %v7988 = vadd.f32 %v7918, %v7976
    %v7989 = vadd.f32 %v7919, %v7976
    %v7990 = vadd.f32 %v7920, %v7976
    %v7991 = vadd.f32 %v7921, %v7976
    %v7992 = vadd.f32 %v7922, %v7976
    %v7993 = vadd.f32 %v7923, %v7976
    %v7994 = vadd.f32 %v7924, %v7976
    %v7995 = vadd.f32 %v7925, %v7976
    %v7996 = vadd.f32 %v7926, %v7976
    %v7997 = vadd.f32 %v7927, %v7976
    %v7998 = vadd.f32 %v7928, %v7976
    %v7999 = vadd.f32 %v7929, %v7976
    %v8000 = vadd.f32 %v7930, %v7976
    %v8001 = vadd.f32 %v7931, %v7976
    %v8002 = vadd.f32 %v7932, %v7976
    %v8003 = vadd.f32 %v7933, %v7976
    %v8004 = vadd.f32 %v7934, %v7976
    %v8005 = vadd.f32 %v7935, %v7976
    %v8006 = vadd.f32 %v7936, %v7976
    %v8007 = vadd.f32 %v7937, %v7976
    %v8008 = vadd.f32 %v7938, %v7976
    %v8009 = vadd.f32 %v7939, %v7976
    %v8010 = vadd.f32 %v7940, %v7976
    %v8011 = vadd.f32 %v7941, %v7976
    %v8012 = vadd.f32 %v7942, %v7976
    %v8013 = vadd.f32 %v7943, %v7976
    %v8014 = vadd.f32 %v7944, %v7976
    %v8015 = vadd.f32 %v7945, %v7976
    %v8016 = vadd.f32 %v7946, %v7976
    %v8017 = vadd.f32 %v7947, %v7976
    %v8018 = vadd.f32 %v7948, %v7976
    %v8019 = vadd.f32 %v7949, %v7976
    %v8020 = vadd.f32 %v7950, %v7976
    %v8021 = vadd.f32 %v7951, %v7976
    %v8022 = vadd.f32 %v7952, %v7976
    %v8023 = vadd.f32 %v7953, %v7976
    %v8024 = vadd.f32 %v7954, %v7976
    %v8025 = vadd.f32 %v7955, %v7976
    %v8026 = vadd.f32 %v7956, %v7976
    %v8027 = vadd.f32 %v7957, %v7976
    %v8028 = vadd.f32 %v7958, %v7976
    %v8029 = vadd.f32 %v7959, %v7976
    %v8030 = vadd.f32 %v7960, %v7976
    %v8031 = vadd.f32 %v7961, %v7976
    %v8032 = vadd.f32 %v7962, %v7976
    %v8033 = vadd.f32 %v7963, %v7976
    %v8034 = vadd.f32 %v7964, %v7976
    %v8035 = vadd.f32 %v7965, %v7976
    %v8036 = vadd.f32 %v7966, %v7976
    %v8037 = vadd.f32 %v7967, %v7976
    %v8038 = vadd.f32 %v7968, %v7976
    %v8039 = vadd.f32 %v7969, %v7976
    %v8040 = vadd.f32 %v7970, %v7976
    %v8041 = vadd.f32 %v7971, %v7976
    %v8042 = vmax.f32 %v7978, 0.0
    %v8043 = vmax.f32 %v7979, 0.0
    %v8044 = vmax.f32 %v7980, 0.0
    %v8045 = vmax.f32 %v7981, 0.0
    %v8046 = vmax.f32 %v7982, 0.0
    %v8047 = vmax.f32 %v7983, 0.0
    %v8048 = vmax.f32 %v7984, 0.0
    %v8049 = vmax.f32 %v7985, 0.0
    %v8050 = vmax.f32 %v7986, 0.0
    %v8051 = vmax.f32 %v7987, 0.0
    %v8052 = vmax.f32 %v7988, 0.0
    %v8053 = vmax.f32 %v7989, 0.0
    %v8054 = vmax.f32 %v7990, 0.0
    %v8055 = vmax.f32 %v7991, 0.0
    %v8056 = vmax.f32 %v7992, 0.0
    %v8057 = vmax.f32 %v7993, 0.0
    %v8058 = vmax.f32 %v7994, 0.0
    %v8059 = vmax.f32 %v7995, 0.0
    %v8060 = vmax.f32 %v7996, 0.0
    %v8061 = vmax.f32 %v7997, 0.0
    %v8062 = vmax.f32 %v7998, 0.0
    %v8063 = vmax.f32 %v7999, 0.0
    %v8064 = vmax.f32 %v8000, 0.0
    %v8065 = vmax.f32 %v8001, 0.0
    %v8066 = vmax.f32 %v8002, 0.0
    %v8067 = vmax.f32 %v8003, 0.0
    %v8068 = vmax.f32 %v8004, 0.0
    %v8069 = vmax.f32 %v8005, 0.0
    %v8070 = vmax.f32 %v8006, 0.0
    %v8071 = vmax.f32 %v8007, 0.0
    %v8072 = vmax.f32 %v8008, 0.0
    %v8073 = vmax.f32 %v8009, 0.0
    %v8074 = vmax.f32 %v8010, 0.0
    %v8075 = vmax.f32 %v8011, 0.0
    %v8076 = vmax.f32 %v8012, 0.0
    %v8077 = vmax.f32 %v8013, 0.0
    %v8078 = vmax.f32 %v8014, 0.0
    %v8079 = vmax.f32 %v8015, 0.0
    %v8080 = vmax.f32 %v8016, 0.0
    %v8081 = vmax.f32 %v8017, 0.0
    %v8082 = vmax.f32 %v8018, 0.0
    %v8083 = vmax.f32 %v8019, 0.0
    %v8084 = vmax.f32 %v8020, 0.0
    %v8085 = vmax.f32 %v8021, 0.0
    %v8086 = vmax.f32 %v8022, 0.0
    %v8087 = vmax.f32 %v8023, 0.0
    %v8088 = vmax.f32 %v8024, 0.0
    %v8089 = vmax.f32 %v8025, 0.0
    %v8090 = vmax.f32 %v8026, 0.0
    %v8091 = vmax.f32 %v8027, 0.0
    %v8092 = vmax.f32 %v8028, 0.0
    %v8093 = vmax.f32 %v8029, 0.0
    %v8094 = vmax.f32 %v8030, 0.0
    %v8095 = vmax.f32 %v8031, 0.0
    %v8096 = vmax.f32 %v8032, 0.0
    %v8097 = vmax.f32 %v8033, 0.0
    %v8098 = vmax.f32 %v8034, 0.0
    %v8099 = vmax.f32 %v8035, 0.0
    %v8100 = vmax.f32 %v8036, 0.0
    %v8101 = vmax.f32 %v8037, 0.0
    %v8102 = vmax.f32 %v8038, 0.0
    %v8103 = vmax.f32 %v8039, 0.0
    %v8104 = vmax.f32 %v8040, 0.0
    %v8105 = vmax.f32 %v8041, 0.0
    %v8106 = vld [vmem:[#allocation4] sm:$0xff]
    %v8107 = vld [vmem:[#allocation4 + $0x8] sm:$0xff]
    %v8108 = vld [vmem:[#allocation4 + $0x10] sm:$0xff]
    %v8109 = vld [vmem:[#allocation4 + $0x18] sm:$0xff]
    %v8110 = vld [vmem:[#allocation4 + $0x20] sm:$0xff]
    %v8111 = vld [vmem:[#allocation4 + $0x28] sm:$0xff]
    %v8112 = vld [vmem:[#allocation4 + $0x30] sm:$0xff]
    %v8113 = vld [vmem:[#allocation4 + $0x38] sm:$0xff]
    %v8114 = vld [vmem:[#allocation4 + $0x40] sm:$0xff]
    %v8115 = vld [vmem:[#allocation4 + $0x48] sm:$0xff]
    %v8116 = vld [vmem:[#allocation4 + $0x50] sm:$0xff]
    %v8117 = vld [vmem:[#allocation4 + $0x58] sm:$0xff]
    %v8118 = vld [vmem:[#allocation4 + $0x60] sm:$0xff]
    %v8119 = vld [vmem:[#allocation4 + $0x68] sm:$0xff]
    %v8120 = vld [vmem:[#allocation4 + $0x70] sm:$0xff]
    %v8121 = vld [vmem:[#allocation4 + $0x78] sm:$0xff]
    %v8122 = vld [vmem:[#allocation4 + $0x80] sm:$0xff]
    %v8123 = vld [vmem:[#allocation4 + $0x88] sm:$0xff]
    %v8124 = vld [vmem:[#allocation4 + $0x90] sm:$0xff]
    %v8125 = vld [vmem:[#allocation4 + $0x98] sm:$0xff]
    %v8126 = vld [vmem:[#allocation4 + $0xa0] sm:$0xff]
    %v8127 = vld [vmem:[#allocation4 + $0xa8] sm:$0xff]
    %v8128 = vld [vmem:[#allocation4 + $0xb0] sm:$0xff]
    %v8129 = vld [vmem:[#allocation4 + $0xb8] sm:$0xff]
    %v8130 = vld [vmem:[#allocation4 + $0xc0] sm:$0xff]
    %v8131 = vld [vmem:[#allocation4 + $0xc8] sm:$0xff]
    %v8132 = vld [vmem:[#allocation4 + $0xd0] sm:$0xff]
    %v8133 = vld [vmem:[#allocation4 + $0xd8] sm:$0xff]
    %v8134 = vld [vmem:[#allocation4 + $0xe0] sm:$0xff]
    %v8135 = vld [vmem:[#allocation4 + $0xe8] sm:$0xff]
    %v8136 = vld [vmem:[#allocation4 + $0xf0] sm:$0xff]
    %v8137 = vld [vmem:[#allocation4 + $0xf8] sm:$0xff]
    %v8138 = vld [vmem:[#allocation4 + $0x100] sm:$0xff]
    %v8139 = vld [vmem:[#allocation4 + $0x108] sm:$0xff]
    %v8140 = vld [vmem:[#allocation4 + $0x110] sm:$0xff]
    %v8141 = vld [vmem:[#allocation4 + $0x118] sm:$0xff]
    %v8142 = vld [vmem:[#allocation4 + $0x120] sm:$0xff]
    %v8143 = vld [vmem:[#allocation4 + $0x128] sm:$0xff]
    %v8144 = vld [vmem:[#allocation4 + $0x130] sm:$0xff]
    %v8145 = vld [vmem:[#allocation4 + $0x138] sm:$0xff]
    %v8146 = vld [vmem:[#allocation4 + $0x140] sm:$0xff]
    %v8147 = vld [vmem:[#allocation4 + $0x148] sm:$0xff]
    %v8148 = vld [vmem:[#allocation4 + $0x150] sm:$0xff]
    %v8149 = vld [vmem:[#allocation4 + $0x158] sm:$0xff]
    %v8150 = vld [vmem:[#allocation4 + $0x160] sm:$0xff]
    %v8151 = vld [vmem:[#allocation4 + $0x168] sm:$0xff]
    %v8152 = vld [vmem:[#allocation4 + $0x170] sm:$0xff]
    %v8153 = vld [vmem:[#allocation4 + $0x178] sm:$0xff]
    %v8154 = vld [vmem:[#allocation4 + $0x180] sm:$0xff]
    %v8155 = vld [vmem:[#allocation4 + $0x188] sm:$0xff]
    %v8156 = vld [vmem:[#allocation4 + $0x190] sm:$0xff]
    %v8157 = vld [vmem:[#allocation4 + $0x198] sm:$0xff]
    %v8158 = vld [vmem:[#allocation4 + $0x1a0] sm:$0xff]
    %v8159 = vld [vmem:[#allocation4 + $0x1a8] sm:$0xff]
    %v8160 = vld [vmem:[#allocation4 + $0x1b0] sm:$0xff]
    %v8161 = vld [vmem:[#allocation4 + $0x1b8] sm:$0xff]
    %v8162 = vld [vmem:[#allocation4 + $0x1c0] sm:$0xff]
    %v8163 = vld [vmem:[#allocation4 + $0x1c8] sm:$0xff]
    %v8164 = vld [vmem:[#allocation4 + $0x1d0] sm:$0xff]
    %v8165 = vld [vmem:[#allocation4 + $0x1d8] sm:$0xff]
    %v8166 = vld [vmem:[#allocation4 + $0x1e0] sm:$0xff]
    %v8167 = vld [vmem:[#allocation4 + $0x1e8] sm:$0xff]
    %v8168 = vld [vmem:[#allocation4 + $0x1f0] sm:$0xff]
    %v8169 = vld [vmem:[#allocation4 + $0x1f8] sm:$0xff]
    %v8170 = vadd.f32 %v8106, %v8042
    %v8171 = vadd.f32 %v8107, %v8043
    %v8172 = vadd.f32 %v8108, %v8044
    %v8173 = vadd.f32 %v8109, %v8045
    %v8174 = vadd.f32 %v8110, %v8046
    %v8175 = vadd.f32 %v8111, %v8047
    %v8176 = vadd.f32 %v8112, %v8048
    %v8177 = vadd.f32 %v8113, %v8049
    %v8178 = vadd.f32 %v8114, %v8050
    %v8179 = vadd.f32 %v8115, %v8051
    %v8180 = vadd.f32 %v8116, %v8052
    %v8181 = vadd.f32 %v8117, %v8053
    %v8182 = vadd.f32 %v8118, %v8054
    %v8183 = vadd.f32 %v8119, %v8055
    %v8184 = vadd.f32 %v8120, %v8056
    %v8185 = vadd.f32 %v8121, %v8057
    %v8186 = vadd.f32 %v8122, %v8058
    %v8187 = vadd.f32 %v8123, %v8059
    %v8188 = vadd.f32 %v8124, %v8060
    %v8189 = vadd.f32 %v8125, %v8061
    %v8190 = vadd.f32 %v8126, %v8062
    %v8191 = vadd.f32 %v8127, %v8063
    %v8192 = vadd.f32 %v8128, %v8064
    %v8193 = vadd.f32 %v8129, %v8065
    %v8194 = vadd.f32 %v8130, %v8066
    %v8195 = vadd.f32 %v8131, %v8067
    %v8196 = vadd.f32 %v8132, %v8068
    %v8197 = vadd.f32 %v8133, %v8069
    %v8198 = vadd.f32 %v8134, %v8070
    %v8199 = vadd.f32 %v8135, %v8071
    %v8200 = vadd.f32 %v8136, %v8072
    %v8201 = vadd.f32 %v8137, %v8073
    %v8202 = vadd.f32 %v8138, %v8074
    %v8203 = vadd.f32 %v8139, %v8075
    %v8204 = vadd.f32 %v8140, %v8076
    %v8205 = vadd.f32 %v8141, %v8077
    %v8206 = vadd.f32 %v8142, %v8078
    %v8207 = vadd.f32 %v8143, %v8079
    %v8208 = vadd.f32 %v8144, %v8080
    %v8209 = vadd.f32 %v8145, %v8081
    %v8210 = vadd.f32 %v8146, %v8082
    %v8211 = vadd.f32 %v8147, %v8083
    %v8212 = vadd.f32 %v8148, %v8084
    %v8213 = vadd.f32 %v8149, %v8085
    %v8214 = vadd.f32 %v8150, %v8086
    %v8215 = vadd.f32 %v8151, %v8087
    %v8216 = vadd.f32 %v8152, %v8088
    %v8217 = vadd.f32 %v8153, %v8089
    %v8218 = vadd.f32 %v8154, %v8090
    %v8219 = vadd.f32 %v8155, %v8091
    %v8220 = vadd.f32 %v8156, %v8092
    %v8221 = vadd.f32 %v8157, %v8093
    %v8222 = vadd.f32 %v8158, %v8094
    %v8223 = vadd.f32 %v8159, %v8095
    %v8224 = vadd.f32 %v8160, %v8096
    %v8225 = vadd.f32 %v8161, %v8097
    %v8226 = vadd.f32 %v8162, %v8098
    %v8227 = vadd.f32 %v8163, %v8099
    %v8228 = vadd.f32 %v8164, %v8100
    %v8229 = vadd.f32 %v8165, %v8101
    %v8230 = vadd.f32 %v8166, %v8102
    %v8231 = vadd.f32 %v8167, %v8103
    %v8232 = vadd.f32 %v8168, %v8104
    %v8233 = vadd.f32 %v8169, %v8105
    %v8234 = vmax.f32 %v8170, 0.0
    %v8235 = vmax.f32 %v8171, 0.0
    %v8236 = vmax.f32 %v8172, 0.0
    %v8237 = vmax.f32 %v8173, 0.0
    %v8238 = vmax.f32 %v8174, 0.0
    %v8239 = vmax.f32 %v8175, 0.0
    %v8240 = vmax.f32 %v8176, 0.0
    %v8241 = vmax.f32 %v8177, 0.0
    %v8242 = vmax.f32 %v8178, 0.0
    %v8243 = vmax.f32 %v8179, 0.0
    %v8244 = vmax.f32 %v8180, 0.0
    %v8245 = vmax.f32 %v8181, 0.0
    %v8246 = vmax.f32 %v8182, 0.0
    %v8247 = vmax.f32 %v8183, 0.0
    %v8248 = vmax.f32 %v8184, 0.0
    %v8249 = vmax.f32 %v8185, 0.0
    %v8250 = vmax.f32 %v8186, 0.0
    %v8251 = vmax.f32 %v8187, 0.0
    %v8252 = vmax.f32 %v8188, 0.0
    %v8253 = vmax.f32 %v8189, 0.0
    %v8254 = vmax.f32 %v8190, 0.0
    %v8255 = vmax.f32 %v8191, 0.0
    %v8256 = vmax.f32 %v8192, 0.0
    %v8257 = vmax.f32 %v8193, 0.0
    %v8258 = vmax.f32 %v8194, 0.0
    %v8259 = vmax.f32 %v8195, 0.0
    %v8260 = vmax.f32 %v8196, 0.0
    %v8261 = vmax.f32 %v8197, 0.0
    %v8262 = vmax.f32 %v8198, 0.0
    %v8263 = vmax.f32 %v8199, 0.0
    %v8264 = vmax.f32 %v8200, 0.0
    %v8265 = vmax.f32 %v8201, 0.0
    %v8266 = vmax.f32 %v8202, 0.0
    %v8267 = vmax.f32 %v8203, 0.0
    %v8268 = vmax.f32 %v8204, 0.0
    %v8269 = vmax.f32 %v8205, 0.0
    %v8270 = vmax.f32 %v8206, 0.0
    %v8271 = vmax.f32 %v8207, 0.0
    %v8272 = vmax.f32 %v8208, 0.0
    %v8273 = vmax.f32 %v8209, 0.0
    %v8274 = vmax.f32 %v8210, 0.0
    %v8275 = vmax.f32 %v8211, 0.0
    %v8276 = vmax.f32 %v8212, 0.0
    %v8277 = vmax.f32 %v8213, 0.0
    %v8278 = vmax.f32 %v8214, 0.0
    %v8279 = vmax.f32 %v8215, 0.0
    %v8280 = vmax.f32 %v8216, 0.0
    %v8281 = vmax.f32 %v8217, 0.0
    %v8282 = vmax.f32 %v8218, 0.0
    %v8283 = vmax.f32 %v8219, 0.0
    %v8284 = vmax.f32 %v8220, 0.0
    %v8285 = vmax.f32 %v8221, 0.0
    %v8286 = vmax.f32 %v8222, 0.0
    %v8287 = vmax.f32 %v8223, 0.0
    %v8288 = vmax.f32 %v8224, 0.0
    %v8289 = vmax.f32 %v8225, 0.0
    %v8290 = vmax.f32 %v8226, 0.0
    %v8291 = vmax.f32 %v8227, 0.0
    %v8292 = vmax.f32 %v8228, 0.0
    %v8293 = vmax.f32 %v8229, 0.0
    %v8294 = vmax.f32 %v8230, 0.0
    %v8295 = vmax.f32 %v8231, 0.0
    %v8296 = vmax.f32 %v8232, 0.0
    %v8297 = vmax.f32 %v8233, 0.0
    %8298 = vst [vmem:[#allocation10] sm:$0xff] %v8234
    %8299 = vst [vmem:[#allocation10 + $0x8] sm:$0xff] %v8235
    %8300 = vst [vmem:[#allocation10 + $0x10] sm:$0xff] %v8236
    %8301 = vst [vmem:[#allocation10 + $0x18] sm:$0xff] %v8237
    %8302 = vst [vmem:[#allocation10 + $0x20] sm:$0xff] %v8238
    %8303 = vst [vmem:[#allocation10 + $0x28] sm:$0xff] %v8239
    %8304 = vst [vmem:[#allocation10 + $0x30] sm:$0xff] %v8240
    %8305 = vst [vmem:[#allocation10 + $0x38] sm:$0xff] %v8241
    %8306 = vst [vmem:[#allocation10 + $0x40] sm:$0xff] %v8242
    %8307 = vst [vmem:[#allocation10 + $0x48] sm:$0xff] %v8243
    %8308 = vst [vmem:[#allocation10 + $0x50] sm:$0xff] %v8244
    %8309 = vst [vmem:[#allocation10 + $0x58] sm:$0xff] %v8245
    %8310 = vst [vmem:[#allocation10 + $0x60] sm:$0xff] %v8246
    %8311 = vst [vmem:[#allocation10 + $0x68] sm:$0xff] %v8247
    %8312 = vst [vmem:[#allocation10 + $0x70] sm:$0xff] %v8248
    %8313 = vst [vmem:[#allocation10 + $0x78] sm:$0xff] %v8249
    %8314 = vst [vmem:[#allocation10 + $0x80] sm:$0xff] %v8250
    %8315 = vst [vmem:[#allocation10 + $0x88] sm:$0xff] %v8251
    %8316 = vst [vmem:[#allocation10 + $0x90] sm:$0xff] %v8252
    %8317 = vst [vmem:[#allocation10 + $0x98] sm:$0xff] %v8253
    %8318 = vst [vmem:[#allocation10 + $0xa0] sm:$0xff] %v8254
    %8319 = vst [vmem:[#allocation10 + $0xa8] sm:$0xff] %v8255
    %8320 = vst [vmem:[#allocation10 + $0xb0] sm:$0xff] %v8256
    %8321 = vst [vmem:[#allocation10 + $0xb8] sm:$0xff] %v8257
    %8322 = vst [vmem:[#allocation10 + $0xc0] sm:$0xff] %v8258
    %8323 = vst [vmem:[#allocation10 + $0xc8] sm:$0xff] %v8259
    %8324 = vst [vmem:[#allocation10 + $0xd0] sm:$0xff] %v8260
    %8325 = vst [vmem:[#allocation10 + $0xd8] sm:$0xff] %v8261
    %8326 = vst [vmem:[#allocation10 + $0xe0] sm:$0xff] %v8262
    %8327 = vst [vmem:[#allocation10 + $0xe8] sm:$0xff] %v8263
    %8328 = vst [vmem:[#allocation10 + $0xf0] sm:$0xff] %v8264
    %8329 = vst [vmem:[#allocation10 + $0xf8] sm:$0xff] %v8265
    %8330 = vst [vmem:[#allocation10 + $0x100] sm:$0xff] %v8266
    %8331 = vst [vmem:[#allocation10 + $0x108] sm:$0xff] %v8267
    %8332 = vst [vmem:[#allocation10 + $0x110] sm:$0xff] %v8268
    %8333 = vst [vmem:[#allocation10 + $0x118] sm:$0xff] %v8269
    %8334 = vst [vmem:[#allocation10 + $0x120] sm:$0xff] %v8270
    %8335 = vst [vmem:[#allocation10 + $0x128] sm:$0xff] %v8271
    %8336 = vst [vmem:[#allocation10 + $0x130] sm:$0xff] %v8272
    %8337 = vst [vmem:[#allocation10 + $0x138] sm:$0xff] %v8273
    %8338 = vst [vmem:[#allocation10 + $0x140] sm:$0xff] %v8274
    %8339 = vst [vmem:[#allocation10 + $0x148] sm:$0xff] %v8275
    %8340 = vst [vmem:[#allocation10 + $0x150] sm:$0xff] %v8276
    %8341 = vst [vmem:[#allocation10 + $0x158] sm:$0xff] %v8277
    %8342 = vst [vmem:[#allocation10 + $0x160] sm:$0xff] %v8278
    %8343 = vst [vmem:[#allocation10 + $0x168] sm:$0xff] %v8279
    %8344 = vst [vmem:[#allocation10 + $0x170] sm:$0xff] %v8280
    %8345 = vst [vmem:[#allocation10 + $0x178] sm:$0xff] %v8281
    %8346 = vst [vmem:[#allocation10 + $0x180] sm:$0xff] %v8282
    %8347 = vst [vmem:[#allocation10 + $0x188] sm:$0xff] %v8283
    %8348 = vst [vmem:[#allocation10 + $0x190] sm:$0xff] %v8284
    %8349 = vst [vmem:[#allocation10 + $0x198] sm:$0xff] %v8285
    %8350 = vst [vmem:[#allocation10 + $0x1a0] sm:$0xff] %v8286
    %8351 = vst [vmem:[#allocation10 + $0x1a8] sm:$0xff] %v8287
    %8352 = vst [vmem:[#allocation10 + $0x1b0] sm:$0xff] %v8288
    %8353 = vst [vmem:[#allocation10 + $0x1b8] sm:$0xff] %v8289
    %8354 = vst [vmem:[#allocation10 + $0x1c0] sm:$0xff] %v8290
    %8355 = vst [vmem:[#allocation10 + $0x1c8] sm:$0xff] %v8291
    %8356 = vst [vmem:[#allocation10 + $0x1d0] sm:$0xff] %v8292
    %8357 = vst [vmem:[#allocation10 + $0x1d8] sm:$0xff] %v8293
    %8358 = vst [vmem:[#allocation10 + $0x1e0] sm:$0xff] %v8294
    %8359 = vst [vmem:[#allocation10 + $0x1e8] sm:$0xff] %v8295
    %8360 = vst [vmem:[#allocation10 + $0x1f0] sm:$0xff] %v8296
    %8361 = vst [vmem:[#allocation10 + $0x1f8] sm:$0xff] %v8297
    // Predicated region
    $region42: #{tpu_custom_call.1} parent=1 // pred_check
      _
    $region43: #{tpu_custom_call.1} parent=1 // pred_check_branch
      %8363 = sbr.rel (0) target = $region45
    $region44: #{tpu_custom_call.1} parent=1 // pred_region
      %s8365 = ssub.s32 8192, 8192
      %8366 = vsyncadd [#allocation6], %s8365
      %s8367 = sshll.u32 [#allocation10], 4
      %s8368 = int_to_ptr.vmem [resolvable:$true] %s8367
      %8373 = dma.vmem_to_hbm [thread:$0]  %s8368, 8192, %s7, [#allocation6], 128, 128, 8
    $region45: #{tpu_custom_call.1} parent=1 // pred_fallthru
      _
    // Predicated region
    $region46: #{tpu_custom_call.1} parent=1 // pred_check
      _
    $region47: #{tpu_custom_call.1} parent=1 // pred_check_branch
      %8375 = sbr.rel (0) target = $region49
    $region48: #{tpu_custom_call.1} parent=1 // pred_region
      %8376 = dma.done [#allocation6], 8192
    $region49: #{tpu_custom_call.1} parent=1 // pred_fallthru
      _
    %8377 = vsyncpa [#allocation5], 1
    %8378 = vsyncpa [#allocation8], 1
    %8379 = vsyncpa [#allocation6], 1

</llo_original>
